<compile_context>
chip_gen: v7x
topology: tpu7x:2x2x1
jax: 0.10.0
libtpu: 0.0.40
codegen_flags: <defaults>
</compile_context>

<pallas_src>
import math

import jax
import jax.numpy as jnp
from jax import lax
from jax.experimental import pallas as pl
from jax.experimental.pallas import tpu as pltpu

# ----------------------------- config (small) -----------------------------
B = 2            # batch
N_X = 8          # x sequence length
N_FL = 35        # fl sequence length (fixed by fl_pos_embed in the module)
IN_CH = 16       # in_channels
COND = 32        # cond_size
HID = 64         # hidden_size
DEPTH = 2        # depth
HEADS = 4        # num_heads
HEAD_DIM = HID // HEADS
MLP_RATIO = 4.0
MLP_HID = int(HID * MLP_RATIO)
FREQ = 256       # frequency_embedding_size (matches the module)
LN_EPS = 1e-6
L_TOT = N_X + N_FL

_BF16 = jnp.bfloat16

# ---- per-depth weight slab W1: (2*HID, W1_COLS), column offsets (x128) ----
C_ADA = 0                        # adaLN (x || cond), width 12*HID, rows [0,HID)
C_QKV = 12 * HID                 # qkv / qkv_c stacked, width 4*HID (3*HID used)
C_MLP1 = C_QKV + 4 * HID         # mlp fc1 / mlp_c fc1 stacked, width MLP_HID
C_PROJ = C_MLP1 + MLP_HID        # proj / proj_c stacked, width HID
W1_COLS = C_PROJ + HID           # 1344

# ---- per-depth bias slab: (2, BB_COLS); row 0 = x-branch, row 1 = cond ----
C_MLP2B = 1408                   # mlp fc2 biases (128-aligned pad after proj)
BB_COLS = C_MLP2B + HID          # 1472

# ---- embed-stage slabs (all offsets 128-aligned) ----
H64_TW2, H64_FCW2, H64_FADA, H64_FINW = 0, 128, 256, 384
H64_COLS = 512
EB_XEMB, EB_FLEMB, EB_TB1, EB_TB2 = 0, 128, 256, 384
EB_FCB1, EB_FCB2, EB_FADA, EB_FINB = 512, 640, 768, 896
EB_COLS = 1024


# ----------------------------- in-kernel math ------------------------------
def _silu(x):
    return x * jax.nn.sigmoid(x)


def _gelu_tanh(x):
    c = math.sqrt(2.0 / math.pi)
    return 0.5 * x * (1.0 + jnp.tanh(c * (x + 0.044715 * x * x * x)))


def _layernorm(x, eps=LN_EPS):
    mean = jnp.mean(x, axis=-1, keepdims=True)
    var = jnp.mean((x - mean) ** 2, axis=-1, keepdims=True)
    return (x - mean) * lax.rsqrt(var + eps)


def _mm(x, w):
    # bf16 operands at the MXU, f32 accumulation.
    return jnp.dot(x.astype(_BF16), w.astype(_BF16),
                   preferred_element_type=jnp.float32)


# ------------------------------ fused kernel -------------------------------
def _dit_kernel(x_ref, fl_ref, tf_ref, fc_ref,
                xw_ref, wc32_ref, tw1_ref, wh64_ref, eb_ref, flpos_ref,
                bw1_ref, bw2_ref, bb_ref,
                o_ref):
    # ------------------ embedders ------------------
    x = _mm(x_ref[...], xw_ref[...]) + eb_ref[:, EB_XEMB:EB_XEMB + HID]
    cond = (_mm(fl_ref[...], wc32_ref[:, :HID])
            + eb_ref[:, EB_FLEMB:EB_FLEMB + HID] + flpos_ref[...])
    th = _silu(_mm(tf_ref[...], tw1_ref[...]) + eb_ref[:, EB_TB1:EB_TB1 + HID])
    t_emb = (_mm(th, wh64_ref[:, H64_TW2:H64_TW2 + HID])
             + eb_ref[:, EB_TB2:EB_TB2 + HID])
    fh = _silu(_mm(fc_ref[...], wc32_ref[:, HID:2 * HID])
               + eb_ref[:, EB_FCB1:EB_FCB1 + HID])
    fc_emb = (_mm(fh, wh64_ref[:, H64_FCW2:H64_FCW2 + HID])
              + eb_ref[:, EB_FCB2:EB_FCB2 + HID])
    c = t_emb + fc_emb                     # (1, HID)
    c_silu = _silu(c)                      # reused by every adaLN

    # x rows [0, N_X), cond rows [N_X, L_TOT) in one combined slab.
    xc = jnp.concatenate([x, cond], axis=0)                  # (L_TOT, HID)
    row = lax.broadcasted_iota(jnp.int32, (L_TOT, 1), 0)
    is_x = row < N_X

    def rowsel(a, b):                      # per-row branch select
        return jnp.where(is_x, a, b)

    def blockdiag(m):                      # (L, H) -> (L, 2H) block-diag operand
        return jnp.concatenate([jnp.where(is_x, m, 0.0),
                                jnp.where(is_x, 0.0, m)], axis=-1)

    attn_scale = HEAD_DIM ** (-0.5)

    for d in range(DEPTH):                 # DEPTH=2 -> static unroll
        # merged adaLN for both branches: (1, 12*HID)
        mod = (_mm(c_silu, bw1_ref[d, :HID, C_ADA:C_ADA + 12 * HID])
               + bb_ref[d, 0:1, C_ADA:C_ADA + 12 * HID])

        def mx(i):                         # x-branch chunk i (shift/scale/gate...)
            return mod[:, i * HID:(i + 1) * HID]

        def mc(i):                         # cond-branch chunk i
            return mod[:, (6 + i) * HID:(7 + i) * HID]

        # -------- attention branch --------
        xcn = _layernorm(xc)
        m1 = xcn * (1.0 + rowsel(mx(1), mc(1))) + rowsel(mx(0), mc(0))
        qkv = (_mm(blockdiag(m1), bw1_ref[d, :, C_QKV:C_QKV + 4 * HID])
               + rowsel(bb_ref[d, 0:1, C_QKV:C_QKV + 4 * HID],
                        bb_ref[d, 1:2, C_QKV:C_QKV + 4 * HID]))  # (L, 4H), 3H used
        qkv16 = qkv.astype(_BF16)          # cast once for all heads
        heads = []
        for h in range(HEADS):
            lo = h * HEAD_DIM
            qh = qkv16[:, lo:lo + HEAD_DIM]
            kh = qkv16[:, HID + lo:HID + lo + HEAD_DIM]
            vh = qkv16[:, 2 * HID + lo:2 * HID + lo + HEAD_DIM]
            s = lax.dot_general(qh, kh, (((1,), (1,)), ((), ())),
                                preferred_element_type=jnp.float32) * attn_scale
            s = s - jnp.max(s, axis=-1, keepdims=True)
            p = jnp.exp(s)
            p = p * pl.reciprocal(jnp.sum(p, axis=-1, keepdims=True), approx=True)
            heads.append(jnp.dot(p.astype(_BF16), vh,
                                 preferred_element_type=jnp.float32))
        attn = jnp.concatenate(heads, axis=-1)                 # (L, HID)
        attn_out = (_mm(blockdiag(attn), bw1_ref[d, :, C_PROJ:C_PROJ + HID])
                    + rowsel(bb_ref[d, 0:1, C_PROJ:C_PROJ + HID],
                             bb_ref[d, 1:2, C_PROJ:C_PROJ + HID]))
        xc = xc + rowsel(mx(2), mc(2)) * attn_out

        # -------- MLP branch --------
        xcn2 = _layernorm(xc)
        m2 = xcn2 * (1.0 + rowsel(mx(4), mc(4))) + rowsel(mx(3), mc(3))
        h1 = _gelu_tanh(_mm(blockdiag(m2), bw1_ref[d, :, C_MLP1:C_MLP1 + MLP_HID])
                        + rowsel(bb_ref[d, 0:1, C_MLP1:C_MLP1 + MLP_HID],
                                 bb_ref[d, 1:2, C_MLP1:C_MLP1 + MLP_HID]))
        h_op = jnp.concatenate([jnp.where(is_x, h1, 0.0),
                                jnp.where(is_x, 0.0, h1)], axis=-1)  # (L, 2*MLP)
        mlp_out = (_mm(h_op, bw2_ref[d])
                   + rowsel(bb_ref[d, 0:1, C_MLP2B:C_MLP2B + HID],
                            bb_ref[d, 1:2, C_MLP2B:C_MLP2B + HID]))
        xc = xc + rowsel(mx(5), mc(5)) * mlp_out

    # ------------------ final layer ------------------
    fmod = (_mm(c_silu, wh64_ref[:, H64_FADA:H64_FADA + 2 * HID])
            + eb_ref[:, EB_FADA:EB_FADA + 2 * HID])            # (1, 2H)
    xf = _layernorm(xc[:N_X]) * (1.0 + fmod[:, HID:]) + fmod[:, :HID]
    # lane-dense padded output (N_X, 128); channel slice happens outside.
    o_ref[...] = (_mm(xf, wh64_ref[:, H64_FINW:H64_FINW + 2 * HID])
                  + eb_ref[:, EB_FINB:EB_FINB + 2 * HID])


# ----------------------------- kernel wrapper -------------------------------
def _wspec(arr):
    return pl.BlockSpec(arr.shape, lambda b, _nd=arr.ndim: (0,) * _nd)


def timestep_embedding(t, dim, max_period=10000):
    half = dim // 2
    freqs = jnp.exp(
        -math.log(max_period) * jnp.arange(half, dtype=jnp.float32) / half)
    args = t.astype(jnp.float32)[:, None] * freqs[None]
    return jnp.concatenate([jnp.cos(args), jnp.sin(args)], axis=-1)


def dit_forward(packed, x, t, fc, fl):
    t_freq = timestep_embedding(t, FREQ)[:, None, :]     # (B, 1, FREQ)
    fc3 = fc[:, None, :]                                  # (B, 1, COND)
    out_pad = pl.pallas_call(
        _dit_kernel,
        out_shape=jax.ShapeDtypeStruct((B, N_X, 2 * HID), jnp.float32),
        grid=(B,),
        in_specs=[
            pl.BlockSpec((None, N_X, IN_CH), lambda b: (b, 0, 0)),
            pl.BlockSpec((None, N_FL, COND), lambda b: (b, 0, 0)),
            pl.BlockSpec((None, 1, FREQ), lambda b: (b, 0, 0)),
            pl.BlockSpec((None, 1, COND), lambda b: (b, 0, 0)),
        ] + [_wspec(w) for w in packed],
        out_specs=pl.BlockSpec((None, N_X, 2 * HID), lambda b: (b, 0, 0)),
        compiler_params=pltpu.CompilerParams(
            dimension_semantics=("parallel",)),
    )(x, fl, t_freq, fc3, *packed)
    return out_pad[:, :, :IN_CH]


# ----------------------------- parameter init ------------------------------
def init_params(key):
    # Synthetic deterministic init (random instead of the module's zero-init
    # adaLN/final so every code path is exercised).  Matmul weights bf16,
    # biases / pos-embed f32.
    keys = iter(jax.random.split(key, 128))

    def w(shape, std=0.02):
        return (std * jax.random.normal(next(keys), shape,
                                        jnp.float32)).astype(_BF16)

    def b(n, std=0.02):
        return std * jax.random.normal(next(keys), (n,), jnp.float32)

    p = {
        "x_emb_w": w((IN_CH, HID)), "x_emb_b": b(HID),
        "fl_emb_w": w((COND, HID)), "fl_emb_b": b(HID),
        "fl_pos": 0.02 * jax.random.normal(next(keys), (N_FL, HID), jnp.float32),
        "t_w1": w((FREQ, HID)), "t_b1": b(HID),
        "t_w2": w((HID, HID)), "t_b2": b(HID),
        "fc_w1": w((COND, HID)), "fc_b1": b(HID),
        "fc_w2": w((HID, HID)), "fc_b2": b(HID),
        "final_ada_w": w((HID, 2 * HID)), "final_ada_b": b(2 * HID),
        "final_w": w((HID, IN_CH)), "final_b": b(IN_CH),
        "blocks": [],
    }
    for _ in range(DEPTH):
        p["blocks"].append({
            "ada_w": w((HID, 6 * HID)), "ada_b": b(6 * HID),
            "ada_c_w": w((HID, 6 * HID)), "ada_c_b": b(6 * HID),
            "qkv_w": w((HID, 3 * HID)), "qkv_b": b(3 * HID),
            "qkvc_w": w((HID, 3 * HID)), "qkvc_b": b(3 * HID),
            "proj_w": w((HID, HID)), "proj_b": b(HID),
            "projc_w": w((HID, HID)), "projc_b": b(HID),
            "mlp_w1": w((HID, MLP_HID)), "mlp_b1": b(MLP_HID),
            "mlp_w2": w((MLP_HID, HID)), "mlp_b2": b(HID),
            "mlpc_w1": w((HID, MLP_HID)), "mlpc_b1": b(MLP_HID),
            "mlpc_w2": w((MLP_HID, HID)), "mlpc_b2": b(HID),
        })
    return p


def pack_params(p):
    """Pack per-layer weights into the few VMEM slabs the fused kernel reads."""
    f32 = jnp.float32
    # embed-stage weight slabs
    wc32 = jnp.concatenate([p["fl_emb_w"], p["fc_w1"]], axis=1)       # (COND, 2H)
    wh64 = jnp.zeros((HID, H64_COLS), _BF16)
    wh64 = wh64.at[:, H64_TW2:H64_TW2 + HID].set(p["t_w2"])
    wh64 = wh64.at[:, H64_FCW2:H64_FCW2 + HID].set(p["fc_w2"])
    wh64 = wh64.at[:, H64_FADA:H64_FADA + 2 * HID].set(p["final_ada_w"])
    wh64 = wh64.at[:, H64_FINW:H64_FINW + IN_CH].set(p["final_w"])    # lane-padded
    eb = jnp.zeros((1, EB_COLS), f32)
    for off, name in ((EB_XEMB, "x_emb_b"), (EB_FLEMB, "fl_emb_b"),
                      (EB_TB1, "t_b1"), (EB_TB2, "t_b2"),
                      (EB_FCB1, "fc_b1"), (EB_FCB2, "fc_b2"),
                      (EB_FADA, "final_ada_b"), (EB_FINB, "final_b")):
        v = p[name]
        eb = eb.at[0, off:off + v.shape[0]].set(v)

    # per-depth slabs
    bw1, bw2, bb = [], [], []
    for blk in p["blocks"]:
        w1 = jnp.zeros((2 * HID, W1_COLS), _BF16)
        w1 = w1.at[:HID, C_ADA:C_ADA + 12 * HID].set(
            jnp.concatenate([blk["ada_w"], blk["ada_c_w"]], axis=1))
        w1 = w1.at[:HID, C_QKV:C_QKV + 3 * HID].set(blk["qkv_w"])
        w1 = w1.at[HID:, C_QKV:C_QKV + 3 * HID].set(blk["qkvc_w"])
        w1 = w1.at[:HID, C_MLP1:C_MLP1 + MLP_HID].set(blk["mlp_w1"])
        w1 = w1.at[HID:, C_MLP1:C_MLP1 + MLP_HID].set(blk["mlpc_w1"])
        w1 = w1.at[:HID, C_PROJ:C_PROJ + HID].set(blk["proj_w"])
        w1 = w1.at[HID:, C_PROJ:C_PROJ + HID].set(blk["projc_w"])
        bw1.append(w1)
        bw2.append(jnp.concatenate([blk["mlp_w2"], blk["mlpc_w2"]], axis=0))

        bd = jnp.zeros((2, BB_COLS), f32)
        bd = bd.at[0, C_ADA:C_ADA + 6 * HID].set(blk["ada_b"])
        bd = bd.at[0, C_ADA + 6 * HID:C_ADA + 12 * HID].set(blk["ada_c_b"])
        bd = bd.at[0, C_QKV:C_QKV + 3 * HID].set(blk["qkv_b"])
        bd = bd.at[1, C_QKV:C_QKV + 3 * HID].set(blk["qkvc_b"])
        bd = bd.at[0, C_PROJ:C_PROJ + HID].set(blk["proj_b"])
        bd = bd.at[1, C_PROJ:C_PROJ + HID].set(blk["projc_b"])
        bd = bd.at[0, C_MLP1:C_MLP1 + MLP_HID].set(blk["mlp_b1"])
        bd = bd.at[1, C_MLP1:C_MLP1 + MLP_HID].set(blk["mlpc_b1"])
        bd = bd.at[0, C_MLP2B:C_MLP2B + HID].set(blk["mlp_b2"])
        bd = bd.at[1, C_MLP2B:C_MLP2B + HID].set(blk["mlpc_b2"])
        bb.append(bd)

    return [p["x_emb_w"], wc32, p["t_w1"], wh64, eb, p["fl_pos"],
            jnp.stack(bw1), jnp.stack(bw2), jnp.stack(bb)]


# ----------------------------- main ----------------------------------------
if __name__ == "__main__":
    root = jax.random.PRNGKey(0)
    k_p, k_x, k_t, k_fc, k_fl = jax.random.split(root, 5)

    params = init_params(k_p)
    packed = pack_params(params)

    x = jax.random.normal(k_x, (B, N_X, IN_CH), dtype=jnp.float32)
    t = jax.random.uniform(k_t, (B,), minval=0.0, maxval=1000.0,
                           dtype=jnp.float32)
    fc = jax.random.normal(k_fc, (B, COND), dtype=jnp.float32)
    fl = jax.random.normal(k_fl, (B, N_FL, COND), dtype=jnp.float32)

    fwd = jax.jit(dit_forward)
    out = jax.block_until_ready(fwd(packed, x, t, fc, fl))

    assert out.shape == (B, N_X, IN_CH), out.shape
    assert bool(jnp.all(jnp.isfinite(out)))
    print("KERNEL_OK")
</pallas_src>

<mosaic_0001>
module attributes {stable_mosaic.version = 11 : i64} {
  func.func @_dit_kernel(%arg0: i32, %arg1: memref<1x8x16xf32, #tpu.memory_space<vmem>>, %arg2: memref<1x35x32xf32, #tpu.memory_space<vmem>>, %arg3: memref<1x1x256xf32, #tpu.memory_space<vmem>>, %arg4: memref<1x1x32xf32, #tpu.memory_space<vmem>>, %arg5: memref<16x64xbf16, #tpu.memory_space<vmem>>, %arg6: memref<32x128xbf16, #tpu.memory_space<vmem>>, %arg7: memref<256x64xbf16, #tpu.memory_space<vmem>>, %arg8: memref<64x512xbf16, #tpu.memory_space<vmem>>, %arg9: memref<1x1024xf32, #tpu.memory_space<vmem>>, %arg10: memref<35x64xf32, #tpu.memory_space<vmem>>, %arg11: memref<2x128x1344xbf16, #tpu.memory_space<vmem>>, %arg12: memref<2x512x64xbf16, #tpu.memory_space<vmem>>, %arg13: memref<2x2x1472xf32, #tpu.memory_space<vmem>>, %arg14: memref<1x8x128xf32, #tpu.memory_space<vmem>>) attributes {dimension_semantics = [#tpu.dimension_semantics<parallel>], iteration_bounds = array<i64: 2>, scalar_prefetch = 0 : i64, scratch_operands = 0 : i64, tpu.core_type = #tpu.core_type<tc>, window_params = [{transform_indices = @transform_0, window_bounds = array<i64: 1, 8, 16>}, {transform_indices = @transform_1, window_bounds = array<i64: 1, 35, 32>}, {transform_indices = @transform_2, window_bounds = array<i64: 1, 1, 256>}, {transform_indices = @transform_3, window_bounds = array<i64: 1, 1, 32>}, {pipeline_mode = #tpu.pipeline_mode<synchronous>, transform_indices = @transform_4, window_bounds = array<i64: 16, 64>}, {pipeline_mode = #tpu.pipeline_mode<synchronous>, transform_indices = @transform_5, window_bounds = array<i64: 32, 128>}, {pipeline_mode = #tpu.pipeline_mode<synchronous>, transform_indices = @transform_6, window_bounds = array<i64: 256, 64>}, {pipeline_mode = #tpu.pipeline_mode<synchronous>, transform_indices = @transform_7, window_bounds = array<i64: 64, 512>}, {pipeline_mode = #tpu.pipeline_mode<synchronous>, transform_indices = @transform_8, window_bounds = array<i64: 1, 1024>}, {pipeline_mode = #tpu.pipeline_mode<synchronous>, transform_indices = @transform_9, window_bounds = array<i64: 35, 64>}, {pipeline_mode = #tpu.pipeline_mode<synchronous>, transform_indices = @transform_10, window_bounds = array<i64: 2, 128, 1344>}, {pipeline_mode = #tpu.pipeline_mode<synchronous>, transform_indices = @transform_11, window_bounds = array<i64: 2, 512, 64>}, {pipeline_mode = #tpu.pipeline_mode<synchronous>, transform_indices = @transform_12, window_bounds = array<i64: 2, 2, 1472>}, {transform_indices = @transform_13, window_bounds = array<i64: 1, 8, 128>}]} {
    %c0 = arith.constant 0 : index
    %c0_0 = arith.constant 0 : index
    %c0_1 = arith.constant 0 : index
    %0 = vector.load %arg1[%c0, %c0_0, %c0_1] : memref<1x8x16xf32, #tpu.memory_space<vmem>>, vector<1x8x16xf32>
    %1 = vector.shape_cast %0 : vector<1x8x16xf32> to vector<8x16xf32>
    %c0_2 = arith.constant 0 : index
    %c0_3 = arith.constant 0 : index
    %2 = vector.load %arg5[%c0_2, %c0_3] : memref<16x64xbf16, #tpu.memory_space<vmem>>, vector<16x64xbf16>
    %3 = arith.truncf %1 : vector<8x16xf32> to vector<8x16xbf16>
    %cst = arith.constant dense<0.000000e+00> : vector<8x64xf32>
    %4 = tpu.matmul %3, %2, %cst {dimension_numbers = #tpu.dot_dimension_numbers<[1], [0], [0], [1], [0, 0, 1, 1], [], []>} : vector<8x16xbf16>, vector<16x64xbf16>, vector<8x64xf32> -> vector<8x64xf32>
    %c0_4 = arith.constant 0 : index
    %c0_5 = arith.constant 0 : index
    %5 = vector.load %arg9[%c0_4, %c0_5] : memref<1x1024xf32, #tpu.memory_space<vmem>>, vector<1x64xf32>
    %6 = vector.broadcast %5 : vector<1x64xf32> to vector<8x64xf32>
    %7 = arith.addf %4, %6 : vector<8x64xf32>
    %c0_6 = arith.constant 0 : index
    %c0_7 = arith.constant 0 : index
    %c0_8 = arith.constant 0 : index
    %8 = vector.load %arg2[%c0_6, %c0_7, %c0_8] : memref<1x35x32xf32, #tpu.memory_space<vmem>>, vector<1x35x32xf32>
    %9 = vector.shape_cast %8 : vector<1x35x32xf32> to vector<35x32xf32>
    %c0_9 = arith.constant 0 : index
    %c0_10 = arith.constant 0 : index
    %10 = vector.load %arg6[%c0_9, %c0_10] : memref<32x128xbf16, #tpu.memory_space<vmem>>, vector<32x64xbf16>
    %11 = arith.truncf %9 : vector<35x32xf32> to vector<35x32xbf16>
    %cst_11 = arith.constant dense<0.000000e+00> : vector<35x64xf32>
    %12 = tpu.matmul %11, %10, %cst_11 {dimension_numbers = #tpu.dot_dimension_numbers<[1], [0], [0], [1], [0, 0, 1, 1], [], []>} : vector<35x32xbf16>, vector<32x64xbf16>, vector<35x64xf32> -> vector<35x64xf32>
    %c0_12 = arith.constant 0 : index
    %c128 = arith.constant 128 : index
    %13 = vector.load %arg9[%c0_12, %c128] : memref<1x1024xf32, #tpu.memory_space<vmem>>, vector<1x64xf32>
    %14 = vector.broadcast %13 : vector<1x64xf32> to vector<35x64xf32>
    %15 = arith.addf %12, %14 : vector<35x64xf32>
    %c0_13 = arith.constant 0 : index
    %c0_14 = arith.constant 0 : index
    %16 = vector.load %arg10[%c0_13, %c0_14] : memref<35x64xf32, #tpu.memory_space<vmem>>, vector<35x64xf32>
    %17 = arith.addf %15, %16 : vector<35x64xf32>
    %c0_15 = arith.constant 0 : index
    %c0_16 = arith.constant 0 : index
    %c0_17 = arith.constant 0 : index
    %18 = vector.load %arg3[%c0_15, %c0_16, %c0_17] : memref<1x1x256xf32, #tpu.memory_space<vmem>>, vector<1x1x256xf32>
    %19 = vector.shape_cast %18 : vector<1x1x256xf32> to vector<1x256xf32>
    %c0_18 = arith.constant 0 : index
    %c0_19 = arith.constant 0 : index
    %20 = vector.load %arg7[%c0_18, %c0_19] : memref<256x64xbf16, #tpu.memory_space<vmem>>, vector<256x64xbf16>
    %21 = arith.truncf %19 : vector<1x256xf32> to vector<1x256xbf16>
    %cst_20 = arith.constant dense<0.000000e+00> : vector<1x64xf32>
    %22 = tpu.matmul %21, %20, %cst_20 {dimension_numbers = #tpu.dot_dimension_numbers<[1], [0], [0], [1], [0, 0, 1, 1], [], []>} : vector<1x256xbf16>, vector<256x64xbf16>, vector<1x64xf32> -> vector<1x64xf32>
    %c0_21 = arith.constant 0 : index
    %c256 = arith.constant 256 : index
    %23 = vector.load %arg9[%c0_21, %c256] : memref<1x1024xf32, #tpu.memory_space<vmem>>, vector<1x64xf32>
    %24 = arith.addf %22, %23 : vector<1x64xf32>
    %25 = arith.negf %24 : vector<1x64xf32>
    %26 = math.exp %25 : vector<1x64xf32>
    %cst_22 = arith.constant 1.000000e+00 : f32
    %27 = vector.broadcast %cst_22 : f32 to vector<1x64xf32>
    %28 = arith.addf %27, %26 : vector<1x64xf32>
    %29 = arith.divf %27, %28 : vector<1x64xf32>
    %30 = arith.mulf %24, %29 : vector<1x64xf32>
    %c0_23 = arith.constant 0 : index
    %c0_24 = arith.constant 0 : index
    %31 = vector.load %arg8[%c0_23, %c0_24] : memref<64x512xbf16, #tpu.memory_space<vmem>>, vector<64x64xbf16>
    %32 = arith.truncf %30 : vector<1x64xf32> to vector<1x64xbf16>
    %cst_25 = arith.constant dense<0.000000e+00> : vector<1x64xf32>
    %33 = tpu.matmul %32, %31, %cst_25 {dimension_numbers = #tpu.dot_dimension_numbers<[1], [0], [0], [1], [0, 0, 1, 1], [], []>} : vector<1x64xbf16>, vector<64x64xbf16>, vector<1x64xf32> -> vector<1x64xf32>
    %c0_26 = arith.constant 0 : index
    %c384 = arith.constant 384 : index
    %34 = vector.load %arg9[%c0_26, %c384] : memref<1x1024xf32, #tpu.memory_space<vmem>>, vector<1x64xf32>
    %35 = arith.addf %33, %34 : vector<1x64xf32>
    %c0_27 = arith.constant 0 : index
    %c0_28 = arith.constant 0 : index
    %c0_29 = arith.constant 0 : index
    %36 = vector.load %arg4[%c0_27, %c0_28, %c0_29] : memref<1x1x32xf32, #tpu.memory_space<vmem>>, vector<1x1x32xf32>
    %37 = vector.shape_cast %36 : vector<1x1x32xf32> to vector<1x32xf32>
    %c0_30 = arith.constant 0 : index
    %c64 = arith.constant 64 : index
    %38 = vector.load %arg6[%c0_30, %c64] : memref<32x128xbf16, #tpu.memory_space<vmem>>, vector<32x64xbf16>
    %39 = arith.truncf %37 : vector<1x32xf32> to vector<1x32xbf16>
    %cst_31 = arith.constant dense<0.000000e+00> : vector<1x64xf32>
    %40 = tpu.matmul %39, %38, %cst_31 {dimension_numbers = #tpu.dot_dimension_numbers<[1], [0], [0], [1], [0, 0, 1, 1], [], []>} : vector<1x32xbf16>, vector<32x64xbf16>, vector<1x64xf32> -> vector<1x64xf32>
    %c0_32 = arith.constant 0 : index
    %c512 = arith.constant 512 : index
    %41 = vector.load %arg9[%c0_32, %c512] : memref<1x1024xf32, #tpu.memory_space<vmem>>, vector<1x64xf32>
    %42 = arith.addf %40, %41 : vector<1x64xf32>
    %43 = arith.negf %42 : vector<1x64xf32>
    %44 = math.exp %43 : vector<1x64xf32>
    %cst_33 = arith.constant 1.000000e+00 : f32
    %45 = vector.broadcast %cst_33 : f32 to vector<1x64xf32>
    %46 = arith.addf %45, %44 : vector<1x64xf32>
    %47 = arith.divf %45, %46 : vector<1x64xf32>
    %48 = arith.mulf %42, %47 : vector<1x64xf32>
    %c0_34 = arith.constant 0 : index
    %c128_35 = arith.constant 128 : index
    %49 = vector.load %arg8[%c0_34, %c128_35] : memref<64x512xbf16, #tpu.memory_space<vmem>>, vector<64x64xbf16>
    %50 = arith.truncf %48 : vector<1x64xf32> to vector<1x64xbf16>
    %cst_36 = arith.constant dense<0.000000e+00> : vector<1x64xf32>
    %51 = tpu.matmul %50, %49, %cst_36 {dimension_numbers = #tpu.dot_dimension_numbers<[1], [0], [0], [1], [0, 0, 1, 1], [], []>} : vector<1x64xbf16>, vector<64x64xbf16>, vector<1x64xf32> -> vector<1x64xf32>
    %c0_37 = arith.constant 0 : index
    %c640 = arith.constant 640 : index
    %52 = vector.load %arg9[%c0_37, %c640] : memref<1x1024xf32, #tpu.memory_space<vmem>>, vector<1x64xf32>
    %53 = arith.addf %51, %52 : vector<1x64xf32>
    %54 = arith.addf %35, %53 : vector<1x64xf32>
    %55 = arith.negf %54 : vector<1x64xf32>
    %56 = math.exp %55 : vector<1x64xf32>
    %cst_38 = arith.constant 1.000000e+00 : f32
    %57 = vector.broadcast %cst_38 : f32 to vector<1x64xf32>
    %58 = arith.addf %57, %56 : vector<1x64xf32>
    %59 = arith.divf %57, %58 : vector<1x64xf32>
    %60 = arith.mulf %54, %59 : vector<1x64xf32>
    %61 = tpu.concatenate %7, %17 in 0 : vector<8x64xf32>, vector<35x64xf32> -> vector<43x64xf32>
    %62 = tpu.iota {dimensions = array<i32: 0>} : vector<43x1xi32>
    %c8_i32 = arith.constant 8 : i32
    %63 = vector.broadcast %c8_i32 : i32 to vector<43x1xi32>
    %64 = arith.cmpi slt, %62, %63 : vector<43x1xi32>
    %c0_39 = arith.constant 0 : index
    %c0_40 = arith.constant 0 : index
    %c0_41 = arith.constant 0 : index
    %65 = vector.load %arg11[%c0_39, %c0_40, %c0_41] : memref<2x128x1344xbf16, #tpu.memory_space<vmem>>, vector<1x64x768xbf16>
    %66 = vector.shape_cast %65 : vector<1x64x768xbf16> to vector<64x768xbf16>
    %67 = arith.truncf %60 : vector<1x64xf32> to vector<1x64xbf16>
    %cst_42 = arith.constant dense<0.000000e+00> : vector<1x768xf32>
    %68 = tpu.matmul %67, %66, %cst_42 {dimension_numbers = #tpu.dot_dimension_numbers<[1], [0], [0], [1], [0, 0, 1, 1], [], []>} : vector<1x64xbf16>, vector<64x768xbf16>, vector<1x768xf32> -> vector<1x768xf32>
    %c0_43 = arith.constant 0 : index
    %c0_44 = arith.constant 0 : index
    %c0_45 = arith.constant 0 : index
    %69 = vector.load %arg13[%c0_43, %c0_44, %c0_45] : memref<2x2x1472xf32, #tpu.memory_space<vmem>>, vector<1x1x768xf32>
    %70 = vector.shape_cast %69 : vector<1x1x768xf32> to vector<1x768xf32>
    %71 = arith.addf %68, %70 : vector<1x768xf32>
    %cst_46 = arith.constant dense<0.000000e+00> : vector<43xf32>
    %72 = vector.multi_reduction <add>, %61, %cst_46 [1] : vector<43x64xf32> to vector<43xf32>
    %73 = vector.shape_cast %72 : vector<43xf32> to vector<43x1xf32>
    %cst_47 = arith.constant 6.400000e+01 : f32
    %74 = vector.broadcast %cst_47 : f32 to vector<43x1xf32>
    %75 = arith.divf %73, %74 : vector<43x1xf32>
    %76 = vector.broadcast %75 : vector<43x1xf32> to vector<43x64xf32>
    %77 = arith.subf %61, %76 : vector<43x64xf32>
    %78 = arith.mulf %77, %77 : vector<43x64xf32>
    %cst_48 = arith.constant dense<0.000000e+00> : vector<43xf32>
    %79 = vector.multi_reduction <add>, %78, %cst_48 [1] : vector<43x64xf32> to vector<43xf32>
    %80 = vector.shape_cast %79 : vector<43xf32> to vector<43x1xf32>
    %cst_49 = arith.constant 6.400000e+01 : f32
    %81 = vector.broadcast %cst_49 : f32 to vector<43x1xf32>
    %82 = arith.divf %80, %81 : vector<43x1xf32>
    %83 = vector.broadcast %75 : vector<43x1xf32> to vector<43x64xf32>
    %84 = arith.subf %61, %83 : vector<43x64xf32>
    %cst_50 = arith.constant 9.99999997E-7 : f32
    %85 = vector.broadcast %cst_50 : f32 to vector<43x1xf32>
    %86 = arith.addf %82, %85 : vector<43x1xf32>
    %87 = math.rsqrt %86 : vector<43x1xf32>
    %88 = vector.broadcast %87 : vector<43x1xf32> to vector<43x64xf32>
    %89 = arith.mulf %84, %88 : vector<43x64xf32>
    %90 = vector.extract_strided_slice %71 {offsets = [0, 64], sizes = [1, 64], strides = [1, 1]} : vector<1x768xf32> to vector<1x64xf32>
    %91 = vector.extract_strided_slice %71 {offsets = [0, 448], sizes = [1, 64], strides = [1, 1]} : vector<1x768xf32> to vector<1x64xf32>
    %92 = vector.shape_cast %64 : vector<43x1xi1> to vector<43x1xi1>
    %93 = vector.broadcast %92 : vector<43x1xi1> to vector<43x64xi1>
    %94 = vector.shape_cast %90 : vector<1x64xf32> to vector<1x64xf32>
    %95 = vector.broadcast %94 : vector<1x64xf32> to vector<43x64xf32>
    %96 = vector.shape_cast %91 : vector<1x64xf32> to vector<1x64xf32>
    %97 = vector.broadcast %96 : vector<1x64xf32> to vector<43x64xf32>
    %98 = arith.select %93, %95, %97 : vector<43x64xi1>, vector<43x64xf32>
    %cst_51 = arith.constant 1.000000e+00 : f32
    %99 = vector.broadcast %cst_51 : f32 to vector<43x64xf32>
    %100 = arith.addf %99, %98 : vector<43x64xf32>
    %101 = arith.mulf %89, %100 : vector<43x64xf32>
    %102 = vector.extract_strided_slice %71 {offsets = [0, 0], sizes = [1, 64], strides = [1, 1]} : vector<1x768xf32> to vector<1x64xf32>
    %103 = vector.extract_strided_slice %71 {offsets = [0, 384], sizes = [1, 64], strides = [1, 1]} : vector<1x768xf32> to vector<1x64xf32>
    %104 = vector.shape_cast %64 : vector<43x1xi1> to vector<43x1xi1>
    %105 = vector.broadcast %104 : vector<43x1xi1> to vector<43x64xi1>
    %106 = vector.shape_cast %102 : vector<1x64xf32> to vector<1x64xf32>
    %107 = vector.broadcast %106 : vector<1x64xf32> to vector<43x64xf32>
    %108 = vector.shape_cast %103 : vector<1x64xf32> to vector<1x64xf32>
    %109 = vector.broadcast %108 : vector<1x64xf32> to vector<43x64xf32>
    %110 = arith.select %105, %107, %109 : vector<43x64xi1>, vector<43x64xf32>
    %111 = arith.addf %101, %110 : vector<43x64xf32>
    %cst_52 = arith.constant 0.000000e+00 : f32
    %112 = vector.shape_cast %64 : vector<43x1xi1> to vector<43x1xi1>
    %113 = vector.broadcast %112 : vector<43x1xi1> to vector<43x64xi1>
    %114 = vector.broadcast %cst_52 : f32 to vector<43x64xf32>
    %115 = arith.select %113, %111, %114 : vector<43x64xi1>, vector<43x64xf32>
    %cst_53 = arith.constant 0.000000e+00 : f32
    %116 = vector.shape_cast %64 : vector<43x1xi1> to vector<43x1xi1>
    %117 = vector.broadcast %116 : vector<43x1xi1> to vector<43x64xi1>
    %118 = vector.broadcast %cst_53 : f32 to vector<43x64xf32>
    %119 = arith.select %117, %118, %111 : vector<43x64xi1>, vector<43x64xf32>
    %120 = tpu.concatenate %115, %119 in 1 : vector<43x64xf32>, vector<43x64xf32> -> vector<43x128xf32>
    %c0_54 = arith.constant 0 : index
    %c0_55 = arith.constant 0 : index
    %c768 = arith.constant 768 : index
    %121 = vector.load %arg11[%c0_54, %c0_55, %c768] : memref<2x128x1344xbf16, #tpu.memory_space<vmem>>, vector<1x128x256xbf16>
    %122 = vector.shape_cast %121 : vector<1x128x256xbf16> to vector<128x256xbf16>
    %123 = arith.truncf %120 : vector<43x128xf32> to vector<43x128xbf16>
    %cst_56 = arith.constant dense<0.000000e+00> : vector<43x256xf32>
    %124 = tpu.matmul %123, %122, %cst_56 {dimension_numbers = #tpu.dot_dimension_numbers<[1], [0], [0], [1], [0, 0, 1, 1], [], []>} : vector<43x128xbf16>, vector<128x256xbf16>, vector<43x256xf32> -> vector<43x256xf32>
    %c0_57 = arith.constant 0 : index
    %c0_58 = arith.constant 0 : index
    %c768_59 = arith.constant 768 : index
    %125 = vector.load %arg13[%c0_57, %c0_58, %c768_59] : memref<2x2x1472xf32, #tpu.memory_space<vmem>>, vector<1x1x256xf32>
    %126 = vector.shape_cast %125 : vector<1x1x256xf32> to vector<1x256xf32>
    %c0_60 = arith.constant 0 : index
    %c1 = arith.constant 1 : index
    %c768_61 = arith.constant 768 : index
    %127 = vector.load %arg13[%c0_60, %c1, %c768_61] : memref<2x2x1472xf32, #tpu.memory_space<vmem>>, vector<1x1x256xf32>
    %128 = vector.shape_cast %127 : vector<1x1x256xf32> to vector<1x256xf32>
    %129 = vector.shape_cast %64 : vector<43x1xi1> to vector<43x1xi1>
    %130 = vector.broadcast %129 : vector<43x1xi1> to vector<43x256xi1>
    %131 = vector.shape_cast %126 : vector<1x256xf32> to vector<1x256xf32>
    %132 = vector.broadcast %131 : vector<1x256xf32> to vector<43x256xf32>
    %133 = vector.shape_cast %128 : vector<1x256xf32> to vector<1x256xf32>
    %134 = vector.broadcast %133 : vector<1x256xf32> to vector<43x256xf32>
    %135 = arith.select %130, %132, %134 : vector<43x256xi1>, vector<43x256xf32>
    %136 = arith.addf %124, %135 : vector<43x256xf32>
    %137 = arith.truncf %136 : vector<43x256xf32> to vector<43x256xbf16>
    %138 = vector.extract_strided_slice %137 {offsets = [0, 0], sizes = [43, 16], strides = [1, 1]} : vector<43x256xbf16> to vector<43x16xbf16>
    %139 = vector.extract_strided_slice %137 {offsets = [0, 64], sizes = [43, 16], strides = [1, 1]} : vector<43x256xbf16> to vector<43x16xbf16>
    %140 = vector.extract_strided_slice %137 {offsets = [0, 128], sizes = [43, 16], strides = [1, 1]} : vector<43x256xbf16> to vector<43x16xbf16>
    %cst_62 = arith.constant dense<0.000000e+00> : vector<43x43xf32>
    %141 = tpu.matmul %138, %139, %cst_62 {dimension_numbers = #tpu.dot_dimension_numbers<[1], [1], [0], [0], [0, 0, 1, 0], [], []>} : vector<43x16xbf16>, vector<43x16xbf16>, vector<43x43xf32> -> vector<43x43xf32>
    %cst_63 = arith.constant 2.500000e-01 : f32
    %142 = vector.broadcast %cst_63 : f32 to vector<43x43xf32>
    %143 = arith.mulf %141, %142 : vector<43x43xf32>
    %cst_64 = arith.constant dense<0xFF800000> : vector<43xf32>
    %144 = vector.multi_reduction <maximumf>, %143, %cst_64 [1] : vector<43x43xf32> to vector<43xf32>
    %145 = vector.shape_cast %144 : vector<43xf32> to vector<43x1xf32>
    %146 = vector.broadcast %145 : vector<43x1xf32> to vector<43x43xf32>
    %147 = arith.subf %143, %146 : vector<43x43xf32>
    %148 = math.exp %147 : vector<43x43xf32>
    %cst_65 = arith.constant dense<0.000000e+00> : vector<43xf32>
    %149 = vector.multi_reduction <add>, %148, %cst_65 [1] : vector<43x43xf32> to vector<43xf32>
    %150 = vector.shape_cast %149 : vector<43xf32> to vector<43x1xf32>
    %151 = tpu.reciprocal %150 {approx = true} : vector<43x1xf32> -> vector<43x1xf32>
    %152 = vector.broadcast %151 : vector<43x1xf32> to vector<43x43xf32>
    %153 = arith.mulf %148, %152 : vector<43x43xf32>
    %154 = arith.truncf %153 : vector<43x43xf32> to vector<43x43xbf16>
    %cst_66 = arith.constant dense<0.000000e+00> : vector<43x16xf32>
    %155 = tpu.matmul %154, %140, %cst_66 {dimension_numbers = #tpu.dot_dimension_numbers<[1], [0], [0], [1], [0, 0, 1, 1], [], []>} : vector<43x43xbf16>, vector<43x16xbf16>, vector<43x16xf32> -> vector<43x16xf32>
    %156 = vector.extract_strided_slice %137 {offsets = [0, 16], sizes = [43, 16], strides = [1, 1]} : vector<43x256xbf16> to vector<43x16xbf16>
    %157 = vector.extract_strided_slice %137 {offsets = [0, 80], sizes = [43, 16], strides = [1, 1]} : vector<43x256xbf16> to vector<43x16xbf16>
    %158 = vector.extract_strided_slice %137 {offsets = [0, 144], sizes = [43, 16], strides = [1, 1]} : vector<43x256xbf16> to vector<43x16xbf16>
    %cst_67 = arith.constant dense<0.000000e+00> : vector<43x43xf32>
    %159 = tpu.matmul %156, %157, %cst_67 {dimension_numbers = #tpu.dot_dimension_numbers<[1], [1], [0], [0], [0, 0, 1, 0], [], []>} : vector<43x16xbf16>, vector<43x16xbf16>, vector<43x43xf32> -> vector<43x43xf32>
    %cst_68 = arith.constant 2.500000e-01 : f32
    %160 = vector.broadcast %cst_68 : f32 to vector<43x43xf32>
    %161 = arith.mulf %159, %160 : vector<43x43xf32>
    %cst_69 = arith.constant dense<0xFF800000> : vector<43xf32>
    %162 = vector.multi_reduction <maximumf>, %161, %cst_69 [1] : vector<43x43xf32> to vector<43xf32>
    %163 = vector.shape_cast %162 : vector<43xf32> to vector<43x1xf32>
    %164 = vector.broadcast %163 : vector<43x1xf32> to vector<43x43xf32>
    %165 = arith.subf %161, %164 : vector<43x43xf32>
    %166 = math.exp %165 : vector<43x43xf32>
    %cst_70 = arith.constant dense<0.000000e+00> : vector<43xf32>
    %167 = vector.multi_reduction <add>, %166, %cst_70 [1] : vector<43x43xf32> to vector<43xf32>
    %168 = vector.shape_cast %167 : vector<43xf32> to vector<43x1xf32>
    %169 = tpu.reciprocal %168 {approx = true} : vector<43x1xf32> -> vector<43x1xf32>
    %170 = vector.broadcast %169 : vector<43x1xf32> to vector<43x43xf32>
    %171 = arith.mulf %166, %170 : vector<43x43xf32>
    %172 = arith.truncf %171 : vector<43x43xf32> to vector<43x43xbf16>
    %cst_71 = arith.constant dense<0.000000e+00> : vector<43x16xf32>
    %173 = tpu.matmul %172, %158, %cst_71 {dimension_numbers = #tpu.dot_dimension_numbers<[1], [0], [0], [1], [0, 0, 1, 1], [], []>} : vector<43x43xbf16>, vector<43x16xbf16>, vector<43x16xf32> -> vector<43x16xf32>
    %174 = vector.extract_strided_slice %137 {offsets = [0, 32], sizes = [43, 16], strides = [1, 1]} : vector<43x256xbf16> to vector<43x16xbf16>
    %175 = vector.extract_strided_slice %137 {offsets = [0, 96], sizes = [43, 16], strides = [1, 1]} : vector<43x256xbf16> to vector<43x16xbf16>
    %176 = vector.extract_strided_slice %137 {offsets = [0, 160], sizes = [43, 16], strides = [1, 1]} : vector<43x256xbf16> to vector<43x16xbf16>
    %cst_72 = arith.constant dense<0.000000e+00> : vector<43x43xf32>
    %177 = tpu.matmul %174, %175, %cst_72 {dimension_numbers = #tpu.dot_dimension_numbers<[1], [1], [0], [0], [0, 0, 1, 0], [], []>} : vector<43x16xbf16>, vector<43x16xbf16>, vector<43x43xf32> -> vector<43x43xf32>
    %cst_73 = arith.constant 2.500000e-01 : f32
    %178 = vector.broadcast %cst_73 : f32 to vector<43x43xf32>
    %179 = arith.mulf %177, %178 : vector<43x43xf32>
    %cst_74 = arith.constant dense<0xFF800000> : vector<43xf32>
    %180 = vector.multi_reduction <maximumf>, %179, %cst_74 [1] : vector<43x43xf32> to vector<43xf32>
    %181 = vector.shape_cast %180 : vector<43xf32> to vector<43x1xf32>
    %182 = vector.broadcast %181 : vector<43x1xf32> to vector<43x43xf32>
    %183 = arith.subf %179, %182 : vector<43x43xf32>
    %184 = math.exp %183 : vector<43x43xf32>
    %cst_75 = arith.constant dense<0.000000e+00> : vector<43xf32>
    %185 = vector.multi_reduction <add>, %184, %cst_75 [1] : vector<43x43xf32> to vector<43xf32>
    %186 = vector.shape_cast %185 : vector<43xf32> to vector<43x1xf32>
    %187 = tpu.reciprocal %186 {approx = true} : vector<43x1xf32> -> vector<43x1xf32>
    %188 = vector.broadcast %187 : vector<43x1xf32> to vector<43x43xf32>
    %189 = arith.mulf %184, %188 : vector<43x43xf32>
    %190 = arith.truncf %189 : vector<43x43xf32> to vector<43x43xbf16>
    %cst_76 = arith.constant dense<0.000000e+00> : vector<43x16xf32>
    %191 = tpu.matmul %190, %176, %cst_76 {dimension_numbers = #tpu.dot_dimension_numbers<[1], [0], [0], [1], [0, 0, 1, 1], [], []>} : vector<43x43xbf16>, vector<43x16xbf16>, vector<43x16xf32> -> vector<43x16xf32>
    %192 = vector.extract_strided_slice %137 {offsets = [0, 48], sizes = [43, 16], strides = [1, 1]} : vector<43x256xbf16> to vector<43x16xbf16>
    %193 = vector.extract_strided_slice %137 {offsets = [0, 112], sizes = [43, 16], strides = [1, 1]} : vector<43x256xbf16> to vector<43x16xbf16>
    %194 = vector.extract_strided_slice %137 {offsets = [0, 176], sizes = [43, 16], strides = [1, 1]} : vector<43x256xbf16> to vector<43x16xbf16>
    %cst_77 = arith.constant dense<0.000000e+00> : vector<43x43xf32>
    %195 = tpu.matmul %192, %193, %cst_77 {dimension_numbers = #tpu.dot_dimension_numbers<[1], [1], [0], [0], [0, 0, 1, 0], [], []>} : vector<43x16xbf16>, vector<43x16xbf16>, vector<43x43xf32> -> vector<43x43xf32>
    %cst_78 = arith.constant 2.500000e-01 : f32
    %196 = vector.broadcast %cst_78 : f32 to vector<43x43xf32>
    %197 = arith.mulf %195, %196 : vector<43x43xf32>
    %cst_79 = arith.constant dense<0xFF800000> : vector<43xf32>
    %198 = vector.multi_reduction <maximumf>, %197, %cst_79 [1] : vector<43x43xf32> to vector<43xf32>
    %199 = vector.shape_cast %198 : vector<43xf32> to vector<43x1xf32>
    %200 = vector.broadcast %199 : vector<43x1xf32> to vector<43x43xf32>
    %201 = arith.subf %197, %200 : vector<43x43xf32>
    %202 = math.exp %201 : vector<43x43xf32>
    %cst_80 = arith.constant dense<0.000000e+00> : vector<43xf32>
    %203 = vector.multi_reduction <add>, %202, %cst_80 [1] : vector<43x43xf32> to vector<43xf32>
    %204 = vector.shape_cast %203 : vector<43xf32> to vector<43x1xf32>
    %205 = tpu.reciprocal %204 {approx = true} : vector<43x1xf32> -> vector<43x1xf32>
    %206 = vector.broadcast %205 : vector<43x1xf32> to vector<43x43xf32>
    %207 = arith.mulf %202, %206 : vector<43x43xf32>
    %208 = arith.truncf %207 : vector<43x43xf32> to vector<43x43xbf16>
    %cst_81 = arith.constant dense<0.000000e+00> : vector<43x16xf32>
    %209 = tpu.matmul %208, %194, %cst_81 {dimension_numbers = #tpu.dot_dimension_numbers<[1], [0], [0], [1], [0, 0, 1, 1], [], []>} : vector<43x43xbf16>, vector<43x16xbf16>, vector<43x16xf32> -> vector<43x16xf32>
    %210 = tpu.concatenate %155, %173, %191, %209 in 1 : vector<43x16xf32>, vector<43x16xf32>, vector<43x16xf32>, vector<43x16xf32> -> vector<43x64xf32>
    %cst_82 = arith.constant 0.000000e+00 : f32
    %211 = vector.shape_cast %64 : vector<43x1xi1> to vector<43x1xi1>
    %212 = vector.broadcast %211 : vector<43x1xi1> to vector<43x64xi1>
    %213 = vector.broadcast %cst_82 : f32 to vector<43x64xf32>
    %214 = arith.select %212, %210, %213 : vector<43x64xi1>, vector<43x64xf32>
    %cst_83 = arith.constant 0.000000e+00 : f32
    %215 = vector.shape_cast %64 : vector<43x1xi1> to vector<43x1xi1>
    %216 = vector.broadcast %215 : vector<43x1xi1> to vector<43x64xi1>
    %217 = vector.broadcast %cst_83 : f32 to vector<43x64xf32>
    %218 = arith.select %216, %217, %210 : vector<43x64xi1>, vector<43x64xf32>
    %219 = tpu.concatenate %214, %218 in 1 : vector<43x64xf32>, vector<43x64xf32> -> vector<43x128xf32>
    %c0_84 = arith.constant 0 : index
    %c0_85 = arith.constant 0 : index
    %c1280 = arith.constant 1280 : index
    %220 = vector.load %arg11[%c0_84, %c0_85, %c1280] : memref<2x128x1344xbf16, #tpu.memory_space<vmem>>, vector<1x128x64xbf16>
    %221 = vector.shape_cast %220 : vector<1x128x64xbf16> to vector<128x64xbf16>
    %222 = arith.truncf %219 : vector<43x128xf32> to vector<43x128xbf16>
    %cst_86 = arith.constant dense<0.000000e+00> : vector<43x64xf32>
    %223 = tpu.matmul %222, %221, %cst_86 {dimension_numbers = #tpu.dot_dimension_numbers<[1], [0], [0], [1], [0, 0, 1, 1], [], []>} : vector<43x128xbf16>, vector<128x64xbf16>, vector<43x64xf32> -> vector<43x64xf32>
    %c0_87 = arith.constant 0 : index
    %c0_88 = arith.constant 0 : index
    %c1280_89 = arith.constant 1280 : index
    %224 = vector.load %arg13[%c0_87, %c0_88, %c1280_89] : memref<2x2x1472xf32, #tpu.memory_space<vmem>>, vector<1x1x64xf32>
    %225 = vector.shape_cast %224 : vector<1x1x64xf32> to vector<1x64xf32>
    %c0_90 = arith.constant 0 : index
    %c1_91 = arith.constant 1 : index
    %c1280_92 = arith.constant 1280 : index
    %226 = vector.load %arg13[%c0_90, %c1_91, %c1280_92] : memref<2x2x1472xf32, #tpu.memory_space<vmem>>, vector<1x1x64xf32>
    %227 = vector.shape_cast %226 : vector<1x1x64xf32> to vector<1x64xf32>
    %228 = vector.shape_cast %64 : vector<43x1xi1> to vector<43x1xi1>
    %229 = vector.broadcast %228 : vector<43x1xi1> to vector<43x64xi1>
    %230 = vector.shape_cast %225 : vector<1x64xf32> to vector<1x64xf32>
    %231 = vector.broadcast %230 : vector<1x64xf32> to vector<43x64xf32>
    %232 = vector.shape_cast %227 : vector<1x64xf32> to vector<1x64xf32>
    %233 = vector.broadcast %232 : vector<1x64xf32> to vector<43x64xf32>
    %234 = arith.select %229, %231, %233 : vector<43x64xi1>, vector<43x64xf32>
    %235 = arith.addf %223, %234 : vector<43x64xf32>
    %236 = vector.extract_strided_slice %71 {offsets = [0, 128], sizes = [1, 64], strides = [1, 1]} : vector<1x768xf32> to vector<1x64xf32>
    %237 = vector.extract_strided_slice %71 {offsets = [0, 512], sizes = [1, 64], strides = [1, 1]} : vector<1x768xf32> to vector<1x64xf32>
    %238 = vector.shape_cast %64 : vector<43x1xi1> to vector<43x1xi1>
    %239 = vector.broadcast %238 : vector<43x1xi1> to vector<43x64xi1>
    %240 = vector.shape_cast %236 : vector<1x64xf32> to vector<1x64xf32>
    %241 = vector.broadcast %240 : vector<1x64xf32> to vector<43x64xf32>
    %242 = vector.shape_cast %237 : vector<1x64xf32> to vector<1x64xf32>
    %243 = vector.broadcast %242 : vector<1x64xf32> to vector<43x64xf32>
    %244 = arith.select %239, %241, %243 : vector<43x64xi1>, vector<43x64xf32>
    %245 = arith.mulf %244, %235 : vector<43x64xf32>
    %246 = arith.addf %61, %245 : vector<43x64xf32>
    %cst_93 = arith.constant dense<0.000000e+00> : vector<43xf32>
    %247 = vector.multi_reduction <add>, %246, %cst_93 [1] : vector<43x64xf32> to vector<43xf32>
    %248 = vector.shape_cast %247 : vector<43xf32> to vector<43x1xf32>
    %cst_94 = arith.constant 6.400000e+01 : f32
    %249 = vector.broadcast %cst_94 : f32 to vector<43x1xf32>
    %250 = arith.divf %248, %249 : vector<43x1xf32>
    %251 = vector.broadcast %250 : vector<43x1xf32> to vector<43x64xf32>
    %252 = arith.subf %246, %251 : vector<43x64xf32>
    %253 = arith.mulf %252, %252 : vector<43x64xf32>
    %cst_95 = arith.constant dense<0.000000e+00> : vector<43xf32>
    %254 = vector.multi_reduction <add>, %253, %cst_95 [1] : vector<43x64xf32> to vector<43xf32>
    %255 = vector.shape_cast %254 : vector<43xf32> to vector<43x1xf32>
    %cst_96 = arith.constant 6.400000e+01 : f32
    %256 = vector.broadcast %cst_96 : f32 to vector<43x1xf32>
    %257 = arith.divf %255, %256 : vector<43x1xf32>
    %258 = vector.broadcast %250 : vector<43x1xf32> to vector<43x64xf32>
    %259 = arith.subf %246, %258 : vector<43x64xf32>
    %cst_97 = arith.constant 9.99999997E-7 : f32
    %260 = vector.broadcast %cst_97 : f32 to vector<43x1xf32>
    %261 = arith.addf %257, %260 : vector<43x1xf32>
    %262 = math.rsqrt %261 : vector<43x1xf32>
    %263 = vector.broadcast %262 : vector<43x1xf32> to vector<43x64xf32>
    %264 = arith.mulf %259, %263 : vector<43x64xf32>
    %265 = vector.extract_strided_slice %71 {offsets = [0, 256], sizes = [1, 64], strides = [1, 1]} : vector<1x768xf32> to vector<1x64xf32>
    %266 = vector.extract_strided_slice %71 {offsets = [0, 640], sizes = [1, 64], strides = [1, 1]} : vector<1x768xf32> to vector<1x64xf32>
    %267 = vector.shape_cast %64 : vector<43x1xi1> to vector<43x1xi1>
    %268 = vector.broadcast %267 : vector<43x1xi1> to vector<43x64xi1>
    %269 = vector.shape_cast %265 : vector<1x64xf32> to vector<1x64xf32>
    %270 = vector.broadcast %269 : vector<1x64xf32> to vector<43x64xf32>
    %271 = vector.shape_cast %266 : vector<1x64xf32> to vector<1x64xf32>
    %272 = vector.broadcast %271 : vector<1x64xf32> to vector<43x64xf32>
    %273 = arith.select %268, %270, %272 : vector<43x64xi1>, vector<43x64xf32>
    %cst_98 = arith.constant 1.000000e+00 : f32
    %274 = vector.broadcast %cst_98 : f32 to vector<43x64xf32>
    %275 = arith.addf %274, %273 : vector<43x64xf32>
    %276 = arith.mulf %264, %275 : vector<43x64xf32>
    %277 = vector.extract_strided_slice %71 {offsets = [0, 192], sizes = [1, 64], strides = [1, 1]} : vector<1x768xf32> to vector<1x64xf32>
    %278 = vector.extract_strided_slice %71 {offsets = [0, 576], sizes = [1, 64], strides = [1, 1]} : vector<1x768xf32> to vector<1x64xf32>
    %279 = vector.shape_cast %64 : vector<43x1xi1> to vector<43x1xi1>
    %280 = vector.broadcast %279 : vector<43x1xi1> to vector<43x64xi1>
    %281 = vector.shape_cast %277 : vector<1x64xf32> to vector<1x64xf32>
    %282 = vector.broadcast %281 : vector<1x64xf32> to vector<43x64xf32>
    %283 = vector.shape_cast %278 : vector<1x64xf32> to vector<1x64xf32>
    %284 = vector.broadcast %283 : vector<1x64xf32> to vector<43x64xf32>
    %285 = arith.select %280, %282, %284 : vector<43x64xi1>, vector<43x64xf32>
    %286 = arith.addf %276, %285 : vector<43x64xf32>
    %cst_99 = arith.constant 0.000000e+00 : f32
    %287 = vector.shape_cast %64 : vector<43x1xi1> to vector<43x1xi1>
    %288 = vector.broadcast %287 : vector<43x1xi1> to vector<43x64xi1>
    %289 = vector.broadcast %cst_99 : f32 to vector<43x64xf32>
    %290 = arith.select %288, %286, %289 : vector<43x64xi1>, vector<43x64xf32>
    %cst_100 = arith.constant 0.000000e+00 : f32
    %291 = vector.shape_cast %64 : vector<43x1xi1> to vector<43x1xi1>
    %292 = vector.broadcast %291 : vector<43x1xi1> to vector<43x64xi1>
    %293 = vector.broadcast %cst_100 : f32 to vector<43x64xf32>
    %294 = arith.select %292, %293, %286 : vector<43x64xi1>, vector<43x64xf32>
    %295 = tpu.concatenate %290, %294 in 1 : vector<43x64xf32>, vector<43x64xf32> -> vector<43x128xf32>
    %c0_101 = arith.constant 0 : index
    %c0_102 = arith.constant 0 : index
    %c1024 = arith.constant 1024 : index
    %296 = vector.load %arg11[%c0_101, %c0_102, %c1024] : memref<2x128x1344xbf16, #tpu.memory_space<vmem>>, vector<1x128x256xbf16>
    %297 = vector.shape_cast %296 : vector<1x128x256xbf16> to vector<128x256xbf16>
    %298 = arith.truncf %295 : vector<43x128xf32> to vector<43x128xbf16>
    %cst_103 = arith.constant dense<0.000000e+00> : vector<43x256xf32>
    %299 = tpu.matmul %298, %297, %cst_103 {dimension_numbers = #tpu.dot_dimension_numbers<[1], [0], [0], [1], [0, 0, 1, 1], [], []>} : vector<43x128xbf16>, vector<128x256xbf16>, vector<43x256xf32> -> vector<43x256xf32>
    %c0_104 = arith.constant 0 : index
    %c0_105 = arith.constant 0 : index
    %c1024_106 = arith.constant 1024 : index
    %300 = vector.load %arg13[%c0_104, %c0_105, %c1024_106] : memref<2x2x1472xf32, #tpu.memory_space<vmem>>, vector<1x1x256xf32>
    %301 = vector.shape_cast %300 : vector<1x1x256xf32> to vector<1x256xf32>
    %c0_107 = arith.constant 0 : index
    %c1_108 = arith.constant 1 : index
    %c1024_109 = arith.constant 1024 : index
    %302 = vector.load %arg13[%c0_107, %c1_108, %c1024_109] : memref<2x2x1472xf32, #tpu.memory_space<vmem>>, vector<1x1x256xf32>
    %303 = vector.shape_cast %302 : vector<1x1x256xf32> to vector<1x256xf32>
    %304 = vector.shape_cast %64 : vector<43x1xi1> to vector<43x1xi1>
    %305 = vector.broadcast %304 : vector<43x1xi1> to vector<43x256xi1>
    %306 = vector.shape_cast %301 : vector<1x256xf32> to vector<1x256xf32>
    %307 = vector.broadcast %306 : vector<1x256xf32> to vector<43x256xf32>
    %308 = vector.shape_cast %303 : vector<1x256xf32> to vector<1x256xf32>
    %309 = vector.broadcast %308 : vector<1x256xf32> to vector<43x256xf32>
    %310 = arith.select %305, %307, %309 : vector<43x256xi1>, vector<43x256xf32>
    %311 = arith.addf %299, %310 : vector<43x256xf32>
    %cst_110 = arith.constant 5.000000e-01 : f32
    %312 = vector.broadcast %cst_110 : f32 to vector<43x256xf32>
    %313 = arith.mulf %312, %311 : vector<43x256xf32>
    %cst_111 = arith.constant 4.471500e-02 : f32
    %314 = vector.broadcast %cst_111 : f32 to vector<43x256xf32>
    %315 = arith.mulf %314, %311 : vector<43x256xf32>
    %316 = arith.mulf %315, %311 : vector<43x256xf32>
    %317 = arith.mulf %316, %311 : vector<43x256xf32>
    %318 = arith.addf %311, %317 : vector<43x256xf32>
    %cst_112 = arith.constant 0.797884583 : f32
    %319 = vector.broadcast %cst_112 : f32 to vector<43x256xf32>
    %320 = arith.mulf %319, %318 : vector<43x256xf32>
    %321 = math.tanh %320 : vector<43x256xf32>
    %cst_113 = arith.constant 1.000000e+00 : f32
    %322 = vector.broadcast %cst_113 : f32 to vector<43x256xf32>
    %323 = arith.addf %322, %321 : vector<43x256xf32>
    %324 = arith.mulf %313, %323 : vector<43x256xf32>
    %cst_114 = arith.constant 0.000000e+00 : f32
    %325 = vector.shape_cast %64 : vector<43x1xi1> to vector<43x1xi1>
    %326 = vector.broadcast %325 : vector<43x1xi1> to vector<43x256xi1>
    %327 = vector.broadcast %cst_114 : f32 to vector<43x256xf32>
    %328 = arith.select %326, %324, %327 : vector<43x256xi1>, vector<43x256xf32>
    %cst_115 = arith.constant 0.000000e+00 : f32
    %329 = vector.shape_cast %64 : vector<43x1xi1> to vector<43x1xi1>
    %330 = vector.broadcast %329 : vector<43x1xi1> to vector<43x256xi1>
    %331 = vector.broadcast %cst_115 : f32 to vector<43x256xf32>
    %332 = arith.select %330, %331, %324 : vector<43x256xi1>, vector<43x256xf32>
    %333 = tpu.concatenate %328, %332 in 1 : vector<43x256xf32>, vector<43x256xf32> -> vector<43x512xf32>
    %c0_116 = arith.constant 0 : index
    %c0_117 = arith.constant 0 : index
    %c0_118 = arith.constant 0 : index
    %334 = vector.load %arg12[%c0_116, %c0_117, %c0_118] : memref<2x512x64xbf16, #tpu.memory_space<vmem>>, vector<1x512x64xbf16>
    %335 = vector.shape_cast %334 : vector<1x512x64xbf16> to vector<512x64xbf16>
    %336 = arith.truncf %333 : vector<43x512xf32> to vector<43x512xbf16>
    %cst_119 = arith.constant dense<0.000000e+00> : vector<43x64xf32>
    %337 = tpu.matmul %336, %335, %cst_119 {dimension_numbers = #tpu.dot_dimension_numbers<[1], [0], [0], [1], [0, 0, 1, 1], [], []>} : vector<43x512xbf16>, vector<512x64xbf16>, vector<43x64xf32> -> vector<43x64xf32>
    %c0_120 = arith.constant 0 : index
    %c0_121 = arith.constant 0 : index
    %c1408 = arith.constant 1408 : index
    %338 = vector.load %arg13[%c0_120, %c0_121, %c1408] : memref<2x2x1472xf32, #tpu.memory_space<vmem>>, vector<1x1x64xf32>
    %339 = vector.shape_cast %338 : vector<1x1x64xf32> to vector<1x64xf32>
    %c0_122 = arith.constant 0 : index
    %c1_123 = arith.constant 1 : index
    %c1408_124 = arith.constant 1408 : index
    %340 = vector.load %arg13[%c0_122, %c1_123, %c1408_124] : memref<2x2x1472xf32, #tpu.memory_space<vmem>>, vector<1x1x64xf32>
    %341 = vector.shape_cast %340 : vector<1x1x64xf32> to vector<1x64xf32>
    %342 = vector.shape_cast %64 : vector<43x1xi1> to vector<43x1xi1>
    %343 = vector.broadcast %342 : vector<43x1xi1> to vector<43x64xi1>
    %344 = vector.shape_cast %339 : vector<1x64xf32> to vector<1x64xf32>
    %345 = vector.broadcast %344 : vector<1x64xf32> to vector<43x64xf32>
    %346 = vector.shape_cast %341 : vector<1x64xf32> to vector<1x64xf32>
    %347 = vector.broadcast %346 : vector<1x64xf32> to vector<43x64xf32>
    %348 = arith.select %343, %345, %347 : vector<43x64xi1>, vector<43x64xf32>
    %349 = arith.addf %337, %348 : vector<43x64xf32>
    %350 = vector.extract_strided_slice %71 {offsets = [0, 320], sizes = [1, 64], strides = [1, 1]} : vector<1x768xf32> to vector<1x64xf32>
    %351 = vector.extract_strided_slice %71 {offsets = [0, 704], sizes = [1, 64], strides = [1, 1]} : vector<1x768xf32> to vector<1x64xf32>
    %352 = vector.shape_cast %64 : vector<43x1xi1> to vector<43x1xi1>
    %353 = vector.broadcast %352 : vector<43x1xi1> to vector<43x64xi1>
    %354 = vector.shape_cast %350 : vector<1x64xf32> to vector<1x64xf32>
    %355 = vector.broadcast %354 : vector<1x64xf32> to vector<43x64xf32>
    %356 = vector.shape_cast %351 : vector<1x64xf32> to vector<1x64xf32>
    %357 = vector.broadcast %356 : vector<1x64xf32> to vector<43x64xf32>
    %358 = arith.select %353, %355, %357 : vector<43x64xi1>, vector<43x64xf32>
    %359 = arith.mulf %358, %349 : vector<43x64xf32>
    %360 = arith.addf %246, %359 : vector<43x64xf32>
    %c1_125 = arith.constant 1 : index
    %c0_126 = arith.constant 0 : index
    %c0_127 = arith.constant 0 : index
    %361 = vector.load %arg11[%c1_125, %c0_126, %c0_127] : memref<2x128x1344xbf16, #tpu.memory_space<vmem>>, vector<1x64x768xbf16>
    %362 = vector.shape_cast %361 : vector<1x64x768xbf16> to vector<64x768xbf16>
    %363 = arith.truncf %60 : vector<1x64xf32> to vector<1x64xbf16>
    %cst_128 = arith.constant dense<0.000000e+00> : vector<1x768xf32>
    %364 = tpu.matmul %363, %362, %cst_128 {dimension_numbers = #tpu.dot_dimension_numbers<[1], [0], [0], [1], [0, 0, 1, 1], [], []>} : vector<1x64xbf16>, vector<64x768xbf16>, vector<1x768xf32> -> vector<1x768xf32>
    %c1_129 = arith.constant 1 : index
    %c0_130 = arith.constant 0 : index
    %c0_131 = arith.constant 0 : index
    %365 = vector.load %arg13[%c1_129, %c0_130, %c0_131] : memref<2x2x1472xf32, #tpu.memory_space<vmem>>, vector<1x1x768xf32>
    %366 = vector.shape_cast %365 : vector<1x1x768xf32> to vector<1x768xf32>
    %367 = arith.addf %364, %366 : vector<1x768xf32>
    %cst_132 = arith.constant dense<0.000000e+00> : vector<43xf32>
    %368 = vector.multi_reduction <add>, %360, %cst_132 [1] : vector<43x64xf32> to vector<43xf32>
    %369 = vector.shape_cast %368 : vector<43xf32> to vector<43x1xf32>
    %cst_133 = arith.constant 6.400000e+01 : f32
    %370 = vector.broadcast %cst_133 : f32 to vector<43x1xf32>
    %371 = arith.divf %369, %370 : vector<43x1xf32>
    %372 = vector.broadcast %371 : vector<43x1xf32> to vector<43x64xf32>
    %373 = arith.subf %360, %372 : vector<43x64xf32>
    %374 = arith.mulf %373, %373 : vector<43x64xf32>
    %cst_134 = arith.constant dense<0.000000e+00> : vector<43xf32>
    %375 = vector.multi_reduction <add>, %374, %cst_134 [1] : vector<43x64xf32> to vector<43xf32>
    %376 = vector.shape_cast %375 : vector<43xf32> to vector<43x1xf32>
    %cst_135 = arith.constant 6.400000e+01 : f32
    %377 = vector.broadcast %cst_135 : f32 to vector<43x1xf32>
    %378 = arith.divf %376, %377 : vector<43x1xf32>
    %379 = vector.broadcast %371 : vector<43x1xf32> to vector<43x64xf32>
    %380 = arith.subf %360, %379 : vector<43x64xf32>
    %cst_136 = arith.constant 9.99999997E-7 : f32
    %381 = vector.broadcast %cst_136 : f32 to vector<43x1xf32>
    %382 = arith.addf %378, %381 : vector<43x1xf32>
    %383 = math.rsqrt %382 : vector<43x1xf32>
    %384 = vector.broadcast %383 : vector<43x1xf32> to vector<43x64xf32>
    %385 = arith.mulf %380, %384 : vector<43x64xf32>
    %386 = vector.extract_strided_slice %367 {offsets = [0, 64], sizes = [1, 64], strides = [1, 1]} : vector<1x768xf32> to vector<1x64xf32>
    %387 = vector.extract_strided_slice %367 {offsets = [0, 448], sizes = [1, 64], strides = [1, 1]} : vector<1x768xf32> to vector<1x64xf32>
    %388 = vector.shape_cast %64 : vector<43x1xi1> to vector<43x1xi1>
    %389 = vector.broadcast %388 : vector<43x1xi1> to vector<43x64xi1>
    %390 = vector.shape_cast %386 : vector<1x64xf32> to vector<1x64xf32>
    %391 = vector.broadcast %390 : vector<1x64xf32> to vector<43x64xf32>
    %392 = vector.shape_cast %387 : vector<1x64xf32> to vector<1x64xf32>
    %393 = vector.broadcast %392 : vector<1x64xf32> to vector<43x64xf32>
    %394 = arith.select %389, %391, %393 : vector<43x64xi1>, vector<43x64xf32>
    %cst_137 = arith.constant 1.000000e+00 : f32
    %395 = vector.broadcast %cst_137 : f32 to vector<43x64xf32>
    %396 = arith.addf %395, %394 : vector<43x64xf32>
    %397 = arith.mulf %385, %396 : vector<43x64xf32>
    %398 = vector.extract_strided_slice %367 {offsets = [0, 0], sizes = [1, 64], strides = [1, 1]} : vector<1x768xf32> to vector<1x64xf32>
    %399 = vector.extract_strided_slice %367 {offsets = [0, 384], sizes = [1, 64], strides = [1, 1]} : vector<1x768xf32> to vector<1x64xf32>
    %400 = vector.shape_cast %64 : vector<43x1xi1> to vector<43x1xi1>
    %401 = vector.broadcast %400 : vector<43x1xi1> to vector<43x64xi1>
    %402 = vector.shape_cast %398 : vector<1x64xf32> to vector<1x64xf32>
    %403 = vector.broadcast %402 : vector<1x64xf32> to vector<43x64xf32>
    %404 = vector.shape_cast %399 : vector<1x64xf32> to vector<1x64xf32>
    %405 = vector.broadcast %404 : vector<1x64xf32> to vector<43x64xf32>
    %406 = arith.select %401, %403, %405 : vector<43x64xi1>, vector<43x64xf32>
    %407 = arith.addf %397, %406 : vector<43x64xf32>
    %cst_138 = arith.constant 0.000000e+00 : f32
    %408 = vector.shape_cast %64 : vector<43x1xi1> to vector<43x1xi1>
    %409 = vector.broadcast %408 : vector<43x1xi1> to vector<43x64xi1>
    %410 = vector.broadcast %cst_138 : f32 to vector<43x64xf32>
    %411 = arith.select %409, %407, %410 : vector<43x64xi1>, vector<43x64xf32>
    %cst_139 = arith.constant 0.000000e+00 : f32
    %412 = vector.shape_cast %64 : vector<43x1xi1> to vector<43x1xi1>
    %413 = vector.broadcast %412 : vector<43x1xi1> to vector<43x64xi1>
    %414 = vector.broadcast %cst_139 : f32 to vector<43x64xf32>
    %415 = arith.select %413, %414, %407 : vector<43x64xi1>, vector<43x64xf32>
    %416 = tpu.concatenate %411, %415 in 1 : vector<43x64xf32>, vector<43x64xf32> -> vector<43x128xf32>
    %c1_140 = arith.constant 1 : index
    %c0_141 = arith.constant 0 : index
    %c768_142 = arith.constant 768 : index
    %417 = vector.load %arg11[%c1_140, %c0_141, %c768_142] : memref<2x128x1344xbf16, #tpu.memory_space<vmem>>, vector<1x128x256xbf16>
    %418 = vector.shape_cast %417 : vector<1x128x256xbf16> to vector<128x256xbf16>
    %419 = arith.truncf %416 : vector<43x128xf32> to vector<43x128xbf16>
    %cst_143 = arith.constant dense<0.000000e+00> : vector<43x256xf32>
    %420 = tpu.matmul %419, %418, %cst_143 {dimension_numbers = #tpu.dot_dimension_numbers<[1], [0], [0], [1], [0, 0, 1, 1], [], []>} : vector<43x128xbf16>, vector<128x256xbf16>, vector<43x256xf32> -> vector<43x256xf32>
    %c1_144 = arith.constant 1 : index
    %c0_145 = arith.constant 0 : index
    %c768_146 = arith.constant 768 : index
    %421 = vector.load %arg13[%c1_144, %c0_145, %c768_146] : memref<2x2x1472xf32, #tpu.memory_space<vmem>>, vector<1x1x256xf32>
    %422 = vector.shape_cast %421 : vector<1x1x256xf32> to vector<1x256xf32>
    %c1_147 = arith.constant 1 : index
    %c1_148 = arith.constant 1 : index
    %c768_149 = arith.constant 768 : index
    %423 = vector.load %arg13[%c1_147, %c1_148, %c768_149] : memref<2x2x1472xf32, #tpu.memory_space<vmem>>, vector<1x1x256xf32>
    %424 = vector.shape_cast %423 : vector<1x1x256xf32> to vector<1x256xf32>
    %425 = vector.shape_cast %64 : vector<43x1xi1> to vector<43x1xi1>
    %426 = vector.broadcast %425 : vector<43x1xi1> to vector<43x256xi1>
    %427 = vector.shape_cast %422 : vector<1x256xf32> to vector<1x256xf32>
    %428 = vector.broadcast %427 : vector<1x256xf32> to vector<43x256xf32>
    %429 = vector.shape_cast %424 : vector<1x256xf32> to vector<1x256xf32>
    %430 = vector.broadcast %429 : vector<1x256xf32> to vector<43x256xf32>
    %431 = arith.select %426, %428, %430 : vector<43x256xi1>, vector<43x256xf32>
    %432 = arith.addf %420, %431 : vector<43x256xf32>
    %433 = arith.truncf %432 : vector<43x256xf32> to vector<43x256xbf16>
    %434 = vector.extract_strided_slice %433 {offsets = [0, 0], sizes = [43, 16], strides = [1, 1]} : vector<43x256xbf16> to vector<43x16xbf16>
    %435 = vector.extract_strided_slice %433 {offsets = [0, 64], sizes = [43, 16], strides = [1, 1]} : vector<43x256xbf16> to vector<43x16xbf16>
    %436 = vector.extract_strided_slice %433 {offsets = [0, 128], sizes = [43, 16], strides = [1, 1]} : vector<43x256xbf16> to vector<43x16xbf16>
    %cst_150 = arith.constant dense<0.000000e+00> : vector<43x43xf32>
    %437 = tpu.matmul %434, %435, %cst_150 {dimension_numbers = #tpu.dot_dimension_numbers<[1], [1], [0], [0], [0, 0, 1, 0], [], []>} : vector<43x16xbf16>, vector<43x16xbf16>, vector<43x43xf32> -> vector<43x43xf32>
    %cst_151 = arith.constant 2.500000e-01 : f32
    %438 = vector.broadcast %cst_151 : f32 to vector<43x43xf32>
    %439 = arith.mulf %437, %438 : vector<43x43xf32>
    %cst_152 = arith.constant dense<0xFF800000> : vector<43xf32>
    %440 = vector.multi_reduction <maximumf>, %439, %cst_152 [1] : vector<43x43xf32> to vector<43xf32>
    %441 = vector.shape_cast %440 : vector<43xf32> to vector<43x1xf32>
    %442 = vector.broadcast %441 : vector<43x1xf32> to vector<43x43xf32>
    %443 = arith.subf %439, %442 : vector<43x43xf32>
    %444 = math.exp %443 : vector<43x43xf32>
    %cst_153 = arith.constant dense<0.000000e+00> : vector<43xf32>
    %445 = vector.multi_reduction <add>, %444, %cst_153 [1] : vector<43x43xf32> to vector<43xf32>
    %446 = vector.shape_cast %445 : vector<43xf32> to vector<43x1xf32>
    %447 = tpu.reciprocal %446 {approx = true} : vector<43x1xf32> -> vector<43x1xf32>
    %448 = vector.broadcast %447 : vector<43x1xf32> to vector<43x43xf32>
    %449 = arith.mulf %444, %448 : vector<43x43xf32>
    %450 = arith.truncf %449 : vector<43x43xf32> to vector<43x43xbf16>
    %cst_154 = arith.constant dense<0.000000e+00> : vector<43x16xf32>
    %451 = tpu.matmul %450, %436, %cst_154 {dimension_numbers = #tpu.dot_dimension_numbers<[1], [0], [0], [1], [0, 0, 1, 1], [], []>} : vector<43x43xbf16>, vector<43x16xbf16>, vector<43x16xf32> -> vector<43x16xf32>
    %452 = vector.extract_strided_slice %433 {offsets = [0, 16], sizes = [43, 16], strides = [1, 1]} : vector<43x256xbf16> to vector<43x16xbf16>
    %453 = vector.extract_strided_slice %433 {offsets = [0, 80], sizes = [43, 16], strides = [1, 1]} : vector<43x256xbf16> to vector<43x16xbf16>
    %454 = vector.extract_strided_slice %433 {offsets = [0, 144], sizes = [43, 16], strides = [1, 1]} : vector<43x256xbf16> to vector<43x16xbf16>
    %cst_155 = arith.constant dense<0.000000e+00> : vector<43x43xf32>
    %455 = tpu.matmul %452, %453, %cst_155 {dimension_numbers = #tpu.dot_dimension_numbers<[1], [1], [0], [0], [0, 0, 1, 0], [], []>} : vector<43x16xbf16>, vector<43x16xbf16>, vector<43x43xf32> -> vector<43x43xf32>
    %cst_156 = arith.constant 2.500000e-01 : f32
    %456 = vector.broadcast %cst_156 : f32 to vector<43x43xf32>
    %457 = arith.mulf %455, %456 : vector<43x43xf32>
    %cst_157 = arith.constant dense<0xFF800000> : vector<43xf32>
    %458 = vector.multi_reduction <maximumf>, %457, %cst_157 [1] : vector<43x43xf32> to vector<43xf32>
    %459 = vector.shape_cast %458 : vector<43xf32> to vector<43x1xf32>
    %460 = vector.broadcast %459 : vector<43x1xf32> to vector<43x43xf32>
    %461 = arith.subf %457, %460 : vector<43x43xf32>
    %462 = math.exp %461 : vector<43x43xf32>
    %cst_158 = arith.constant dense<0.000000e+00> : vector<43xf32>
    %463 = vector.multi_reduction <add>, %462, %cst_158 [1] : vector<43x43xf32> to vector<43xf32>
    %464 = vector.shape_cast %463 : vector<43xf32> to vector<43x1xf32>
    %465 = tpu.reciprocal %464 {approx = true} : vector<43x1xf32> -> vector<43x1xf32>
    %466 = vector.broadcast %465 : vector<43x1xf32> to vector<43x43xf32>
    %467 = arith.mulf %462, %466 : vector<43x43xf32>
    %468 = arith.truncf %467 : vector<43x43xf32> to vector<43x43xbf16>
    %cst_159 = arith.constant dense<0.000000e+00> : vector<43x16xf32>
    %469 = tpu.matmul %468, %454, %cst_159 {dimension_numbers = #tpu.dot_dimension_numbers<[1], [0], [0], [1], [0, 0, 1, 1], [], []>} : vector<43x43xbf16>, vector<43x16xbf16>, vector<43x16xf32> -> vector<43x16xf32>
    %470 = vector.extract_strided_slice %433 {offsets = [0, 32], sizes = [43, 16], strides = [1, 1]} : vector<43x256xbf16> to vector<43x16xbf16>
    %471 = vector.extract_strided_slice %433 {offsets = [0, 96], sizes = [43, 16], strides = [1, 1]} : vector<43x256xbf16> to vector<43x16xbf16>
    %472 = vector.extract_strided_slice %433 {offsets = [0, 160], sizes = [43, 16], strides = [1, 1]} : vector<43x256xbf16> to vector<43x16xbf16>
    %cst_160 = arith.constant dense<0.000000e+00> : vector<43x43xf32>
    %473 = tpu.matmul %470, %471, %cst_160 {dimension_numbers = #tpu.dot_dimension_numbers<[1], [1], [0], [0], [0, 0, 1, 0], [], []>} : vector<43x16xbf16>, vector<43x16xbf16>, vector<43x43xf32> -> vector<43x43xf32>
    %cst_161 = arith.constant 2.500000e-01 : f32
    %474 = vector.broadcast %cst_161 : f32 to vector<43x43xf32>
    %475 = arith.mulf %473, %474 : vector<43x43xf32>
    %cst_162 = arith.constant dense<0xFF800000> : vector<43xf32>
    %476 = vector.multi_reduction <maximumf>, %475, %cst_162 [1] : vector<43x43xf32> to vector<43xf32>
    %477 = vector.shape_cast %476 : vector<43xf32> to vector<43x1xf32>
    %478 = vector.broadcast %477 : vector<43x1xf32> to vector<43x43xf32>
    %479 = arith.subf %475, %478 : vector<43x43xf32>
    %480 = math.exp %479 : vector<43x43xf32>
    %cst_163 = arith.constant dense<0.000000e+00> : vector<43xf32>
    %481 = vector.multi_reduction <add>, %480, %cst_163 [1] : vector<43x43xf32> to vector<43xf32>
    %482 = vector.shape_cast %481 : vector<43xf32> to vector<43x1xf32>
    %483 = tpu.reciprocal %482 {approx = true} : vector<43x1xf32> -> vector<43x1xf32>
    %484 = vector.broadcast %483 : vector<43x1xf32> to vector<43x43xf32>
    %485 = arith.mulf %480, %484 : vector<43x43xf32>
    %486 = arith.truncf %485 : vector<43x43xf32> to vector<43x43xbf16>
    %cst_164 = arith.constant dense<0.000000e+00> : vector<43x16xf32>
    %487 = tpu.matmul %486, %472, %cst_164 {dimension_numbers = #tpu.dot_dimension_numbers<[1], [0], [0], [1], [0, 0, 1, 1], [], []>} : vector<43x43xbf16>, vector<43x16xbf16>, vector<43x16xf32> -> vector<43x16xf32>
    %488 = vector.extract_strided_slice %433 {offsets = [0, 48], sizes = [43, 16], strides = [1, 1]} : vector<43x256xbf16> to vector<43x16xbf16>
    %489 = vector.extract_strided_slice %433 {offsets = [0, 112], sizes = [43, 16], strides = [1, 1]} : vector<43x256xbf16> to vector<43x16xbf16>
    %490 = vector.extract_strided_slice %433 {offsets = [0, 176], sizes = [43, 16], strides = [1, 1]} : vector<43x256xbf16> to vector<43x16xbf16>
    %cst_165 = arith.constant dense<0.000000e+00> : vector<43x43xf32>
    %491 = tpu.matmul %488, %489, %cst_165 {dimension_numbers = #tpu.dot_dimension_numbers<[1], [1], [0], [0], [0, 0, 1, 0], [], []>} : vector<43x16xbf16>, vector<43x16xbf16>, vector<43x43xf32> -> vector<43x43xf32>
    %cst_166 = arith.constant 2.500000e-01 : f32
    %492 = vector.broadcast %cst_166 : f32 to vector<43x43xf32>
    %493 = arith.mulf %491, %492 : vector<43x43xf32>
    %cst_167 = arith.constant dense<0xFF800000> : vector<43xf32>
    %494 = vector.multi_reduction <maximumf>, %493, %cst_167 [1] : vector<43x43xf32> to vector<43xf32>
    %495 = vector.shape_cast %494 : vector<43xf32> to vector<43x1xf32>
    %496 = vector.broadcast %495 : vector<43x1xf32> to vector<43x43xf32>
    %497 = arith.subf %493, %496 : vector<43x43xf32>
    %498 = math.exp %497 : vector<43x43xf32>
    %cst_168 = arith.constant dense<0.000000e+00> : vector<43xf32>
    %499 = vector.multi_reduction <add>, %498, %cst_168 [1] : vector<43x43xf32> to vector<43xf32>
    %500 = vector.shape_cast %499 : vector<43xf32> to vector<43x1xf32>
    %501 = tpu.reciprocal %500 {approx = true} : vector<43x1xf32> -> vector<43x1xf32>
    %502 = vector.broadcast %501 : vector<43x1xf32> to vector<43x43xf32>
    %503 = arith.mulf %498, %502 : vector<43x43xf32>
    %504 = arith.truncf %503 : vector<43x43xf32> to vector<43x43xbf16>
    %cst_169 = arith.constant dense<0.000000e+00> : vector<43x16xf32>
    %505 = tpu.matmul %504, %490, %cst_169 {dimension_numbers = #tpu.dot_dimension_numbers<[1], [0], [0], [1], [0, 0, 1, 1], [], []>} : vector<43x43xbf16>, vector<43x16xbf16>, vector<43x16xf32> -> vector<43x16xf32>
    %506 = tpu.concatenate %451, %469, %487, %505 in 1 : vector<43x16xf32>, vector<43x16xf32>, vector<43x16xf32>, vector<43x16xf32> -> vector<43x64xf32>
    %cst_170 = arith.constant 0.000000e+00 : f32
    %507 = vector.shape_cast %64 : vector<43x1xi1> to vector<43x1xi1>
    %508 = vector.broadcast %507 : vector<43x1xi1> to vector<43x64xi1>
    %509 = vector.broadcast %cst_170 : f32 to vector<43x64xf32>
    %510 = arith.select %508, %506, %509 : vector<43x64xi1>, vector<43x64xf32>
    %cst_171 = arith.constant 0.000000e+00 : f32
    %511 = vector.shape_cast %64 : vector<43x1xi1> to vector<43x1xi1>
    %512 = vector.broadcast %511 : vector<43x1xi1> to vector<43x64xi1>
    %513 = vector.broadcast %cst_171 : f32 to vector<43x64xf32>
    %514 = arith.select %512, %513, %506 : vector<43x64xi1>, vector<43x64xf32>
    %515 = tpu.concatenate %510, %514 in 1 : vector<43x64xf32>, vector<43x64xf32> -> vector<43x128xf32>
    %c1_172 = arith.constant 1 : index
    %c0_173 = arith.constant 0 : index
    %c1280_174 = arith.constant 1280 : index
    %516 = vector.load %arg11[%c1_172, %c0_173, %c1280_174] : memref<2x128x1344xbf16, #tpu.memory_space<vmem>>, vector<1x128x64xbf16>
    %517 = vector.shape_cast %516 : vector<1x128x64xbf16> to vector<128x64xbf16>
    %518 = arith.truncf %515 : vector<43x128xf32> to vector<43x128xbf16>
    %cst_175 = arith.constant dense<0.000000e+00> : vector<43x64xf32>
    %519 = tpu.matmul %518, %517, %cst_175 {dimension_numbers = #tpu.dot_dimension_numbers<[1], [0], [0], [1], [0, 0, 1, 1], [], []>} : vector<43x128xbf16>, vector<128x64xbf16>, vector<43x64xf32> -> vector<43x64xf32>
    %c1_176 = arith.constant 1 : index
    %c0_177 = arith.constant 0 : index
    %c1280_178 = arith.constant 1280 : index
    %520 = vector.load %arg13[%c1_176, %c0_177, %c1280_178] : memref<2x2x1472xf32, #tpu.memory_space<vmem>>, vector<1x1x64xf32>
    %521 = vector.shape_cast %520 : vector<1x1x64xf32> to vector<1x64xf32>
    %c1_179 = arith.constant 1 : index
    %c1_180 = arith.constant 1 : index
    %c1280_181 = arith.constant 1280 : index
    %522 = vector.load %arg13[%c1_179, %c1_180, %c1280_181] : memref<2x2x1472xf32, #tpu.memory_space<vmem>>, vector<1x1x64xf32>
    %523 = vector.shape_cast %522 : vector<1x1x64xf32> to vector<1x64xf32>
    %524 = vector.shape_cast %64 : vector<43x1xi1> to vector<43x1xi1>
    %525 = vector.broadcast %524 : vector<43x1xi1> to vector<43x64xi1>
    %526 = vector.shape_cast %521 : vector<1x64xf32> to vector<1x64xf32>
    %527 = vector.broadcast %526 : vector<1x64xf32> to vector<43x64xf32>
    %528 = vector.shape_cast %523 : vector<1x64xf32> to vector<1x64xf32>
    %529 = vector.broadcast %528 : vector<1x64xf32> to vector<43x64xf32>
    %530 = arith.select %525, %527, %529 : vector<43x64xi1>, vector<43x64xf32>
    %531 = arith.addf %519, %530 : vector<43x64xf32>
    %532 = vector.extract_strided_slice %367 {offsets = [0, 128], sizes = [1, 64], strides = [1, 1]} : vector<1x768xf32> to vector<1x64xf32>
    %533 = vector.extract_strided_slice %367 {offsets = [0, 512], sizes = [1, 64], strides = [1, 1]} : vector<1x768xf32> to vector<1x64xf32>
    %534 = vector.shape_cast %64 : vector<43x1xi1> to vector<43x1xi1>
    %535 = vector.broadcast %534 : vector<43x1xi1> to vector<43x64xi1>
    %536 = vector.shape_cast %532 : vector<1x64xf32> to vector<1x64xf32>
    %537 = vector.broadcast %536 : vector<1x64xf32> to vector<43x64xf32>
    %538 = vector.shape_cast %533 : vector<1x64xf32> to vector<1x64xf32>
    %539 = vector.broadcast %538 : vector<1x64xf32> to vector<43x64xf32>
    %540 = arith.select %535, %537, %539 : vector<43x64xi1>, vector<43x64xf32>
    %541 = arith.mulf %540, %531 : vector<43x64xf32>
    %542 = arith.addf %360, %541 : vector<43x64xf32>
    %cst_182 = arith.constant dense<0.000000e+00> : vector<43xf32>
    %543 = vector.multi_reduction <add>, %542, %cst_182 [1] : vector<43x64xf32> to vector<43xf32>
    %544 = vector.shape_cast %543 : vector<43xf32> to vector<43x1xf32>
    %cst_183 = arith.constant 6.400000e+01 : f32
    %545 = vector.broadcast %cst_183 : f32 to vector<43x1xf32>
    %546 = arith.divf %544, %545 : vector<43x1xf32>
    %547 = vector.broadcast %546 : vector<43x1xf32> to vector<43x64xf32>
    %548 = arith.subf %542, %547 : vector<43x64xf32>
    %549 = arith.mulf %548, %548 : vector<43x64xf32>
    %cst_184 = arith.constant dense<0.000000e+00> : vector<43xf32>
    %550 = vector.multi_reduction <add>, %549, %cst_184 [1] : vector<43x64xf32> to vector<43xf32>
    %551 = vector.shape_cast %550 : vector<43xf32> to vector<43x1xf32>
    %cst_185 = arith.constant 6.400000e+01 : f32
    %552 = vector.broadcast %cst_185 : f32 to vector<43x1xf32>
    %553 = arith.divf %551, %552 : vector<43x1xf32>
    %554 = vector.broadcast %546 : vector<43x1xf32> to vector<43x64xf32>
    %555 = arith.subf %542, %554 : vector<43x64xf32>
    %cst_186 = arith.constant 9.99999997E-7 : f32
    %556 = vector.broadcast %cst_186 : f32 to vector<43x1xf32>
    %557 = arith.addf %553, %556 : vector<43x1xf32>
    %558 = math.rsqrt %557 : vector<43x1xf32>
    %559 = vector.broadcast %558 : vector<43x1xf32> to vector<43x64xf32>
    %560 = arith.mulf %555, %559 : vector<43x64xf32>
    %561 = vector.extract_strided_slice %367 {offsets = [0, 256], sizes = [1, 64], strides = [1, 1]} : vector<1x768xf32> to vector<1x64xf32>
    %562 = vector.extract_strided_slice %367 {offsets = [0, 640], sizes = [1, 64], strides = [1, 1]} : vector<1x768xf32> to vector<1x64xf32>
    %563 = vector.shape_cast %64 : vector<43x1xi1> to vector<43x1xi1>
    %564 = vector.broadcast %563 : vector<43x1xi1> to vector<43x64xi1>
    %565 = vector.shape_cast %561 : vector<1x64xf32> to vector<1x64xf32>
    %566 = vector.broadcast %565 : vector<1x64xf32> to vector<43x64xf32>
    %567 = vector.shape_cast %562 : vector<1x64xf32> to vector<1x64xf32>
    %568 = vector.broadcast %567 : vector<1x64xf32> to vector<43x64xf32>
    %569 = arith.select %564, %566, %568 : vector<43x64xi1>, vector<43x64xf32>
    %cst_187 = arith.constant 1.000000e+00 : f32
    %570 = vector.broadcast %cst_187 : f32 to vector<43x64xf32>
    %571 = arith.addf %570, %569 : vector<43x64xf32>
    %572 = arith.mulf %560, %571 : vector<43x64xf32>
    %573 = vector.extract_strided_slice %367 {offsets = [0, 192], sizes = [1, 64], strides = [1, 1]} : vector<1x768xf32> to vector<1x64xf32>
    %574 = vector.extract_strided_slice %367 {offsets = [0, 576], sizes = [1, 64], strides = [1, 1]} : vector<1x768xf32> to vector<1x64xf32>
    %575 = vector.shape_cast %64 : vector<43x1xi1> to vector<43x1xi1>
    %576 = vector.broadcast %575 : vector<43x1xi1> to vector<43x64xi1>
    %577 = vector.shape_cast %573 : vector<1x64xf32> to vector<1x64xf32>
    %578 = vector.broadcast %577 : vector<1x64xf32> to vector<43x64xf32>
    %579 = vector.shape_cast %574 : vector<1x64xf32> to vector<1x64xf32>
    %580 = vector.broadcast %579 : vector<1x64xf32> to vector<43x64xf32>
    %581 = arith.select %576, %578, %580 : vector<43x64xi1>, vector<43x64xf32>
    %582 = arith.addf %572, %581 : vector<43x64xf32>
    %cst_188 = arith.constant 0.000000e+00 : f32
    %583 = vector.shape_cast %64 : vector<43x1xi1> to vector<43x1xi1>
    %584 = vector.broadcast %583 : vector<43x1xi1> to vector<43x64xi1>
    %585 = vector.broadcast %cst_188 : f32 to vector<43x64xf32>
    %586 = arith.select %584, %582, %585 : vector<43x64xi1>, vector<43x64xf32>
    %cst_189 = arith.constant 0.000000e+00 : f32
    %587 = vector.shape_cast %64 : vector<43x1xi1> to vector<43x1xi1>
    %588 = vector.broadcast %587 : vector<43x1xi1> to vector<43x64xi1>
    %589 = vector.broadcast %cst_189 : f32 to vector<43x64xf32>
    %590 = arith.select %588, %589, %582 : vector<43x64xi1>, vector<43x64xf32>
    %591 = tpu.concatenate %586, %590 in 1 : vector<43x64xf32>, vector<43x64xf32> -> vector<43x128xf32>
    %c1_190 = arith.constant 1 : index
    %c0_191 = arith.constant 0 : index
    %c1024_192 = arith.constant 1024 : index
    %592 = vector.load %arg11[%c1_190, %c0_191, %c1024_192] : memref<2x128x1344xbf16, #tpu.memory_space<vmem>>, vector<1x128x256xbf16>
    %593 = vector.shape_cast %592 : vector<1x128x256xbf16> to vector<128x256xbf16>
    %594 = arith.truncf %591 : vector<43x128xf32> to vector<43x128xbf16>
    %cst_193 = arith.constant dense<0.000000e+00> : vector<43x256xf32>
    %595 = tpu.matmul %594, %593, %cst_193 {dimension_numbers = #tpu.dot_dimension_numbers<[1], [0], [0], [1], [0, 0, 1, 1], [], []>} : vector<43x128xbf16>, vector<128x256xbf16>, vector<43x256xf32> -> vector<43x256xf32>
    %c1_194 = arith.constant 1 : index
    %c0_195 = arith.constant 0 : index
    %c1024_196 = arith.constant 1024 : index
    %596 = vector.load %arg13[%c1_194, %c0_195, %c1024_196] : memref<2x2x1472xf32, #tpu.memory_space<vmem>>, vector<1x1x256xf32>
    %597 = vector.shape_cast %596 : vector<1x1x256xf32> to vector<1x256xf32>
    %c1_197 = arith.constant 1 : index
    %c1_198 = arith.constant 1 : index
    %c1024_199 = arith.constant 1024 : index
    %598 = vector.load %arg13[%c1_197, %c1_198, %c1024_199] : memref<2x2x1472xf32, #tpu.memory_space<vmem>>, vector<1x1x256xf32>
    %599 = vector.shape_cast %598 : vector<1x1x256xf32> to vector<1x256xf32>
    %600 = vector.shape_cast %64 : vector<43x1xi1> to vector<43x1xi1>
    %601 = vector.broadcast %600 : vector<43x1xi1> to vector<43x256xi1>
    %602 = vector.shape_cast %597 : vector<1x256xf32> to vector<1x256xf32>
    %603 = vector.broadcast %602 : vector<1x256xf32> to vector<43x256xf32>
    %604 = vector.shape_cast %599 : vector<1x256xf32> to vector<1x256xf32>
    %605 = vector.broadcast %604 : vector<1x256xf32> to vector<43x256xf32>
    %606 = arith.select %601, %603, %605 : vector<43x256xi1>, vector<43x256xf32>
    %607 = arith.addf %595, %606 : vector<43x256xf32>
    %cst_200 = arith.constant 5.000000e-01 : f32
    %608 = vector.broadcast %cst_200 : f32 to vector<43x256xf32>
    %609 = arith.mulf %608, %607 : vector<43x256xf32>
    %cst_201 = arith.constant 4.471500e-02 : f32
    %610 = vector.broadcast %cst_201 : f32 to vector<43x256xf32>
    %611 = arith.mulf %610, %607 : vector<43x256xf32>
    %612 = arith.mulf %611, %607 : vector<43x256xf32>
    %613 = arith.mulf %612, %607 : vector<43x256xf32>
    %614 = arith.addf %607, %613 : vector<43x256xf32>
    %cst_202 = arith.constant 0.797884583 : f32
    %615 = vector.broadcast %cst_202 : f32 to vector<43x256xf32>
    %616 = arith.mulf %615, %614 : vector<43x256xf32>
    %617 = math.tanh %616 : vector<43x256xf32>
    %cst_203 = arith.constant 1.000000e+00 : f32
    %618 = vector.broadcast %cst_203 : f32 to vector<43x256xf32>
    %619 = arith.addf %618, %617 : vector<43x256xf32>
    %620 = arith.mulf %609, %619 : vector<43x256xf32>
    %cst_204 = arith.constant 0.000000e+00 : f32
    %621 = vector.shape_cast %64 : vector<43x1xi1> to vector<43x1xi1>
    %622 = vector.broadcast %621 : vector<43x1xi1> to vector<43x256xi1>
    %623 = vector.broadcast %cst_204 : f32 to vector<43x256xf32>
    %624 = arith.select %622, %620, %623 : vector<43x256xi1>, vector<43x256xf32>
    %cst_205 = arith.constant 0.000000e+00 : f32
    %625 = vector.shape_cast %64 : vector<43x1xi1> to vector<43x1xi1>
    %626 = vector.broadcast %625 : vector<43x1xi1> to vector<43x256xi1>
    %627 = vector.broadcast %cst_205 : f32 to vector<43x256xf32>
    %628 = arith.select %626, %627, %620 : vector<43x256xi1>, vector<43x256xf32>
    %629 = tpu.concatenate %624, %628 in 1 : vector<43x256xf32>, vector<43x256xf32> -> vector<43x512xf32>
    %c1_206 = arith.constant 1 : index
    %c0_207 = arith.constant 0 : index
    %c0_208 = arith.constant 0 : index
    %630 = vector.load %arg12[%c1_206, %c0_207, %c0_208] : memref<2x512x64xbf16, #tpu.memory_space<vmem>>, vector<1x512x64xbf16>
    %631 = vector.shape_cast %630 : vector<1x512x64xbf16> to vector<512x64xbf16>
    %632 = arith.truncf %629 : vector<43x512xf32> to vector<43x512xbf16>
    %cst_209 = arith.constant dense<0.000000e+00> : vector<43x64xf32>
    %633 = tpu.matmul %632, %631, %cst_209 {dimension_numbers = #tpu.dot_dimension_numbers<[1], [0], [0], [1], [0, 0, 1, 1], [], []>} : vector<43x512xbf16>, vector<512x64xbf16>, vector<43x64xf32> -> vector<43x64xf32>
    %c1_210 = arith.constant 1 : index
    %c0_211 = arith.constant 0 : index
    %c1408_212 = arith.constant 1408 : index
    %634 = vector.load %arg13[%c1_210, %c0_211, %c1408_212] : memref<2x2x1472xf32, #tpu.memory_space<vmem>>, vector<1x1x64xf32>
    %635 = vector.shape_cast %634 : vector<1x1x64xf32> to vector<1x64xf32>
    %c1_213 = arith.constant 1 : index
    %c1_214 = arith.constant 1 : index
    %c1408_215 = arith.constant 1408 : index
    %636 = vector.load %arg13[%c1_213, %c1_214, %c1408_215] : memref<2x2x1472xf32, #tpu.memory_space<vmem>>, vector<1x1x64xf32>
    %637 = vector.shape_cast %636 : vector<1x1x64xf32> to vector<1x64xf32>
    %638 = vector.shape_cast %64 : vector<43x1xi1> to vector<43x1xi1>
    %639 = vector.broadcast %638 : vector<43x1xi1> to vector<43x64xi1>
    %640 = vector.shape_cast %635 : vector<1x64xf32> to vector<1x64xf32>
    %641 = vector.broadcast %640 : vector<1x64xf32> to vector<43x64xf32>
    %642 = vector.shape_cast %637 : vector<1x64xf32> to vector<1x64xf32>
    %643 = vector.broadcast %642 : vector<1x64xf32> to vector<43x64xf32>
    %644 = arith.select %639, %641, %643 : vector<43x64xi1>, vector<43x64xf32>
    %645 = arith.addf %633, %644 : vector<43x64xf32>
    %646 = vector.extract_strided_slice %367 {offsets = [0, 320], sizes = [1, 64], strides = [1, 1]} : vector<1x768xf32> to vector<1x64xf32>
    %647 = vector.extract_strided_slice %367 {offsets = [0, 704], sizes = [1, 64], strides = [1, 1]} : vector<1x768xf32> to vector<1x64xf32>
    %648 = vector.shape_cast %64 : vector<43x1xi1> to vector<43x1xi1>
    %649 = vector.broadcast %648 : vector<43x1xi1> to vector<43x64xi1>
    %650 = vector.shape_cast %646 : vector<1x64xf32> to vector<1x64xf32>
    %651 = vector.broadcast %650 : vector<1x64xf32> to vector<43x64xf32>
    %652 = vector.shape_cast %647 : vector<1x64xf32> to vector<1x64xf32>
    %653 = vector.broadcast %652 : vector<1x64xf32> to vector<43x64xf32>
    %654 = arith.select %649, %651, %653 : vector<43x64xi1>, vector<43x64xf32>
    %655 = arith.mulf %654, %645 : vector<43x64xf32>
    %656 = arith.addf %542, %655 : vector<43x64xf32>
    %c0_216 = arith.constant 0 : index
    %c256_217 = arith.constant 256 : index
    %657 = vector.load %arg8[%c0_216, %c256_217] : memref<64x512xbf16, #tpu.memory_space<vmem>>, vector<64x128xbf16>
    %658 = arith.truncf %60 : vector<1x64xf32> to vector<1x64xbf16>
    %cst_218 = arith.constant dense<0.000000e+00> : vector<1x128xf32>
    %659 = tpu.matmul %658, %657, %cst_218 {dimension_numbers = #tpu.dot_dimension_numbers<[1], [0], [0], [1], [0, 0, 1, 1], [], []>} : vector<1x64xbf16>, vector<64x128xbf16>, vector<1x128xf32> -> vector<1x128xf32>
    %c0_219 = arith.constant 0 : index
    %c768_220 = arith.constant 768 : index
    %660 = vector.load %arg9[%c0_219, %c768_220] : memref<1x1024xf32, #tpu.memory_space<vmem>>, vector<1x128xf32>
    %661 = arith.addf %659, %660 : vector<1x128xf32>
    %662 = vector.extract_strided_slice %656 {offsets = [0, 0], sizes = [8, 64], strides = [1, 1]} : vector<43x64xf32> to vector<8x64xf32>
    %cst_221 = arith.constant dense<0.000000e+00> : vector<8xf32>
    %663 = vector.multi_reduction <add>, %662, %cst_221 [1] : vector<8x64xf32> to vector<8xf32>
    %664 = vector.shape_cast %663 : vector<8xf32> to vector<8x1xf32>
    %cst_222 = arith.constant 6.400000e+01 : f32
    %665 = vector.broadcast %cst_222 : f32 to vector<8x1xf32>
    %666 = arith.divf %664, %665 : vector<8x1xf32>
    %667 = vector.broadcast %666 : vector<8x1xf32> to vector<8x64xf32>
    %668 = arith.subf %662, %667 : vector<8x64xf32>
    %669 = arith.mulf %668, %668 : vector<8x64xf32>
    %cst_223 = arith.constant dense<0.000000e+00> : vector<8xf32>
    %670 = vector.multi_reduction <add>, %669, %cst_223 [1] : vector<8x64xf32> to vector<8xf32>
    %671 = vector.shape_cast %670 : vector<8xf32> to vector<8x1xf32>
    %cst_224 = arith.constant 6.400000e+01 : f32
    %672 = vector.broadcast %cst_224 : f32 to vector<8x1xf32>
    %673 = arith.divf %671, %672 : vector<8x1xf32>
    %674 = vector.broadcast %666 : vector<8x1xf32> to vector<8x64xf32>
    %675 = arith.subf %662, %674 : vector<8x64xf32>
    %cst_225 = arith.constant 9.99999997E-7 : f32
    %676 = vector.broadcast %cst_225 : f32 to vector<8x1xf32>
    %677 = arith.addf %673, %676 : vector<8x1xf32>
    %678 = math.rsqrt %677 : vector<8x1xf32>
    %679 = vector.broadcast %678 : vector<8x1xf32> to vector<8x64xf32>
    %680 = arith.mulf %675, %679 : vector<8x64xf32>
    %681 = vector.extract_strided_slice %661 {offsets = [0, 64], sizes = [1, 64], strides = [1, 1]} : vector<1x128xf32> to vector<1x64xf32>
    %cst_226 = arith.constant 1.000000e+00 : f32
    %682 = vector.broadcast %cst_226 : f32 to vector<1x64xf32>
    %683 = arith.addf %682, %681 : vector<1x64xf32>
    %684 = vector.broadcast %683 : vector<1x64xf32> to vector<8x64xf32>
    %685 = arith.mulf %680, %684 : vector<8x64xf32>
    %686 = vector.extract_strided_slice %661 {offsets = [0, 0], sizes = [1, 64], strides = [1, 1]} : vector<1x128xf32> to vector<1x64xf32>
    %687 = vector.broadcast %686 : vector<1x64xf32> to vector<8x64xf32>
    %688 = arith.addf %685, %687 : vector<8x64xf32>
    %c0_227 = arith.constant 0 : index
    %c384_228 = arith.constant 384 : index
    %689 = vector.load %arg8[%c0_227, %c384_228] : memref<64x512xbf16, #tpu.memory_space<vmem>>, vector<64x128xbf16>
    %690 = arith.truncf %688 : vector<8x64xf32> to vector<8x64xbf16>
    %cst_229 = arith.constant dense<0.000000e+00> : vector<8x128xf32>
    %691 = tpu.matmul %690, %689, %cst_229 {dimension_numbers = #tpu.dot_dimension_numbers<[1], [0], [0], [1], [0, 0, 1, 1], [], []>} : vector<8x64xbf16>, vector<64x128xbf16>, vector<8x128xf32> -> vector<8x128xf32>
    %c0_230 = arith.constant 0 : index
    %c896 = arith.constant 896 : index
    %692 = vector.load %arg9[%c0_230, %c896] : memref<1x1024xf32, #tpu.memory_space<vmem>>, vector<1x128xf32>
    %693 = vector.broadcast %692 : vector<1x128xf32> to vector<8x128xf32>
    %694 = arith.addf %691, %693 : vector<8x128xf32>
    %c0_231 = arith.constant 0 : index
    %c0_232 = arith.constant 0 : index
    %c0_233 = arith.constant 0 : index
    %695 = vector.load %arg14[%c0_231, %c0_232, %c0_233] : memref<1x8x128xf32, #tpu.memory_space<vmem>>, vector<1x8x128xf32>
    %696 = vector.shape_cast %695 : vector<1x8x128xf32> to vector<8x128xf32>
    %697 = vector.shape_cast %694 : vector<8x128xf32> to vector<1x8x128xf32>
    tpu.vector_store %arg14[%c0_231, %c0_232, %c0_233], %697 {strides = array<i32>} : memref<1x8x128xf32, #tpu.memory_space<vmem>>, vector<1x8x128xf32>,
    return
  }
  func.func @transform_0(%arg0: i32) -> (i32, i32, i32) {
    %c0_i32 = arith.constant 0 : i32
    %c0_i32_0 = arith.constant 0 : i32
    %c0_i32_1 = arith.constant 0 : i32
    return %arg0, %c0_i32, %c0_i32_0 : i32, i32, i32
  }
  func.func @transform_1(%arg0: i32) -> (i32, i32, i32) {
    %c0_i32 = arith.constant 0 : i32
    %c0_i32_0 = arith.constant 0 : i32
    %c0_i32_1 = arith.constant 0 : i32
    return %arg0, %c0_i32, %c0_i32_0 : i32, i32, i32
  }
  func.func @transform_2(%arg0: i32) -> (i32, i32, i32) {
    %c0_i32 = arith.constant 0 : i32
    %c0_i32_0 = arith.constant 0 : i32
    %c0_i32_1 = arith.constant 0 : i32
    return %arg0, %c0_i32, %c0_i32_0 : i32, i32, i32
  }
  func.func @transform_3(%arg0: i32) -> (i32, i32, i32) {
    %c0_i32 = arith.constant 0 : i32
    %c0_i32_0 = arith.constant 0 : i32
    %c0_i32_1 = arith.constant 0 : i32
    return %arg0, %c0_i32, %c0_i32_0 : i32, i32, i32
  }
  func.func @transform_4(%arg0: i32) -> (i32, i32) {
    %c0_i32 = arith.constant 0 : i32
    %c0_i32_0 = arith.constant 0 : i32
    %c0_i32_1 = arith.constant 0 : i32
    return %c0_i32, %c0_i32_0 : i32, i32
  }
  func.func @transform_5(%arg0: i32) -> (i32, i32) {
    %c0_i32 = arith.constant 0 : i32
    %c0_i32_0 = arith.constant 0 : i32
    %c0_i32_1 = arith.constant 0 : i32
    return %c0_i32, %c0_i32_0 : i32, i32
  }
  func.func @transform_6(%arg0: i32) -> (i32, i32) {
    %c0_i32 = arith.constant 0 : i32
    %c0_i32_0 = arith.constant 0 : i32
    %c0_i32_1 = arith.constant 0 : i32
    return %c0_i32, %c0_i32_0 : i32, i32
  }
  func.func @transform_7(%arg0: i32) -> (i32, i32) {
    %c0_i32 = arith.constant 0 : i32
    %c0_i32_0 = arith.constant 0 : i32
    %c0_i32_1 = arith.constant 0 : i32
    return %c0_i32, %c0_i32_0 : i32, i32
  }
  func.func @transform_8(%arg0: i32) -> (i32, i32) {
    %c0_i32 = arith.constant 0 : i32
    %c0_i32_0 = arith.constant 0 : i32
    %c0_i32_1 = arith.constant 0 : i32
    return %c0_i32, %c0_i32_0 : i32, i32
  }
  func.func @transform_9(%arg0: i32) -> (i32, i32) {
    %c0_i32 = arith.constant 0 : i32
    %c0_i32_0 = arith.constant 0 : i32
    %c0_i32_1 = arith.constant 0 : i32
    return %c0_i32, %c0_i32_0 : i32, i32
  }
  func.func @transform_10(%arg0: i32) -> (i32, i32, i32) {
    %c0_i32 = arith.constant 0 : i32
    %c0_i32_0 = arith.constant 0 : i32
    %c0_i32_1 = arith.constant 0 : i32
    %c0_i32_2 = arith.constant 0 : i32
    return %c0_i32, %c0_i32_0, %c0_i32_1 : i32, i32, i32
  }
  func.func @transform_11(%arg0: i32) -> (i32, i32, i32) {
    %c0_i32 = arith.constant 0 : i32
    %c0_i32_0 = arith.constant 0 : i32
    %c0_i32_1 = arith.constant 0 : i32
    %c0_i32_2 = arith.constant 0 : i32
    return %c0_i32, %c0_i32_0, %c0_i32_1 : i32, i32, i32
  }
  func.func @transform_12(%arg0: i32) -> (i32, i32, i32) {
    %c0_i32 = arith.constant 0 : i32
    %c0_i32_0 = arith.constant 0 : i32
    %c0_i32_1 = arith.constant 0 : i32
    %c0_i32_2 = arith.constant 0 : i32
    return %c0_i32, %c0_i32_0, %c0_i32_1 : i32, i32, i32
  }
  func.func @transform_13(%arg0: i32) -> (i32, i32, i32) {
    %c0_i32 = arith.constant 0 : i32
    %c0_i32_0 = arith.constant 0 : i32
    %c0_i32_1 = arith.constant 0 : i32
    return %arg0, %c0_i32, %c0_i32_0 : i32, i32, i32
  }
}

</mosaic_0001>

<llo_original>
// kernel: dit_forward.1
$region0: #{dit_forward.1}
  #allocation0 [shape = 'u32[]', space=smem, size = 0x4, offset = 0x4, fixed_abs, tag = 'smem constant byte address 0x4 - core index']
  #allocation1 [shape = 'u32[144,128]{1,0:T(1,128)}', space=vmem, size = 0x12000, scoped, tag = 'internal scratch']
  %s0 = inlined_call_operand.vmem [shape: f32[2,8,16], index: 0, kind: input, shape index: {}]
  %s1 = inlined_call_operand.vmem [shape: f32[2,35,32], index: 1, kind: input, shape index: {}]
  %s2 = inlined_call_operand.vmem [shape: f32[2,1,256], index: 2, kind: input, shape index: {}]
  %s3 = inlined_call_operand.vmem [shape: f32[2,1,32], index: 3, kind: input, shape index: {}]
  %s4 = inlined_call_operand.vmem [shape: bf16[16,64], index: 4, kind: input, shape index: {}]
  %s5 = inlined_call_operand.vmem [shape: bf16[32,128], index: 5, kind: input, shape index: {}]
  %s6 = inlined_call_operand.vmem [shape: bf16[256,64], index: 6, kind: input, shape index: {}]
  %s7 = inlined_call_operand.vmem [shape: bf16[64,512], index: 7, kind: input, shape index: {}]
  %s8 = inlined_call_operand.vmem [shape: f32[1,1024], index: 8, kind: input, shape index: {}]
  %s9 = inlined_call_operand.vmem [shape: f32[35,64], index: 9, kind: input, shape index: {}]
  %s10 = inlined_call_operand.vmem [shape: bf16[2,128,1344], index: 10, kind: input, shape index: {}]
  %s11 = inlined_call_operand.vmem [shape: bf16[2,512,64], index: 11, kind: input, shape index: {}]
  %s12 = inlined_call_operand.vmem [shape: f32[2,2,1472], index: 12, kind: input, shape index: {}]
  %s13 = inlined_call_operand.hbm [shape: f32[2,8,128], index: 13, kind: output, shape index: {}]
  %s14 = sld [smem:[#allocation0]]
  $region85: #{dit_forward.1} parent=0
    _
  %s16 = ssub.s32 1, %s14
  %s17 = scalar_select 0, %s16, %s14
  $region1: #{dit_forward.1} parent=0
    #allocation2 [shape = 'u8[8192]{0}', space=vmem, size = 0x2000, scoped, tag = 'output window, operand 0']
    #allocation3 [shape = 's32[2]{0}', space=sflag, size = 0x8, scoped, tag = 'scoped memory for dit_forward.1']
    %18 = vsyncpa [#allocation3], 0
    %s19 = scalar_lea.sflag [#allocation3], 1
    %20 = vsyncpa %s19, 0
    loop: start=0, step=1, limit=4
    $region2: #{dit_forward.1} parent=1 // loop_pre_header
      _
    $region3: #{dit_forward.1} parent=1 // loop_header
      %s22 = sphi 0, %s26
      %p23 = scmp.ge.s32.totalorder %s22, 4
      %s32 = sphi 0, %s34
      %s35 = sphi 0, %s32
      %s36 = sphi 0, %s35
      %s52 = sphi 0, %s36
      %s58 = sphi 0, %s60
      %s61 = sphi 0, %s58
      %s62 = sphi 0, %s61
      %s78 = sphi 0, %s62
      %s84 = sphi 0, %s86
      %s87 = sphi 0, %s84
      %s88 = sphi 0, %s87
      %s104 = sphi 0, %s88
      %s110 = sphi 0, %s112
      %s113 = sphi 0, %s110
      %s114 = sphi 0, %s113
      %s130 = sphi 0, %s114
      %s134 = sphi 0, %s134
      %s136 = sphi 0, %s134
      %s137 = sphi 0, %s136
      %s151 = sphi 0, %s137
      %s155 = sphi 0, %s155
      %s157 = sphi 0, %s155
      %s158 = sphi 0, %s157
      %s172 = sphi 0, %s158
      %s176 = sphi 0, %s176
      %s178 = sphi 0, %s176
      %s179 = sphi 0, %s178
      %s193 = sphi 0, %s179
      %s197 = sphi 0, %s197
      %s199 = sphi 0, %s197
      %s200 = sphi 0, %s199
      %s214 = sphi 0, %s200
      %s218 = sphi 0, %s218
      %s220 = sphi 0, %s218
      %s221 = sphi 0, %s220
      %s235 = sphi 0, %s221
      %s239 = sphi 0, %s239
      %s241 = sphi 0, %s239
      %s242 = sphi 0, %s241
      %s256 = sphi 0, %s242
      %s260 = sphi 0, %s260
      %s262 = sphi 0, %s260
      %s263 = sphi 0, %s262
      %s277 = sphi 0, %s263
      %s281 = sphi 0, %s281
      %s283 = sphi 0, %s281
      %s284 = sphi 0, %s283
      %s298 = sphi 0, %s284
      %s302 = sphi 0, %s302
      %s304 = sphi 0, %s302
      %s305 = sphi 0, %s304
      %s319 = sphi 0, %s305
      %s325 = sphi 0, %s327
      %s328 = sphi 0, %s325
      %s329 = sphi 0, %s328
      %s345 = sphi 0, %s329
    $region4: #{dit_forward.1} parent=1 // loop_header_branch
      %25 = sbr.rel (%p23) target = $region8
    $region5: #{dit_forward.1} parent=1 // loop_body
      %s27 = ssub.s32 %s22, 1
      %s28 = ssub.s32 %s22, 2
      %s29 = sadd.s32 %s22, 1
      %s30 = ssub.s32 %s22, %s29
      %p31 = scmp.eq.s32.totalorder %s30, 0
      %s33 = sadd.s32 %s32, 1
      %s34 = scalar_select %p31, %s32, %s33
      %p37 = pneg %p31
      %p38 = scmp.eq.s32.totalorder %s22, 1
      %p39 = por %p37, %p38
      %p40 = scmp.ne.s32.totalorder %s32, %s35
      %p41 = scmp.eq.s32.totalorder %s22, 0
      %p42 = por %p40, %p41
      %p43 = scmp.ne.s32.totalorder %s32, %s35
      %p44 = scmp.eq.s32.totalorder %s27, 1
      %p45 = por %p43, %p44
      %p46 = scmp.ne.s32.totalorder %s35, %s36
      %p47 = scmp.eq.s32.totalorder %s27, 0
      %p48 = por %p46, %p47
      %p49 = scmp.ne.s32.totalorder %s35, %s36
      %p50 = scmp.eq.s32.totalorder %s28, 1
      %p51 = por %p49, %p50
      %p53 = scmp.ne.s32.totalorder %s36, %s52
      %p54 = scmp.eq.s32.totalorder %s28, 0
      %p55 = por %p53, %p54
      %s56 = ssub.s32 %s22, %s29
      %p57 = scmp.eq.s32.totalorder %s56, 0
      %s59 = sadd.s32 %s58, 1
      %s60 = scalar_select %p57, %s58, %s59
      %p63 = pneg %p57
      %p64 = scmp.eq.s32.totalorder %s22, 1
      %p65 = por %p63, %p64
      %p66 = scmp.ne.s32.totalorder %s58, %s61
      %p67 = scmp.eq.s32.totalorder %s22, 0
      %p68 = por %p66, %p67
      %p69 = scmp.ne.s32.totalorder %s58, %s61
      %p70 = scmp.eq.s32.totalorder %s27, 1
      %p71 = por %p69, %p70
      %p72 = scmp.ne.s32.totalorder %s61, %s62
      %p73 = scmp.eq.s32.totalorder %s27, 0
      %p74 = por %p72, %p73
      %p75 = scmp.ne.s32.totalorder %s61, %s62
      %p76 = scmp.eq.s32.totalorder %s28, 1
      %p77 = por %p75, %p76
      %p79 = scmp.ne.s32.totalorder %s62, %s78
      %p80 = scmp.eq.s32.totalorder %s28, 0
      %p81 = por %p79, %p80
      %s82 = ssub.s32 %s22, %s29
      %p83 = scmp.eq.s32.totalorder %s82, 0
      %s85 = sadd.s32 %s84, 1
      %s86 = scalar_select %p83, %s84, %s85
      %p89 = pneg %p83
      %p90 = scmp.eq.s32.totalorder %s22, 1
      %p91 = por %p89, %p90
      %p92 = scmp.ne.s32.totalorder %s84, %s87
      %p93 = scmp.eq.s32.totalorder %s22, 0
      %p94 = por %p92, %p93
      %p95 = scmp.ne.s32.totalorder %s84, %s87
      %p96 = scmp.eq.s32.totalorder %s27, 1
      %p97 = por %p95, %p96
      %p98 = scmp.ne.s32.totalorder %s87, %s88
      %p99 = scmp.eq.s32.totalorder %s27, 0
      %p100 = por %p98, %p99
      %p101 = scmp.ne.s32.totalorder %s87, %s88
      %p102 = scmp.eq.s32.totalorder %s28, 1
      %p103 = por %p101, %p102
      %p105 = scmp.ne.s32.totalorder %s88, %s104
      %p106 = scmp.eq.s32.totalorder %s28, 0
      %p107 = por %p105, %p106
      %s108 = ssub.s32 %s22, %s29
      %p109 = scmp.eq.s32.totalorder %s108, 0
      %s111 = sadd.s32 %s110, 1
      %s112 = scalar_select %p109, %s110, %s111
      %p115 = pneg %p109
      %p116 = scmp.eq.s32.totalorder %s22, 1
      %p117 = por %p115, %p116
      %p118 = scmp.ne.s32.totalorder %s110, %s113
      %p119 = scmp.eq.s32.totalorder %s22, 0
      %p120 = por %p118, %p119
      %p121 = scmp.ne.s32.totalorder %s110, %s113
      %p122 = scmp.eq.s32.totalorder %s27, 1
      %p123 = por %p121, %p122
      %p124 = scmp.ne.s32.totalorder %s113, %s114
      %p125 = scmp.eq.s32.totalorder %s27, 0
      %p126 = por %p124, %p125
      %p127 = scmp.ne.s32.totalorder %s113, %s114
      %p128 = scmp.eq.s32.totalorder %s28, 1
      %p129 = por %p127, %p128
      %p131 = scmp.ne.s32.totalorder %s114, %s130
      %p132 = scmp.eq.s32.totalorder %s28, 0
      %p133 = por %p131, %p132
      %s135 = sadd.s32 %s134, 1
      %p138 = scmp.eq.s32.totalorder %s22, 1
      %p139 = scmp.ne.s32.totalorder %s134, %s136
      %p140 = scmp.eq.s32.totalorder %s22, 0
      %p141 = por %p139, %p140
      %p142 = scmp.ne.s32.totalorder %s134, %s136
      %p143 = scmp.eq.s32.totalorder %s27, 1
      %p144 = por %p142, %p143
      %p145 = scmp.ne.s32.totalorder %s136, %s137
      %p146 = scmp.eq.s32.totalorder %s27, 0
      %p147 = por %p145, %p146
      %p148 = scmp.ne.s32.totalorder %s136, %s137
      %p149 = scmp.eq.s32.totalorder %s28, 1
      %p150 = por %p148, %p149
      %p152 = scmp.ne.s32.totalorder %s137, %s151
      %p153 = scmp.eq.s32.totalorder %s28, 0
      %p154 = por %p152, %p153
      %s156 = sadd.s32 %s155, 1
      %p159 = scmp.eq.s32.totalorder %s22, 1
      %p160 = scmp.ne.s32.totalorder %s155, %s157
      %p161 = scmp.eq.s32.totalorder %s22, 0
      %p162 = por %p160, %p161
      %p163 = scmp.ne.s32.totalorder %s155, %s157
      %p164 = scmp.eq.s32.totalorder %s27, 1
      %p165 = por %p163, %p164
      %p166 = scmp.ne.s32.totalorder %s157, %s158
      %p167 = scmp.eq.s32.totalorder %s27, 0
      %p168 = por %p166, %p167
      %p169 = scmp.ne.s32.totalorder %s157, %s158
      %p170 = scmp.eq.s32.totalorder %s28, 1
      %p171 = por %p169, %p170
      %p173 = scmp.ne.s32.totalorder %s158, %s172
      %p174 = scmp.eq.s32.totalorder %s28, 0
      %p175 = por %p173, %p174
      %s177 = sadd.s32 %s176, 1
      %p180 = scmp.eq.s32.totalorder %s22, 1
      %p181 = scmp.ne.s32.totalorder %s176, %s178
      %p182 = scmp.eq.s32.totalorder %s22, 0
      %p183 = por %p181, %p182
      %p184 = scmp.ne.s32.totalorder %s176, %s178
      %p185 = scmp.eq.s32.totalorder %s27, 1
      %p186 = por %p184, %p185
      %p187 = scmp.ne.s32.totalorder %s178, %s179
      %p188 = scmp.eq.s32.totalorder %s27, 0
      %p189 = por %p187, %p188
      %p190 = scmp.ne.s32.totalorder %s178, %s179
      %p191 = scmp.eq.s32.totalorder %s28, 1
      %p192 = por %p190, %p191
      %p194 = scmp.ne.s32.totalorder %s179, %s193
      %p195 = scmp.eq.s32.totalorder %s28, 0
      %p196 = por %p194, %p195
      %s198 = sadd.s32 %s197, 1
      %p201 = scmp.eq.s32.totalorder %s22, 1
      %p202 = scmp.ne.s32.totalorder %s197, %s199
      %p203 = scmp.eq.s32.totalorder %s22, 0
      %p204 = por %p202, %p203
      %p205 = scmp.ne.s32.totalorder %s197, %s199
      %p206 = scmp.eq.s32.totalorder %s27, 1
      %p207 = por %p205, %p206
      %p208 = scmp.ne.s32.totalorder %s199, %s200
      %p209 = scmp.eq.s32.totalorder %s27, 0
      %p210 = por %p208, %p209
      %p211 = scmp.ne.s32.totalorder %s199, %s200
      %p212 = scmp.eq.s32.totalorder %s28, 1
      %p213 = por %p211, %p212
      %p215 = scmp.ne.s32.totalorder %s200, %s214
      %p216 = scmp.eq.s32.totalorder %s28, 0
      %p217 = por %p215, %p216
      %s219 = sadd.s32 %s218, 1
      %p222 = scmp.eq.s32.totalorder %s22, 1
      %p223 = scmp.ne.s32.totalorder %s218, %s220
      %p224 = scmp.eq.s32.totalorder %s22, 0
      %p225 = por %p223, %p224
      %p226 = scmp.ne.s32.totalorder %s218, %s220
      %p227 = scmp.eq.s32.totalorder %s27, 1
      %p228 = por %p226, %p227
      %p229 = scmp.ne.s32.totalorder %s220, %s221
      %p230 = scmp.eq.s32.totalorder %s27, 0
      %p231 = por %p229, %p230
      %p232 = scmp.ne.s32.totalorder %s220, %s221
      %p233 = scmp.eq.s32.totalorder %s28, 1
      %p234 = por %p232, %p233
      %p236 = scmp.ne.s32.totalorder %s221, %s235
      %p237 = scmp.eq.s32.totalorder %s28, 0
      %p238 = por %p236, %p237
      %s240 = sadd.s32 %s239, 1
      %p243 = scmp.eq.s32.totalorder %s22, 1
      %p244 = scmp.ne.s32.totalorder %s239, %s241
      %p245 = scmp.eq.s32.totalorder %s22, 0
      %p246 = por %p244, %p245
      %p247 = scmp.ne.s32.totalorder %s239, %s241
      %p248 = scmp.eq.s32.totalorder %s27, 1
      %p249 = por %p247, %p248
      %p250 = scmp.ne.s32.totalorder %s241, %s242
      %p251 = scmp.eq.s32.totalorder %s27, 0
      %p252 = por %p250, %p251
      %p253 = scmp.ne.s32.totalorder %s241, %s242
      %p254 = scmp.eq.s32.totalorder %s28, 1
      %p255 = por %p253, %p254
      %p257 = scmp.ne.s32.totalorder %s242, %s256
      %p258 = scmp.eq.s32.totalorder %s28, 0
      %p259 = por %p257, %p258
      %s261 = sadd.s32 %s260, 1
      %p264 = scmp.eq.s32.totalorder %s22, 1
      %p265 = scmp.ne.s32.totalorder %s260, %s262
      %p266 = scmp.eq.s32.totalorder %s22, 0
      %p267 = por %p265, %p266
      %p268 = scmp.ne.s32.totalorder %s260, %s262
      %p269 = scmp.eq.s32.totalorder %s27, 1
      %p270 = por %p268, %p269
      %p271 = scmp.ne.s32.totalorder %s262, %s263
      %p272 = scmp.eq.s32.totalorder %s27, 0
      %p273 = por %p271, %p272
      %p274 = scmp.ne.s32.totalorder %s262, %s263
      %p275 = scmp.eq.s32.totalorder %s28, 1
      %p276 = por %p274, %p275
      %p278 = scmp.ne.s32.totalorder %s263, %s277
      %p279 = scmp.eq.s32.totalorder %s28, 0
      %p280 = por %p278, %p279
      %s282 = sadd.s32 %s281, 1
      %p285 = scmp.eq.s32.totalorder %s22, 1
      %p286 = scmp.ne.s32.totalorder %s281, %s283
      %p287 = scmp.eq.s32.totalorder %s22, 0
      %p288 = por %p286, %p287
      %p289 = scmp.ne.s32.totalorder %s281, %s283
      %p290 = scmp.eq.s32.totalorder %s27, 1
      %p291 = por %p289, %p290
      %p292 = scmp.ne.s32.totalorder %s283, %s284
      %p293 = scmp.eq.s32.totalorder %s27, 0
      %p294 = por %p292, %p293
      %p295 = scmp.ne.s32.totalorder %s283, %s284
      %p296 = scmp.eq.s32.totalorder %s28, 1
      %p297 = por %p295, %p296
      %p299 = scmp.ne.s32.totalorder %s284, %s298
      %p300 = scmp.eq.s32.totalorder %s28, 0
      %p301 = por %p299, %p300
      %s303 = sadd.s32 %s302, 1
      %p306 = scmp.eq.s32.totalorder %s22, 1
      %p307 = scmp.ne.s32.totalorder %s302, %s304
      %p308 = scmp.eq.s32.totalorder %s22, 0
      %p309 = por %p307, %p308
      %p310 = scmp.ne.s32.totalorder %s302, %s304
      %p311 = scmp.eq.s32.totalorder %s27, 1
      %p312 = por %p310, %p311
      %p313 = scmp.ne.s32.totalorder %s304, %s305
      %p314 = scmp.eq.s32.totalorder %s27, 0
      %p315 = por %p313, %p314
      %p316 = scmp.ne.s32.totalorder %s304, %s305
      %p317 = scmp.eq.s32.totalorder %s28, 1
      %p318 = por %p316, %p317
      %p320 = scmp.ne.s32.totalorder %s305, %s319
      %p321 = scmp.eq.s32.totalorder %s28, 0
      %p322 = por %p320, %p321
      %s323 = ssub.s32 %s22, %s29
      %p324 = scmp.eq.s32.totalorder %s323, 0
      %s326 = sadd.s32 %s325, 1
      %s327 = scalar_select %p324, %s325, %s326
      %p330 = pneg %p324
      %p331 = scmp.eq.s32.totalorder %s22, 1
      %p332 = por %p330, %p331
      %p333 = scmp.ne.s32.totalorder %s325, %s328
      %p334 = scmp.eq.s32.totalorder %s22, 0
      %p335 = por %p333, %p334
      %p336 = scmp.ne.s32.totalorder %s325, %s328
      %p337 = scmp.eq.s32.totalorder %s27, 1
      %p338 = por %p336, %p337
      %p339 = scmp.ne.s32.totalorder %s328, %s329
      %p340 = scmp.eq.s32.totalorder %s27, 0
      %p341 = por %p339, %p340
      %p342 = scmp.ne.s32.totalorder %s328, %s329
      %p343 = scmp.eq.s32.totalorder %s28, 1
      %p344 = por %p342, %p343
      %p346 = scmp.ne.s32.totalorder %s329, %s345
      %p347 = scmp.eq.s32.totalorder %s28, 0
      %p348 = por %p346, %p347
      %p349 = scmp.le.s32.totalorder 1, %s22
      %p350 = scmp.lt.s32.totalorder %s22, 3
      %p351 = pnand %p349, %p350
      %p352 = pneg %p351
      // Predicated region
      $region9: #{dit_forward.1} parent=5 // pred_check
        _
      $region10: #{dit_forward.1} parent=5 // pred_check_branch
        %354 = sbr.rel (%p351) target = $region12
      $region11: #{dit_forward.1} parent=5 // pred_region
        %s355 = ssub.s32 %s22, 1
        // Predicated region
        $region13: #{dit_forward.1} parent=11 // pred_check
          %p356 = pneg %p147
        $region14: #{dit_forward.1} parent=11 // pred_check_branch
          %358 = sbr.rel (%p356) target = $region16
        $region15: #{dit_forward.1} parent=11 // pred_region
          _
        $region16: #{dit_forward.1} parent=11 // pred_fallthru
          _
        // Predicated region
        $region17: #{dit_forward.1} parent=11 // pred_check
          %p359 = pneg %p168
        $region18: #{dit_forward.1} parent=11 // pred_check_branch
          %361 = sbr.rel (%p359) target = $region20
        $region19: #{dit_forward.1} parent=11 // pred_region
          _
        $region20: #{dit_forward.1} parent=11 // pred_fallthru
          _
        // Predicated region
        $region21: #{dit_forward.1} parent=11 // pred_check
          %p362 = pneg %p189
        $region22: #{dit_forward.1} parent=11 // pred_check_branch
          %364 = sbr.rel (%p362) target = $region24
        $region23: #{dit_forward.1} parent=11 // pred_region
          _
        $region24: #{dit_forward.1} parent=11 // pred_fallthru
          _
        // Predicated region
        $region25: #{dit_forward.1} parent=11 // pred_check
          %p365 = pneg %p210
        $region26: #{dit_forward.1} parent=11 // pred_check_branch
          %367 = sbr.rel (%p365) target = $region28
        $region27: #{dit_forward.1} parent=11 // pred_region
          _
        $region28: #{dit_forward.1} parent=11 // pred_fallthru
          _
        // Predicated region
        $region29: #{dit_forward.1} parent=11 // pred_check
          %p368 = pneg %p231
        $region30: #{dit_forward.1} parent=11 // pred_check_branch
          %370 = sbr.rel (%p368) target = $region32
        $region31: #{dit_forward.1} parent=11 // pred_region
          _
        $region32: #{dit_forward.1} parent=11 // pred_fallthru
          _
        // Predicated region
        $region33: #{dit_forward.1} parent=11 // pred_check
          %p371 = pneg %p252
        $region34: #{dit_forward.1} parent=11 // pred_check_branch
          %373 = sbr.rel (%p371) target = $region36
        $region35: #{dit_forward.1} parent=11 // pred_region
          _
        $region36: #{dit_forward.1} parent=11 // pred_fallthru
          _
        // Predicated region
        $region37: #{dit_forward.1} parent=11 // pred_check
          %p374 = pneg %p273
        $region38: #{dit_forward.1} parent=11 // pred_check_branch
          %376 = sbr.rel (%p374) target = $region40
        $region39: #{dit_forward.1} parent=11 // pred_region
          _
        $region40: #{dit_forward.1} parent=11 // pred_fallthru
          _
        // Predicated region
        $region41: #{dit_forward.1} parent=11 // pred_check
          %p377 = pneg %p294
        $region42: #{dit_forward.1} parent=11 // pred_check_branch
          %379 = sbr.rel (%p377) target = $region44
        $region43: #{dit_forward.1} parent=11 // pred_region
          _
        $region44: #{dit_forward.1} parent=11 // pred_fallthru
          _
        // Predicated region
        $region45: #{dit_forward.1} parent=11 // pred_check
          %p380 = pneg %p315
        $region46: #{dit_forward.1} parent=11 // pred_check_branch
          %382 = sbr.rel (%p380) target = $region48
        $region47: #{dit_forward.1} parent=11 // pred_region
          _
        $region48: #{dit_forward.1} parent=11 // pred_fallthru
          _
      $region12: #{dit_forward.1} parent=5 // pred_fallthru
        _
      %p383 = scmp.lt.s32.totalorder %s22, 2
      // Predicated region
      $region49: #{dit_forward.1} parent=5 // pred_check
        %p384 = pneg %p383
      $region50: #{dit_forward.1} parent=5 // pred_check_branch
        %386 = sbr.rel (%p384) target = $region52
      $region51: #{dit_forward.1} parent=5 // pred_region
        // Predicated region
        $region53: #{dit_forward.1} parent=51 // pred_check
          %p387 = pneg %p42
        $region54: #{dit_forward.1} parent=51 // pred_check_branch
          %389 = sbr.rel (%p387) target = $region56
        $region55: #{dit_forward.1} parent=51 // pred_region
          %p390 = scmp.lt.s32.totalorder %s22, 1
          %s391 = scalar_select %p390, %s22, 1
          %s392 = smul.addr %s391, 8
          %s393 = scalar_lea.vmem %s0, %s392
        $region56: #{dit_forward.1} parent=51 // pred_fallthru
          _
        // Predicated region
        $region57: #{dit_forward.1} parent=51 // pred_check
          %p394 = pneg %p68
        $region58: #{dit_forward.1} parent=51 // pred_check_branch
          %396 = sbr.rel (%p394) target = $region60
        $region59: #{dit_forward.1} parent=51 // pred_region
          %p397 = scmp.lt.s32.totalorder %s22, 1
          %s398 = scalar_select %p397, %s22, 1
          %s399 = smul.addr %s398, 5
          %s400 = smul.addr %s399, 8
          %s401 = scalar_lea.vmem %s1, %s400
        $region60: #{dit_forward.1} parent=51 // pred_fallthru
          _
        // Predicated region
        $region61: #{dit_forward.1} parent=51 // pred_check
          %p402 = pneg %p94
        $region62: #{dit_forward.1} parent=51 // pred_check_branch
          %404 = sbr.rel (%p402) target = $region64
        $region63: #{dit_forward.1} parent=51 // pred_region
          %p405 = scmp.lt.s32.totalorder %s22, 1
          %s406 = scalar_select %p405, %s22, 1
          %s407 = smul.addr %s406, 2
          %s408 = scalar_lea.vmem %s2, %s407
        $region64: #{dit_forward.1} parent=51 // pred_fallthru
          _
        // Predicated region
        $region65: #{dit_forward.1} parent=51 // pred_check
          %p409 = pneg %p120
        $region66: #{dit_forward.1} parent=51 // pred_check_branch
          %411 = sbr.rel (%p409) target = $region68
        $region67: #{dit_forward.1} parent=51 // pred_region
          %p412 = scmp.lt.s32.totalorder %s22, 1
          %s413 = scalar_select %p412, %s22, 1
          %s414 = scalar_lea.vmem %s3, %s413
        $region68: #{dit_forward.1} parent=51 // pred_fallthru
          _
      $region52: #{dit_forward.1} parent=5 // pred_fallthru
        _
      %p415 = scmp.le.s32.totalorder 1, %s22
      %p416 = scmp.lt.s32.totalorder %s22, 3
      %p417 = pnand %p415, %p416
      %p418 = pneg %p417
      // Predicated region
      $region69: #{dit_forward.1} parent=5 // pred_check
        _
      $region70: #{dit_forward.1} parent=5 // pred_check_branch
        %420 = sbr.rel (%p417) target = $region72
      $region71: #{dit_forward.1} parent=5 // pred_region
        %s421 = ssub.s32 %s22, 1
        %p422 = scmp.lt.s32.totalorder %s27, 1
        %s423 = scalar_select %p422, %s27, 1
        %s424 = smul.addr %s423, 8
        %s425 = scalar_lea.vmem %s0, %s424
        %p426 = pneg %p48
        %p427 = pneg %p45
        %p428 = scmp.lt.s32.totalorder %s27, 1
        %s429 = scalar_select %p428, %s27, 1
        %s430 = smul.addr %s429, 5
        %s431 = smul.addr %s430, 8
        %s432 = scalar_lea.vmem %s1, %s431
        %p433 = pneg %p74
        %p434 = pneg %p71
        %p435 = scmp.lt.s32.totalorder %s27, 1
        %s436 = scalar_select %p435, %s27, 1
        %s437 = smul.addr %s436, 2
        %s438 = scalar_lea.vmem %s2, %s437
        %p439 = pneg %p100
        %p440 = pneg %p97
        %p441 = scmp.lt.s32.totalorder %s27, 1
        %s442 = scalar_select %p441, %s27, 1
        %s443 = scalar_lea.vmem %s3, %s442
        %p444 = pneg %p126
        %p445 = pneg %p123
        %p446 = pneg %p147
        %p447 = pneg %p144
        %p448 = pneg %p168
        %p449 = pneg %p165
        %p450 = pneg %p189
        %p451 = pneg %p186
        %p452 = pneg %p210
        %p453 = pneg %p207
        %p454 = pneg %p231
        %p455 = pneg %p228
        %p456 = pneg %p252
        %p457 = pneg %p249
        %p458 = pneg %p273
        %p459 = pneg %p270
        %p460 = pneg %p294
        %p461 = pneg %p291
        %p462 = pneg %p315
        %p463 = pneg %p312
        %p464 = pneg %p341
        %p465 = pneg %p338
        %s466 = sand.u32 %s328, 1
        %s467 = scalar_lea.sflag [#allocation3], %s466
        %s468 = sand.u32 %s328, 1
        %s469 = smul.addr %s468, 8
        %s470 = scalar_lea.vmem [#allocation2], %s469
        %p471 = scmp.lt.s32.totalorder %s27, 1
        %s472 = scalar_select %p471, %s27, 1
        %s473 = smul.addr %s472, 8
        %s474 = scalar_lea.vmem %s0, %s473
        %p475 = scmp.lt.s32.totalorder %s27, 1
        %s476 = scalar_select %p475, %s27, 1
        %s477 = smul.addr %s476, 5
        %s478 = smul.addr %s477, 8
        %s479 = scalar_lea.vmem %s1, %s478
        %p480 = scmp.lt.s32.totalorder %s27, 1
        %s481 = scalar_select %p480, %s27, 1
        %s482 = smul.addr %s481, 2
        %s483 = scalar_lea.vmem %s2, %s482
        %p484 = scmp.lt.s32.totalorder %s27, 1
        %s485 = scalar_select %p484, %s27, 1
        %s486 = scalar_lea.vmem %s3, %s485
        %v488 = vld [vmem:[%s474] sm:$0xff]
        %v489 = vld [vmem:[%s4] sm:$0xf]
        %v490 = vld [vmem:[%s4 + $0x4] sm:$0xf]
        %v491 = vpack.c.bf16 %v488, %v488
        %v492 = vld [vmem:[%s8] sm:$0x1]
        %v494 = vlaneseq
        %v495 = vshrl.u32 %v494, 7
        %v496 = vsub.s32 0, %v495
        %v497 = vrot.slane %v492, %v496
        %v501 = vunpack.c.l.b16 %v489
        %v502 = vunpack.c.l.b16 %v490
        %v503 = vpack.c.b16 %v502, %v501
        %vm505 = vcmask 130048
        %v507 = vsel %vm505, %v491, 0
        %509 = vmatprep.subr.bf16.mxu0 0
        %510 = vmatpush1.bf16.msra.mxu0 %v503
        %511 = vmatprep.subr.bf16.mxu0 0
        %512 = vmatpush1.bf16.msra.mxu0 0
        %513 = vmatprep.subr.bf16.mxu0 0
        %514 = vmatpush1.bf16.msra.mxu0 0
        %515 = vmatprep.subr.bf16.mxu0 0
        %516 = vmatpush1.bf16.msra.mxu0 0
        %517 = vmatprep.subr.bf16.mxu0 0
        %518 = vmatpush1.bf16.msra.mxu0 0
        %519 = vmatprep.subr.bf16.mxu0 0
        %520 = vmatpush1.bf16.msra.mxu0 0
        %521 = vmatprep.subr.bf16.mxu0 0
        %522 = vmatpush1.bf16.msra.mxu0 0
        %523 = vmatprep.subr.bf16.mxu0 0
        %524 = vmatpush1.bf16.msra.mxu0 0
        %525 = vmatprep.subr.bf16.mxu0 0
        %526 = vmatpush1.bf16.msra.mxu0 0
        %527 = vmatprep.subr.bf16.mxu0 0
        %528 = vmatpush1.bf16.msra.mxu0 0
        %529 = vmatprep.subr.bf16.mxu0 0
        %530 = vmatpush1.bf16.msra.mxu0 0
        %531 = vmatprep.subr.bf16.mxu0 0
        %532 = vmatpush1.bf16.msra.mxu0 0
        %533 = vmatprep.subr.bf16.mxu0 0
        %534 = vmatpush1.bf16.msra.mxu0 0
        %535 = vmatprep.subr.bf16.mxu0 0
        %536 = vmatpush1.bf16.msra.mxu0 0
        %537 = vmatprep.subr.bf16.mxu0 0
        %538 = vmatpush1.bf16.msra.mxu0 0
        %539 = vmatprep.subr.bf16.mxu0 0
        %540 = vmatpush1.bf16.msra.mxu0 0
        %541 = vmatprep.mubr.bf16.mxu0 0
        %542 = vmatmul.mubr.bf16.gmra.mrb[0].mxu0 %v507
        %v543 = vpop.f32.mrb[0].mxu0
        %v544 = vadd.f32 %v497, %v543
        %v545 = vpop.f32.mrb[0].mxu0
        %v546 = vpop.f32.mrb[0].mxu0
        %v547 = vpop.f32.mrb[0].mxu0
        %548 = vdwg.mxu0
        %v549 = vld [vmem:[%s479] sm:$0xff]
        %v550 = vld [vmem:[%s479 + $0x8] sm:$0xff]
        %v551 = vld [vmem:[%s479 + $0x10] sm:$0xff]
        %v552 = vld [vmem:[%s479 + $0x18] sm:$0xff]
        %v553 = vld [vmem:[%s479 + $0x20] sm:$0x7]
        %v554 = vld [vmem:[%s5] sm:$0xf]
        %v555 = vld [vmem:[%s5 + $0x4] sm:$0xf]
        %v556 = vld [vmem:[%s5 + $0x8] sm:$0xf]
        %v557 = vld [vmem:[%s5 + $0xc] sm:$0xf]
        %v558 = vpack.c.bf16 %v550, %v549
        %v559 = vpack.c.bf16 %v552, %v551
        %v560 = vpack.c.bf16 %v553, %v553
        %v561 = vld [vmem:[%s8 + $0x1] sm:$0x1]
        %v563 = vlaneseq
        %v564 = vshrl.u32 %v563, 7
        %v565 = vsub.s32 0, %v564
        %v566 = vrot.slane %v561, %v565
        %v572 = vunpack.c.l.b16 %v554
        %v573 = vunpack.c.l.b16 %v555
        %v574 = vunpack.c.l.b16 %v556
        %v575 = vunpack.c.l.b16 %v557
        %v576 = vpack.c.b16 %v573, %v572
        %v577 = vpack.c.b16 %v575, %v574
        %vm580 = vcmask 261120
        %v582 = vsel %vm580, %v558, 0
        %v585 = vsel %vm580, %v559, 0
        %v588 = vsel %vm580, %v560, 0
        %590 = vmatprep.subr.bf16.mxu0 0
        %591 = vmatpush1.bf16.msra.mxu0 %v576
        %592 = vmatprep.subr.bf16.mxu0 0
        %593 = vmatpush1.bf16.msra.mxu0 %v577
        %594 = vmatprep.subr.bf16.mxu0 0
        %595 = vmatpush1.bf16.msra.mxu0 0
        %596 = vmatprep.subr.bf16.mxu0 0
        %597 = vmatpush1.bf16.msra.mxu0 0
        %598 = vmatprep.subr.bf16.mxu0 0
        %599 = vmatpush1.bf16.msra.mxu0 0
        %600 = vmatprep.subr.bf16.mxu0 0
        %601 = vmatpush1.bf16.msra.mxu0 0
        %602 = vmatprep.subr.bf16.mxu0 0
        %603 = vmatpush1.bf16.msra.mxu0 0
        %604 = vmatprep.subr.bf16.mxu0 0
        %605 = vmatpush1.bf16.msra.mxu0 0
        %606 = vmatprep.subr.bf16.mxu0 0
        %607 = vmatpush1.bf16.msra.mxu0 0
        %608 = vmatprep.subr.bf16.mxu0 0
        %609 = vmatpush1.bf16.msra.mxu0 0
        %610 = vmatprep.subr.bf16.mxu0 0
        %611 = vmatpush1.bf16.msra.mxu0 0
        %612 = vmatprep.subr.bf16.mxu0 0
        %613 = vmatpush1.bf16.msra.mxu0 0
        %614 = vmatprep.subr.bf16.mxu0 0
        %615 = vmatpush1.bf16.msra.mxu0 0
        %616 = vmatprep.subr.bf16.mxu0 0
        %617 = vmatpush1.bf16.msra.mxu0 0
        %618 = vmatprep.subr.bf16.mxu0 0
        %619 = vmatpush1.bf16.msra.mxu0 0
        %620 = vmatprep.subr.bf16.mxu0 0
        %621 = vmatpush1.bf16.msra.mxu0 0
        %622 = vmatprep.mubr.bf16.mxu0 0
        %623 = vmatmul.mubr.bf16.gmra.mrb[0].mxu0 %v582
        %v624 = vpop.f32.mrb[0].mxu0
        %v625 = vadd.f32 %v566, %v624
        %v626 = vpop.f32.mrb[0].mxu0
        %v627 = vpop.f32.mrb[0].mxu0
        %v628 = vadd.f32 %v566, %v627
        %v629 = vpop.f32.mrb[0].mxu0
        %630 = vmatprep.mubr.bf16.mxu0 0
        %631 = vmatmul.mubr.bf16.gmra.mrb[0].mxu0 %v585
        %v632 = vpop.f32.mrb[0].mxu0
        %v633 = vadd.f32 %v566, %v632
        %v634 = vpop.f32.mrb[0].mxu0
        %v635 = vpop.f32.mrb[0].mxu0
        %v636 = vadd.f32 %v566, %v635
        %v637 = vpop.f32.mrb[0].mxu0
        %638 = vmatprep.mubr.bf16.mxu0 0
        %639 = vmatmul.mubr.bf16.gmra.mrb[0].mxu0 %v588
        %v640 = vpop.f32.mrb[0].mxu0
        %v641 = vadd.f32 %v566, %v640
        %v642 = vpop.f32.mrb[0].mxu0
        %v643 = vpop.f32.mrb[0].mxu0
        %v644 = vpop.f32.mrb[0].mxu0
        %645 = vdwg.mxu0
        %v646 = vld [vmem:[%s9] sm:$0xff]
        %v647 = vld [vmem:[%s9 + $0x8] sm:$0xff]
        %v648 = vld [vmem:[%s9 + $0x10] sm:$0xff]
        %v649 = vld [vmem:[%s9 + $0x18] sm:$0xff]
        %v650 = vld [vmem:[%s9 + $0x20] sm:$0x7]
        %v651 = vadd.f32 %v625, %v646
        %v652 = vadd.f32 %v628, %v647
        %v653 = vadd.f32 %v633, %v648
        %v654 = vadd.f32 %v636, %v649
        %v655 = vadd.f32 %v641, %v650
        %v656 = vld [vmem:[%s483] sm:$0x3]
        %v657 = vld [vmem:[%s6] sm:$0xf]
        %v658 = vld [vmem:[%s6 + $0x4] sm:$0xf]
        %v659 = vld [vmem:[%s6 + $0x8] sm:$0xf]
        %v660 = vld [vmem:[%s6 + $0xc] sm:$0xf]
        %v661 = vld [vmem:[%s6 + $0x10] sm:$0xf]
        %v662 = vld [vmem:[%s6 + $0x14] sm:$0xf]
        %v663 = vld [vmem:[%s6 + $0x18] sm:$0xf]
        %v664 = vld [vmem:[%s6 + $0x1c] sm:$0xf]
        %v665 = vld [vmem:[%s6 + $0x20] sm:$0xf]
        %v666 = vld [vmem:[%s6 + $0x24] sm:$0xf]
        %v667 = vld [vmem:[%s6 + $0x28] sm:$0xf]
        %v668 = vld [vmem:[%s6 + $0x2c] sm:$0xf]
        %v669 = vld [vmem:[%s6 + $0x30] sm:$0xf]
        %v670 = vld [vmem:[%s6 + $0x34] sm:$0xf]
        %v671 = vld [vmem:[%s6 + $0x38] sm:$0xf]
        %v672 = vld [vmem:[%s6 + $0x3c] sm:$0xf]
        %v673 = vld [vmem:[%s6 + $0x40] sm:$0xf]
        %v674 = vld [vmem:[%s6 + $0x44] sm:$0xf]
        %v675 = vld [vmem:[%s6 + $0x48] sm:$0xf]
        %v676 = vld [vmem:[%s6 + $0x4c] sm:$0xf]
        %v677 = vld [vmem:[%s6 + $0x50] sm:$0xf]
        %v678 = vld [vmem:[%s6 + $0x54] sm:$0xf]
        %v679 = vld [vmem:[%s6 + $0x58] sm:$0xf]
        %v680 = vld [vmem:[%s6 + $0x5c] sm:$0xf]
        %v681 = vld [vmem:[%s6 + $0x60] sm:$0xf]
        %v682 = vld [vmem:[%s6 + $0x64] sm:$0xf]
        %v683 = vld [vmem:[%s6 + $0x68] sm:$0xf]
        %v684 = vld [vmem:[%s6 + $0x6c] sm:$0xf]
        %v685 = vld [vmem:[%s6 + $0x70] sm:$0xf]
        %v686 = vld [vmem:[%s6 + $0x74] sm:$0xf]
        %v687 = vld [vmem:[%s6 + $0x78] sm:$0xf]
        %v688 = vld [vmem:[%s6 + $0x7c] sm:$0xf]
        %v690 = vlaneseq
        %v691 = vshrl.u32 %v690, 7
        %v692 = vsub.s32 0, %v691
        %v693 = vrot.slane %v656, %v692
        %v694 = vlaneseq
        %v695 = vshrl.u32 %v694, 7
        %v696 = vsub.s32 1, %v695
        %v697 = vrot.slane %v656, %v696
        %v700 = vpack.c.bf16 %v693, %v693
        %v701 = vpack.c.bf16 %v697, %v697
        %v702 = vld [vmem:[%s8 + $0x2] sm:$0x1]
        %v735 = vunpack.c.l.b16 %v657
        %v736 = vunpack.c.l.b16 %v658
        %v737 = vunpack.c.l.b16 %v659
        %v738 = vunpack.c.l.b16 %v660
        %v739 = vunpack.c.l.b16 %v661
        %v740 = vunpack.c.l.b16 %v662
        %v741 = vunpack.c.l.b16 %v663
        %v742 = vunpack.c.l.b16 %v664
        %v743 = vunpack.c.l.b16 %v665
        %v744 = vunpack.c.l.b16 %v666
        %v745 = vunpack.c.l.b16 %v667
        %v746 = vunpack.c.l.b16 %v668
        %v747 = vunpack.c.l.b16 %v669
        %v748 = vunpack.c.l.b16 %v670
        %v749 = vunpack.c.l.b16 %v671
        %v750 = vunpack.c.l.b16 %v672
        %v751 = vunpack.c.l.b16 %v673
        %v752 = vunpack.c.l.b16 %v674
        %v753 = vunpack.c.l.b16 %v675
        %v754 = vunpack.c.l.b16 %v676
        %v755 = vunpack.c.l.b16 %v677
        %v756 = vunpack.c.l.b16 %v678
        %v757 = vunpack.c.l.b16 %v679
        %v758 = vunpack.c.l.b16 %v680
        %v759 = vunpack.c.l.b16 %v681
        %v760 = vunpack.c.l.b16 %v682
        %v761 = vunpack.c.l.b16 %v683
        %v762 = vunpack.c.l.b16 %v684
        %v763 = vunpack.c.l.b16 %v685
        %v764 = vunpack.c.l.b16 %v686
        %v765 = vunpack.c.l.b16 %v687
        %v766 = vunpack.c.l.b16 %v688
        %v767 = vpack.c.b16 %v736, %v735
        %v768 = vpack.c.b16 %v738, %v737
        %v769 = vpack.c.b16 %v740, %v739
        %v770 = vpack.c.b16 %v742, %v741
        %v771 = vpack.c.b16 %v744, %v743
        %v772 = vpack.c.b16 %v746, %v745
        %v773 = vpack.c.b16 %v748, %v747
        %v774 = vpack.c.b16 %v750, %v749
        %v775 = vpack.c.b16 %v752, %v751
        %v776 = vpack.c.b16 %v754, %v753
        %v777 = vpack.c.b16 %v756, %v755
        %v778 = vpack.c.b16 %v758, %v757
        %v779 = vpack.c.b16 %v760, %v759
        %v780 = vpack.c.b16 %v762, %v761
        %v781 = vpack.c.b16 %v764, %v763
        %v782 = vpack.c.b16 %v766, %v765
        %799 = vmatprep.subr.bf16.mxu0 0
        %800 = vmatpush1.bf16.msra.mxu0 %v767
        %801 = vmatprep.subr.bf16.mxu0 0
        %802 = vmatpush1.bf16.msra.mxu0 %v768
        %803 = vmatprep.subr.bf16.mxu0 0
        %804 = vmatpush1.bf16.msra.mxu0 %v769
        %805 = vmatprep.subr.bf16.mxu0 0
        %806 = vmatpush1.bf16.msra.mxu0 %v770
        %807 = vmatprep.subr.bf16.mxu0 0
        %808 = vmatpush1.bf16.msra.mxu0 %v771
        %809 = vmatprep.subr.bf16.mxu0 0
        %810 = vmatpush1.bf16.msra.mxu0 %v772
        %811 = vmatprep.subr.bf16.mxu0 0
        %812 = vmatpush1.bf16.msra.mxu0 %v773
        %813 = vmatprep.subr.bf16.mxu0 0
        %814 = vmatpush1.bf16.msra.mxu0 %v774
        %815 = vmatprep.subr.bf16.mxu0 0
        %816 = vmatpush1.bf16.msra.mxu0 %v775
        %817 = vmatprep.subr.bf16.mxu0 0
        %818 = vmatpush1.bf16.msra.mxu0 %v776
        %819 = vmatprep.subr.bf16.mxu0 0
        %820 = vmatpush1.bf16.msra.mxu0 %v777
        %821 = vmatprep.subr.bf16.mxu0 0
        %822 = vmatpush1.bf16.msra.mxu0 %v778
        %823 = vmatprep.subr.bf16.mxu0 0
        %824 = vmatpush1.bf16.msra.mxu0 %v779
        %825 = vmatprep.subr.bf16.mxu0 0
        %826 = vmatpush1.bf16.msra.mxu0 %v780
        %827 = vmatprep.subr.bf16.mxu0 0
        %828 = vmatpush1.bf16.msra.mxu0 %v781
        %829 = vmatprep.subr.bf16.mxu0 0
        %830 = vmatpush1.bf16.msra.mxu0 %v782
        %831 = vmatprep.mubr.bf16.mxu0 %v701
        %832 = vmatmul.mubr.bf16.gmra.mrb[0].mxu0 %v700
        %v833 = vpop.f32.mrb[0].mxu0
        %v834 = vadd.f32 %v702, %v833
        %v835 = vpop.f32.mrb[0].mxu0
        %v836 = vpop.f32.mrb[0].mxu0
        %v837 = vpop.f32.mrb[0].mxu0
        %838 = vdwg.mxu0
        %v839 = vxor.u32 %v834, 2147483648
        %v840 = vmul.f32 %v839, 1.442695
        %v841 = vpow.pop %v840
        %v842 = vadd.f32 %v841, 1.0
        %v843 = vrcp.pop %v842
        %v844 = vmul.f32 1.0, %v843
        %v845 = vmul.f32 %v834, %v844
        %v846 = vld [vmem:[%s7] sm:$0xf]
        %v847 = vld [vmem:[%s7 + $0x10] sm:$0xf]
        %v848 = vld [vmem:[%s7 + $0x20] sm:$0xf]
        %v849 = vld [vmem:[%s7 + $0x30] sm:$0xf]
        %v850 = vld [vmem:[%s7 + $0x40] sm:$0xf]
        %v851 = vld [vmem:[%s7 + $0x50] sm:$0xf]
        %v852 = vld [vmem:[%s7 + $0x60] sm:$0xf]
        %v853 = vld [vmem:[%s7 + $0x70] sm:$0xf]
        %v854 = vpack.c.bf16 %v845, %v845
        %v855 = vld [vmem:[%s8 + $0x3] sm:$0x1]
        %v864 = vunpack.c.l.b16 %v846
        %v865 = vunpack.c.l.b16 %v847
        %v866 = vunpack.c.l.b16 %v848
        %v867 = vunpack.c.l.b16 %v849
        %v868 = vunpack.c.l.b16 %v850
        %v869 = vunpack.c.l.b16 %v851
        %v870 = vunpack.c.l.b16 %v852
        %v871 = vunpack.c.l.b16 %v853
        %v872 = vpack.c.b16 %v865, %v864
        %v873 = vpack.c.b16 %v867, %v866
        %v874 = vpack.c.b16 %v869, %v868
        %v875 = vpack.c.b16 %v871, %v870
        %vm880 = vcmask 523264
        %v882 = vsel %vm880, %v854, 0
        %884 = vmatprep.subr.bf16.mxu0 0
        %885 = vmatpush1.bf16.msra.mxu0 %v872
        %886 = vmatprep.subr.bf16.mxu0 0
        %887 = vmatpush1.bf16.msra.mxu0 %v873
        %888 = vmatprep.subr.bf16.mxu0 0
        %889 = vmatpush1.bf16.msra.mxu0 %v874
        %890 = vmatprep.subr.bf16.mxu0 0
        %891 = vmatpush1.bf16.msra.mxu0 %v875
        %892 = vmatprep.subr.bf16.mxu0 0
        %893 = vmatpush1.bf16.msra.mxu0 0
        %894 = vmatprep.subr.bf16.mxu0 0
        %895 = vmatpush1.bf16.msra.mxu0 0
        %896 = vmatprep.subr.bf16.mxu0 0
        %897 = vmatpush1.bf16.msra.mxu0 0
        %898 = vmatprep.subr.bf16.mxu0 0
        %899 = vmatpush1.bf16.msra.mxu0 0
        %900 = vmatprep.subr.bf16.mxu0 0
        %901 = vmatpush1.bf16.msra.mxu0 0
        %902 = vmatprep.subr.bf16.mxu0 0
        %903 = vmatpush1.bf16.msra.mxu0 0
        %904 = vmatprep.subr.bf16.mxu0 0
        %905 = vmatpush1.bf16.msra.mxu0 0
        %906 = vmatprep.subr.bf16.mxu0 0
        %907 = vmatpush1.bf16.msra.mxu0 0
        %908 = vmatprep.subr.bf16.mxu0 0
        %909 = vmatpush1.bf16.msra.mxu0 0
        %910 = vmatprep.subr.bf16.mxu0 0
        %911 = vmatpush1.bf16.msra.mxu0 0
        %912 = vmatprep.subr.bf16.mxu0 0
        %913 = vmatpush1.bf16.msra.mxu0 0
        %914 = vmatprep.subr.bf16.mxu0 0
        %915 = vmatpush1.bf16.msra.mxu0 0
        %916 = vmatprep.mubr.bf16.mxu0 0
        %917 = vmatmul.mubr.bf16.gmra.mrb[0].mxu0 %v882
        %v918 = vpop.f32.mrb[0].mxu0
        %v919 = vadd.f32 %v855, %v918
        %v920 = vpop.f32.mrb[0].mxu0
        %v921 = vpop.f32.mrb[0].mxu0
        %v922 = vpop.f32.mrb[0].mxu0
        %923 = vdwg.mxu0
        %v924 = vld [vmem:[%s486] sm:$0x1]
        %v925 = vpack.c.bf16 %v924, %v924
        %v926 = vld [vmem:[%s8 + $0x4] sm:$0x1]
        %927 = vrot.lane.b32.xlu0 %v576, 64
        %v928 = vpop.permute.xlu0 %927
        %929 = vrot.lane.b32.xlu0 %v577, 64
        %v930 = vpop.permute.xlu0 %929
        %v934 = vsel %vm580, %v925, 0
        %936 = vmatprep.subr.bf16.mxu0 0
        %937 = vmatpush1.bf16.msra.mxu0 %v928
        %938 = vmatprep.subr.bf16.mxu0 0
        %939 = vmatpush1.bf16.msra.mxu0 %v930
        %940 = vmatprep.subr.bf16.mxu0 0
        %941 = vmatpush1.bf16.msra.mxu0 0
        %942 = vmatprep.subr.bf16.mxu0 0
        %943 = vmatpush1.bf16.msra.mxu0 0
        %944 = vmatprep.subr.bf16.mxu0 0
        %945 = vmatpush1.bf16.msra.mxu0 0
        %946 = vmatprep.subr.bf16.mxu0 0
        %947 = vmatpush1.bf16.msra.mxu0 0
        %948 = vmatprep.subr.bf16.mxu0 0
        %949 = vmatpush1.bf16.msra.mxu0 0
        %950 = vmatprep.subr.bf16.mxu0 0
        %951 = vmatpush1.bf16.msra.mxu0 0
        %952 = vmatprep.subr.bf16.mxu0 0
        %953 = vmatpush1.bf16.msra.mxu0 0
        %954 = vmatprep.subr.bf16.mxu0 0
        %955 = vmatpush1.bf16.msra.mxu0 0
        %956 = vmatprep.subr.bf16.mxu0 0
        %957 = vmatpush1.bf16.msra.mxu0 0
        %958 = vmatprep.subr.bf16.mxu0 0
        %959 = vmatpush1.bf16.msra.mxu0 0
        %960 = vmatprep.subr.bf16.mxu0 0
        %961 = vmatpush1.bf16.msra.mxu0 0
        %962 = vmatprep.subr.bf16.mxu0 0
        %963 = vmatpush1.bf16.msra.mxu0 0
        %964 = vmatprep.subr.bf16.mxu0 0
        %965 = vmatpush1.bf16.msra.mxu0 0
        %966 = vmatprep.subr.bf16.mxu0 0
        %967 = vmatpush1.bf16.msra.mxu0 0
        %968 = vmatprep.mubr.bf16.mxu0 0
        %969 = vmatmul.mubr.bf16.gmra.mrb[0].mxu0 %v934
        %v970 = vpop.f32.mrb[0].mxu0
        %v971 = vadd.f32 %v926, %v970
        %v972 = vpop.f32.mrb[0].mxu0
        %v973 = vpop.f32.mrb[0].mxu0
        %v974 = vpop.f32.mrb[0].mxu0
        %975 = vdwg.mxu0
        %v976 = vxor.u32 %v971, 2147483648
        %v977 = vmul.f32 %v976, 1.442695
        %v978 = vpow.pop %v977
        %v979 = vadd.f32 %v978, 1.0
        %v980 = vrcp.pop %v979
        %v981 = vmul.f32 1.0, %v980
        %v982 = vmul.f32 %v971, %v981
        %v983 = vld [vmem:[%s7 + $0x4] sm:$0xf]
        %v984 = vld [vmem:[%s7 + $0x14] sm:$0xf]
        %v985 = vld [vmem:[%s7 + $0x24] sm:$0xf]
        %v986 = vld [vmem:[%s7 + $0x34] sm:$0xf]
        %v987 = vld [vmem:[%s7 + $0x44] sm:$0xf]
        %v988 = vld [vmem:[%s7 + $0x54] sm:$0xf]
        %v989 = vld [vmem:[%s7 + $0x64] sm:$0xf]
        %v990 = vld [vmem:[%s7 + $0x74] sm:$0xf]
        %v991 = vpack.c.bf16 %v982, %v982
        %v992 = vld [vmem:[%s8 + $0x5] sm:$0x1]
        %v1001 = vunpack.c.l.b16 %v983
        %v1002 = vunpack.c.l.b16 %v984
        %v1003 = vunpack.c.l.b16 %v985
        %v1004 = vunpack.c.l.b16 %v986
        %v1005 = vunpack.c.l.b16 %v987
        %v1006 = vunpack.c.l.b16 %v988
        %v1007 = vunpack.c.l.b16 %v989
        %v1008 = vunpack.c.l.b16 %v990
        %v1009 = vpack.c.b16 %v1002, %v1001
        %v1010 = vpack.c.b16 %v1004, %v1003
        %v1011 = vpack.c.b16 %v1006, %v1005
        %v1012 = vpack.c.b16 %v1008, %v1007
        %v1018 = vsel %vm880, %v991, 0
        %1020 = vmatprep.subr.bf16.mxu0 0
        %1021 = vmatpush1.bf16.msra.mxu0 %v1009
        %1022 = vmatprep.subr.bf16.mxu0 0
        %1023 = vmatpush1.bf16.msra.mxu0 %v1010
        %1024 = vmatprep.subr.bf16.mxu0 0
        %1025 = vmatpush1.bf16.msra.mxu0 %v1011
        %1026 = vmatprep.subr.bf16.mxu0 0
        %1027 = vmatpush1.bf16.msra.mxu0 %v1012
        %1028 = vmatprep.subr.bf16.mxu0 0
        %1029 = vmatpush1.bf16.msra.mxu0 0
        %1030 = vmatprep.subr.bf16.mxu0 0
        %1031 = vmatpush1.bf16.msra.mxu0 0
        %1032 = vmatprep.subr.bf16.mxu0 0
        %1033 = vmatpush1.bf16.msra.mxu0 0
        %1034 = vmatprep.subr.bf16.mxu0 0
        %1035 = vmatpush1.bf16.msra.mxu0 0
        %1036 = vmatprep.subr.bf16.mxu0 0
        %1037 = vmatpush1.bf16.msra.mxu0 0
        %1038 = vmatprep.subr.bf16.mxu0 0
        %1039 = vmatpush1.bf16.msra.mxu0 0
        %1040 = vmatprep.subr.bf16.mxu0 0
        %1041 = vmatpush1.bf16.msra.mxu0 0
        %1042 = vmatprep.subr.bf16.mxu0 0
        %1043 = vmatpush1.bf16.msra.mxu0 0
        %1044 = vmatprep.subr.bf16.mxu0 0
        %1045 = vmatpush1.bf16.msra.mxu0 0
        %1046 = vmatprep.subr.bf16.mxu0 0
        %1047 = vmatpush1.bf16.msra.mxu0 0
        %1048 = vmatprep.subr.bf16.mxu0 0
        %1049 = vmatpush1.bf16.msra.mxu0 0
        %1050 = vmatprep.subr.bf16.mxu0 0
        %1051 = vmatpush1.bf16.msra.mxu0 0
        %1052 = vmatprep.mubr.bf16.mxu0 0
        %1053 = vmatmul.mubr.bf16.gmra.mrb[0].mxu0 %v1018
        %v1054 = vpop.f32.mrb[0].mxu0
        %v1055 = vadd.f32 %v992, %v1054
        %v1056 = vpop.f32.mrb[0].mxu0
        %v1057 = vpop.f32.mrb[0].mxu0
        %v1058 = vpop.f32.mrb[0].mxu0
        %1059 = vdwg.mxu0
        %v1060 = vadd.f32 %v919, %v1055
        %v1061 = vxor.u32 %v1060, 2147483648
        %v1062 = vmul.f32 %v1061, 1.442695
        %v1063 = vpow.pop %v1062
        %v1064 = vadd.f32 %v1063, 1.0
        %v1065 = vrcp.pop %v1064
        %v1066 = vmul.f32 1.0, %v1065
        %v1067 = vmul.f32 %v1060, %v1066
        %v1068 = vlaneseq
        %v1069 = vshrl.u32 %v1068, 7
        %v1070 = vadd.s32 %v1069, 8
        %v1071 = vadd.s32 %v1069, 16
        %v1072 = vadd.s32 %v1069, 24
        %v1073 = vadd.s32 %v1069, 32
        %v1074 = vadd.s32 %v1069, 40
        %vm1075 = vcmp.lt.s32.totalorder %v1069, 8
        %vm1076 = vcmp.lt.s32.totalorder %v1070, 8
        %vm1077 = vcmp.lt.s32.totalorder %v1071, 8
        %vm1078 = vcmp.lt.s32.totalorder %v1072, 8
        %vm1079 = vcmp.lt.s32.totalorder %v1073, 8
        %vm1080 = vcmp.lt.s32.totalorder %v1074, 8
        %v1081 = vld [vmem:[%s10] sm:$0xff]
        %v1082 = vld [vmem:[%s10 + $0x8] sm:$0xff]
        %v1083 = vld [vmem:[%s10 + $0x10] sm:$0xff]
        %v1084 = vld [vmem:[%s10 + $0x2c] sm:$0xff]
        %v1085 = vld [vmem:[%s10 + $0x34] sm:$0xff]
        %v1086 = vld [vmem:[%s10 + $0x3c] sm:$0xff]
        %v1087 = vld [vmem:[%s10 + $0x58] sm:$0xff]
        %v1088 = vld [vmem:[%s10 + $0x60] sm:$0xff]
        %v1089 = vld [vmem:[%s10 + $0x68] sm:$0xff]
        %v1090 = vld [vmem:[%s10 + $0x84] sm:$0xff]
        %v1091 = vld [vmem:[%s10 + $0x8c] sm:$0xff]
        %v1092 = vld [vmem:[%s10 + $0x94] sm:$0xff]
        %v1093 = vld [vmem:[%s10 + $0xb0] sm:$0xff]
        %v1094 = vld [vmem:[%s10 + $0xb8] sm:$0xff]
        %v1095 = vld [vmem:[%s10 + $0xc0] sm:$0xff]
        %v1096 = vld [vmem:[%s10 + $0xdc] sm:$0xff]
        %v1097 = vld [vmem:[%s10 + $0xe4] sm:$0xff]
        %v1098 = vld [vmem:[%s10 + $0xec] sm:$0xff]
        %v1099 = vld [vmem:[%s10 + $0x108] sm:$0xff]
        %v1100 = vld [vmem:[%s10 + $0x110] sm:$0xff]
        %v1101 = vld [vmem:[%s10 + $0x118] sm:$0xff]
        %v1102 = vld [vmem:[%s10 + $0x134] sm:$0xff]
        %v1103 = vld [vmem:[%s10 + $0x13c] sm:$0xff]
        %v1104 = vld [vmem:[%s10 + $0x144] sm:$0xff]
        %v1105 = vpack.c.bf16 %v1067, %v1067
        %v1106 = vld [vmem:[%s12] ss:$2 sm:$0x3f]
        %v1131 = vunpack.c.l.b16 %v1081
        %v1132 = vunpack.c.h.b16 %v1081
        %v1133 = vunpack.c.l.b16 %v1082
        %v1134 = vunpack.c.h.b16 %v1082
        %v1135 = vunpack.c.l.b16 %v1083
        %v1136 = vunpack.c.h.b16 %v1083
        %v1137 = vunpack.c.l.b16 %v1084
        %v1138 = vunpack.c.h.b16 %v1084
        %v1139 = vunpack.c.l.b16 %v1085
        %v1140 = vunpack.c.h.b16 %v1085
        %v1141 = vunpack.c.l.b16 %v1086
        %v1142 = vunpack.c.h.b16 %v1086
        %v1143 = vunpack.c.l.b16 %v1087
        %v1144 = vunpack.c.h.b16 %v1087
        %v1145 = vunpack.c.l.b16 %v1088
        %v1146 = vunpack.c.h.b16 %v1088
        %v1147 = vunpack.c.l.b16 %v1089
        %v1148 = vunpack.c.h.b16 %v1089
        %v1149 = vunpack.c.l.b16 %v1090
        %v1150 = vunpack.c.h.b16 %v1090
        %v1151 = vunpack.c.l.b16 %v1091
        %v1152 = vunpack.c.h.b16 %v1091
        %v1153 = vunpack.c.l.b16 %v1092
        %v1154 = vunpack.c.h.b16 %v1092
        %v1155 = vunpack.c.l.b16 %v1093
        %v1156 = vunpack.c.h.b16 %v1093
        %v1157 = vunpack.c.l.b16 %v1094
        %v1158 = vunpack.c.h.b16 %v1094
        %v1159 = vunpack.c.l.b16 %v1095
        %v1160 = vunpack.c.h.b16 %v1095
        %v1161 = vunpack.c.l.b16 %v1096
        %v1162 = vunpack.c.h.b16 %v1096
        %v1163 = vunpack.c.l.b16 %v1097
        %v1164 = vunpack.c.h.b16 %v1097
        %v1165 = vunpack.c.l.b16 %v1098
        %v1166 = vunpack.c.h.b16 %v1098
        %v1167 = vunpack.c.l.b16 %v1099
        %v1168 = vunpack.c.h.b16 %v1099
        %v1169 = vunpack.c.l.b16 %v1100
        %v1170 = vunpack.c.h.b16 %v1100
        %v1171 = vunpack.c.l.b16 %v1101
        %v1172 = vunpack.c.h.b16 %v1101
        %v1173 = vunpack.c.l.b16 %v1102
        %v1174 = vunpack.c.h.b16 %v1102
        %v1175 = vunpack.c.l.b16 %v1103
        %v1176 = vunpack.c.h.b16 %v1103
        %v1177 = vunpack.c.l.b16 %v1104
        %v1178 = vunpack.c.h.b16 %v1104
        %v1179 = vpack.c.b16 %v1137, %v1131
        %v1180 = vpack.c.b16 %v1138, %v1132
        %v1181 = vpack.c.b16 %v1139, %v1133
        %v1182 = vpack.c.b16 %v1140, %v1134
        %v1183 = vpack.c.b16 %v1141, %v1135
        %v1184 = vpack.c.b16 %v1142, %v1136
        %v1185 = vpack.c.b16 %v1149, %v1143
        %v1186 = vpack.c.b16 %v1150, %v1144
        %v1187 = vpack.c.b16 %v1151, %v1145
        %v1188 = vpack.c.b16 %v1152, %v1146
        %v1189 = vpack.c.b16 %v1153, %v1147
        %v1190 = vpack.c.b16 %v1154, %v1148
        %v1191 = vpack.c.b16 %v1161, %v1155
        %v1192 = vpack.c.b16 %v1162, %v1156
        %v1193 = vpack.c.b16 %v1163, %v1157
        %v1194 = vpack.c.b16 %v1164, %v1158
        %v1195 = vpack.c.b16 %v1165, %v1159
        %v1196 = vpack.c.b16 %v1166, %v1160
        %v1197 = vpack.c.b16 %v1173, %v1167
        %v1198 = vpack.c.b16 %v1174, %v1168
        %v1199 = vpack.c.b16 %v1175, %v1169
        %v1200 = vpack.c.b16 %v1176, %v1170
        %v1201 = vpack.c.b16 %v1177, %v1171
        %v1202 = vpack.c.b16 %v1178, %v1172
        %v1228 = vlaneseq
        %v1229 = vshrl.u32 %v1228, 7
        %v1230 = vsub.s32 0, %v1229
        %v1231 = vrot.slane %v1106, %v1230
        %v1232 = vlaneseq
        %v1233 = vshrl.u32 %v1232, 7
        %v1234 = vsub.s32 1, %v1233
        %v1235 = vrot.slane %v1106, %v1234
        %v1236 = vlaneseq
        %v1237 = vshrl.u32 %v1236, 7
        %v1238 = vsub.s32 2, %v1237
        %v1239 = vrot.slane %v1106, %v1238
        %v1240 = vlaneseq
        %v1241 = vshrl.u32 %v1240, 7
        %v1242 = vsub.s32 3, %v1241
        %v1243 = vrot.slane %v1106, %v1242
        %v1244 = vlaneseq
        %v1245 = vshrl.u32 %v1244, 7
        %v1246 = vsub.s32 4, %v1245
        %v1247 = vrot.slane %v1106, %v1246
        %v1248 = vlaneseq
        %v1249 = vshrl.u32 %v1248, 7
        %v1250 = vsub.s32 5, %v1249
        %v1251 = vrot.slane %v1106, %v1250
        %v1259 = vsel %vm880, %v1105, 0
        %1261 = vmatprep.subr.bf16.mxu0 %v1180
        %1262 = vmatpush1.bf16.msra.mxu0 %v1179
        %1263 = vmatprep.subr.bf16.mxu0 %v1186
        %1264 = vmatpush1.bf16.msra.mxu0 %v1185
        %1265 = vmatprep.subr.bf16.mxu0 %v1192
        %1266 = vmatpush1.bf16.msra.mxu0 %v1191
        %1267 = vmatprep.subr.bf16.mxu0 %v1198
        %1268 = vmatpush1.bf16.msra.mxu0 %v1197
        %1269 = vmatprep.subr.bf16.mxu0 0
        %1270 = vmatpush1.bf16.msra.mxu0 0
        %1271 = vmatprep.subr.bf16.mxu0 0
        %1272 = vmatpush1.bf16.msra.mxu0 0
        %1273 = vmatprep.subr.bf16.mxu0 0
        %1274 = vmatpush1.bf16.msra.mxu0 0
        %1275 = vmatprep.subr.bf16.mxu0 0
        %1276 = vmatpush1.bf16.msra.mxu0 0
        %1277 = vmatprep.subr.bf16.mxu0 0
        %1278 = vmatpush1.bf16.msra.mxu0 0
        %1279 = vmatprep.subr.bf16.mxu0 0
        %1280 = vmatpush1.bf16.msra.mxu0 0
        %1281 = vmatprep.subr.bf16.mxu0 0
        %1282 = vmatpush1.bf16.msra.mxu0 0
        %1283 = vmatprep.subr.bf16.mxu0 0
        %1284 = vmatpush1.bf16.msra.mxu0 0
        %1285 = vmatprep.subr.bf16.mxu0 0
        %1286 = vmatpush1.bf16.msra.mxu0 0
        %1287 = vmatprep.subr.bf16.mxu0 0
        %1288 = vmatpush1.bf16.msra.mxu0 0
        %1289 = vmatprep.subr.bf16.mxu0 0
        %1290 = vmatpush1.bf16.msra.mxu0 0
        %1291 = vmatprep.subr.bf16.mxu0 0
        %1292 = vmatpush1.bf16.msra.mxu0 0
        %1293 = vmatprep.mubr.bf16.mxu0 0
        %1294 = vmatmul.mubr.bf16.gmra.mrb[0].mxu0 %v1259
        %v1295 = vpop.f32.mrb[0].mxu0
        %v1296 = vadd.f32 %v1231, %v1295
        %v1297 = vpop.f32.mrb[0].mxu0
        %v1298 = vadd.f32 %v1235, %v1297
        %v1299 = vpop.f32.mrb[0].mxu0
        %v1300 = vpop.f32.mrb[0].mxu0
        %1301 = vdwg.mxu0
        %1302 = vmatprep.subr.bf16.mxu0 %v1182
        %1303 = vmatpush1.bf16.msra.mxu0 %v1181
        %1304 = vmatprep.subr.bf16.mxu0 %v1188
        %1305 = vmatpush1.bf16.msra.mxu0 %v1187
        %1306 = vmatprep.subr.bf16.mxu0 %v1194
        %1307 = vmatpush1.bf16.msra.mxu0 %v1193
        %1308 = vmatprep.subr.bf16.mxu0 %v1200
        %1309 = vmatpush1.bf16.msra.mxu0 %v1199
        %1310 = vmatprep.subr.bf16.mxu0 0
        %1311 = vmatpush1.bf16.msra.mxu0 0
        %1312 = vmatprep.subr.bf16.mxu0 0
        %1313 = vmatpush1.bf16.msra.mxu0 0
        %1314 = vmatprep.subr.bf16.mxu0 0
        %1315 = vmatpush1.bf16.msra.mxu0 0
        %1316 = vmatprep.subr.bf16.mxu0 0
        %1317 = vmatpush1.bf16.msra.mxu0 0
        %1318 = vmatprep.subr.bf16.mxu0 0
        %1319 = vmatpush1.bf16.msra.mxu0 0
        %1320 = vmatprep.subr.bf16.mxu0 0
        %1321 = vmatpush1.bf16.msra.mxu0 0
        %1322 = vmatprep.subr.bf16.mxu0 0
        %1323 = vmatpush1.bf16.msra.mxu0 0
        %1324 = vmatprep.subr.bf16.mxu0 0
        %1325 = vmatpush1.bf16.msra.mxu0 0
        %1326 = vmatprep.subr.bf16.mxu0 0
        %1327 = vmatpush1.bf16.msra.mxu0 0
        %1328 = vmatprep.subr.bf16.mxu0 0
        %1329 = vmatpush1.bf16.msra.mxu0 0
        %1330 = vmatprep.subr.bf16.mxu0 0
        %1331 = vmatpush1.bf16.msra.mxu0 0
        %1332 = vmatprep.subr.bf16.mxu0 0
        %1333 = vmatpush1.bf16.msra.mxu0 0
        %1334 = vmatprep.mubr.bf16.mxu0 0
        %1335 = vmatmul.mubr.bf16.gmra.mrb[0].mxu0 %v1259
        %v1336 = vpop.f32.mrb[0].mxu0
        %v1337 = vadd.f32 %v1239, %v1336
        %v1338 = vpop.f32.mrb[0].mxu0
        %v1339 = vadd.f32 %v1243, %v1338
        %v1340 = vpop.f32.mrb[0].mxu0
        %v1341 = vpop.f32.mrb[0].mxu0
        %1342 = vdwg.mxu0
        %1343 = vmatprep.subr.bf16.mxu0 %v1184
        %1344 = vmatpush1.bf16.msra.mxu0 %v1183
        %1345 = vmatprep.subr.bf16.mxu0 %v1190
        %1346 = vmatpush1.bf16.msra.mxu0 %v1189
        %1347 = vmatprep.subr.bf16.mxu0 %v1196
        %1348 = vmatpush1.bf16.msra.mxu0 %v1195
        %1349 = vmatprep.subr.bf16.mxu0 %v1202
        %1350 = vmatpush1.bf16.msra.mxu0 %v1201
        %1351 = vmatprep.subr.bf16.mxu0 0
        %1352 = vmatpush1.bf16.msra.mxu0 0
        %1353 = vmatprep.subr.bf16.mxu0 0
        %1354 = vmatpush1.bf16.msra.mxu0 0
        %1355 = vmatprep.subr.bf16.mxu0 0
        %1356 = vmatpush1.bf16.msra.mxu0 0
        %1357 = vmatprep.subr.bf16.mxu0 0
        %1358 = vmatpush1.bf16.msra.mxu0 0
        %1359 = vmatprep.subr.bf16.mxu0 0
        %1360 = vmatpush1.bf16.msra.mxu0 0
        %1361 = vmatprep.subr.bf16.mxu0 0
        %1362 = vmatpush1.bf16.msra.mxu0 0
        %1363 = vmatprep.subr.bf16.mxu0 0
        %1364 = vmatpush1.bf16.msra.mxu0 0
        %1365 = vmatprep.subr.bf16.mxu0 0
        %1366 = vmatpush1.bf16.msra.mxu0 0
        %1367 = vmatprep.subr.bf16.mxu0 0
        %1368 = vmatpush1.bf16.msra.mxu0 0
        %1369 = vmatprep.subr.bf16.mxu0 0
        %1370 = vmatpush1.bf16.msra.mxu0 0
        %1371 = vmatprep.subr.bf16.mxu0 0
        %1372 = vmatpush1.bf16.msra.mxu0 0
        %1373 = vmatprep.subr.bf16.mxu0 0
        %1374 = vmatpush1.bf16.msra.mxu0 0
        %1375 = vmatprep.mubr.bf16.mxu0 0
        %1376 = vmatmul.mubr.bf16.gmra.mrb[0].mxu0 %v1259
        %v1377 = vpop.f32.mrb[0].mxu0
        %v1378 = vadd.f32 %v1247, %v1377
        %v1379 = vpop.f32.mrb[0].mxu0
        %v1380 = vadd.f32 %v1251, %v1379
        %v1381 = vpop.f32.mrb[0].mxu0
        %v1382 = vpop.f32.mrb[0].mxu0
        %1383 = vdwg.mxu0
        %v1384 = vsel %vm880, %v544, 0.0
        %1385 = vadd.xlane.f32.xlu0 %v1384
        %v1386 = vpop.xlane.xlu0 %1385
        %v1387 = vsel %vm880, %v651, 0.0
        %1388 = vadd.xlane.f32.xlu0 %v1387
        %v1389 = vpop.xlane.xlu0 %1388
        %v1390 = vsel %vm880, %v652, 0.0
        %1391 = vadd.xlane.f32.xlu0 %v1390
        %v1392 = vpop.xlane.xlu0 %1391
        %v1393 = vsel %vm880, %v653, 0.0
        %1394 = vadd.xlane.f32.xlu0 %v1393
        %v1395 = vpop.xlane.xlu0 %1394
        %v1396 = vsel %vm880, %v654, 0.0
        %1397 = vadd.xlane.f32.xlu0 %v1396
        %v1398 = vpop.xlane.xlu0 %1397
        %vm1399 = vcmask 518144
        %v1400 = vsel %vm1399, %v655, 0.0
        %1401 = vadd.xlane.f32.xlu0 %v1400
        %v1402 = vpop.xlane.xlu0 %1401
        %v1403 = vrcp.pop 64.0
        %v1404 = vmul.f32 %v1386, %v1403
        %v1405 = vmul.f32 %v1389, %v1403
        %v1406 = vmul.f32 %v1392, %v1403
        %v1407 = vmul.f32 %v1395, %v1403
        %v1408 = vmul.f32 %v1398, %v1403
        %v1409 = vmul.f32 %v1402, %v1403
        %v1410 = vsub.f32 %v544, %v1404
        %v1411 = vsub.f32 %v651, %v1405
        %v1412 = vsub.f32 %v652, %v1406
        %v1413 = vsub.f32 %v653, %v1407
        %v1414 = vsub.f32 %v654, %v1408
        %v1415 = vsub.f32 %v655, %v1409
        %v1416 = vmul.f32 %v1410, %v1410
        %v1417 = vmul.f32 %v1411, %v1411
        %v1418 = vmul.f32 %v1412, %v1412
        %v1419 = vmul.f32 %v1413, %v1413
        %v1420 = vmul.f32 %v1414, %v1414
        %v1421 = vmul.f32 %v1415, %v1415
        %v1422 = vsel %vm880, %v1416, 0.0
        %1423 = vadd.xlane.f32.xlu0 %v1422
        %v1424 = vpop.xlane.xlu0 %1423
        %v1425 = vsel %vm880, %v1417, 0.0
        %1426 = vadd.xlane.f32.xlu0 %v1425
        %v1427 = vpop.xlane.xlu0 %1426
        %v1428 = vsel %vm880, %v1418, 0.0
        %1429 = vadd.xlane.f32.xlu0 %v1428
        %v1430 = vpop.xlane.xlu0 %1429
        %v1431 = vsel %vm880, %v1419, 0.0
        %1432 = vadd.xlane.f32.xlu0 %v1431
        %v1433 = vpop.xlane.xlu0 %1432
        %v1434 = vsel %vm880, %v1420, 0.0
        %1435 = vadd.xlane.f32.xlu0 %v1434
        %v1436 = vpop.xlane.xlu0 %1435
        %v1437 = vsel %vm1399, %v1421, 0.0
        %1438 = vadd.xlane.f32.xlu0 %v1437
        %v1439 = vpop.xlane.xlu0 %1438
        %v1440 = vmul.f32 %v1424, %v1403
        %v1441 = vmul.f32 %v1427, %v1403
        %v1442 = vmul.f32 %v1430, %v1403
        %v1443 = vmul.f32 %v1433, %v1403
        %v1444 = vmul.f32 %v1436, %v1403
        %v1445 = vmul.f32 %v1439, %v1403
        %v1446 = vadd.f32 %v1440, 1e-06
        %v1447 = vadd.f32 %v1441, 1e-06
        %v1448 = vadd.f32 %v1442, 1e-06
        %v1449 = vadd.f32 %v1443, 1e-06
        %v1450 = vadd.f32 %v1444, 1e-06
        %v1451 = vadd.f32 %v1445, 1e-06
        %v1452 = vrsqrt.pop %v1446
        %v1453 = vrsqrt.pop %v1447
        %v1454 = vrsqrt.pop %v1448
        %v1455 = vrsqrt.pop %v1449
        %v1456 = vrsqrt.pop %v1450
        %v1457 = vrsqrt.pop %v1451
        %v1458 = vmul.f32 %v1410, %v1452
        %v1459 = vmul.f32 %v1411, %v1453
        %v1460 = vmul.f32 %v1412, %v1454
        %v1461 = vmul.f32 %v1413, %v1455
        %v1462 = vmul.f32 %v1414, %v1456
        %v1463 = vmul.f32 %v1415, %v1457
        %v1464 = vsel %vm1075, 1, 0
        %v1465 = vsel %vm1076, 1, 0
        %v1466 = vsel %vm1077, 1, 0
        %v1467 = vsel %vm1078, 1, 0
        %v1468 = vsel %vm1079, 1, 0
        %v1469 = vsel %vm1080, 1, 0
        %vm1470 = vcmp.eq.s32.totalorder %v1464, 1
        %vm1471 = vcmp.eq.s32.totalorder %v1465, 1
        %vm1472 = vcmp.eq.s32.totalorder %v1466, 1
        %vm1473 = vcmp.eq.s32.totalorder %v1467, 1
        %vm1474 = vcmp.eq.s32.totalorder %v1468, 1
        %vm1475 = vcmp.eq.s32.totalorder %v1469, 1
        %v1476 = vlaneseq
        %v1477 = vshrl.u32 %v1476, 7
        %v1478 = vsub.s32 0, %v1477
        %v1479 = vrot.slane %v1296, %v1478
        %v1480 = vlaneseq
        %v1481 = vshrl.u32 %v1480, 7
        %v1482 = vsub.s32 0, %v1481
        %v1483 = vrot.slane %v1339, %v1482
        %v1484 = vsel %vm1470, %v1479, %v1483
        %v1485 = vsel %vm1471, %v1479, %v1483
        %v1486 = vsel %vm1472, %v1479, %v1483
        %v1487 = vsel %vm1473, %v1479, %v1483
        %v1488 = vsel %vm1474, %v1479, %v1483
        %v1489 = vsel %vm1475, %v1479, %v1483
        %v1490 = vadd.f32 %v1484, 1.0
        %v1491 = vadd.f32 %v1485, 1.0
        %v1492 = vadd.f32 %v1486, 1.0
        %v1493 = vadd.f32 %v1487, 1.0
        %v1494 = vadd.f32 %v1488, 1.0
        %v1495 = vadd.f32 %v1489, 1.0
        %1502 = vrot.lane.b32.xlu0 %v1490, 64
        %v1503 = vpop.permute.xlu0 %1502
        %1504 = vrot.lane.b32.xlu0 %v1491, 64
        %v1505 = vpop.permute.xlu0 %1504
        %1506 = vrot.lane.b32.xlu0 %v1492, 64
        %v1507 = vpop.permute.xlu0 %1506
        %1508 = vrot.lane.b32.xlu0 %v1493, 64
        %v1509 = vpop.permute.xlu0 %1508
        %1510 = vrot.lane.b32.xlu0 %v1494, 64
        %v1511 = vpop.permute.xlu0 %1510
        %1512 = vrot.lane.b32.xlu0 %v1495, 64
        %v1513 = vpop.permute.xlu0 %1512
        %v1520 = vmul.f32 %v1458, %v1503
        %v1521 = vmul.f32 %v1459, %v1505
        %v1522 = vmul.f32 %v1460, %v1507
        %v1523 = vmul.f32 %v1461, %v1509
        %v1524 = vmul.f32 %v1462, %v1511
        %v1525 = vmul.f32 %v1463, %v1513
        %v1526 = vadd.f32 %v1520, %v1484
        %v1527 = vadd.f32 %v1521, %v1485
        %v1528 = vadd.f32 %v1522, %v1486
        %v1529 = vadd.f32 %v1523, %v1487
        %v1530 = vadd.f32 %v1524, %v1488
        %v1531 = vadd.f32 %v1525, %v1489
        %v1532 = vsel %vm1470, %v1526, 0.0
        %v1533 = vsel %vm1471, %v1527, 0.0
        %v1534 = vsel %vm1472, %v1528, 0.0
        %v1535 = vsel %vm1473, %v1529, 0.0
        %v1536 = vsel %vm1474, %v1530, 0.0
        %v1537 = vsel %vm1475, %v1531, 0.0
        %v1538 = vsel %vm1470, 0.0, %v1526
        %v1539 = vsel %vm1471, 0.0, %v1527
        %v1540 = vsel %vm1472, 0.0, %v1528
        %v1541 = vsel %vm1473, 0.0, %v1529
        %v1542 = vsel %vm1474, 0.0, %v1530
        %v1543 = vsel %vm1475, 0.0, %v1531
        %1550 = vrot.lane.b32.xlu0 %v1538, 64
        %v1551 = vpop.permute.xlu0 %1550
        %1552 = vrot.lane.b32.xlu0 %v1539, 64
        %v1553 = vpop.permute.xlu0 %1552
        %1554 = vrot.lane.b32.xlu0 %v1540, 64
        %v1555 = vpop.permute.xlu0 %1554
        %1556 = vrot.lane.b32.xlu0 %v1541, 64
        %v1557 = vpop.permute.xlu0 %1556
        %1558 = vrot.lane.b32.xlu0 %v1542, 64
        %v1559 = vpop.permute.xlu0 %1558
        %1560 = vrot.lane.b32.xlu0 %v1543, 64
        %v1561 = vpop.permute.xlu0 %1560
        %v1568 = vsel %vm880, %v1532, %v1551
        %v1569 = vsel %vm880, %v1533, %v1553
        %v1570 = vsel %vm880, %v1534, %v1555
        %v1571 = vsel %vm880, %v1535, %v1557
        %v1572 = vsel %vm880, %v1536, %v1559
        %v1573 = vsel %vm880, %v1537, %v1561
        %v1574 = vld [vmem:[%s10 + $0x18] sm:$0xff]
        %v1575 = vld [vmem:[%s10 + $0x44] sm:$0xff]
        %v1576 = vld [vmem:[%s10 + $0x70] sm:$0xff]
        %v1577 = vld [vmem:[%s10 + $0x9c] sm:$0xff]
        %v1578 = vld [vmem:[%s10 + $0xc8] sm:$0xff]
        %v1579 = vld [vmem:[%s10 + $0xf4] sm:$0xff]
        %v1580 = vld [vmem:[%s10 + $0x120] sm:$0xff]
        %v1581 = vld [vmem:[%s10 + $0x14c] sm:$0xff]
        %v1582 = vld [vmem:[%s10 + $0x178] sm:$0xff]
        %v1583 = vld [vmem:[%s10 + $0x1a4] sm:$0xff]
        %v1584 = vld [vmem:[%s10 + $0x1d0] sm:$0xff]
        %v1585 = vld [vmem:[%s10 + $0x1fc] sm:$0xff]
        %v1586 = vld [vmem:[%s10 + $0x228] sm:$0xff]
        %v1587 = vld [vmem:[%s10 + $0x254] sm:$0xff]
        %v1588 = vld [vmem:[%s10 + $0x280] sm:$0xff]
        %v1589 = vld [vmem:[%s10 + $0x2ac] sm:$0xff]
        %v1590 = vpack.c.bf16 %v1569, %v1568
        %v1591 = vpack.c.bf16 %v1571, %v1570
        %v1592 = vpack.c.bf16 %v1573, %v1572
        %s1593 = scalar_lea.vmem %s12, 12
        %v1594 = vld [vmem:[%s1593] ss:$2 sm:$0x3]
        %s1595 = scalar_lea.vmem %s12, 13
        %v1596 = vld [vmem:[%s1595] ss:$2 sm:$0x3]
        %v1598 = vlaneseq
        %v1599 = vshrl.u32 %v1598, 7
        %v1600 = vsub.s32 0, %v1599
        %v1601 = vrot.slane %v1594, %v1600
        %v1602 = vlaneseq
        %v1603 = vshrl.u32 %v1602, 7
        %v1604 = vsub.s32 1, %v1603
        %v1605 = vrot.slane %v1594, %v1604
        %v1609 = vlaneseq
        %v1610 = vshrl.u32 %v1609, 7
        %v1611 = vsub.s32 0, %v1610
        %v1612 = vrot.slane %v1596, %v1611
        %v1613 = vlaneseq
        %v1614 = vshrl.u32 %v1613, 7
        %v1615 = vsub.s32 1, %v1614
        %v1616 = vrot.slane %v1596, %v1615
        %v1619 = vsel %vm1470, %v1601, %v1612
        %v1620 = vsel %vm1470, %v1605, %v1616
        %v1621 = vsel %vm1471, %v1601, %v1612
        %v1622 = vsel %vm1471, %v1605, %v1616
        %v1623 = vsel %vm1472, %v1601, %v1612
        %v1624 = vsel %vm1472, %v1605, %v1616
        %v1625 = vsel %vm1473, %v1601, %v1612
        %v1626 = vsel %vm1473, %v1605, %v1616
        %v1627 = vsel %vm1474, %v1601, %v1612
        %v1628 = vsel %vm1474, %v1605, %v1616
        %v1629 = vsel %vm1475, %v1601, %v1612
        %v1630 = vsel %vm1475, %v1605, %v1616
        %v1647 = vunpack.c.l.b16 %v1574
        %v1648 = vunpack.c.h.b16 %v1574
        %v1649 = vunpack.c.l.b16 %v1575
        %v1650 = vunpack.c.h.b16 %v1575
        %v1651 = vunpack.c.l.b16 %v1576
        %v1652 = vunpack.c.h.b16 %v1576
        %v1653 = vunpack.c.l.b16 %v1577
        %v1654 = vunpack.c.h.b16 %v1577
        %v1655 = vunpack.c.l.b16 %v1578
        %v1656 = vunpack.c.h.b16 %v1578
        %v1657 = vunpack.c.l.b16 %v1579
        %v1658 = vunpack.c.h.b16 %v1579
        %v1659 = vunpack.c.l.b16 %v1580
        %v1660 = vunpack.c.h.b16 %v1580
        %v1661 = vunpack.c.l.b16 %v1581
        %v1662 = vunpack.c.h.b16 %v1581
        %v1663 = vunpack.c.l.b16 %v1582
        %v1664 = vunpack.c.h.b16 %v1582
        %v1665 = vunpack.c.l.b16 %v1583
        %v1666 = vunpack.c.h.b16 %v1583
        %v1667 = vunpack.c.l.b16 %v1584
        %v1668 = vunpack.c.h.b16 %v1584
        %v1669 = vunpack.c.l.b16 %v1585
        %v1670 = vunpack.c.h.b16 %v1585
        %v1671 = vunpack.c.l.b16 %v1586
        %v1672 = vunpack.c.h.b16 %v1586
        %v1673 = vunpack.c.l.b16 %v1587
        %v1674 = vunpack.c.h.b16 %v1587
        %v1675 = vunpack.c.l.b16 %v1588
        %v1676 = vunpack.c.h.b16 %v1588
        %v1677 = vunpack.c.l.b16 %v1589
        %v1678 = vunpack.c.h.b16 %v1589
        %v1679 = vpack.c.b16 %v1649, %v1647
        %v1680 = vpack.c.b16 %v1650, %v1648
        %v1681 = vpack.c.b16 %v1653, %v1651
        %v1682 = vpack.c.b16 %v1654, %v1652
        %v1683 = vpack.c.b16 %v1657, %v1655
        %v1684 = vpack.c.b16 %v1658, %v1656
        %v1685 = vpack.c.b16 %v1661, %v1659
        %v1686 = vpack.c.b16 %v1662, %v1660
        %v1687 = vpack.c.b16 %v1665, %v1663
        %v1688 = vpack.c.b16 %v1666, %v1664
        %v1689 = vpack.c.b16 %v1669, %v1667
        %v1690 = vpack.c.b16 %v1670, %v1668
        %v1691 = vpack.c.b16 %v1673, %v1671
        %v1692 = vpack.c.b16 %v1674, %v1672
        %v1693 = vpack.c.b16 %v1677, %v1675
        %v1694 = vpack.c.b16 %v1678, %v1676
        %1711 = vmatprep.subr.bf16.mxu0 %v1680
        %1712 = vmatpush1.bf16.msra.mxu0 %v1679
        %1713 = vmatprep.subr.bf16.mxu0 %v1682
        %1714 = vmatpush1.bf16.msra.mxu0 %v1681
        %1715 = vmatprep.subr.bf16.mxu0 %v1684
        %1716 = vmatpush1.bf16.msra.mxu0 %v1683
        %1717 = vmatprep.subr.bf16.mxu0 %v1686
        %1718 = vmatpush1.bf16.msra.mxu0 %v1685
        %1719 = vmatprep.subr.bf16.mxu0 %v1688
        %1720 = vmatpush1.bf16.msra.mxu0 %v1687
        %1721 = vmatprep.subr.bf16.mxu0 %v1690
        %1722 = vmatpush1.bf16.msra.mxu0 %v1689
        %1723 = vmatprep.subr.bf16.mxu0 %v1692
        %1724 = vmatpush1.bf16.msra.mxu0 %v1691
        %1725 = vmatprep.subr.bf16.mxu0 %v1694
        %1726 = vmatpush1.bf16.msra.mxu0 %v1693
        %1727 = vmatprep.subr.bf16.mxu0 0
        %1728 = vmatpush1.bf16.msra.mxu0 0
        %1729 = vmatprep.subr.bf16.mxu0 0
        %1730 = vmatpush1.bf16.msra.mxu0 0
        %1731 = vmatprep.subr.bf16.mxu0 0
        %1732 = vmatpush1.bf16.msra.mxu0 0
        %1733 = vmatprep.subr.bf16.mxu0 0
        %1734 = vmatpush1.bf16.msra.mxu0 0
        %1735 = vmatprep.subr.bf16.mxu0 0
        %1736 = vmatpush1.bf16.msra.mxu0 0
        %1737 = vmatprep.subr.bf16.mxu0 0
        %1738 = vmatpush1.bf16.msra.mxu0 0
        %1739 = vmatprep.subr.bf16.mxu0 0
        %1740 = vmatpush1.bf16.msra.mxu0 0
        %1741 = vmatprep.subr.bf16.mxu0 0
        %1742 = vmatpush1.bf16.msra.mxu0 0
        %1743 = vmatprep.mubr.bf16.mxu0 0
        %1744 = vmatmul.mubr.bf16.gmra.mrb[0].mxu0 %v1590
        %v1745 = vpop.f32.mrb[0].mxu0
        %v1746 = vadd.f32 %v1619, %v1745
        %v1747 = vpop.f32.mrb[0].mxu0
        %v1748 = vadd.f32 %v1620, %v1747
        %v1749 = vpop.f32.mrb[0].mxu0
        %v1750 = vadd.f32 %v1621, %v1749
        %v1751 = vpop.f32.mrb[0].mxu0
        %v1752 = vadd.f32 %v1622, %v1751
        %1753 = vmatprep.mubr.bf16.mxu0 0
        %1754 = vmatmul.mubr.bf16.gmra.mrb[0].mxu0 %v1591
        %v1755 = vpop.f32.mrb[0].mxu0
        %v1756 = vadd.f32 %v1623, %v1755
        %v1757 = vpop.f32.mrb[0].mxu0
        %v1758 = vadd.f32 %v1624, %v1757
        %v1759 = vpop.f32.mrb[0].mxu0
        %v1760 = vadd.f32 %v1625, %v1759
        %v1761 = vpop.f32.mrb[0].mxu0
        %v1762 = vadd.f32 %v1626, %v1761
        %1763 = vmatprep.mubr.bf16.mxu0 0
        %1764 = vmatmul.mubr.bf16.gmra.mrb[0].mxu0 %v1592
        %v1765 = vpop.f32.mrb[0].mxu0
        %v1766 = vadd.f32 %v1627, %v1765
        %v1767 = vpop.f32.mrb[0].mxu0
        %v1768 = vadd.f32 %v1628, %v1767
        %v1769 = vpop.f32.mrb[0].mxu0
        %v1770 = vadd.f32 %v1629, %v1769
        %v1771 = vpop.f32.mrb[0].mxu0
        %v1772 = vadd.f32 %v1630, %v1771
        %1773 = vdwg.mxu0
        %v1774 = vpack.c.bf16 %v1750, %v1746
        %v1775 = vpack.c.bf16 %v1752, %v1748
        %v1776 = vpack.c.bf16 %v1760, %v1756
        %v1777 = vpack.c.bf16 %v1762, %v1758
        %v1778 = vpack.c.bf16 %v1770, %v1766
        %v1779 = vpack.c.bf16 %v1772, %v1768
        %1783 = vrot.lane.b32.xlu0 %v1774, 64
        %v1784 = vpop.permute.xlu0 %1783
        %1785 = vrot.lane.b32.xlu0 %v1776, 64
        %v1786 = vpop.permute.xlu0 %1785
        %1787 = vrot.lane.b32.xlu0 %v1778, 64
        %v1788 = vpop.permute.xlu0 %1787
        %v1790 = vsel %vm505, %v1774, 0
        %v1793 = vsel %vm505, %v1776, 0
        %v1796 = vsel %vm505, %v1778, 0
        %v1799 = vsel %vm505, %v1784, 0
        %v1802 = vsel %vm505, %v1786, 0
        %v1805 = vsel %vm505, %v1788, 0
        %1807 = vmatprep.subr.bf16.mxu0 0
        %1808 = vmatpush1.bf16.xpose.msra.mxu0 %v1799
        %1809 = vmatprep.subr.bf16.mxu0 0
        %1810 = vmatpush1.bf16.xpose.msra.mxu0 %v1802
        %1811 = vmatprep.subr.bf16.mxu0 0
        %1812 = vmatpush1.bf16.xpose.msra.mxu0 %v1805
        %1813 = vmatprep.subr.bf16.mxu0 0
        %1814 = vmatpush1.bf16.xpose.msra.mxu0 0
        %1815 = vmatprep.subr.bf16.mxu0 0
        %1816 = vmatpush1.bf16.xpose.msra.mxu0 0
        %1817 = vmatprep.subr.bf16.mxu0 0
        %1818 = vmatpush1.bf16.xpose.msra.mxu0 0
        %1819 = vmatprep.subr.bf16.mxu0 0
        %1820 = vmatpush1.bf16.xpose.msra.mxu0 0
        %1821 = vmatprep.subr.bf16.mxu0 0
        %1822 = vmatpush1.bf16.xpose.msra.mxu0 0
        %1823 = vmatprep.subr.bf16.mxu0 0
        %1824 = vmatpush1.bf16.xpose.msra.mxu0 0
        %1825 = vmatprep.subr.bf16.mxu0 0
        %1826 = vmatpush1.bf16.xpose.msra.mxu0 0
        %1827 = vmatprep.subr.bf16.mxu0 0
        %1828 = vmatpush1.bf16.xpose.msra.mxu0 0
        %1829 = vmatprep.subr.bf16.mxu0 0
        %1830 = vmatpush1.bf16.xpose.msra.mxu0 0
        %1831 = vmatprep.subr.bf16.mxu0 0
        %1832 = vmatpush1.bf16.xpose.msra.mxu0 0
        %1833 = vmatprep.subr.bf16.mxu0 0
        %1834 = vmatpush1.bf16.xpose.msra.mxu0 0
        %1835 = vmatprep.subr.bf16.mxu0 0
        %1836 = vmatpush1.bf16.xpose.msra.mxu0 0
        %1837 = vmatprep.subr.bf16.mxu0 0
        %1838 = vmatpush1.bf16.xpose.msra.mxu0 0
        %1839 = vmatprep.mubr.bf16.mxu0 0
        %1840 = vmatmul.mubr.bf16.gmra.mrb[0].mxu0 %v1790
        %v1841 = vpop.f32.mrb[0].mxu0
        %v1842 = vadd.f32 0.0, %v1841
        %v1843 = vpop.f32.mrb[0].mxu0
        %v1844 = vpop.f32.mrb[0].mxu0
        %v1845 = vadd.f32 0.0, %v1844
        %v1846 = vpop.f32.mrb[0].mxu0
        %1847 = vmatprep.mubr.bf16.mxu0 0
        %1848 = vmatmul.mubr.bf16.gmra.mrb[0].mxu0 %v1793
        %v1849 = vpop.f32.mrb[0].mxu0
        %v1850 = vadd.f32 0.0, %v1849
        %v1851 = vpop.f32.mrb[0].mxu0
        %v1852 = vpop.f32.mrb[0].mxu0
        %v1853 = vadd.f32 0.0, %v1852
        %v1854 = vpop.f32.mrb[0].mxu0
        %1855 = vmatprep.mubr.bf16.mxu0 0
        %1856 = vmatmul.mubr.bf16.gmra.mrb[0].mxu0 %v1796
        %v1857 = vpop.f32.mrb[0].mxu0
        %v1858 = vadd.f32 0.0, %v1857
        %v1859 = vpop.f32.mrb[0].mxu0
        %v1860 = vpop.f32.mrb[0].mxu0
        %v1861 = vadd.f32 0.0, %v1860
        %v1862 = vpop.f32.mrb[0].mxu0
        %1863 = vdwg.mxu0
        %v1864 = vmul.f32 %v1842, 0.25
        %v1865 = vmul.f32 %v1845, 0.25
        %v1866 = vmul.f32 %v1850, 0.25
        %v1867 = vmul.f32 %v1853, 0.25
        %v1868 = vmul.f32 %v1858, 0.25
        %v1869 = vmul.f32 %v1861, 0.25
        %vm1870 = vcmask 351232
        %v1871 = vsel %vm1870, %v1864, -inf
        %1872 = vmax.xlane.f32.xlu0 %v1871
        %v1873 = vpop.xlane.xlu0 %1872
        %v1874 = vsel %vm1870, %v1865, -inf
        %1875 = vmax.xlane.f32.xlu0 %v1874
        %v1876 = vpop.xlane.xlu0 %1875
        %v1877 = vsel %vm1870, %v1866, -inf
        %1878 = vmax.xlane.f32.xlu0 %v1877
        %v1879 = vpop.xlane.xlu0 %1878
        %v1880 = vsel %vm1870, %v1867, -inf
        %1881 = vmax.xlane.f32.xlu0 %v1880
        %v1882 = vpop.xlane.xlu0 %1881
        %v1883 = vsel %vm1870, %v1868, -inf
        %1884 = vmax.xlane.f32.xlu0 %v1883
        %v1885 = vpop.xlane.xlu0 %1884
        %vm1886 = vcmask 346112
        %v1887 = vsel %vm1886, %v1869, -inf
        %1888 = vmax.xlane.f32.xlu0 %v1887
        %v1889 = vpop.xlane.xlu0 %1888
        %v1890 = vsub.f32 %v1864, %v1873
        %v1891 = vsub.f32 %v1865, %v1876
        %v1892 = vsub.f32 %v1866, %v1879
        %v1893 = vsub.f32 %v1867, %v1882
        %v1894 = vsub.f32 %v1868, %v1885
        %v1895 = vsub.f32 %v1869, %v1889
        %v1896 = vmul.f32 %v1890, 1.442695
        %v1897 = vpow.pop %v1896
        %v1898 = vmul.f32 %v1891, 1.442695
        %v1899 = vpow.pop %v1898
        %v1900 = vmul.f32 %v1892, 1.442695
        %v1901 = vpow.pop %v1900
        %v1902 = vmul.f32 %v1893, 1.442695
        %v1903 = vpow.pop %v1902
        %v1904 = vmul.f32 %v1894, 1.442695
        %v1905 = vpow.pop %v1904
        %v1906 = vmul.f32 %v1895, 1.442695
        %v1907 = vpow.pop %v1906
        %v1908 = vsel %vm1870, %v1897, 0.0
        %1909 = vadd.xlane.f32.xlu0 %v1908
        %v1910 = vpop.xlane.xlu0 %1909
        %v1911 = vsel %vm1870, %v1899, 0.0
        %1912 = vadd.xlane.f32.xlu0 %v1911
        %v1913 = vpop.xlane.xlu0 %1912
        %v1914 = vsel %vm1870, %v1901, 0.0
        %1915 = vadd.xlane.f32.xlu0 %v1914
        %v1916 = vpop.xlane.xlu0 %1915
        %v1917 = vsel %vm1870, %v1903, 0.0
        %1918 = vadd.xlane.f32.xlu0 %v1917
        %v1919 = vpop.xlane.xlu0 %1918
        %v1920 = vsel %vm1870, %v1905, 0.0
        %1921 = vadd.xlane.f32.xlu0 %v1920
        %v1922 = vpop.xlane.xlu0 %1921
        %v1923 = vsel %vm1886, %v1907, 0.0
        %1924 = vadd.xlane.f32.xlu0 %v1923
        %v1925 = vpop.xlane.xlu0 %1924
        %v1926 = vrcp.pop %v1910
        %v1927 = vrcp.pop %v1913
        %v1928 = vrcp.pop %v1916
        %v1929 = vrcp.pop %v1919
        %v1930 = vrcp.pop %v1922
        %v1931 = vrcp.pop %v1925
        %v1932 = vmul.f32 %v1897, %v1926
        %v1933 = vmul.f32 %v1899, %v1927
        %v1934 = vmul.f32 %v1901, %v1928
        %v1935 = vmul.f32 %v1903, %v1929
        %v1936 = vmul.f32 %v1905, %v1930
        %v1937 = vmul.f32 %v1907, %v1931
        %v1938 = vpack.c.bf16 %v1933, %v1932
        %v1939 = vpack.c.bf16 %v1935, %v1934
        %v1940 = vpack.c.bf16 %v1937, %v1936
        %v1942 = vsel %vm1870, %v1938, 0
        %v1945 = vsel %vm1870, %v1939, 0
        %v1948 = vsel %vm1870, %v1940, 0
        %vm1950 = vcmask 1044480
        %vm1951 = vcmask 1045504
        %v1952 = vsel %vm1950, 4294967295, 65535
        %v1953 = vsel %vm1951, %v1952, 0
        %v1955 = vand.u32 %v1779, %v1953
        %1957 = vmatprep.subr.bf16.mxu0 0
        %1958 = vmatpush1.bf16.msra.mxu0 %v1775
        %1959 = vmatprep.subr.bf16.mxu0 0
        %1960 = vmatpush1.bf16.msra.mxu0 %v1777
        %1961 = vmatprep.subr.bf16.mxu0 0
        %1962 = vmatpush1.bf16.msra.mxu0 %v1955
        %1963 = vmatprep.subr.bf16.mxu0 0
        %1964 = vmatpush1.bf16.msra.mxu0 0
        %1965 = vmatprep.subr.bf16.mxu0 0
        %1966 = vmatpush1.bf16.msra.mxu0 0
        %1967 = vmatprep.subr.bf16.mxu0 0
        %1968 = vmatpush1.bf16.msra.mxu0 0
        %1969 = vmatprep.subr.bf16.mxu0 0
        %1970 = vmatpush1.bf16.msra.mxu0 0
        %1971 = vmatprep.subr.bf16.mxu0 0
        %1972 = vmatpush1.bf16.msra.mxu0 0
        %1973 = vmatprep.subr.bf16.mxu0 0
        %1974 = vmatpush1.bf16.msra.mxu0 0
        %1975 = vmatprep.subr.bf16.mxu0 0
        %1976 = vmatpush1.bf16.msra.mxu0 0
        %1977 = vmatprep.subr.bf16.mxu0 0
        %1978 = vmatpush1.bf16.msra.mxu0 0
        %1979 = vmatprep.subr.bf16.mxu0 0
        %1980 = vmatpush1.bf16.msra.mxu0 0
        %1981 = vmatprep.subr.bf16.mxu0 0
        %1982 = vmatpush1.bf16.msra.mxu0 0
        %1983 = vmatprep.subr.bf16.mxu0 0
        %1984 = vmatpush1.bf16.msra.mxu0 0
        %1985 = vmatprep.subr.bf16.mxu0 0
        %1986 = vmatpush1.bf16.msra.mxu0 0
        %1987 = vmatprep.subr.bf16.mxu0 0
        %1988 = vmatpush1.bf16.msra.mxu0 0
        %1989 = vmatprep.mubr.bf16.mxu0 0
        %1990 = vmatmul.mubr.bf16.gmra.mrb[0].mxu0 %v1942
        %v1991 = vpop.f32.mrb[0].mxu0
        %v1992 = vadd.f32 0.0, %v1991
        %v1993 = vpop.f32.mrb[0].mxu0
        %v1994 = vpop.f32.mrb[0].mxu0
        %v1995 = vadd.f32 0.0, %v1994
        %v1996 = vpop.f32.mrb[0].mxu0
        %1997 = vmatprep.mubr.bf16.mxu0 0
        %1998 = vmatmul.mubr.bf16.gmra.mrb[0].mxu0 %v1945
        %v1999 = vpop.f32.mrb[0].mxu0
        %v2000 = vadd.f32 0.0, %v1999
        %v2001 = vpop.f32.mrb[0].mxu0
        %v2002 = vpop.f32.mrb[0].mxu0
        %v2003 = vadd.f32 0.0, %v2002
        %v2004 = vpop.f32.mrb[0].mxu0
        %2005 = vmatprep.mubr.bf16.mxu0 0
        %2006 = vmatmul.mubr.bf16.gmra.mrb[0].mxu0 %v1948
        %v2007 = vpop.f32.mrb[0].mxu0
        %v2008 = vadd.f32 0.0, %v2007
        %v2009 = vpop.f32.mrb[0].mxu0
        %v2010 = vpop.f32.mrb[0].mxu0
        %v2011 = vadd.f32 0.0, %v2010
        %v2012 = vpop.f32.mrb[0].mxu0
        %2013 = vdwg.mxu0
        %2014 = vrot.lane.b32.xlu0 %v1774, 112
        %v2015 = vpop.permute.xlu0 %2014
        %2016 = vrot.lane.b32.xlu0 %v1776, 112
        %v2017 = vpop.permute.xlu0 %2016
        %2018 = vrot.lane.b32.xlu0 %v1778, 112
        %v2019 = vpop.permute.xlu0 %2018
        %2020 = vrot.lane.b32.xlu0 %v1774, 48
        %v2021 = vpop.permute.xlu0 %2020
        %2022 = vrot.lane.b32.xlu0 %v1776, 48
        %v2023 = vpop.permute.xlu0 %2022
        %2024 = vrot.lane.b32.xlu0 %v1778, 48
        %v2025 = vpop.permute.xlu0 %2024
        %v2027 = vsel %vm505, %v2015, 0
        %v2030 = vsel %vm505, %v2017, 0
        %v2033 = vsel %vm505, %v2019, 0
        %v2036 = vsel %vm505, %v2021, 0
        %v2039 = vsel %vm505, %v2023, 0
        %v2042 = vsel %vm505, %v2025, 0
        %2044 = vmatprep.subr.bf16.mxu0 0
        %2045 = vmatpush1.bf16.xpose.msra.mxu0 %v2036
        %2046 = vmatprep.subr.bf16.mxu0 0
        %2047 = vmatpush1.bf16.xpose.msra.mxu0 %v2039
        %2048 = vmatprep.subr.bf16.mxu0 0
        %2049 = vmatpush1.bf16.xpose.msra.mxu0 %v2042
        %2050 = vmatprep.subr.bf16.mxu0 0
        %2051 = vmatpush1.bf16.xpose.msra.mxu0 0
        %2052 = vmatprep.subr.bf16.mxu0 0
        %2053 = vmatpush1.bf16.xpose.msra.mxu0 0
        %2054 = vmatprep.subr.bf16.mxu0 0
        %2055 = vmatpush1.bf16.xpose.msra.mxu0 0
        %2056 = vmatprep.subr.bf16.mxu0 0
        %2057 = vmatpush1.bf16.xpose.msra.mxu0 0
        %2058 = vmatprep.subr.bf16.mxu0 0
        %2059 = vmatpush1.bf16.xpose.msra.mxu0 0
        %2060 = vmatprep.subr.bf16.mxu0 0
        %2061 = vmatpush1.bf16.xpose.msra.mxu0 0
        %2062 = vmatprep.subr.bf16.mxu0 0
        %2063 = vmatpush1.bf16.xpose.msra.mxu0 0
        %2064 = vmatprep.subr.bf16.mxu0 0
        %2065 = vmatpush1.bf16.xpose.msra.mxu0 0
        %2066 = vmatprep.subr.bf16.mxu0 0
        %2067 = vmatpush1.bf16.xpose.msra.mxu0 0
        %2068 = vmatprep.subr.bf16.mxu0 0
        %2069 = vmatpush1.bf16.xpose.msra.mxu0 0
        %2070 = vmatprep.subr.bf16.mxu0 0
        %2071 = vmatpush1.bf16.xpose.msra.mxu0 0
        %2072 = vmatprep.subr.bf16.mxu0 0
        %2073 = vmatpush1.bf16.xpose.msra.mxu0 0
        %2074 = vmatprep.subr.bf16.mxu0 0
        %2075 = vmatpush1.bf16.xpose.msra.mxu0 0
        %2076 = vmatprep.mubr.bf16.mxu0 0
        %2077 = vmatmul.mubr.bf16.gmra.mrb[0].mxu0 %v2027
        %v2078 = vpop.f32.mrb[0].mxu0
        %v2079 = vadd.f32 0.0, %v2078
        %v2080 = vpop.f32.mrb[0].mxu0
        %v2081 = vpop.f32.mrb[0].mxu0
        %v2082 = vadd.f32 0.0, %v2081
        %v2083 = vpop.f32.mrb[0].mxu0
        %2084 = vmatprep.mubr.bf16.mxu0 0
        %2085 = vmatmul.mubr.bf16.gmra.mrb[0].mxu0 %v2030
        %v2086 = vpop.f32.mrb[0].mxu0
        %v2087 = vadd.f32 0.0, %v2086
        %v2088 = vpop.f32.mrb[0].mxu0
        %v2089 = vpop.f32.mrb[0].mxu0
        %v2090 = vadd.f32 0.0, %v2089
        %v2091 = vpop.f32.mrb[0].mxu0
        %2092 = vmatprep.mubr.bf16.mxu0 0
        %2093 = vmatmul.mubr.bf16.gmra.mrb[0].mxu0 %v2033
        %v2094 = vpop.f32.mrb[0].mxu0
        %v2095 = vadd.f32 0.0, %v2094
        %v2096 = vpop.f32.mrb[0].mxu0
        %v2097 = vpop.f32.mrb[0].mxu0
        %v2098 = vadd.f32 0.0, %v2097
        %v2099 = vpop.f32.mrb[0].mxu0
        %2100 = vdwg.mxu0
        %v2101 = vmul.f32 %v2079, 0.25
        %v2102 = vmul.f32 %v2082, 0.25
        %v2103 = vmul.f32 %v2087, 0.25
        %v2104 = vmul.f32 %v2090, 0.25
        %v2105 = vmul.f32 %v2095, 0.25
        %v2106 = vmul.f32 %v2098, 0.25
        %v2107 = vsel %vm1870, %v2101, -inf
        %2108 = vmax.xlane.f32.xlu0 %v2107
        %v2109 = vpop.xlane.xlu0 %2108
        %v2110 = vsel %vm1870, %v2102, -inf
        %2111 = vmax.xlane.f32.xlu0 %v2110
        %v2112 = vpop.xlane.xlu0 %2111
        %v2113 = vsel %vm1870, %v2103, -inf
        %2114 = vmax.xlane.f32.xlu0 %v2113
        %v2115 = vpop.xlane.xlu0 %2114
        %v2116 = vsel %vm1870, %v2104, -inf
        %2117 = vmax.xlane.f32.xlu0 %v2116
        %v2118 = vpop.xlane.xlu0 %2117
        %v2119 = vsel %vm1870, %v2105, -inf
        %2120 = vmax.xlane.f32.xlu0 %v2119
        %v2121 = vpop.xlane.xlu0 %2120
        %v2122 = vsel %vm1886, %v2106, -inf
        %2123 = vmax.xlane.f32.xlu0 %v2122
        %v2124 = vpop.xlane.xlu0 %2123
        %v2125 = vsub.f32 %v2101, %v2109
        %v2126 = vsub.f32 %v2102, %v2112
        %v2127 = vsub.f32 %v2103, %v2115
        %v2128 = vsub.f32 %v2104, %v2118
        %v2129 = vsub.f32 %v2105, %v2121
        %v2130 = vsub.f32 %v2106, %v2124
        %v2131 = vmul.f32 %v2125, 1.442695
        %v2132 = vpow.pop %v2131
        %v2133 = vmul.f32 %v2126, 1.442695
        %v2134 = vpow.pop %v2133
        %v2135 = vmul.f32 %v2127, 1.442695
        %v2136 = vpow.pop %v2135
        %v2137 = vmul.f32 %v2128, 1.442695
        %v2138 = vpow.pop %v2137
        %v2139 = vmul.f32 %v2129, 1.442695
        %v2140 = vpow.pop %v2139
        %v2141 = vmul.f32 %v2130, 1.442695
        %v2142 = vpow.pop %v2141
        %v2143 = vsel %vm1870, %v2132, 0.0
        %2144 = vadd.xlane.f32.xlu0 %v2143
        %v2145 = vpop.xlane.xlu0 %2144
        %v2146 = vsel %vm1870, %v2134, 0.0
        %2147 = vadd.xlane.f32.xlu0 %v2146
        %v2148 = vpop.xlane.xlu0 %2147
        %v2149 = vsel %vm1870, %v2136, 0.0
        %2150 = vadd.xlane.f32.xlu0 %v2149
        %v2151 = vpop.xlane.xlu0 %2150
        %v2152 = vsel %vm1870, %v2138, 0.0
        %2153 = vadd.xlane.f32.xlu0 %v2152
        %v2154 = vpop.xlane.xlu0 %2153
        %v2155 = vsel %vm1870, %v2140, 0.0
        %2156 = vadd.xlane.f32.xlu0 %v2155
        %v2157 = vpop.xlane.xlu0 %2156
        %v2158 = vsel %vm1886, %v2142, 0.0
        %2159 = vadd.xlane.f32.xlu0 %v2158
        %v2160 = vpop.xlane.xlu0 %2159
        %v2161 = vrcp.pop %v2145
        %v2162 = vrcp.pop %v2148
        %v2163 = vrcp.pop %v2151
        %v2164 = vrcp.pop %v2154
        %v2165 = vrcp.pop %v2157
        %v2166 = vrcp.pop %v2160
        %v2167 = vmul.f32 %v2132, %v2161
        %v2168 = vmul.f32 %v2134, %v2162
        %v2169 = vmul.f32 %v2136, %v2163
        %v2170 = vmul.f32 %v2138, %v2164
        %v2171 = vmul.f32 %v2140, %v2165
        %v2172 = vmul.f32 %v2142, %v2166
        %v2173 = vpack.c.bf16 %v2168, %v2167
        %v2174 = vpack.c.bf16 %v2170, %v2169
        %v2175 = vpack.c.bf16 %v2172, %v2171
        %2179 = vrot.lane.b32.xlu0 %v1775, 112
        %v2180 = vpop.permute.xlu0 %2179
        %2181 = vrot.lane.b32.xlu0 %v1777, 112
        %v2182 = vpop.permute.xlu0 %2181
        %2183 = vrot.lane.b32.xlu0 %v1779, 112
        %v2184 = vpop.permute.xlu0 %2183
        %v2188 = vsel %vm1870, %v2173, 0
        %v2191 = vsel %vm1870, %v2174, 0
        %v2194 = vsel %vm1870, %v2175, 0
        %v2197 = vand.u32 %v2184, %v1953
        %2199 = vmatprep.subr.bf16.mxu0 0
        %2200 = vmatpush1.bf16.msra.mxu0 %v2180
        %2201 = vmatprep.subr.bf16.mxu0 0
        %2202 = vmatpush1.bf16.msra.mxu0 %v2182
        %2203 = vmatprep.subr.bf16.mxu0 0
        %2204 = vmatpush1.bf16.msra.mxu0 %v2197
        %2205 = vmatprep.subr.bf16.mxu0 0
        %2206 = vmatpush1.bf16.msra.mxu0 0
        %2207 = vmatprep.subr.bf16.mxu0 0
        %2208 = vmatpush1.bf16.msra.mxu0 0
        %2209 = vmatprep.subr.bf16.mxu0 0
        %2210 = vmatpush1.bf16.msra.mxu0 0
        %2211 = vmatprep.subr.bf16.mxu0 0
        %2212 = vmatpush1.bf16.msra.mxu0 0
        %2213 = vmatprep.subr.bf16.mxu0 0
        %2214 = vmatpush1.bf16.msra.mxu0 0
        %2215 = vmatprep.subr.bf16.mxu0 0
        %2216 = vmatpush1.bf16.msra.mxu0 0
        %2217 = vmatprep.subr.bf16.mxu0 0
        %2218 = vmatpush1.bf16.msra.mxu0 0
        %2219 = vmatprep.subr.bf16.mxu0 0
        %2220 = vmatpush1.bf16.msra.mxu0 0
        %2221 = vmatprep.subr.bf16.mxu0 0
        %2222 = vmatpush1.bf16.msra.mxu0 0
        %2223 = vmatprep.subr.bf16.mxu0 0
        %2224 = vmatpush1.bf16.msra.mxu0 0
        %2225 = vmatprep.subr.bf16.mxu0 0
        %2226 = vmatpush1.bf16.msra.mxu0 0
        %2227 = vmatprep.subr.bf16.mxu0 0
        %2228 = vmatpush1.bf16.msra.mxu0 0
        %2229 = vmatprep.subr.bf16.mxu0 0
        %2230 = vmatpush1.bf16.msra.mxu0 0
        %2231 = vmatprep.mubr.bf16.mxu0 0
        %2232 = vmatmul.mubr.bf16.gmra.mrb[0].mxu0 %v2188
        %v2233 = vpop.f32.mrb[0].mxu0
        %v2234 = vadd.f32 0.0, %v2233
        %v2235 = vpop.f32.mrb[0].mxu0
        %v2236 = vpop.f32.mrb[0].mxu0
        %v2237 = vadd.f32 0.0, %v2236
        %v2238 = vpop.f32.mrb[0].mxu0
        %2239 = vmatprep.mubr.bf16.mxu0 0
        %2240 = vmatmul.mubr.bf16.gmra.mrb[0].mxu0 %v2191
        %v2241 = vpop.f32.mrb[0].mxu0
        %v2242 = vadd.f32 0.0, %v2241
        %v2243 = vpop.f32.mrb[0].mxu0
        %v2244 = vpop.f32.mrb[0].mxu0
        %v2245 = vadd.f32 0.0, %v2244
        %v2246 = vpop.f32.mrb[0].mxu0
        %2247 = vmatprep.mubr.bf16.mxu0 0
        %2248 = vmatmul.mubr.bf16.gmra.mrb[0].mxu0 %v2194
        %v2249 = vpop.f32.mrb[0].mxu0
        %v2250 = vadd.f32 0.0, %v2249
        %v2251 = vpop.f32.mrb[0].mxu0
        %v2252 = vpop.f32.mrb[0].mxu0
        %v2253 = vadd.f32 0.0, %v2252
        %v2254 = vpop.f32.mrb[0].mxu0
        %2255 = vdwg.mxu0
        %2256 = vrot.lane.b32.xlu0 %v1774, 96
        %v2257 = vpop.permute.xlu0 %2256
        %2258 = vrot.lane.b32.xlu0 %v1776, 96
        %v2259 = vpop.permute.xlu0 %2258
        %2260 = vrot.lane.b32.xlu0 %v1778, 96
        %v2261 = vpop.permute.xlu0 %2260
        %2262 = vrot.lane.b32.xlu0 %v1774, 32
        %v2263 = vpop.permute.xlu0 %2262
        %2264 = vrot.lane.b32.xlu0 %v1776, 32
        %v2265 = vpop.permute.xlu0 %2264
        %2266 = vrot.lane.b32.xlu0 %v1778, 32
        %v2267 = vpop.permute.xlu0 %2266
        %v2269 = vsel %vm505, %v2257, 0
        %v2272 = vsel %vm505, %v2259, 0
        %v2275 = vsel %vm505, %v2261, 0
        %v2278 = vsel %vm505, %v2263, 0
        %v2281 = vsel %vm505, %v2265, 0
        %v2284 = vsel %vm505, %v2267, 0
        %2286 = vmatprep.subr.bf16.mxu0 0
        %2287 = vmatpush1.bf16.xpose.msra.mxu0 %v2278
        %2288 = vmatprep.subr.bf16.mxu0 0
        %2289 = vmatpush1.bf16.xpose.msra.mxu0 %v2281
        %2290 = vmatprep.subr.bf16.mxu0 0
        %2291 = vmatpush1.bf16.xpose.msra.mxu0 %v2284
        %2292 = vmatprep.subr.bf16.mxu0 0
        %2293 = vmatpush1.bf16.xpose.msra.mxu0 0
        %2294 = vmatprep.subr.bf16.mxu0 0
        %2295 = vmatpush1.bf16.xpose.msra.mxu0 0
        %2296 = vmatprep.subr.bf16.mxu0 0
        %2297 = vmatpush1.bf16.xpose.msra.mxu0 0
        %2298 = vmatprep.subr.bf16.mxu0 0
        %2299 = vmatpush1.bf16.xpose.msra.mxu0 0
        %2300 = vmatprep.subr.bf16.mxu0 0
        %2301 = vmatpush1.bf16.xpose.msra.mxu0 0
        %2302 = vmatprep.subr.bf16.mxu0 0
        %2303 = vmatpush1.bf16.xpose.msra.mxu0 0
        %2304 = vmatprep.subr.bf16.mxu0 0
        %2305 = vmatpush1.bf16.xpose.msra.mxu0 0
        %2306 = vmatprep.subr.bf16.mxu0 0
        %2307 = vmatpush1.bf16.xpose.msra.mxu0 0
        %2308 = vmatprep.subr.bf16.mxu0 0
        %2309 = vmatpush1.bf16.xpose.msra.mxu0 0
        %2310 = vmatprep.subr.bf16.mxu0 0
        %2311 = vmatpush1.bf16.xpose.msra.mxu0 0
        %2312 = vmatprep.subr.bf16.mxu0 0
        %2313 = vmatpush1.bf16.xpose.msra.mxu0 0
        %2314 = vmatprep.subr.bf16.mxu0 0
        %2315 = vmatpush1.bf16.xpose.msra.mxu0 0
        %2316 = vmatprep.subr.bf16.mxu0 0
        %2317 = vmatpush1.bf16.xpose.msra.mxu0 0
        %2318 = vmatprep.mubr.bf16.mxu0 0
        %2319 = vmatmul.mubr.bf16.gmra.mrb[0].mxu0 %v2269
        %v2320 = vpop.f32.mrb[0].mxu0
        %v2321 = vadd.f32 0.0, %v2320
        %v2322 = vpop.f32.mrb[0].mxu0
        %v2323 = vpop.f32.mrb[0].mxu0
        %v2324 = vadd.f32 0.0, %v2323
        %v2325 = vpop.f32.mrb[0].mxu0
        %2326 = vmatprep.mubr.bf16.mxu0 0
        %2327 = vmatmul.mubr.bf16.gmra.mrb[0].mxu0 %v2272
        %v2328 = vpop.f32.mrb[0].mxu0
        %v2329 = vadd.f32 0.0, %v2328
        %v2330 = vpop.f32.mrb[0].mxu0
        %v2331 = vpop.f32.mrb[0].mxu0
        %v2332 = vadd.f32 0.0, %v2331
        %v2333 = vpop.f32.mrb[0].mxu0
        %2334 = vmatprep.mubr.bf16.mxu0 0
        %2335 = vmatmul.mubr.bf16.gmra.mrb[0].mxu0 %v2275
        %v2336 = vpop.f32.mrb[0].mxu0
        %v2337 = vadd.f32 0.0, %v2336
        %v2338 = vpop.f32.mrb[0].mxu0
        %v2339 = vpop.f32.mrb[0].mxu0
        %v2340 = vadd.f32 0.0, %v2339
        %v2341 = vpop.f32.mrb[0].mxu0
        %2342 = vdwg.mxu0
        %v2343 = vmul.f32 %v2321, 0.25
        %v2344 = vmul.f32 %v2324, 0.25
        %v2345 = vmul.f32 %v2329, 0.25
        %v2346 = vmul.f32 %v2332, 0.25
        %v2347 = vmul.f32 %v2337, 0.25
        %v2348 = vmul.f32 %v2340, 0.25
        %v2349 = vsel %vm1870, %v2343, -inf
        %2350 = vmax.xlane.f32.xlu0 %v2349
        %v2351 = vpop.xlane.xlu0 %2350
        %v2352 = vsel %vm1870, %v2344, -inf
        %2353 = vmax.xlane.f32.xlu0 %v2352
        %v2354 = vpop.xlane.xlu0 %2353
        %v2355 = vsel %vm1870, %v2345, -inf
        %2356 = vmax.xlane.f32.xlu0 %v2355
        %v2357 = vpop.xlane.xlu0 %2356
        %v2358 = vsel %vm1870, %v2346, -inf
        %2359 = vmax.xlane.f32.xlu0 %v2358
        %v2360 = vpop.xlane.xlu0 %2359
        %v2361 = vsel %vm1870, %v2347, -inf
        %2362 = vmax.xlane.f32.xlu0 %v2361
        %v2363 = vpop.xlane.xlu0 %2362
        %v2364 = vsel %vm1886, %v2348, -inf
        %2365 = vmax.xlane.f32.xlu0 %v2364
        %v2366 = vpop.xlane.xlu0 %2365
        %v2367 = vsub.f32 %v2343, %v2351
        %v2368 = vsub.f32 %v2344, %v2354
        %v2369 = vsub.f32 %v2345, %v2357
        %v2370 = vsub.f32 %v2346, %v2360
        %v2371 = vsub.f32 %v2347, %v2363
        %v2372 = vsub.f32 %v2348, %v2366
        %v2373 = vmul.f32 %v2367, 1.442695
        %v2374 = vpow.pop %v2373
        %v2375 = vmul.f32 %v2368, 1.442695
        %v2376 = vpow.pop %v2375
        %v2377 = vmul.f32 %v2369, 1.442695
        %v2378 = vpow.pop %v2377
        %v2379 = vmul.f32 %v2370, 1.442695
        %v2380 = vpow.pop %v2379
        %v2381 = vmul.f32 %v2371, 1.442695
        %v2382 = vpow.pop %v2381
        %v2383 = vmul.f32 %v2372, 1.442695
        %v2384 = vpow.pop %v2383
        %v2385 = vsel %vm1870, %v2374, 0.0
        %2386 = vadd.xlane.f32.xlu0 %v2385
        %v2387 = vpop.xlane.xlu0 %2386
        %v2388 = vsel %vm1870, %v2376, 0.0
        %2389 = vadd.xlane.f32.xlu0 %v2388
        %v2390 = vpop.xlane.xlu0 %2389
        %v2391 = vsel %vm1870, %v2378, 0.0
        %2392 = vadd.xlane.f32.xlu0 %v2391
        %v2393 = vpop.xlane.xlu0 %2392
        %v2394 = vsel %vm1870, %v2380, 0.0
        %2395 = vadd.xlane.f32.xlu0 %v2394
        %v2396 = vpop.xlane.xlu0 %2395
        %v2397 = vsel %vm1870, %v2382, 0.0
        %2398 = vadd.xlane.f32.xlu0 %v2397
        %v2399 = vpop.xlane.xlu0 %2398
        %v2400 = vsel %vm1886, %v2384, 0.0
        %2401 = vadd.xlane.f32.xlu0 %v2400
        %v2402 = vpop.xlane.xlu0 %2401
        %v2403 = vrcp.pop %v2387
        %v2404 = vrcp.pop %v2390
        %v2405 = vrcp.pop %v2393
        %v2406 = vrcp.pop %v2396
        %v2407 = vrcp.pop %v2399
        %v2408 = vrcp.pop %v2402
        %v2409 = vmul.f32 %v2374, %v2403
        %v2410 = vmul.f32 %v2376, %v2404
        %v2411 = vmul.f32 %v2378, %v2405
        %v2412 = vmul.f32 %v2380, %v2406
        %v2413 = vmul.f32 %v2382, %v2407
        %v2414 = vmul.f32 %v2384, %v2408
        %v2415 = vpack.c.bf16 %v2410, %v2409
        %v2416 = vpack.c.bf16 %v2412, %v2411
        %v2417 = vpack.c.bf16 %v2414, %v2413
        %2418 = vrot.lane.b32.xlu0 %v1775, 96
        %v2419 = vpop.permute.xlu0 %2418
        %2420 = vrot.lane.b32.xlu0 %v1777, 96
        %v2421 = vpop.permute.xlu0 %2420
        %2422 = vrot.lane.b32.xlu0 %v1779, 96
        %v2423 = vpop.permute.xlu0 %2422
        %v2427 = vsel %vm1870, %v2415, 0
        %v2430 = vsel %vm1870, %v2416, 0
        %v2433 = vsel %vm1870, %v2417, 0
        %v2436 = vand.u32 %v2423, %v1953
        %2438 = vmatprep.subr.bf16.mxu0 0
        %2439 = vmatpush1.bf16.msra.mxu0 %v2419
        %2440 = vmatprep.subr.bf16.mxu0 0
        %2441 = vmatpush1.bf16.msra.mxu0 %v2421
        %2442 = vmatprep.subr.bf16.mxu0 0
        %2443 = vmatpush1.bf16.msra.mxu0 %v2436
        %2444 = vmatprep.subr.bf16.mxu0 0
        %2445 = vmatpush1.bf16.msra.mxu0 0
        %2446 = vmatprep.subr.bf16.mxu0 0
        %2447 = vmatpush1.bf16.msra.mxu0 0
        %2448 = vmatprep.subr.bf16.mxu0 0
        %2449 = vmatpush1.bf16.msra.mxu0 0
        %2450 = vmatprep.subr.bf16.mxu0 0
        %2451 = vmatpush1.bf16.msra.mxu0 0
        %2452 = vmatprep.subr.bf16.mxu0 0
        %2453 = vmatpush1.bf16.msra.mxu0 0
        %2454 = vmatprep.subr.bf16.mxu0 0
        %2455 = vmatpush1.bf16.msra.mxu0 0
        %2456 = vmatprep.subr.bf16.mxu0 0
        %2457 = vmatpush1.bf16.msra.mxu0 0
        %2458 = vmatprep.subr.bf16.mxu0 0
        %2459 = vmatpush1.bf16.msra.mxu0 0
        %2460 = vmatprep.subr.bf16.mxu0 0
        %2461 = vmatpush1.bf16.msra.mxu0 0
        %2462 = vmatprep.subr.bf16.mxu0 0
        %2463 = vmatpush1.bf16.msra.mxu0 0
        %2464 = vmatprep.subr.bf16.mxu0 0
        %2465 = vmatpush1.bf16.msra.mxu0 0
        %2466 = vmatprep.subr.bf16.mxu0 0
        %2467 = vmatpush1.bf16.msra.mxu0 0
        %2468 = vmatprep.subr.bf16.mxu0 0
        %2469 = vmatpush1.bf16.msra.mxu0 0
        %2470 = vmatprep.mubr.bf16.mxu0 0
        %2471 = vmatmul.mubr.bf16.gmra.mrb[0].mxu0 %v2427
        %v2472 = vpop.f32.mrb[0].mxu0
        %v2473 = vadd.f32 0.0, %v2472
        %v2474 = vpop.f32.mrb[0].mxu0
        %v2475 = vpop.f32.mrb[0].mxu0
        %v2476 = vadd.f32 0.0, %v2475
        %v2477 = vpop.f32.mrb[0].mxu0
        %2478 = vmatprep.mubr.bf16.mxu0 0
        %2479 = vmatmul.mubr.bf16.gmra.mrb[0].mxu0 %v2430
        %v2480 = vpop.f32.mrb[0].mxu0
        %v2481 = vadd.f32 0.0, %v2480
        %v2482 = vpop.f32.mrb[0].mxu0
        %v2483 = vpop.f32.mrb[0].mxu0
        %v2484 = vadd.f32 0.0, %v2483
        %v2485 = vpop.f32.mrb[0].mxu0
        %2486 = vmatprep.mubr.bf16.mxu0 0
        %2487 = vmatmul.mubr.bf16.gmra.mrb[0].mxu0 %v2433
        %v2488 = vpop.f32.mrb[0].mxu0
        %v2489 = vadd.f32 0.0, %v2488
        %v2490 = vpop.f32.mrb[0].mxu0
        %v2491 = vpop.f32.mrb[0].mxu0
        %v2492 = vadd.f32 0.0, %v2491
        %v2493 = vpop.f32.mrb[0].mxu0
        %2494 = vdwg.mxu0
        %2495 = vrot.lane.b32.xlu0 %v1774, 80
        %v2496 = vpop.permute.xlu0 %2495
        %2497 = vrot.lane.b32.xlu0 %v1776, 80
        %v2498 = vpop.permute.xlu0 %2497
        %2499 = vrot.lane.b32.xlu0 %v1778, 80
        %v2500 = vpop.permute.xlu0 %2499
        %2501 = vrot.lane.b32.xlu0 %v1774, 16
        %v2502 = vpop.permute.xlu0 %2501
        %2503 = vrot.lane.b32.xlu0 %v1776, 16
        %v2504 = vpop.permute.xlu0 %2503
        %2505 = vrot.lane.b32.xlu0 %v1778, 16
        %v2506 = vpop.permute.xlu0 %2505
        %v2508 = vsel %vm505, %v2496, 0
        %v2511 = vsel %vm505, %v2498, 0
        %v2514 = vsel %vm505, %v2500, 0
        %v2517 = vsel %vm505, %v2502, 0
        %v2520 = vsel %vm505, %v2504, 0
        %v2523 = vsel %vm505, %v2506, 0
        %2525 = vmatprep.subr.bf16.mxu0 0
        %2526 = vmatpush1.bf16.xpose.msra.mxu0 %v2517
        %2527 = vmatprep.subr.bf16.mxu0 0
        %2528 = vmatpush1.bf16.xpose.msra.mxu0 %v2520
        %2529 = vmatprep.subr.bf16.mxu0 0
        %2530 = vmatpush1.bf16.xpose.msra.mxu0 %v2523
        %2531 = vmatprep.subr.bf16.mxu0 0
        %2532 = vmatpush1.bf16.xpose.msra.mxu0 0
        %2533 = vmatprep.subr.bf16.mxu0 0
        %2534 = vmatpush1.bf16.xpose.msra.mxu0 0
        %2535 = vmatprep.subr.bf16.mxu0 0
        %2536 = vmatpush1.bf16.xpose.msra.mxu0 0
        %2537 = vmatprep.subr.bf16.mxu0 0
        %2538 = vmatpush1.bf16.xpose.msra.mxu0 0
        %2539 = vmatprep.subr.bf16.mxu0 0
        %2540 = vmatpush1.bf16.xpose.msra.mxu0 0
        %2541 = vmatprep.subr.bf16.mxu0 0
        %2542 = vmatpush1.bf16.xpose.msra.mxu0 0
        %2543 = vmatprep.subr.bf16.mxu0 0
        %2544 = vmatpush1.bf16.xpose.msra.mxu0 0
        %2545 = vmatprep.subr.bf16.mxu0 0
        %2546 = vmatpush1.bf16.xpose.msra.mxu0 0
        %2547 = vmatprep.subr.bf16.mxu0 0
        %2548 = vmatpush1.bf16.xpose.msra.mxu0 0
        %2549 = vmatprep.subr.bf16.mxu0 0
        %2550 = vmatpush1.bf16.xpose.msra.mxu0 0
        %2551 = vmatprep.subr.bf16.mxu0 0
        %2552 = vmatpush1.bf16.xpose.msra.mxu0 0
        %2553 = vmatprep.subr.bf16.mxu0 0
        %2554 = vmatpush1.bf16.xpose.msra.mxu0 0
        %2555 = vmatprep.subr.bf16.mxu0 0
        %2556 = vmatpush1.bf16.xpose.msra.mxu0 0
        %2557 = vmatprep.mubr.bf16.mxu0 0
        %2558 = vmatmul.mubr.bf16.gmra.mrb[0].mxu0 %v2508
        %v2559 = vpop.f32.mrb[0].mxu0
        %v2560 = vadd.f32 0.0, %v2559
        %v2561 = vpop.f32.mrb[0].mxu0
        %v2562 = vpop.f32.mrb[0].mxu0
        %v2563 = vadd.f32 0.0, %v2562
        %v2564 = vpop.f32.mrb[0].mxu0
        %2565 = vmatprep.mubr.bf16.mxu0 0
        %2566 = vmatmul.mubr.bf16.gmra.mrb[0].mxu0 %v2511
        %v2567 = vpop.f32.mrb[0].mxu0
        %v2568 = vadd.f32 0.0, %v2567
        %v2569 = vpop.f32.mrb[0].mxu0
        %v2570 = vpop.f32.mrb[0].mxu0
        %v2571 = vadd.f32 0.0, %v2570
        %v2572 = vpop.f32.mrb[0].mxu0
        %2573 = vmatprep.mubr.bf16.mxu0 0
        %2574 = vmatmul.mubr.bf16.gmra.mrb[0].mxu0 %v2514
        %v2575 = vpop.f32.mrb[0].mxu0
        %v2576 = vadd.f32 0.0, %v2575
        %v2577 = vpop.f32.mrb[0].mxu0
        %v2578 = vpop.f32.mrb[0].mxu0
        %v2579 = vadd.f32 0.0, %v2578
        %v2580 = vpop.f32.mrb[0].mxu0
        %2581 = vdwg.mxu0
        %v2582 = vmul.f32 %v2560, 0.25
        %v2583 = vmul.f32 %v2563, 0.25
        %v2584 = vmul.f32 %v2568, 0.25
        %v2585 = vmul.f32 %v2571, 0.25
        %v2586 = vmul.f32 %v2576, 0.25
        %v2587 = vmul.f32 %v2579, 0.25
        %v2588 = vsel %vm1870, %v2582, -inf
        %2589 = vmax.xlane.f32.xlu0 %v2588
        %v2590 = vpop.xlane.xlu0 %2589
        %v2591 = vsel %vm1870, %v2583, -inf
        %2592 = vmax.xlane.f32.xlu0 %v2591
        %v2593 = vpop.xlane.xlu0 %2592
        %v2594 = vsel %vm1870, %v2584, -inf
        %2595 = vmax.xlane.f32.xlu0 %v2594
        %v2596 = vpop.xlane.xlu0 %2595
        %v2597 = vsel %vm1870, %v2585, -inf
        %2598 = vmax.xlane.f32.xlu0 %v2597
        %v2599 = vpop.xlane.xlu0 %2598
        %v2600 = vsel %vm1870, %v2586, -inf
        %2601 = vmax.xlane.f32.xlu0 %v2600
        %v2602 = vpop.xlane.xlu0 %2601
        %v2603 = vsel %vm1886, %v2587, -inf
        %2604 = vmax.xlane.f32.xlu0 %v2603
        %v2605 = vpop.xlane.xlu0 %2604
        %v2606 = vsub.f32 %v2582, %v2590
        %v2607 = vsub.f32 %v2583, %v2593
        %v2608 = vsub.f32 %v2584, %v2596
        %v2609 = vsub.f32 %v2585, %v2599
        %v2610 = vsub.f32 %v2586, %v2602
        %v2611 = vsub.f32 %v2587, %v2605
        %v2612 = vmul.f32 %v2606, 1.442695
        %v2613 = vpow.pop %v2612
        %v2614 = vmul.f32 %v2607, 1.442695
        %v2615 = vpow.pop %v2614
        %v2616 = vmul.f32 %v2608, 1.442695
        %v2617 = vpow.pop %v2616
        %v2618 = vmul.f32 %v2609, 1.442695
        %v2619 = vpow.pop %v2618
        %v2620 = vmul.f32 %v2610, 1.442695
        %v2621 = vpow.pop %v2620
        %v2622 = vmul.f32 %v2611, 1.442695
        %v2623 = vpow.pop %v2622
        %v2624 = vsel %vm1870, %v2613, 0.0
        %2625 = vadd.xlane.f32.xlu0 %v2624
        %v2626 = vpop.xlane.xlu0 %2625
        %v2627 = vsel %vm1870, %v2615, 0.0
        %2628 = vadd.xlane.f32.xlu0 %v2627
        %v2629 = vpop.xlane.xlu0 %2628
        %v2630 = vsel %vm1870, %v2617, 0.0
        %2631 = vadd.xlane.f32.xlu0 %v2630
        %v2632 = vpop.xlane.xlu0 %2631
        %v2633 = vsel %vm1870, %v2619, 0.0
        %2634 = vadd.xlane.f32.xlu0 %v2633
        %v2635 = vpop.xlane.xlu0 %2634
        %v2636 = vsel %vm1870, %v2621, 0.0
        %2637 = vadd.xlane.f32.xlu0 %v2636
        %v2638 = vpop.xlane.xlu0 %2637
        %v2639 = vsel %vm1886, %v2623, 0.0
        %2640 = vadd.xlane.f32.xlu0 %v2639
        %v2641 = vpop.xlane.xlu0 %2640
        %v2642 = vrcp.pop %v2626
        %v2643 = vrcp.pop %v2629
        %v2644 = vrcp.pop %v2632
        %v2645 = vrcp.pop %v2635
        %v2646 = vrcp.pop %v2638
        %v2647 = vrcp.pop %v2641
        %v2648 = vmul.f32 %v2613, %v2642
        %v2649 = vmul.f32 %v2615, %v2643
        %v2650 = vmul.f32 %v2617, %v2644
        %v2651 = vmul.f32 %v2619, %v2645
        %v2652 = vmul.f32 %v2621, %v2646
        %v2653 = vmul.f32 %v2623, %v2647
        %v2654 = vpack.c.bf16 %v2649, %v2648
        %v2655 = vpack.c.bf16 %v2651, %v2650
        %v2656 = vpack.c.bf16 %v2653, %v2652
        %2657 = vrot.lane.b32.xlu0 %v1775, 80
        %v2658 = vpop.permute.xlu0 %2657
        %2659 = vrot.lane.b32.xlu0 %v1777, 80
        %v2660 = vpop.permute.xlu0 %2659
        %2661 = vrot.lane.b32.xlu0 %v1779, 80
        %v2662 = vpop.permute.xlu0 %2661
        %v2666 = vsel %vm1870, %v2654, 0
        %v2669 = vsel %vm1870, %v2655, 0
        %v2672 = vsel %vm1870, %v2656, 0
        %v2675 = vand.u32 %v2662, %v1953
        %2677 = vmatprep.subr.bf16.mxu0 0
        %2678 = vmatpush1.bf16.msra.mxu0 %v2658
        %2679 = vmatprep.subr.bf16.mxu0 0
        %2680 = vmatpush1.bf16.msra.mxu0 %v2660
        %2681 = vmatprep.subr.bf16.mxu0 0
        %2682 = vmatpush1.bf16.msra.mxu0 %v2675
        %2683 = vmatprep.subr.bf16.mxu0 0
        %2684 = vmatpush1.bf16.msra.mxu0 0
        %2685 = vmatprep.subr.bf16.mxu0 0
        %2686 = vmatpush1.bf16.msra.mxu0 0
        %2687 = vmatprep.subr.bf16.mxu0 0
        %2688 = vmatpush1.bf16.msra.mxu0 0
        %2689 = vmatprep.subr.bf16.mxu0 0
        %2690 = vmatpush1.bf16.msra.mxu0 0
        %2691 = vmatprep.subr.bf16.mxu0 0
        %2692 = vmatpush1.bf16.msra.mxu0 0
        %2693 = vmatprep.subr.bf16.mxu0 0
        %2694 = vmatpush1.bf16.msra.mxu0 0
        %2695 = vmatprep.subr.bf16.mxu0 0
        %2696 = vmatpush1.bf16.msra.mxu0 0
        %2697 = vmatprep.subr.bf16.mxu0 0
        %2698 = vmatpush1.bf16.msra.mxu0 0
        %2699 = vmatprep.subr.bf16.mxu0 0
        %2700 = vmatpush1.bf16.msra.mxu0 0
        %2701 = vmatprep.subr.bf16.mxu0 0
        %2702 = vmatpush1.bf16.msra.mxu0 0
        %2703 = vmatprep.subr.bf16.mxu0 0
        %2704 = vmatpush1.bf16.msra.mxu0 0
        %2705 = vmatprep.subr.bf16.mxu0 0
        %2706 = vmatpush1.bf16.msra.mxu0 0
        %2707 = vmatprep.subr.bf16.mxu0 0
        %2708 = vmatpush1.bf16.msra.mxu0 0
        %2709 = vmatprep.mubr.bf16.mxu0 0
        %2710 = vmatmul.mubr.bf16.gmra.mrb[0].mxu0 %v2666
        %v2711 = vpop.f32.mrb[0].mxu0
        %v2712 = vadd.f32 0.0, %v2711
        %v2713 = vpop.f32.mrb[0].mxu0
        %v2714 = vpop.f32.mrb[0].mxu0
        %v2715 = vadd.f32 0.0, %v2714
        %v2716 = vpop.f32.mrb[0].mxu0
        %2717 = vmatprep.mubr.bf16.mxu0 0
        %2718 = vmatmul.mubr.bf16.gmra.mrb[0].mxu0 %v2669
        %v2719 = vpop.f32.mrb[0].mxu0
        %v2720 = vadd.f32 0.0, %v2719
        %v2721 = vpop.f32.mrb[0].mxu0
        %v2722 = vpop.f32.mrb[0].mxu0
        %v2723 = vadd.f32 0.0, %v2722
        %v2724 = vpop.f32.mrb[0].mxu0
        %2725 = vmatprep.mubr.bf16.mxu0 0
        %2726 = vmatmul.mubr.bf16.gmra.mrb[0].mxu0 %v2672
        %v2727 = vpop.f32.mrb[0].mxu0
        %v2728 = vadd.f32 0.0, %v2727
        %v2729 = vpop.f32.mrb[0].mxu0
        %v2730 = vpop.f32.mrb[0].mxu0
        %v2731 = vadd.f32 0.0, %v2730
        %v2732 = vpop.f32.mrb[0].mxu0
        %2733 = vdwg.mxu0
        %2740 = vrot.lane.b32.xlu0 %v2234, 16
        %v2741 = vpop.permute.xlu0 %2740
        %2742 = vrot.lane.b32.xlu0 %v2237, 16
        %v2743 = vpop.permute.xlu0 %2742
        %2744 = vrot.lane.b32.xlu0 %v2242, 16
        %v2745 = vpop.permute.xlu0 %2744
        %2746 = vrot.lane.b32.xlu0 %v2245, 16
        %v2747 = vpop.permute.xlu0 %2746
        %2748 = vrot.lane.b32.xlu0 %v2250, 16
        %v2749 = vpop.permute.xlu0 %2748
        %2750 = vrot.lane.b32.xlu0 %v2253, 16
        %v2751 = vpop.permute.xlu0 %2750
        %2764 = vrot.lane.b32.xlu0 %v2473, 32
        %v2765 = vpop.permute.xlu0 %2764
        %2766 = vrot.lane.b32.xlu0 %v2476, 32
        %v2767 = vpop.permute.xlu0 %2766
        %2768 = vrot.lane.b32.xlu0 %v2481, 32
        %v2769 = vpop.permute.xlu0 %2768
        %2770 = vrot.lane.b32.xlu0 %v2484, 32
        %v2771 = vpop.permute.xlu0 %2770
        %2772 = vrot.lane.b32.xlu0 %v2489, 32
        %v2773 = vpop.permute.xlu0 %2772
        %2774 = vrot.lane.b32.xlu0 %v2492, 32
        %v2775 = vpop.permute.xlu0 %2774
        %2788 = vrot.lane.b32.xlu0 %v2712, 48
        %v2789 = vpop.permute.xlu0 %2788
        %2790 = vrot.lane.b32.xlu0 %v2715, 48
        %v2791 = vpop.permute.xlu0 %2790
        %2792 = vrot.lane.b32.xlu0 %v2720, 48
        %v2793 = vpop.permute.xlu0 %2792
        %2794 = vrot.lane.b32.xlu0 %v2723, 48
        %v2795 = vpop.permute.xlu0 %2794
        %2796 = vrot.lane.b32.xlu0 %v2728, 48
        %v2797 = vpop.permute.xlu0 %2796
        %2798 = vrot.lane.b32.xlu0 %v2731, 48
        %v2799 = vpop.permute.xlu0 %2798
        %v2806 = vsel %vm505, %v1992, %v2741
        %v2807 = vsel %vm505, %v1995, %v2743
        %v2808 = vsel %vm505, %v2000, %v2745
        %v2809 = vsel %vm505, %v2003, %v2747
        %v2810 = vsel %vm505, %v2008, %v2749
        %v2811 = vsel %vm505, %v2011, %v2751
        %v2812 = vsel %vm580, %v2806, %v2765
        %v2813 = vsel %vm580, %v2807, %v2767
        %v2814 = vsel %vm580, %v2808, %v2769
        %v2815 = vsel %vm580, %v2809, %v2771
        %v2816 = vsel %vm580, %v2810, %v2773
        %v2817 = vsel %vm580, %v2811, %v2775
        %vm2818 = vcmask 392192
        %v2819 = vsel %vm2818, %v2812, %v2789
        %v2820 = vsel %vm2818, %v2813, %v2791
        %v2821 = vsel %vm2818, %v2814, %v2793
        %v2822 = vsel %vm2818, %v2815, %v2795
        %v2823 = vsel %vm2818, %v2816, %v2797
        %v2824 = vsel %vm2818, %v2817, %v2799
        %v2825 = vsel %vm1470, %v2819, 0.0
        %v2826 = vsel %vm1471, %v2820, 0.0
        %v2827 = vsel %vm1472, %v2821, 0.0
        %v2828 = vsel %vm1473, %v2822, 0.0
        %v2829 = vsel %vm1474, %v2823, 0.0
        %v2830 = vsel %vm1475, %v2824, 0.0
        %v2831 = vsel %vm1470, 0.0, %v2819
        %v2832 = vsel %vm1471, 0.0, %v2820
        %v2833 = vsel %vm1472, 0.0, %v2821
        %v2834 = vsel %vm1473, 0.0, %v2822
        %v2835 = vsel %vm1474, 0.0, %v2823
        %v2836 = vsel %vm1475, 0.0, %v2824
        %2843 = vrot.lane.b32.xlu0 %v2831, 64
        %v2844 = vpop.permute.xlu0 %2843
        %2845 = vrot.lane.b32.xlu0 %v2832, 64
        %v2846 = vpop.permute.xlu0 %2845
        %2847 = vrot.lane.b32.xlu0 %v2833, 64
        %v2848 = vpop.permute.xlu0 %2847
        %2849 = vrot.lane.b32.xlu0 %v2834, 64
        %v2850 = vpop.permute.xlu0 %2849
        %2851 = vrot.lane.b32.xlu0 %v2835, 64
        %v2852 = vpop.permute.xlu0 %2851
        %2853 = vrot.lane.b32.xlu0 %v2836, 64
        %v2854 = vpop.permute.xlu0 %2853
        %v2861 = vsel %vm880, %v2825, %v2844
        %v2862 = vsel %vm880, %v2826, %v2846
        %v2863 = vsel %vm880, %v2827, %v2848
        %v2864 = vsel %vm880, %v2828, %v2850
        %v2865 = vsel %vm880, %v2829, %v2852
        %v2866 = vsel %vm880, %v2830, %v2854
        %v2867 = vld [vmem:[%s10 + $0x28] sm:$0xf]
        %v2868 = vld [vmem:[%s10 + $0x54] sm:$0xf]
        %v2869 = vld [vmem:[%s10 + $0x80] sm:$0xf]
        %v2870 = vld [vmem:[%s10 + $0xac] sm:$0xf]
        %v2871 = vld [vmem:[%s10 + $0xd8] sm:$0xf]
        %v2872 = vld [vmem:[%s10 + $0x104] sm:$0xf]
        %v2873 = vld [vmem:[%s10 + $0x130] sm:$0xf]
        %v2874 = vld [vmem:[%s10 + $0x15c] sm:$0xf]
        %v2875 = vld [vmem:[%s10 + $0x188] sm:$0xf]
        %v2876 = vld [vmem:[%s10 + $0x1b4] sm:$0xf]
        %v2877 = vld [vmem:[%s10 + $0x1e0] sm:$0xf]
        %v2878 = vld [vmem:[%s10 + $0x20c] sm:$0xf]
        %v2879 = vld [vmem:[%s10 + $0x238] sm:$0xf]
        %v2880 = vld [vmem:[%s10 + $0x264] sm:$0xf]
        %v2881 = vld [vmem:[%s10 + $0x290] sm:$0xf]
        %v2882 = vld [vmem:[%s10 + $0x2bc] sm:$0xf]
        %v2883 = vpack.c.bf16 %v2862, %v2861
        %v2884 = vpack.c.bf16 %v2864, %v2863
        %v2885 = vpack.c.bf16 %v2866, %v2865
        %v2886 = vld [vmem:[%s12 + $0x14] sm:$0x1]
        %v2887 = vld [vmem:[%s12 + $0x15] sm:$0x1]
        %v2888 = vlaneseq
        %v2889 = vshrl.u32 %v2888, 7
        %v2890 = vsub.s32 0, %v2889
        %v2891 = vrot.slane %v2886, %v2890
        %v2892 = vlaneseq
        %v2893 = vshrl.u32 %v2892, 7
        %v2894 = vsub.s32 0, %v2893
        %v2895 = vrot.slane %v2887, %v2894
        %v2896 = vsel %vm1470, %v2891, %v2895
        %v2897 = vsel %vm1471, %v2891, %v2895
        %v2898 = vsel %vm1472, %v2891, %v2895
        %v2899 = vsel %vm1473, %v2891, %v2895
        %v2900 = vsel %vm1474, %v2891, %v2895
        %v2901 = vsel %vm1475, %v2891, %v2895
        %v2918 = vunpack.c.l.b16 %v2867
        %v2919 = vunpack.c.l.b16 %v2868
        %v2920 = vunpack.c.l.b16 %v2869
        %v2921 = vunpack.c.l.b16 %v2870
        %v2922 = vunpack.c.l.b16 %v2871
        %v2923 = vunpack.c.l.b16 %v2872
        %v2924 = vunpack.c.l.b16 %v2873
        %v2925 = vunpack.c.l.b16 %v2874
        %v2926 = vunpack.c.l.b16 %v2875
        %v2927 = vunpack.c.l.b16 %v2876
        %v2928 = vunpack.c.l.b16 %v2877
        %v2929 = vunpack.c.l.b16 %v2878
        %v2930 = vunpack.c.l.b16 %v2879
        %v2931 = vunpack.c.l.b16 %v2880
        %v2932 = vunpack.c.l.b16 %v2881
        %v2933 = vunpack.c.l.b16 %v2882
        %v2934 = vpack.c.b16 %v2919, %v2918
        %v2935 = vpack.c.b16 %v2921, %v2920
        %v2936 = vpack.c.b16 %v2923, %v2922
        %v2937 = vpack.c.b16 %v2925, %v2924
        %v2938 = vpack.c.b16 %v2927, %v2926
        %v2939 = vpack.c.b16 %v2929, %v2928
        %v2940 = vpack.c.b16 %v2931, %v2930
        %v2941 = vpack.c.b16 %v2933, %v2932
        %2950 = vmatprep.subr.bf16.mxu0 0
        %2951 = vmatpush1.bf16.msra.mxu0 %v2934
        %2952 = vmatprep.subr.bf16.mxu0 0
        %2953 = vmatpush1.bf16.msra.mxu0 %v2935
        %2954 = vmatprep.subr.bf16.mxu0 0
        %2955 = vmatpush1.bf16.msra.mxu0 %v2936
        %2956 = vmatprep.subr.bf16.mxu0 0
        %2957 = vmatpush1.bf16.msra.mxu0 %v2937
        %2958 = vmatprep.subr.bf16.mxu0 0
        %2959 = vmatpush1.bf16.msra.mxu0 %v2938
        %2960 = vmatprep.subr.bf16.mxu0 0
        %2961 = vmatpush1.bf16.msra.mxu0 %v2939
        %2962 = vmatprep.subr.bf16.mxu0 0
        %2963 = vmatpush1.bf16.msra.mxu0 %v2940
        %2964 = vmatprep.subr.bf16.mxu0 0
        %2965 = vmatpush1.bf16.msra.mxu0 %v2941
        %2966 = vmatprep.subr.bf16.mxu0 0
        %2967 = vmatpush1.bf16.msra.mxu0 0
        %2968 = vmatprep.subr.bf16.mxu0 0
        %2969 = vmatpush1.bf16.msra.mxu0 0
        %2970 = vmatprep.subr.bf16.mxu0 0
        %2971 = vmatpush1.bf16.msra.mxu0 0
        %2972 = vmatprep.subr.bf16.mxu0 0
        %2973 = vmatpush1.bf16.msra.mxu0 0
        %2974 = vmatprep.subr.bf16.mxu0 0
        %2975 = vmatpush1.bf16.msra.mxu0 0
        %2976 = vmatprep.subr.bf16.mxu0 0
        %2977 = vmatpush1.bf16.msra.mxu0 0
        %2978 = vmatprep.subr.bf16.mxu0 0
        %2979 = vmatpush1.bf16.msra.mxu0 0
        %2980 = vmatprep.subr.bf16.mxu0 0
        %2981 = vmatpush1.bf16.msra.mxu0 0
        %2982 = vmatprep.mubr.bf16.mxu0 0
        %2983 = vmatmul.mubr.bf16.gmra.mrb[0].mxu0 %v2883
        %v2984 = vpop.f32.mrb[0].mxu0
        %v2985 = vadd.f32 %v2896, %v2984
        %v2986 = vpop.f32.mrb[0].mxu0
        %v2987 = vpop.f32.mrb[0].mxu0
        %v2988 = vadd.f32 %v2897, %v2987
        %v2989 = vpop.f32.mrb[0].mxu0
        %2990 = vmatprep.mubr.bf16.mxu0 0
        %2991 = vmatmul.mubr.bf16.gmra.mrb[0].mxu0 %v2884
        %v2992 = vpop.f32.mrb[0].mxu0
        %v2993 = vadd.f32 %v2898, %v2992
        %v2994 = vpop.f32.mrb[0].mxu0
        %v2995 = vpop.f32.mrb[0].mxu0
        %v2996 = vadd.f32 %v2899, %v2995
        %v2997 = vpop.f32.mrb[0].mxu0
        %2998 = vmatprep.mubr.bf16.mxu0 0
        %2999 = vmatmul.mubr.bf16.gmra.mrb[0].mxu0 %v2885
        %v3000 = vpop.f32.mrb[0].mxu0
        %v3001 = vadd.f32 %v2900, %v3000
        %v3002 = vpop.f32.mrb[0].mxu0
        %v3003 = vpop.f32.mrb[0].mxu0
        %v3004 = vadd.f32 %v2901, %v3003
        %v3005 = vpop.f32.mrb[0].mxu0
        %3006 = vdwg.mxu0
        %v3007 = vlaneseq
        %v3008 = vshrl.u32 %v3007, 7
        %v3009 = vsub.s32 0, %v3008
        %v3010 = vrot.slane %v1298, %v3009
        %v3011 = vlaneseq
        %v3012 = vshrl.u32 %v3011, 7
        %v3013 = vsub.s32 0, %v3012
        %v3014 = vrot.slane %v1378, %v3013
        %v3015 = vsel %vm1470, %v3010, %v3014
        %v3016 = vsel %vm1471, %v3010, %v3014
        %v3017 = vsel %vm1472, %v3010, %v3014
        %v3018 = vsel %vm1473, %v3010, %v3014
        %v3019 = vsel %vm1474, %v3010, %v3014
        %v3020 = vsel %vm1475, %v3010, %v3014
        %v3021 = vmul.f32 %v3015, %v2985
        %v3022 = vmul.f32 %v3016, %v2988
        %v3023 = vmul.f32 %v3017, %v2993
        %v3024 = vmul.f32 %v3018, %v2996
        %v3025 = vmul.f32 %v3019, %v3001
        %v3026 = vmul.f32 %v3020, %v3004
        %v3027 = vadd.f32 %v544, %v3021
        %v3028 = vadd.f32 %v651, %v3022
        %v3029 = vadd.f32 %v652, %v3023
        %v3030 = vadd.f32 %v653, %v3024
        %v3031 = vadd.f32 %v654, %v3025
        %v3032 = vadd.f32 %v655, %v3026
        %v3033 = vsel %vm880, %v3027, 0.0
        %3034 = vadd.xlane.f32.xlu0 %v3033
        %v3035 = vpop.xlane.xlu0 %3034
        %v3036 = vsel %vm880, %v3028, 0.0
        %3037 = vadd.xlane.f32.xlu0 %v3036
        %v3038 = vpop.xlane.xlu0 %3037
        %v3039 = vsel %vm880, %v3029, 0.0
        %3040 = vadd.xlane.f32.xlu0 %v3039
        %v3041 = vpop.xlane.xlu0 %3040
        %v3042 = vsel %vm880, %v3030, 0.0
        %3043 = vadd.xlane.f32.xlu0 %v3042
        %v3044 = vpop.xlane.xlu0 %3043
        %v3045 = vsel %vm880, %v3031, 0.0
        %3046 = vadd.xlane.f32.xlu0 %v3045
        %v3047 = vpop.xlane.xlu0 %3046
        %v3048 = vsel %vm1399, %v3032, 0.0
        %3049 = vadd.xlane.f32.xlu0 %v3048
        %v3050 = vpop.xlane.xlu0 %3049
        %v3051 = vmul.f32 %v3035, %v1403
        %v3052 = vmul.f32 %v3038, %v1403
        %v3053 = vmul.f32 %v3041, %v1403
        %v3054 = vmul.f32 %v3044, %v1403
        %v3055 = vmul.f32 %v3047, %v1403
        %v3056 = vmul.f32 %v3050, %v1403
        %v3057 = vsub.f32 %v3027, %v3051
        %v3058 = vsub.f32 %v3028, %v3052
        %v3059 = vsub.f32 %v3029, %v3053
        %v3060 = vsub.f32 %v3030, %v3054
        %v3061 = vsub.f32 %v3031, %v3055
        %v3062 = vsub.f32 %v3032, %v3056
        %v3063 = vmul.f32 %v3057, %v3057
        %v3064 = vmul.f32 %v3058, %v3058
        %v3065 = vmul.f32 %v3059, %v3059
        %v3066 = vmul.f32 %v3060, %v3060
        %v3067 = vmul.f32 %v3061, %v3061
        %v3068 = vmul.f32 %v3062, %v3062
        %v3069 = vsel %vm880, %v3063, 0.0
        %3070 = vadd.xlane.f32.xlu0 %v3069
        %v3071 = vpop.xlane.xlu0 %3070
        %v3072 = vsel %vm880, %v3064, 0.0
        %3073 = vadd.xlane.f32.xlu0 %v3072
        %v3074 = vpop.xlane.xlu0 %3073
        %v3075 = vsel %vm880, %v3065, 0.0
        %3076 = vadd.xlane.f32.xlu0 %v3075
        %v3077 = vpop.xlane.xlu0 %3076
        %v3078 = vsel %vm880, %v3066, 0.0
        %3079 = vadd.xlane.f32.xlu0 %v3078
        %v3080 = vpop.xlane.xlu0 %3079
        %v3081 = vsel %vm880, %v3067, 0.0
        %3082 = vadd.xlane.f32.xlu0 %v3081
        %v3083 = vpop.xlane.xlu0 %3082
        %v3084 = vsel %vm1399, %v3068, 0.0
        %3085 = vadd.xlane.f32.xlu0 %v3084
        %v3086 = vpop.xlane.xlu0 %3085
        %v3087 = vmul.f32 %v3071, %v1403
        %v3088 = vmul.f32 %v3074, %v1403
        %v3089 = vmul.f32 %v3077, %v1403
        %v3090 = vmul.f32 %v3080, %v1403
        %v3091 = vmul.f32 %v3083, %v1403
        %v3092 = vmul.f32 %v3086, %v1403
        %v3093 = vadd.f32 %v3087, 1e-06
        %v3094 = vadd.f32 %v3088, 1e-06
        %v3095 = vadd.f32 %v3089, 1e-06
        %v3096 = vadd.f32 %v3090, 1e-06
        %v3097 = vadd.f32 %v3091, 1e-06
        %v3098 = vadd.f32 %v3092, 1e-06
        %v3099 = vrsqrt.pop %v3093
        %v3100 = vrsqrt.pop %v3094
        %v3101 = vrsqrt.pop %v3095
        %v3102 = vrsqrt.pop %v3096
        %v3103 = vrsqrt.pop %v3097
        %v3104 = vrsqrt.pop %v3098
        %v3105 = vmul.f32 %v3057, %v3099
        %v3106 = vmul.f32 %v3058, %v3100
        %v3107 = vmul.f32 %v3059, %v3101
        %v3108 = vmul.f32 %v3060, %v3102
        %v3109 = vmul.f32 %v3061, %v3103
        %v3110 = vmul.f32 %v3062, %v3104
        %v3111 = vlaneseq
        %v3112 = vshrl.u32 %v3111, 7
        %v3113 = vsub.s32 0, %v3112
        %v3114 = vrot.slane %v1337, %v3113
        %v3115 = vlaneseq
        %v3116 = vshrl.u32 %v3115, 7
        %v3117 = vsub.s32 0, %v3116
        %v3118 = vrot.slane %v1380, %v3117
        %v3119 = vsel %vm1470, %v3114, %v3118
        %v3120 = vsel %vm1471, %v3114, %v3118
        %v3121 = vsel %vm1472, %v3114, %v3118
        %v3122 = vsel %vm1473, %v3114, %v3118
        %v3123 = vsel %vm1474, %v3114, %v3118
        %v3124 = vsel %vm1475, %v3114, %v3118
        %v3125 = vadd.f32 %v3119, 1.0
        %v3126 = vadd.f32 %v3120, 1.0
        %v3127 = vadd.f32 %v3121, 1.0
        %v3128 = vadd.f32 %v3122, 1.0
        %v3129 = vadd.f32 %v3123, 1.0
        %v3130 = vadd.f32 %v3124, 1.0
        %v3131 = vmul.f32 %v3105, %v3125
        %v3132 = vmul.f32 %v3106, %v3126
        %v3133 = vmul.f32 %v3107, %v3127
        %v3134 = vmul.f32 %v3108, %v3128
        %v3135 = vmul.f32 %v3109, %v3129
        %v3136 = vmul.f32 %v3110, %v3130
        %3143 = vrot.lane.b32.xlu0 %v3015, 64
        %v3144 = vpop.permute.xlu0 %3143
        %3145 = vrot.lane.b32.xlu0 %v3016, 64
        %v3146 = vpop.permute.xlu0 %3145
        %3147 = vrot.lane.b32.xlu0 %v3017, 64
        %v3148 = vpop.permute.xlu0 %3147
        %3149 = vrot.lane.b32.xlu0 %v3018, 64
        %v3150 = vpop.permute.xlu0 %3149
        %3151 = vrot.lane.b32.xlu0 %v3019, 64
        %v3152 = vpop.permute.xlu0 %3151
        %3153 = vrot.lane.b32.xlu0 %v3020, 64
        %v3154 = vpop.permute.xlu0 %3153
        %v3161 = vadd.f32 %v3131, %v3144
        %v3162 = vadd.f32 %v3132, %v3146
        %v3163 = vadd.f32 %v3133, %v3148
        %v3164 = vadd.f32 %v3134, %v3150
        %v3165 = vadd.f32 %v3135, %v3152
        %v3166 = vadd.f32 %v3136, %v3154
        %v3167 = vsel %vm1470, %v3161, 0.0
        %v3168 = vsel %vm1471, %v3162, 0.0
        %v3169 = vsel %vm1472, %v3163, 0.0
        %v3170 = vsel %vm1473, %v3164, 0.0
        %v3171 = vsel %vm1474, %v3165, 0.0
        %v3172 = vsel %vm1475, %v3166, 0.0
        %v3173 = vsel %vm1470, 0.0, %v3161
        %v3174 = vsel %vm1471, 0.0, %v3162
        %v3175 = vsel %vm1472, 0.0, %v3163
        %v3176 = vsel %vm1473, 0.0, %v3164
        %v3177 = vsel %vm1474, 0.0, %v3165
        %v3178 = vsel %vm1475, 0.0, %v3166
        %3185 = vrot.lane.b32.xlu0 %v3173, 64
        %v3186 = vpop.permute.xlu0 %3185
        %3187 = vrot.lane.b32.xlu0 %v3174, 64
        %v3188 = vpop.permute.xlu0 %3187
        %3189 = vrot.lane.b32.xlu0 %v3175, 64
        %v3190 = vpop.permute.xlu0 %3189
        %3191 = vrot.lane.b32.xlu0 %v3176, 64
        %v3192 = vpop.permute.xlu0 %3191
        %3193 = vrot.lane.b32.xlu0 %v3177, 64
        %v3194 = vpop.permute.xlu0 %3193
        %3195 = vrot.lane.b32.xlu0 %v3178, 64
        %v3196 = vpop.permute.xlu0 %3195
        %v3203 = vsel %vm880, %v3167, %v3186
        %v3204 = vsel %vm880, %v3168, %v3188
        %v3205 = vsel %vm880, %v3169, %v3190
        %v3206 = vsel %vm880, %v3170, %v3192
        %v3207 = vsel %vm880, %v3171, %v3194
        %v3208 = vsel %vm880, %v3172, %v3196
        %v3209 = vld [vmem:[%s10 + $0x20] sm:$0xff]
        %v3210 = vld [vmem:[%s10 + $0x4c] sm:$0xff]
        %v3211 = vld [vmem:[%s10 + $0x78] sm:$0xff]
        %v3212 = vld [vmem:[%s10 + $0xa4] sm:$0xff]
        %v3213 = vld [vmem:[%s10 + $0xd0] sm:$0xff]
        %v3214 = vld [vmem:[%s10 + $0xfc] sm:$0xff]
        %v3215 = vld [vmem:[%s10 + $0x128] sm:$0xff]
        %v3216 = vld [vmem:[%s10 + $0x154] sm:$0xff]
        %v3217 = vld [vmem:[%s10 + $0x180] sm:$0xff]
        %v3218 = vld [vmem:[%s10 + $0x1ac] sm:$0xff]
        %v3219 = vld [vmem:[%s10 + $0x1d8] sm:$0xff]
        %v3220 = vld [vmem:[%s10 + $0x204] sm:$0xff]
        %v3221 = vld [vmem:[%s10 + $0x230] sm:$0xff]
        %v3222 = vld [vmem:[%s10 + $0x25c] sm:$0xff]
        %v3223 = vld [vmem:[%s10 + $0x288] sm:$0xff]
        %v3224 = vld [vmem:[%s10 + $0x2b4] sm:$0xff]
        %v3225 = vpack.c.bf16 %v3204, %v3203
        %v3226 = vpack.c.bf16 %v3206, %v3205
        %v3227 = vpack.c.bf16 %v3208, %v3207
        %s3228 = scalar_lea.vmem %s12, 16
        %v3229 = vld [vmem:[%s3228] ss:$2 sm:$0x3]
        %s3230 = scalar_lea.vmem %s12, 17
        %v3231 = vld [vmem:[%s3230] ss:$2 sm:$0x3]
        %v3233 = vlaneseq
        %v3234 = vshrl.u32 %v3233, 7
        %v3235 = vsub.s32 0, %v3234
        %v3236 = vrot.slane %v3229, %v3235
        %v3237 = vlaneseq
        %v3238 = vshrl.u32 %v3237, 7
        %v3239 = vsub.s32 1, %v3238
        %v3240 = vrot.slane %v3229, %v3239
        %v3244 = vlaneseq
        %v3245 = vshrl.u32 %v3244, 7
        %v3246 = vsub.s32 0, %v3245
        %v3247 = vrot.slane %v3231, %v3246
        %v3248 = vlaneseq
        %v3249 = vshrl.u32 %v3248, 7
        %v3250 = vsub.s32 1, %v3249
        %v3251 = vrot.slane %v3231, %v3250
        %v3254 = vsel %vm1470, %v3236, %v3247
        %v3255 = vsel %vm1470, %v3240, %v3251
        %v3256 = vsel %vm1471, %v3236, %v3247
        %v3257 = vsel %vm1471, %v3240, %v3251
        %v3258 = vsel %vm1472, %v3236, %v3247
        %v3259 = vsel %vm1472, %v3240, %v3251
        %v3260 = vsel %vm1473, %v3236, %v3247
        %v3261 = vsel %vm1473, %v3240, %v3251
        %v3262 = vsel %vm1474, %v3236, %v3247
        %v3263 = vsel %vm1474, %v3240, %v3251
        %v3264 = vsel %vm1475, %v3236, %v3247
        %v3265 = vsel %vm1475, %v3240, %v3251
        %v3282 = vunpack.c.l.b16 %v3209
        %v3283 = vunpack.c.h.b16 %v3209
        %v3284 = vunpack.c.l.b16 %v3210
        %v3285 = vunpack.c.h.b16 %v3210
        %v3286 = vunpack.c.l.b16 %v3211
        %v3287 = vunpack.c.h.b16 %v3211
        %v3288 = vunpack.c.l.b16 %v3212
        %v3289 = vunpack.c.h.b16 %v3212
        %v3290 = vunpack.c.l.b16 %v3213
        %v3291 = vunpack.c.h.b16 %v3213
        %v3292 = vunpack.c.l.b16 %v3214
        %v3293 = vunpack.c.h.b16 %v3214
        %v3294 = vunpack.c.l.b16 %v3215
        %v3295 = vunpack.c.h.b16 %v3215
        %v3296 = vunpack.c.l.b16 %v3216
        %v3297 = vunpack.c.h.b16 %v3216
        %v3298 = vunpack.c.l.b16 %v3217
        %v3299 = vunpack.c.h.b16 %v3217
        %v3300 = vunpack.c.l.b16 %v3218
        %v3301 = vunpack.c.h.b16 %v3218
        %v3302 = vunpack.c.l.b16 %v3219
        %v3303 = vunpack.c.h.b16 %v3219
        %v3304 = vunpack.c.l.b16 %v3220
        %v3305 = vunpack.c.h.b16 %v3220
        %v3306 = vunpack.c.l.b16 %v3221
        %v3307 = vunpack.c.h.b16 %v3221
        %v3308 = vunpack.c.l.b16 %v3222
        %v3309 = vunpack.c.h.b16 %v3222
        %v3310 = vunpack.c.l.b16 %v3223
        %v3311 = vunpack.c.h.b16 %v3223
        %v3312 = vunpack.c.l.b16 %v3224
        %v3313 = vunpack.c.h.b16 %v3224
        %v3314 = vpack.c.b16 %v3284, %v3282
        %v3315 = vpack.c.b16 %v3285, %v3283
        %v3316 = vpack.c.b16 %v3288, %v3286
        %v3317 = vpack.c.b16 %v3289, %v3287
        %v3318 = vpack.c.b16 %v3292, %v3290
        %v3319 = vpack.c.b16 %v3293, %v3291
        %v3320 = vpack.c.b16 %v3296, %v3294
        %v3321 = vpack.c.b16 %v3297, %v3295
        %v3322 = vpack.c.b16 %v3300, %v3298
        %v3323 = vpack.c.b16 %v3301, %v3299
        %v3324 = vpack.c.b16 %v3304, %v3302
        %v3325 = vpack.c.b16 %v3305, %v3303
        %v3326 = vpack.c.b16 %v3308, %v3306
        %v3327 = vpack.c.b16 %v3309, %v3307
        %v3328 = vpack.c.b16 %v3312, %v3310
        %v3329 = vpack.c.b16 %v3313, %v3311
        %3346 = vmatprep.subr.bf16.mxu0 %v3315
        %3347 = vmatpush1.bf16.msra.mxu0 %v3314
        %3348 = vmatprep.subr.bf16.mxu0 %v3317
        %3349 = vmatpush1.bf16.msra.mxu0 %v3316
        %3350 = vmatprep.subr.bf16.mxu0 %v3319
        %3351 = vmatpush1.bf16.msra.mxu0 %v3318
        %3352 = vmatprep.subr.bf16.mxu0 %v3321
        %3353 = vmatpush1.bf16.msra.mxu0 %v3320
        %3354 = vmatprep.subr.bf16.mxu0 %v3323
        %3355 = vmatpush1.bf16.msra.mxu0 %v3322
        %3356 = vmatprep.subr.bf16.mxu0 %v3325
        %3357 = vmatpush1.bf16.msra.mxu0 %v3324
        %3358 = vmatprep.subr.bf16.mxu0 %v3327
        %3359 = vmatpush1.bf16.msra.mxu0 %v3326
        %3360 = vmatprep.subr.bf16.mxu0 %v3329
        %3361 = vmatpush1.bf16.msra.mxu0 %v3328
        %3362 = vmatprep.subr.bf16.mxu0 0
        %3363 = vmatpush1.bf16.msra.mxu0 0
        %3364 = vmatprep.subr.bf16.mxu0 0
        %3365 = vmatpush1.bf16.msra.mxu0 0
        %3366 = vmatprep.subr.bf16.mxu0 0
        %3367 = vmatpush1.bf16.msra.mxu0 0
        %3368 = vmatprep.subr.bf16.mxu0 0
        %3369 = vmatpush1.bf16.msra.mxu0 0
        %3370 = vmatprep.subr.bf16.mxu0 0
        %3371 = vmatpush1.bf16.msra.mxu0 0
        %3372 = vmatprep.subr.bf16.mxu0 0
        %3373 = vmatpush1.bf16.msra.mxu0 0
        %3374 = vmatprep.subr.bf16.mxu0 0
        %3375 = vmatpush1.bf16.msra.mxu0 0
        %3376 = vmatprep.subr.bf16.mxu0 0
        %3377 = vmatpush1.bf16.msra.mxu0 0
        %3378 = vmatprep.mubr.bf16.mxu0 0
        %3379 = vmatmul.mubr.bf16.gmra.mrb[0].mxu0 %v3225
        %v3380 = vpop.f32.mrb[0].mxu0
        %v3381 = vadd.f32 %v3254, %v3380
        %v3382 = vpop.f32.mrb[0].mxu0
        %v3383 = vadd.f32 %v3255, %v3382
        %v3384 = vpop.f32.mrb[0].mxu0
        %v3385 = vadd.f32 %v3256, %v3384
        %v3386 = vpop.f32.mrb[0].mxu0
        %v3387 = vadd.f32 %v3257, %v3386
        %3388 = vmatprep.mubr.bf16.mxu0 0
        %3389 = vmatmul.mubr.bf16.gmra.mrb[0].mxu0 %v3226
        %v3390 = vpop.f32.mrb[0].mxu0
        %v3391 = vadd.f32 %v3258, %v3390
        %v3392 = vpop.f32.mrb[0].mxu0
        %v3393 = vadd.f32 %v3259, %v3392
        %v3394 = vpop.f32.mrb[0].mxu0
        %v3395 = vadd.f32 %v3260, %v3394
        %v3396 = vpop.f32.mrb[0].mxu0
        %v3397 = vadd.f32 %v3261, %v3396
        %3398 = vmatprep.mubr.bf16.mxu0 0
        %3399 = vmatmul.mubr.bf16.gmra.mrb[0].mxu0 %v3227
        %v3400 = vpop.f32.mrb[0].mxu0
        %v3401 = vadd.f32 %v3262, %v3400
        %v3402 = vpop.f32.mrb[0].mxu0
        %v3403 = vadd.f32 %v3263, %v3402
        %v3404 = vpop.f32.mrb[0].mxu0
        %v3405 = vadd.f32 %v3264, %v3404
        %v3406 = vpop.f32.mrb[0].mxu0
        %v3407 = vadd.f32 %v3265, %v3406
        %3408 = vdwg.mxu0
        %v3409 = vmul.f32 %v3381, 0.5
        %v3410 = vmul.f32 %v3383, 0.5
        %v3411 = vmul.f32 %v3385, 0.5
        %v3412 = vmul.f32 %v3387, 0.5
        %v3413 = vmul.f32 %v3391, 0.5
        %v3414 = vmul.f32 %v3393, 0.5
        %v3415 = vmul.f32 %v3395, 0.5
        %v3416 = vmul.f32 %v3397, 0.5
        %v3417 = vmul.f32 %v3401, 0.5
        %v3418 = vmul.f32 %v3403, 0.5
        %v3419 = vmul.f32 %v3405, 0.5
        %v3420 = vmul.f32 %v3407, 0.5
        %v3421 = vmul.f32 %v3381, 0.044715
        %v3422 = vmul.f32 %v3383, 0.044715
        %v3423 = vmul.f32 %v3385, 0.044715
        %v3424 = vmul.f32 %v3387, 0.044715
        %v3425 = vmul.f32 %v3391, 0.044715
        %v3426 = vmul.f32 %v3393, 0.044715
        %v3427 = vmul.f32 %v3395, 0.044715
        %v3428 = vmul.f32 %v3397, 0.044715
        %v3429 = vmul.f32 %v3401, 0.044715
        %v3430 = vmul.f32 %v3403, 0.044715
        %v3431 = vmul.f32 %v3405, 0.044715
        %v3432 = vmul.f32 %v3407, 0.044715
        %v3433 = vmul.f32 %v3421, %v3381
        %v3434 = vmul.f32 %v3422, %v3383
        %v3435 = vmul.f32 %v3423, %v3385
        %v3436 = vmul.f32 %v3424, %v3387
        %v3437 = vmul.f32 %v3425, %v3391
        %v3438 = vmul.f32 %v3426, %v3393
        %v3439 = vmul.f32 %v3427, %v3395
        %v3440 = vmul.f32 %v3428, %v3397
        %v3441 = vmul.f32 %v3429, %v3401
        %v3442 = vmul.f32 %v3430, %v3403
        %v3443 = vmul.f32 %v3431, %v3405
        %v3444 = vmul.f32 %v3432, %v3407
        %v3445 = vmul.f32 %v3433, %v3381
        %v3446 = vmul.f32 %v3434, %v3383
        %v3447 = vmul.f32 %v3435, %v3385
        %v3448 = vmul.f32 %v3436, %v3387
        %v3449 = vmul.f32 %v3437, %v3391
        %v3450 = vmul.f32 %v3438, %v3393
        %v3451 = vmul.f32 %v3439, %v3395
        %v3452 = vmul.f32 %v3440, %v3397
        %v3453 = vmul.f32 %v3441, %v3401
        %v3454 = vmul.f32 %v3442, %v3403
        %v3455 = vmul.f32 %v3443, %v3405
        %v3456 = vmul.f32 %v3444, %v3407
        %v3457 = vadd.f32 %v3381, %v3445
        %v3458 = vadd.f32 %v3383, %v3446
        %v3459 = vadd.f32 %v3385, %v3447
        %v3460 = vadd.f32 %v3387, %v3448
        %v3461 = vadd.f32 %v3391, %v3449
        %v3462 = vadd.f32 %v3393, %v3450
        %v3463 = vadd.f32 %v3395, %v3451
        %v3464 = vadd.f32 %v3397, %v3452
        %v3465 = vadd.f32 %v3401, %v3453
        %v3466 = vadd.f32 %v3403, %v3454
        %v3467 = vadd.f32 %v3405, %v3455
        %v3468 = vadd.f32 %v3407, %v3456
        %v3469 = vmul.f32 %v3457, 0.7978846
        %v3470 = vmul.f32 %v3458, 0.7978846
        %v3471 = vmul.f32 %v3459, 0.7978846
        %v3472 = vmul.f32 %v3460, 0.7978846
        %v3473 = vmul.f32 %v3461, 0.7978846
        %v3474 = vmul.f32 %v3462, 0.7978846
        %v3475 = vmul.f32 %v3463, 0.7978846
        %v3476 = vmul.f32 %v3464, 0.7978846
        %v3477 = vmul.f32 %v3465, 0.7978846
        %v3478 = vmul.f32 %v3466, 0.7978846
        %v3479 = vmul.f32 %v3467, 0.7978846
        %v3480 = vmul.f32 %v3468, 0.7978846
        %v3481 = vtanh.pop %v3469
        %v3482 = vtanh.pop %v3470
        %v3483 = vtanh.pop %v3471
        %v3484 = vtanh.pop %v3472
        %v3485 = vtanh.pop %v3473
        %v3486 = vtanh.pop %v3474
        %v3487 = vtanh.pop %v3475
        %v3488 = vtanh.pop %v3476
        %v3489 = vtanh.pop %v3477
        %v3490 = vtanh.pop %v3478
        %v3491 = vtanh.pop %v3479
        %v3492 = vtanh.pop %v3480
        %v3493 = vadd.f32 %v3481, 1.0
        %v3494 = vadd.f32 %v3482, 1.0
        %v3495 = vadd.f32 %v3483, 1.0
        %v3496 = vadd.f32 %v3484, 1.0
        %v3497 = vadd.f32 %v3485, 1.0
        %v3498 = vadd.f32 %v3486, 1.0
        %v3499 = vadd.f32 %v3487, 1.0
        %v3500 = vadd.f32 %v3488, 1.0
        %v3501 = vadd.f32 %v3489, 1.0
        %v3502 = vadd.f32 %v3490, 1.0
        %v3503 = vadd.f32 %v3491, 1.0
        %v3504 = vadd.f32 %v3492, 1.0
        %v3505 = vmul.f32 %v3409, %v3493
        %v3506 = vmul.f32 %v3410, %v3494
        %v3507 = vmul.f32 %v3411, %v3495
        %v3508 = vmul.f32 %v3412, %v3496
        %v3509 = vmul.f32 %v3413, %v3497
        %v3510 = vmul.f32 %v3414, %v3498
        %v3511 = vmul.f32 %v3415, %v3499
        %v3512 = vmul.f32 %v3416, %v3500
        %v3513 = vmul.f32 %v3417, %v3501
        %v3514 = vmul.f32 %v3418, %v3502
        %v3515 = vmul.f32 %v3419, %v3503
        %v3516 = vmul.f32 %v3420, %v3504
        %v3517 = vsel %vm1470, %v3505, 0.0
        %v3518 = vsel %vm1470, %v3506, 0.0
        %v3519 = vsel %vm1471, %v3507, 0.0
        %v3520 = vsel %vm1471, %v3508, 0.0
        %v3521 = vsel %vm1472, %v3509, 0.0
        %v3522 = vsel %vm1472, %v3510, 0.0
        %v3523 = vsel %vm1473, %v3511, 0.0
        %v3524 = vsel %vm1473, %v3512, 0.0
        %v3525 = vsel %vm1474, %v3513, 0.0
        %v3526 = vsel %vm1474, %v3514, 0.0
        %v3527 = vsel %vm1475, %v3515, 0.0
        %v3528 = vsel %vm1475, %v3516, 0.0
        %v3529 = vsel %vm1470, 0.0, %v3505
        %v3530 = vsel %vm1470, 0.0, %v3506
        %v3531 = vsel %vm1471, 0.0, %v3507
        %v3532 = vsel %vm1471, 0.0, %v3508
        %v3533 = vsel %vm1472, 0.0, %v3509
        %v3534 = vsel %vm1472, 0.0, %v3510
        %v3535 = vsel %vm1473, 0.0, %v3511
        %v3536 = vsel %vm1473, 0.0, %v3512
        %v3537 = vsel %vm1474, 0.0, %v3513
        %v3538 = vsel %vm1474, 0.0, %v3514
        %v3539 = vsel %vm1475, 0.0, %v3515
        %v3540 = vsel %vm1475, 0.0, %v3516
        %v3541 = vld [vmem:[%s11] sm:$0xf]
        %v3542 = vld [vmem:[%s11 + $0x4] sm:$0xf]
        %v3543 = vld [vmem:[%s11 + $0x8] sm:$0xf]
        %v3544 = vld [vmem:[%s11 + $0xc] sm:$0xf]
        %v3545 = vld [vmem:[%s11 + $0x10] sm:$0xf]
        %v3546 = vld [vmem:[%s11 + $0x14] sm:$0xf]
        %v3547 = vld [vmem:[%s11 + $0x18] sm:$0xf]
        %v3548 = vld [vmem:[%s11 + $0x1c] sm:$0xf]
        %v3549 = vld [vmem:[%s11 + $0x20] sm:$0xf]
        %v3550 = vld [vmem:[%s11 + $0x24] sm:$0xf]
        %v3551 = vld [vmem:[%s11 + $0x28] sm:$0xf]
        %v3552 = vld [vmem:[%s11 + $0x2c] sm:$0xf]
        %v3553 = vld [vmem:[%s11 + $0x30] sm:$0xf]
        %v3554 = vld [vmem:[%s11 + $0x34] sm:$0xf]
        %v3555 = vld [vmem:[%s11 + $0x38] sm:$0xf]
        %v3556 = vld [vmem:[%s11 + $0x3c] sm:$0xf]
        %v3557 = vld [vmem:[%s11 + $0x40] sm:$0xf]
        %v3558 = vld [vmem:[%s11 + $0x44] sm:$0xf]
        %v3559 = vld [vmem:[%s11 + $0x48] sm:$0xf]
        %v3560 = vld [vmem:[%s11 + $0x4c] sm:$0xf]
        %v3561 = vld [vmem:[%s11 + $0x50] sm:$0xf]
        %v3562 = vld [vmem:[%s11 + $0x54] sm:$0xf]
        %v3563 = vld [vmem:[%s11 + $0x58] sm:$0xf]
        %v3564 = vld [vmem:[%s11 + $0x5c] sm:$0xf]
        %v3565 = vld [vmem:[%s11 + $0x60] sm:$0xf]
        %v3566 = vld [vmem:[%s11 + $0x64] sm:$0xf]
        %v3567 = vld [vmem:[%s11 + $0x68] sm:$0xf]
        %v3568 = vld [vmem:[%s11 + $0x6c] sm:$0xf]
        %v3569 = vld [vmem:[%s11 + $0x70] sm:$0xf]
        %v3570 = vld [vmem:[%s11 + $0x74] sm:$0xf]
        %v3571 = vld [vmem:[%s11 + $0x78] sm:$0xf]
        %v3572 = vld [vmem:[%s11 + $0x7c] sm:$0xf]
        %v3573 = vld [vmem:[%s11 + $0x80] sm:$0xf]
        %v3574 = vld [vmem:[%s11 + $0x84] sm:$0xf]
        %v3575 = vld [vmem:[%s11 + $0x88] sm:$0xf]
        %v3576 = vld [vmem:[%s11 + $0x8c] sm:$0xf]
        %v3577 = vld [vmem:[%s11 + $0x90] sm:$0xf]
        %v3578 = vld [vmem:[%s11 + $0x94] sm:$0xf]
        %v3579 = vld [vmem:[%s11 + $0x98] sm:$0xf]
        %v3580 = vld [vmem:[%s11 + $0x9c] sm:$0xf]
        %v3581 = vld [vmem:[%s11 + $0xa0] sm:$0xf]
        %v3582 = vld [vmem:[%s11 + $0xa4] sm:$0xf]
        %v3583 = vld [vmem:[%s11 + $0xa8] sm:$0xf]
        %v3584 = vld [vmem:[%s11 + $0xac] sm:$0xf]
        %v3585 = vld [vmem:[%s11 + $0xb0] sm:$0xf]
        %v3586 = vld [vmem:[%s11 + $0xb4] sm:$0xf]
        %v3587 = vld [vmem:[%s11 + $0xb8] sm:$0xf]
        %v3588 = vld [vmem:[%s11 + $0xbc] sm:$0xf]
        %v3589 = vld [vmem:[%s11 + $0xc0] sm:$0xf]
        %v3590 = vld [vmem:[%s11 + $0xc4] sm:$0xf]
        %v3591 = vld [vmem:[%s11 + $0xc8] sm:$0xf]
        %v3592 = vld [vmem:[%s11 + $0xcc] sm:$0xf]
        %v3593 = vld [vmem:[%s11 + $0xd0] sm:$0xf]
        %v3594 = vld [vmem:[%s11 + $0xd4] sm:$0xf]
        %v3595 = vld [vmem:[%s11 + $0xd8] sm:$0xf]
        %v3596 = vld [vmem:[%s11 + $0xdc] sm:$0xf]
        %v3597 = vld [vmem:[%s11 + $0xe0] sm:$0xf]
        %v3598 = vld [vmem:[%s11 + $0xe4] sm:$0xf]
        %v3599 = vld [vmem:[%s11 + $0xe8] sm:$0xf]
        %v3600 = vld [vmem:[%s11 + $0xec] sm:$0xf]
        %v3601 = vld [vmem:[%s11 + $0xf0] sm:$0xf]
        %v3602 = vld [vmem:[%s11 + $0xf4] sm:$0xf]
        %v3603 = vld [vmem:[%s11 + $0xf8] sm:$0xf]
        %v3604 = vld [vmem:[%s11 + $0xfc] sm:$0xf]
        %v3605 = vpack.c.bf16 %v3519, %v3517
        %v3606 = vpack.c.bf16 %v3520, %v3518
        %v3607 = vpack.c.bf16 %v3531, %v3529
        %v3608 = vpack.c.bf16 %v3532, %v3530
        %v3609 = vpack.c.bf16 %v3523, %v3521
        %v3610 = vpack.c.bf16 %v3524, %v3522
        %v3611 = vpack.c.bf16 %v3535, %v3533
        %v3612 = vpack.c.bf16 %v3536, %v3534
        %v3613 = vpack.c.bf16 %v3527, %v3525
        %v3614 = vpack.c.bf16 %v3528, %v3526
        %v3615 = vpack.c.bf16 %v3539, %v3537
        %v3616 = vpack.c.bf16 %v3540, %v3538
        %v3617 = vld [vmem:[%s12 + $0x16] sm:$0x1]
        %v3618 = vld [vmem:[%s12 + $0x17] sm:$0x1]
        %v3619 = vlaneseq
        %v3620 = vshrl.u32 %v3619, 7
        %v3621 = vsub.s32 0, %v3620
        %v3622 = vrot.slane %v3617, %v3621
        %v3623 = vlaneseq
        %v3624 = vshrl.u32 %v3623, 7
        %v3625 = vsub.s32 0, %v3624
        %v3626 = vrot.slane %v3618, %v3625
        %v3627 = vsel %vm1470, %v3622, %v3626
        %v3628 = vsel %vm1471, %v3622, %v3626
        %v3629 = vsel %vm1472, %v3622, %v3626
        %v3630 = vsel %vm1473, %v3622, %v3626
        %v3631 = vsel %vm1474, %v3622, %v3626
        %v3632 = vsel %vm1475, %v3622, %v3626
        %v3697 = vunpack.c.l.b16 %v3541
        %v3698 = vunpack.c.l.b16 %v3542
        %v3699 = vunpack.c.l.b16 %v3543
        %v3700 = vunpack.c.l.b16 %v3544
        %v3701 = vunpack.c.l.b16 %v3545
        %v3702 = vunpack.c.l.b16 %v3546
        %v3703 = vunpack.c.l.b16 %v3547
        %v3704 = vunpack.c.l.b16 %v3548
        %v3705 = vunpack.c.l.b16 %v3549
        %v3706 = vunpack.c.l.b16 %v3550
        %v3707 = vunpack.c.l.b16 %v3551
        %v3708 = vunpack.c.l.b16 %v3552
        %v3709 = vunpack.c.l.b16 %v3553
        %v3710 = vunpack.c.l.b16 %v3554
        %v3711 = vunpack.c.l.b16 %v3555
        %v3712 = vunpack.c.l.b16 %v3556
        %v3713 = vunpack.c.l.b16 %v3557
        %v3714 = vunpack.c.l.b16 %v3558
        %v3715 = vunpack.c.l.b16 %v3559
        %v3716 = vunpack.c.l.b16 %v3560
        %v3717 = vunpack.c.l.b16 %v3561
        %v3718 = vunpack.c.l.b16 %v3562
        %v3719 = vunpack.c.l.b16 %v3563
        %v3720 = vunpack.c.l.b16 %v3564
        %v3721 = vunpack.c.l.b16 %v3565
        %v3722 = vunpack.c.l.b16 %v3566
        %v3723 = vunpack.c.l.b16 %v3567
        %v3724 = vunpack.c.l.b16 %v3568
        %v3725 = vunpack.c.l.b16 %v3569
        %v3726 = vunpack.c.l.b16 %v3570
        %v3727 = vunpack.c.l.b16 %v3571
        %v3728 = vunpack.c.l.b16 %v3572
        %v3729 = vunpack.c.l.b16 %v3573
        %v3730 = vunpack.c.l.b16 %v3574
        %v3731 = vunpack.c.l.b16 %v3575
        %v3732 = vunpack.c.l.b16 %v3576
        %v3733 = vunpack.c.l.b16 %v3577
        %v3734 = vunpack.c.l.b16 %v3578
        %v3735 = vunpack.c.l.b16 %v3579
        %v3736 = vunpack.c.l.b16 %v3580
        %v3737 = vunpack.c.l.b16 %v3581
        %v3738 = vunpack.c.l.b16 %v3582
        %v3739 = vunpack.c.l.b16 %v3583
        %v3740 = vunpack.c.l.b16 %v3584
        %v3741 = vunpack.c.l.b16 %v3585
        %v3742 = vunpack.c.l.b16 %v3586
        %v3743 = vunpack.c.l.b16 %v3587
        %v3744 = vunpack.c.l.b16 %v3588
        %v3745 = vunpack.c.l.b16 %v3589
        %v3746 = vunpack.c.l.b16 %v3590
        %v3747 = vunpack.c.l.b16 %v3591
        %v3748 = vunpack.c.l.b16 %v3592
        %v3749 = vunpack.c.l.b16 %v3593
        %v3750 = vunpack.c.l.b16 %v3594
        %v3751 = vunpack.c.l.b16 %v3595
        %v3752 = vunpack.c.l.b16 %v3596
        %v3753 = vunpack.c.l.b16 %v3597
        %v3754 = vunpack.c.l.b16 %v3598
        %v3755 = vunpack.c.l.b16 %v3599
        %v3756 = vunpack.c.l.b16 %v3600
        %v3757 = vunpack.c.l.b16 %v3601
        %v3758 = vunpack.c.l.b16 %v3602
        %v3759 = vunpack.c.l.b16 %v3603
        %v3760 = vunpack.c.l.b16 %v3604
        %v3761 = vpack.c.b16 %v3698, %v3697
        %v3762 = vpack.c.b16 %v3700, %v3699
        %v3763 = vpack.c.b16 %v3702, %v3701
        %v3764 = vpack.c.b16 %v3704, %v3703
        %v3765 = vpack.c.b16 %v3706, %v3705
        %v3766 = vpack.c.b16 %v3708, %v3707
        %v3767 = vpack.c.b16 %v3710, %v3709
        %v3768 = vpack.c.b16 %v3712, %v3711
        %v3769 = vpack.c.b16 %v3714, %v3713
        %v3770 = vpack.c.b16 %v3716, %v3715
        %v3771 = vpack.c.b16 %v3718, %v3717
        %v3772 = vpack.c.b16 %v3720, %v3719
        %v3773 = vpack.c.b16 %v3722, %v3721
        %v3774 = vpack.c.b16 %v3724, %v3723
        %v3775 = vpack.c.b16 %v3726, %v3725
        %v3776 = vpack.c.b16 %v3728, %v3727
        %v3777 = vpack.c.b16 %v3730, %v3729
        %v3778 = vpack.c.b16 %v3732, %v3731
        %v3779 = vpack.c.b16 %v3734, %v3733
        %v3780 = vpack.c.b16 %v3736, %v3735
        %v3781 = vpack.c.b16 %v3738, %v3737
        %v3782 = vpack.c.b16 %v3740, %v3739
        %v3783 = vpack.c.b16 %v3742, %v3741
        %v3784 = vpack.c.b16 %v3744, %v3743
        %v3785 = vpack.c.b16 %v3746, %v3745
        %v3786 = vpack.c.b16 %v3748, %v3747
        %v3787 = vpack.c.b16 %v3750, %v3749
        %v3788 = vpack.c.b16 %v3752, %v3751
        %v3789 = vpack.c.b16 %v3754, %v3753
        %v3790 = vpack.c.b16 %v3756, %v3755
        %v3791 = vpack.c.b16 %v3758, %v3757
        %v3792 = vpack.c.b16 %v3760, %v3759
        %3825 = vmatprep.subr.bf16.mxu0 0
        %3826 = vmatpush1.bf16.msra.mxu0 %v3761
        %3827 = vmatprep.subr.bf16.mxu0 0
        %3828 = vmatpush1.bf16.msra.mxu0 %v3762
        %3829 = vmatprep.subr.bf16.mxu0 0
        %3830 = vmatpush1.bf16.msra.mxu0 %v3763
        %3831 = vmatprep.subr.bf16.mxu0 0
        %3832 = vmatpush1.bf16.msra.mxu0 %v3764
        %3833 = vmatprep.subr.bf16.mxu0 0
        %3834 = vmatpush1.bf16.msra.mxu0 %v3765
        %3835 = vmatprep.subr.bf16.mxu0 0
        %3836 = vmatpush1.bf16.msra.mxu0 %v3766
        %3837 = vmatprep.subr.bf16.mxu0 0
        %3838 = vmatpush1.bf16.msra.mxu0 %v3767
        %3839 = vmatprep.subr.bf16.mxu0 0
        %3840 = vmatpush1.bf16.msra.mxu0 %v3768
        %3841 = vmatprep.subr.bf16.mxu0 0
        %3842 = vmatpush1.bf16.msra.mxu0 %v3769
        %3843 = vmatprep.subr.bf16.mxu0 0
        %3844 = vmatpush1.bf16.msra.mxu0 %v3770
        %3845 = vmatprep.subr.bf16.mxu0 0
        %3846 = vmatpush1.bf16.msra.mxu0 %v3771
        %3847 = vmatprep.subr.bf16.mxu0 0
        %3848 = vmatpush1.bf16.msra.mxu0 %v3772
        %3849 = vmatprep.subr.bf16.mxu0 0
        %3850 = vmatpush1.bf16.msra.mxu0 %v3773
        %3851 = vmatprep.subr.bf16.mxu0 0
        %3852 = vmatpush1.bf16.msra.mxu0 %v3774
        %3853 = vmatprep.subr.bf16.mxu0 0
        %3854 = vmatpush1.bf16.msra.mxu0 %v3775
        %3855 = vmatprep.subr.bf16.mxu0 0
        %3856 = vmatpush1.bf16.msra.mxu0 %v3776
        %3857 = vmatprep.mubr.bf16.mxu0 %v3606
        %3858 = vmatmul.mubr.bf16.gmra.mrb[0].mxu0 %v3605
        %v3859 = vpop.f32.mrb[0].mxu0
        %v3860 = vadd.f32 %v3627, %v3859
        %v3861 = vpop.f32.mrb[0].mxu0
        %v3862 = vpop.f32.mrb[0].mxu0
        %v3863 = vadd.f32 %v3628, %v3862
        %v3864 = vpop.f32.mrb[0].mxu0
        %3865 = vmatprep.mubr.bf16.mxu0 %v3610
        %3866 = vmatmul.mubr.bf16.gmra.mrb[0].mxu0 %v3609
        %v3867 = vpop.f32.mrb[0].mxu0
        %v3868 = vadd.f32 %v3629, %v3867
        %v3869 = vpop.f32.mrb[0].mxu0
        %v3870 = vpop.f32.mrb[0].mxu0
        %v3871 = vadd.f32 %v3630, %v3870
        %v3872 = vpop.f32.mrb[0].mxu0
        %3873 = vmatprep.mubr.bf16.mxu0 %v3614
        %3874 = vmatmul.mubr.bf16.gmra.mrb[0].mxu0 %v3613
        %v3875 = vpop.f32.mrb[0].mxu0
        %v3876 = vadd.f32 %v3631, %v3875
        %v3877 = vpop.f32.mrb[0].mxu0
        %v3878 = vpop.f32.mrb[0].mxu0
        %v3879 = vadd.f32 %v3632, %v3878
        %v3880 = vpop.f32.mrb[0].mxu0
        %3881 = vdwg.mxu0
        %3882 = vmatprep.subr.bf16.mxu0 0
        %3883 = vmatpush1.bf16.msra.mxu0 %v3777
        %3884 = vmatprep.subr.bf16.mxu0 0
        %3885 = vmatpush1.bf16.msra.mxu0 %v3778
        %3886 = vmatprep.subr.bf16.mxu0 0
        %3887 = vmatpush1.bf16.msra.mxu0 %v3779
        %3888 = vmatprep.subr.bf16.mxu0 0
        %3889 = vmatpush1.bf16.msra.mxu0 %v3780
        %3890 = vmatprep.subr.bf16.mxu0 0
        %3891 = vmatpush1.bf16.msra.mxu0 %v3781
        %3892 = vmatprep.subr.bf16.mxu0 0
        %3893 = vmatpush1.bf16.msra.mxu0 %v3782
        %3894 = vmatprep.subr.bf16.mxu0 0
        %3895 = vmatpush1.bf16.msra.mxu0 %v3783
        %3896 = vmatprep.subr.bf16.mxu0 0
        %3897 = vmatpush1.bf16.msra.mxu0 %v3784
        %3898 = vmatprep.subr.bf16.mxu0 0
        %3899 = vmatpush1.bf16.msra.mxu0 %v3785
        %3900 = vmatprep.subr.bf16.mxu0 0
        %3901 = vmatpush1.bf16.msra.mxu0 %v3786
        %3902 = vmatprep.subr.bf16.mxu0 0
        %3903 = vmatpush1.bf16.msra.mxu0 %v3787
        %3904 = vmatprep.subr.bf16.mxu0 0
        %3905 = vmatpush1.bf16.msra.mxu0 %v3788
        %3906 = vmatprep.subr.bf16.mxu0 0
        %3907 = vmatpush1.bf16.msra.mxu0 %v3789
        %3908 = vmatprep.subr.bf16.mxu0 0
        %3909 = vmatpush1.bf16.msra.mxu0 %v3790
        %3910 = vmatprep.subr.bf16.mxu0 0
        %3911 = vmatpush1.bf16.msra.mxu0 %v3791
        %3912 = vmatprep.subr.bf16.mxu0 0
        %3913 = vmatpush1.bf16.msra.mxu0 %v3792
        %3914 = vmatprep.mubr.bf16.mxu0 %v3608
        %3915 = vmatmul.mubr.bf16.gmra.mrb[0].mxu0 %v3607
        %v3916 = vpop.f32.mrb[0].mxu0
        %v3917 = vadd.f32 %v3860, %v3916
        %v3918 = vpop.f32.mrb[0].mxu0
        %v3919 = vpop.f32.mrb[0].mxu0
        %v3920 = vadd.f32 %v3863, %v3919
        %v3921 = vpop.f32.mrb[0].mxu0
        %3922 = vmatprep.mubr.bf16.mxu0 %v3612
        %3923 = vmatmul.mubr.bf16.gmra.mrb[0].mxu0 %v3611
        %v3924 = vpop.f32.mrb[0].mxu0
        %v3925 = vadd.f32 %v3868, %v3924
        %v3926 = vpop.f32.mrb[0].mxu0
        %v3927 = vpop.f32.mrb[0].mxu0
        %v3928 = vadd.f32 %v3871, %v3927
        %v3929 = vpop.f32.mrb[0].mxu0
        %3930 = vmatprep.mubr.bf16.mxu0 %v3616
        %3931 = vmatmul.mubr.bf16.gmra.mrb[0].mxu0 %v3615
        %v3932 = vpop.f32.mrb[0].mxu0
        %v3933 = vadd.f32 %v3876, %v3932
        %v3934 = vpop.f32.mrb[0].mxu0
        %v3935 = vpop.f32.mrb[0].mxu0
        %v3936 = vadd.f32 %v3879, %v3935
        %v3937 = vpop.f32.mrb[0].mxu0
        %3938 = vdwg.mxu0
        %3945 = vrot.lane.b32.xlu0 %v3917, 64
        %v3946 = vpop.permute.xlu0 %3945
        %3947 = vrot.lane.b32.xlu0 %v3920, 64
        %v3948 = vpop.permute.xlu0 %3947
        %3949 = vrot.lane.b32.xlu0 %v3925, 64
        %v3950 = vpop.permute.xlu0 %3949
        %3951 = vrot.lane.b32.xlu0 %v3928, 64
        %v3952 = vpop.permute.xlu0 %3951
        %3953 = vrot.lane.b32.xlu0 %v3933, 64
        %v3954 = vpop.permute.xlu0 %3953
        %3955 = vrot.lane.b32.xlu0 %v3936, 64
        %v3956 = vpop.permute.xlu0 %3955
        %v3963 = vmul.f32 %v3119, %v3946
        %v3964 = vmul.f32 %v3120, %v3948
        %v3965 = vmul.f32 %v3121, %v3950
        %v3966 = vmul.f32 %v3122, %v3952
        %v3967 = vmul.f32 %v3123, %v3954
        %v3968 = vmul.f32 %v3124, %v3956
        %3975 = vrot.lane.b32.xlu0 %v3963, 64
        %v3976 = vpop.permute.xlu0 %3975
        %3977 = vrot.lane.b32.xlu0 %v3964, 64
        %v3978 = vpop.permute.xlu0 %3977
        %3979 = vrot.lane.b32.xlu0 %v3965, 64
        %v3980 = vpop.permute.xlu0 %3979
        %3981 = vrot.lane.b32.xlu0 %v3966, 64
        %v3982 = vpop.permute.xlu0 %3981
        %3983 = vrot.lane.b32.xlu0 %v3967, 64
        %v3984 = vpop.permute.xlu0 %3983
        %3985 = vrot.lane.b32.xlu0 %v3968, 64
        %v3986 = vpop.permute.xlu0 %3985
        %v3993 = vadd.f32 %v3027, %v3976
        %v3994 = vadd.f32 %v3028, %v3978
        %v3995 = vadd.f32 %v3029, %v3980
        %v3996 = vadd.f32 %v3030, %v3982
        %v3997 = vadd.f32 %v3031, %v3984
        %v3998 = vadd.f32 %v3032, %v3986
        %s3999 = scalar_lea.vmem %s10, 704
        %v4000 = vld [vmem:[%s3999] sm:$0xff]
        %v4001 = vld [vmem:[%s3999 + $0x8] sm:$0xff]
        %v4002 = vld [vmem:[%s3999 + $0x10] sm:$0xff]
        %v4003 = vld [vmem:[%s3999 + $0x2c] sm:$0xff]
        %v4004 = vld [vmem:[%s3999 + $0x34] sm:$0xff]
        %v4005 = vld [vmem:[%s3999 + $0x3c] sm:$0xff]
        %v4006 = vld [vmem:[%s3999 + $0x58] sm:$0xff]
        %v4007 = vld [vmem:[%s3999 + $0x60] sm:$0xff]
        %v4008 = vld [vmem:[%s3999 + $0x68] sm:$0xff]
        %v4009 = vld [vmem:[%s3999 + $0x84] sm:$0xff]
        %v4010 = vld [vmem:[%s3999 + $0x8c] sm:$0xff]
        %v4011 = vld [vmem:[%s3999 + $0x94] sm:$0xff]
        %v4012 = vld [vmem:[%s3999 + $0xb0] sm:$0xff]
        %v4013 = vld [vmem:[%s3999 + $0xb8] sm:$0xff]
        %v4014 = vld [vmem:[%s3999 + $0xc0] sm:$0xff]
        %v4015 = vld [vmem:[%s3999 + $0xdc] sm:$0xff]
        %v4016 = vld [vmem:[%s3999 + $0xe4] sm:$0xff]
        %v4017 = vld [vmem:[%s3999 + $0xec] sm:$0xff]
        %v4018 = vld [vmem:[%s3999 + $0x108] sm:$0xff]
        %v4019 = vld [vmem:[%s3999 + $0x110] sm:$0xff]
        %v4020 = vld [vmem:[%s3999 + $0x118] sm:$0xff]
        %v4021 = vld [vmem:[%s3999 + $0x134] sm:$0xff]
        %v4022 = vld [vmem:[%s3999 + $0x13c] sm:$0xff]
        %v4023 = vld [vmem:[%s3999 + $0x144] sm:$0xff]
        %s4024 = scalar_lea.vmem %s12, 24
        %v4025 = vld [vmem:[%s4024] ss:$2 sm:$0x3f]
        %v4050 = vunpack.c.l.b16 %v4000
        %v4051 = vunpack.c.h.b16 %v4000
        %v4052 = vunpack.c.l.b16 %v4001
        %v4053 = vunpack.c.h.b16 %v4001
        %v4054 = vunpack.c.l.b16 %v4002
        %v4055 = vunpack.c.h.b16 %v4002
        %v4056 = vunpack.c.l.b16 %v4003
        %v4057 = vunpack.c.h.b16 %v4003
        %v4058 = vunpack.c.l.b16 %v4004
        %v4059 = vunpack.c.h.b16 %v4004
        %v4060 = vunpack.c.l.b16 %v4005
        %v4061 = vunpack.c.h.b16 %v4005
        %v4062 = vunpack.c.l.b16 %v4006
        %v4063 = vunpack.c.h.b16 %v4006
        %v4064 = vunpack.c.l.b16 %v4007
        %v4065 = vunpack.c.h.b16 %v4007
        %v4066 = vunpack.c.l.b16 %v4008
        %v4067 = vunpack.c.h.b16 %v4008
        %v4068 = vunpack.c.l.b16 %v4009
        %v4069 = vunpack.c.h.b16 %v4009
        %v4070 = vunpack.c.l.b16 %v4010
        %v4071 = vunpack.c.h.b16 %v4010
        %v4072 = vunpack.c.l.b16 %v4011
        %v4073 = vunpack.c.h.b16 %v4011
        %v4074 = vunpack.c.l.b16 %v4012
        %v4075 = vunpack.c.h.b16 %v4012
        %v4076 = vunpack.c.l.b16 %v4013
        %v4077 = vunpack.c.h.b16 %v4013
        %v4078 = vunpack.c.l.b16 %v4014
        %v4079 = vunpack.c.h.b16 %v4014
        %v4080 = vunpack.c.l.b16 %v4015
        %v4081 = vunpack.c.h.b16 %v4015
        %v4082 = vunpack.c.l.b16 %v4016
        %v4083 = vunpack.c.h.b16 %v4016
        %v4084 = vunpack.c.l.b16 %v4017
        %v4085 = vunpack.c.h.b16 %v4017
        %v4086 = vunpack.c.l.b16 %v4018
        %v4087 = vunpack.c.h.b16 %v4018
        %v4088 = vunpack.c.l.b16 %v4019
        %v4089 = vunpack.c.h.b16 %v4019
        %v4090 = vunpack.c.l.b16 %v4020
        %v4091 = vunpack.c.h.b16 %v4020
        %v4092 = vunpack.c.l.b16 %v4021
        %v4093 = vunpack.c.h.b16 %v4021
        %v4094 = vunpack.c.l.b16 %v4022
        %v4095 = vunpack.c.h.b16 %v4022
        %v4096 = vunpack.c.l.b16 %v4023
        %v4097 = vunpack.c.h.b16 %v4023
        %v4098 = vpack.c.b16 %v4056, %v4050
        %v4099 = vpack.c.b16 %v4057, %v4051
        %v4100 = vpack.c.b16 %v4058, %v4052
        %v4101 = vpack.c.b16 %v4059, %v4053
        %v4102 = vpack.c.b16 %v4060, %v4054
        %v4103 = vpack.c.b16 %v4061, %v4055
        %v4104 = vpack.c.b16 %v4068, %v4062
        %v4105 = vpack.c.b16 %v4069, %v4063
        %v4106 = vpack.c.b16 %v4070, %v4064
        %v4107 = vpack.c.b16 %v4071, %v4065
        %v4108 = vpack.c.b16 %v4072, %v4066
        %v4109 = vpack.c.b16 %v4073, %v4067
        %v4110 = vpack.c.b16 %v4080, %v4074
        %v4111 = vpack.c.b16 %v4081, %v4075
        %v4112 = vpack.c.b16 %v4082, %v4076
        %v4113 = vpack.c.b16 %v4083, %v4077
        %v4114 = vpack.c.b16 %v4084, %v4078
        %v4115 = vpack.c.b16 %v4085, %v4079
        %v4116 = vpack.c.b16 %v4092, %v4086
        %v4117 = vpack.c.b16 %v4093, %v4087
        %v4118 = vpack.c.b16 %v4094, %v4088
        %v4119 = vpack.c.b16 %v4095, %v4089
        %v4120 = vpack.c.b16 %v4096, %v4090
        %v4121 = vpack.c.b16 %v4097, %v4091
        %v4147 = vlaneseq
        %v4148 = vshrl.u32 %v4147, 7
        %v4149 = vsub.s32 0, %v4148
        %v4150 = vrot.slane %v4025, %v4149
        %v4151 = vlaneseq
        %v4152 = vshrl.u32 %v4151, 7
        %v4153 = vsub.s32 1, %v4152
        %v4154 = vrot.slane %v4025, %v4153
        %v4155 = vlaneseq
        %v4156 = vshrl.u32 %v4155, 7
        %v4157 = vsub.s32 2, %v4156
        %v4158 = vrot.slane %v4025, %v4157
        %v4159 = vlaneseq
        %v4160 = vshrl.u32 %v4159, 7
        %v4161 = vsub.s32 3, %v4160
        %v4162 = vrot.slane %v4025, %v4161
        %v4163 = vlaneseq
        %v4164 = vshrl.u32 %v4163, 7
        %v4165 = vsub.s32 4, %v4164
        %v4166 = vrot.slane %v4025, %v4165
        %v4167 = vlaneseq
        %v4168 = vshrl.u32 %v4167, 7
        %v4169 = vsub.s32 5, %v4168
        %v4170 = vrot.slane %v4025, %v4169
        %4177 = vmatprep.subr.bf16.mxu0 %v4099
        %4178 = vmatpush1.bf16.msra.mxu0 %v4098
        %4179 = vmatprep.subr.bf16.mxu0 %v4105
        %4180 = vmatpush1.bf16.msra.mxu0 %v4104
        %4181 = vmatprep.subr.bf16.mxu0 %v4111
        %4182 = vmatpush1.bf16.msra.mxu0 %v4110
        %4183 = vmatprep.subr.bf16.mxu0 %v4117
        %4184 = vmatpush1.bf16.msra.mxu0 %v4116
        %4185 = vmatprep.subr.bf16.mxu0 0
        %4186 = vmatpush1.bf16.msra.mxu0 0
        %4187 = vmatprep.subr.bf16.mxu0 0
        %4188 = vmatpush1.bf16.msra.mxu0 0
        %4189 = vmatprep.subr.bf16.mxu0 0
        %4190 = vmatpush1.bf16.msra.mxu0 0
        %4191 = vmatprep.subr.bf16.mxu0 0
        %4192 = vmatpush1.bf16.msra.mxu0 0
        %4193 = vmatprep.subr.bf16.mxu0 0
        %4194 = vmatpush1.bf16.msra.mxu0 0
        %4195 = vmatprep.subr.bf16.mxu0 0
        %4196 = vmatpush1.bf16.msra.mxu0 0
        %4197 = vmatprep.subr.bf16.mxu0 0
        %4198 = vmatpush1.bf16.msra.mxu0 0
        %4199 = vmatprep.subr.bf16.mxu0 0
        %4200 = vmatpush1.bf16.msra.mxu0 0
        %4201 = vmatprep.subr.bf16.mxu0 0
        %4202 = vmatpush1.bf16.msra.mxu0 0
        %4203 = vmatprep.subr.bf16.mxu0 0
        %4204 = vmatpush1.bf16.msra.mxu0 0
        %4205 = vmatprep.subr.bf16.mxu0 0
        %4206 = vmatpush1.bf16.msra.mxu0 0
        %4207 = vmatprep.subr.bf16.mxu0 0
        %4208 = vmatpush1.bf16.msra.mxu0 0
        %4209 = vmatprep.mubr.bf16.mxu0 0
        %4210 = vmatmul.mubr.bf16.gmra.mrb[0].mxu0 %v1259
        %v4211 = vpop.f32.mrb[0].mxu0
        %v4212 = vadd.f32 %v4150, %v4211
        %v4213 = vpop.f32.mrb[0].mxu0
        %v4214 = vadd.f32 %v4154, %v4213
        %v4215 = vpop.f32.mrb[0].mxu0
        %v4216 = vpop.f32.mrb[0].mxu0
        %4217 = vdwg.mxu0
        %4218 = vmatprep.subr.bf16.mxu0 %v4101
        %4219 = vmatpush1.bf16.msra.mxu0 %v4100
        %4220 = vmatprep.subr.bf16.mxu0 %v4107
        %4221 = vmatpush1.bf16.msra.mxu0 %v4106
        %4222 = vmatprep.subr.bf16.mxu0 %v4113
        %4223 = vmatpush1.bf16.msra.mxu0 %v4112
        %4224 = vmatprep.subr.bf16.mxu0 %v4119
        %4225 = vmatpush1.bf16.msra.mxu0 %v4118
        %4226 = vmatprep.subr.bf16.mxu0 0
        %4227 = vmatpush1.bf16.msra.mxu0 0
        %4228 = vmatprep.subr.bf16.mxu0 0
        %4229 = vmatpush1.bf16.msra.mxu0 0
        %4230 = vmatprep.subr.bf16.mxu0 0
        %4231 = vmatpush1.bf16.msra.mxu0 0
        %4232 = vmatprep.subr.bf16.mxu0 0
        %4233 = vmatpush1.bf16.msra.mxu0 0
        %4234 = vmatprep.subr.bf16.mxu0 0
        %4235 = vmatpush1.bf16.msra.mxu0 0
        %4236 = vmatprep.subr.bf16.mxu0 0
        %4237 = vmatpush1.bf16.msra.mxu0 0
        %4238 = vmatprep.subr.bf16.mxu0 0
        %4239 = vmatpush1.bf16.msra.mxu0 0
        %4240 = vmatprep.subr.bf16.mxu0 0
        %4241 = vmatpush1.bf16.msra.mxu0 0
        %4242 = vmatprep.subr.bf16.mxu0 0
        %4243 = vmatpush1.bf16.msra.mxu0 0
        %4244 = vmatprep.subr.bf16.mxu0 0
        %4245 = vmatpush1.bf16.msra.mxu0 0
        %4246 = vmatprep.subr.bf16.mxu0 0
        %4247 = vmatpush1.bf16.msra.mxu0 0
        %4248 = vmatprep.subr.bf16.mxu0 0
        %4249 = vmatpush1.bf16.msra.mxu0 0
        %4250 = vmatprep.mubr.bf16.mxu0 0
        %4251 = vmatmul.mubr.bf16.gmra.mrb[0].mxu0 %v1259
        %v4252 = vpop.f32.mrb[0].mxu0
        %v4253 = vadd.f32 %v4158, %v4252
        %v4254 = vpop.f32.mrb[0].mxu0
        %v4255 = vadd.f32 %v4162, %v4254
        %v4256 = vpop.f32.mrb[0].mxu0
        %v4257 = vpop.f32.mrb[0].mxu0
        %4258 = vdwg.mxu0
        %4259 = vmatprep.subr.bf16.mxu0 %v4103
        %4260 = vmatpush1.bf16.msra.mxu0 %v4102
        %4261 = vmatprep.subr.bf16.mxu0 %v4109
        %4262 = vmatpush1.bf16.msra.mxu0 %v4108
        %4263 = vmatprep.subr.bf16.mxu0 %v4115
        %4264 = vmatpush1.bf16.msra.mxu0 %v4114
        %4265 = vmatprep.subr.bf16.mxu0 %v4121
        %4266 = vmatpush1.bf16.msra.mxu0 %v4120
        %4267 = vmatprep.subr.bf16.mxu0 0
        %4268 = vmatpush1.bf16.msra.mxu0 0
        %4269 = vmatprep.subr.bf16.mxu0 0
        %4270 = vmatpush1.bf16.msra.mxu0 0
        %4271 = vmatprep.subr.bf16.mxu0 0
        %4272 = vmatpush1.bf16.msra.mxu0 0
        %4273 = vmatprep.subr.bf16.mxu0 0
        %4274 = vmatpush1.bf16.msra.mxu0 0
        %4275 = vmatprep.subr.bf16.mxu0 0
        %4276 = vmatpush1.bf16.msra.mxu0 0
        %4277 = vmatprep.subr.bf16.mxu0 0
        %4278 = vmatpush1.bf16.msra.mxu0 0
        %4279 = vmatprep.subr.bf16.mxu0 0
        %4280 = vmatpush1.bf16.msra.mxu0 0
        %4281 = vmatprep.subr.bf16.mxu0 0
        %4282 = vmatpush1.bf16.msra.mxu0 0
        %4283 = vmatprep.subr.bf16.mxu0 0
        %4284 = vmatpush1.bf16.msra.mxu0 0
        %4285 = vmatprep.subr.bf16.mxu0 0
        %4286 = vmatpush1.bf16.msra.mxu0 0
        %4287 = vmatprep.subr.bf16.mxu0 0
        %4288 = vmatpush1.bf16.msra.mxu0 0
        %4289 = vmatprep.subr.bf16.mxu0 0
        %4290 = vmatpush1.bf16.msra.mxu0 0
        %4291 = vmatprep.mubr.bf16.mxu0 0
        %4292 = vmatmul.mubr.bf16.gmra.mrb[0].mxu0 %v1259
        %v4293 = vpop.f32.mrb[0].mxu0
        %v4294 = vadd.f32 %v4166, %v4293
        %v4295 = vpop.f32.mrb[0].mxu0
        %v4296 = vadd.f32 %v4170, %v4295
        %v4297 = vpop.f32.mrb[0].mxu0
        %v4298 = vpop.f32.mrb[0].mxu0
        %4299 = vdwg.mxu0
        %v4300 = vsel %vm880, %v3993, 0.0
        %4301 = vadd.xlane.f32.xlu0 %v4300
        %v4302 = vpop.xlane.xlu0 %4301
        %v4303 = vsel %vm880, %v3994, 0.0
        %4304 = vadd.xlane.f32.xlu0 %v4303
        %v4305 = vpop.xlane.xlu0 %4304
        %v4306 = vsel %vm880, %v3995, 0.0
        %4307 = vadd.xlane.f32.xlu0 %v4306
        %v4308 = vpop.xlane.xlu0 %4307
        %v4309 = vsel %vm880, %v3996, 0.0
        %4310 = vadd.xlane.f32.xlu0 %v4309
        %v4311 = vpop.xlane.xlu0 %4310
        %v4312 = vsel %vm880, %v3997, 0.0
        %4313 = vadd.xlane.f32.xlu0 %v4312
        %v4314 = vpop.xlane.xlu0 %4313
        %v4315 = vsel %vm1399, %v3998, 0.0
        %4316 = vadd.xlane.f32.xlu0 %v4315
        %v4317 = vpop.xlane.xlu0 %4316
        %v4318 = vmul.f32 %v4302, %v1403
        %v4319 = vmul.f32 %v4305, %v1403
        %v4320 = vmul.f32 %v4308, %v1403
        %v4321 = vmul.f32 %v4311, %v1403
        %v4322 = vmul.f32 %v4314, %v1403
        %v4323 = vmul.f32 %v4317, %v1403
        %v4324 = vsub.f32 %v3993, %v4318
        %v4325 = vsub.f32 %v3994, %v4319
        %v4326 = vsub.f32 %v3995, %v4320
        %v4327 = vsub.f32 %v3996, %v4321
        %v4328 = vsub.f32 %v3997, %v4322
        %v4329 = vsub.f32 %v3998, %v4323
        %v4330 = vmul.f32 %v4324, %v4324
        %v4331 = vmul.f32 %v4325, %v4325
        %v4332 = vmul.f32 %v4326, %v4326
        %v4333 = vmul.f32 %v4327, %v4327
        %v4334 = vmul.f32 %v4328, %v4328
        %v4335 = vmul.f32 %v4329, %v4329
        %v4336 = vsel %vm880, %v4330, 0.0
        %4337 = vadd.xlane.f32.xlu0 %v4336
        %v4338 = vpop.xlane.xlu0 %4337
        %v4339 = vsel %vm880, %v4331, 0.0
        %4340 = vadd.xlane.f32.xlu0 %v4339
        %v4341 = vpop.xlane.xlu0 %4340
        %v4342 = vsel %vm880, %v4332, 0.0
        %4343 = vadd.xlane.f32.xlu0 %v4342
        %v4344 = vpop.xlane.xlu0 %4343
        %v4345 = vsel %vm880, %v4333, 0.0
        %4346 = vadd.xlane.f32.xlu0 %v4345
        %v4347 = vpop.xlane.xlu0 %4346
        %v4348 = vsel %vm880, %v4334, 0.0
        %4349 = vadd.xlane.f32.xlu0 %v4348
        %v4350 = vpop.xlane.xlu0 %4349
        %v4351 = vsel %vm1399, %v4335, 0.0
        %4352 = vadd.xlane.f32.xlu0 %v4351
        %v4353 = vpop.xlane.xlu0 %4352
        %v4354 = vmul.f32 %v4338, %v1403
        %v4355 = vmul.f32 %v4341, %v1403
        %v4356 = vmul.f32 %v4344, %v1403
        %v4357 = vmul.f32 %v4347, %v1403
        %v4358 = vmul.f32 %v4350, %v1403
        %v4359 = vmul.f32 %v4353, %v1403
        %v4360 = vadd.f32 %v4354, 1e-06
        %v4361 = vadd.f32 %v4355, 1e-06
        %v4362 = vadd.f32 %v4356, 1e-06
        %v4363 = vadd.f32 %v4357, 1e-06
        %v4364 = vadd.f32 %v4358, 1e-06
        %v4365 = vadd.f32 %v4359, 1e-06
        %v4366 = vrsqrt.pop %v4360
        %v4367 = vrsqrt.pop %v4361
        %v4368 = vrsqrt.pop %v4362
        %v4369 = vrsqrt.pop %v4363
        %v4370 = vrsqrt.pop %v4364
        %v4371 = vrsqrt.pop %v4365
        %v4372 = vmul.f32 %v4324, %v4366
        %v4373 = vmul.f32 %v4325, %v4367
        %v4374 = vmul.f32 %v4326, %v4368
        %v4375 = vmul.f32 %v4327, %v4369
        %v4376 = vmul.f32 %v4328, %v4370
        %v4377 = vmul.f32 %v4329, %v4371
        %v4378 = vlaneseq
        %v4379 = vshrl.u32 %v4378, 7
        %v4380 = vsub.s32 0, %v4379
        %v4381 = vrot.slane %v4212, %v4380
        %v4382 = vlaneseq
        %v4383 = vshrl.u32 %v4382, 7
        %v4384 = vsub.s32 0, %v4383
        %v4385 = vrot.slane %v4255, %v4384
        %v4386 = vsel %vm1470, %v4381, %v4385
        %v4387 = vsel %vm1471, %v4381, %v4385
        %v4388 = vsel %vm1472, %v4381, %v4385
        %v4389 = vsel %vm1473, %v4381, %v4385
        %v4390 = vsel %vm1474, %v4381, %v4385
        %v4391 = vsel %vm1475, %v4381, %v4385
        %v4392 = vadd.f32 %v4386, 1.0
        %v4393 = vadd.f32 %v4387, 1.0
        %v4394 = vadd.f32 %v4388, 1.0
        %v4395 = vadd.f32 %v4389, 1.0
        %v4396 = vadd.f32 %v4390, 1.0
        %v4397 = vadd.f32 %v4391, 1.0
        %4404 = vrot.lane.b32.xlu0 %v4392, 64
        %v4405 = vpop.permute.xlu0 %4404
        %4406 = vrot.lane.b32.xlu0 %v4393, 64
        %v4407 = vpop.permute.xlu0 %4406
        %4408 = vrot.lane.b32.xlu0 %v4394, 64
        %v4409 = vpop.permute.xlu0 %4408
        %4410 = vrot.lane.b32.xlu0 %v4395, 64
        %v4411 = vpop.permute.xlu0 %4410
        %4412 = vrot.lane.b32.xlu0 %v4396, 64
        %v4413 = vpop.permute.xlu0 %4412
        %4414 = vrot.lane.b32.xlu0 %v4397, 64
        %v4415 = vpop.permute.xlu0 %4414
        %v4422 = vmul.f32 %v4372, %v4405
        %v4423 = vmul.f32 %v4373, %v4407
        %v4424 = vmul.f32 %v4374, %v4409
        %v4425 = vmul.f32 %v4375, %v4411
        %v4426 = vmul.f32 %v4376, %v4413
        %v4427 = vmul.f32 %v4377, %v4415
        %v4428 = vadd.f32 %v4422, %v4386
        %v4429 = vadd.f32 %v4423, %v4387
        %v4430 = vadd.f32 %v4424, %v4388
        %v4431 = vadd.f32 %v4425, %v4389
        %v4432 = vadd.f32 %v4426, %v4390
        %v4433 = vadd.f32 %v4427, %v4391
        %v4434 = vsel %vm1470, %v4428, 0.0
        %v4435 = vsel %vm1471, %v4429, 0.0
        %v4436 = vsel %vm1472, %v4430, 0.0
        %v4437 = vsel %vm1473, %v4431, 0.0
        %v4438 = vsel %vm1474, %v4432, 0.0
        %v4439 = vsel %vm1475, %v4433, 0.0
        %v4440 = vsel %vm1470, 0.0, %v4428
        %v4441 = vsel %vm1471, 0.0, %v4429
        %v4442 = vsel %vm1472, 0.0, %v4430
        %v4443 = vsel %vm1473, 0.0, %v4431
        %v4444 = vsel %vm1474, 0.0, %v4432
        %v4445 = vsel %vm1475, 0.0, %v4433
        %4452 = vrot.lane.b32.xlu0 %v4440, 64
        %v4453 = vpop.permute.xlu0 %4452
        %4454 = vrot.lane.b32.xlu0 %v4441, 64
        %v4455 = vpop.permute.xlu0 %4454
        %4456 = vrot.lane.b32.xlu0 %v4442, 64
        %v4457 = vpop.permute.xlu0 %4456
        %4458 = vrot.lane.b32.xlu0 %v4443, 64
        %v4459 = vpop.permute.xlu0 %4458
        %4460 = vrot.lane.b32.xlu0 %v4444, 64
        %v4461 = vpop.permute.xlu0 %4460
        %4462 = vrot.lane.b32.xlu0 %v4445, 64
        %v4463 = vpop.permute.xlu0 %4462
        %v4470 = vsel %vm880, %v4434, %v4453
        %v4471 = vsel %vm880, %v4435, %v4455
        %v4472 = vsel %vm880, %v4436, %v4457
        %v4473 = vsel %vm880, %v4437, %v4459
        %v4474 = vsel %vm880, %v4438, %v4461
        %v4475 = vsel %vm880, %v4439, %v4463
        %v4476 = vld [vmem:[%s3999 + $0x18] sm:$0xff]
        %v4477 = vld [vmem:[%s3999 + $0x44] sm:$0xff]
        %v4478 = vld [vmem:[%s3999 + $0x70] sm:$0xff]
        %v4479 = vld [vmem:[%s3999 + $0x9c] sm:$0xff]
        %v4480 = vld [vmem:[%s3999 + $0xc8] sm:$0xff]
        %v4481 = vld [vmem:[%s3999 + $0xf4] sm:$0xff]
        %v4482 = vld [vmem:[%s3999 + $0x120] sm:$0xff]
        %v4483 = vld [vmem:[%s3999 + $0x14c] sm:$0xff]
        %v4484 = vld [vmem:[%s3999 + $0x178] sm:$0xff]
        %v4485 = vld [vmem:[%s3999 + $0x1a4] sm:$0xff]
        %v4486 = vld [vmem:[%s3999 + $0x1d0] sm:$0xff]
        %v4487 = vld [vmem:[%s3999 + $0x1fc] sm:$0xff]
        %v4488 = vld [vmem:[%s3999 + $0x228] sm:$0xff]
        %v4489 = vld [vmem:[%s3999 + $0x254] sm:$0xff]
        %v4490 = vld [vmem:[%s3999 + $0x280] sm:$0xff]
        %v4491 = vld [vmem:[%s3999 + $0x2ac] sm:$0xff]
        %v4492 = vpack.c.bf16 %v4471, %v4470
        %v4493 = vpack.c.bf16 %v4473, %v4472
        %v4494 = vpack.c.bf16 %v4475, %v4474
        %s4495 = scalar_lea.vmem %s4024, 12
        %v4496 = vld [vmem:[%s4495] ss:$2 sm:$0x3]
        %s4497 = scalar_lea.vmem %s4024, 13
        %v4498 = vld [vmem:[%s4497] ss:$2 sm:$0x3]
        %v4500 = vlaneseq
        %v4501 = vshrl.u32 %v4500, 7
        %v4502 = vsub.s32 0, %v4501
        %v4503 = vrot.slane %v4496, %v4502
        %v4504 = vlaneseq
        %v4505 = vshrl.u32 %v4504, 7
        %v4506 = vsub.s32 1, %v4505
        %v4507 = vrot.slane %v4496, %v4506
        %v4511 = vlaneseq
        %v4512 = vshrl.u32 %v4511, 7
        %v4513 = vsub.s32 0, %v4512
        %v4514 = vrot.slane %v4498, %v4513
        %v4515 = vlaneseq
        %v4516 = vshrl.u32 %v4515, 7
        %v4517 = vsub.s32 1, %v4516
        %v4518 = vrot.slane %v4498, %v4517
        %v4521 = vsel %vm1470, %v4503, %v4514
        %v4522 = vsel %vm1470, %v4507, %v4518
        %v4523 = vsel %vm1471, %v4503, %v4514
        %v4524 = vsel %vm1471, %v4507, %v4518
        %v4525 = vsel %vm1472, %v4503, %v4514
        %v4526 = vsel %vm1472, %v4507, %v4518
        %v4527 = vsel %vm1473, %v4503, %v4514
        %v4528 = vsel %vm1473, %v4507, %v4518
        %v4529 = vsel %vm1474, %v4503, %v4514
        %v4530 = vsel %vm1474, %v4507, %v4518
        %v4531 = vsel %vm1475, %v4503, %v4514
        %v4532 = vsel %vm1475, %v4507, %v4518
        %v4549 = vunpack.c.l.b16 %v4476
        %v4550 = vunpack.c.h.b16 %v4476
        %v4551 = vunpack.c.l.b16 %v4477
        %v4552 = vunpack.c.h.b16 %v4477
        %v4553 = vunpack.c.l.b16 %v4478
        %v4554 = vunpack.c.h.b16 %v4478
        %v4555 = vunpack.c.l.b16 %v4479
        %v4556 = vunpack.c.h.b16 %v4479
        %v4557 = vunpack.c.l.b16 %v4480
        %v4558 = vunpack.c.h.b16 %v4480
        %v4559 = vunpack.c.l.b16 %v4481
        %v4560 = vunpack.c.h.b16 %v4481
        %v4561 = vunpack.c.l.b16 %v4482
        %v4562 = vunpack.c.h.b16 %v4482
        %v4563 = vunpack.c.l.b16 %v4483
        %v4564 = vunpack.c.h.b16 %v4483
        %v4565 = vunpack.c.l.b16 %v4484
        %v4566 = vunpack.c.h.b16 %v4484
        %v4567 = vunpack.c.l.b16 %v4485
        %v4568 = vunpack.c.h.b16 %v4485
        %v4569 = vunpack.c.l.b16 %v4486
        %v4570 = vunpack.c.h.b16 %v4486
        %v4571 = vunpack.c.l.b16 %v4487
        %v4572 = vunpack.c.h.b16 %v4487
        %v4573 = vunpack.c.l.b16 %v4488
        %v4574 = vunpack.c.h.b16 %v4488
        %v4575 = vunpack.c.l.b16 %v4489
        %v4576 = vunpack.c.h.b16 %v4489
        %v4577 = vunpack.c.l.b16 %v4490
        %v4578 = vunpack.c.h.b16 %v4490
        %v4579 = vunpack.c.l.b16 %v4491
        %v4580 = vunpack.c.h.b16 %v4491
        %v4581 = vpack.c.b16 %v4551, %v4549
        %v4582 = vpack.c.b16 %v4552, %v4550
        %v4583 = vpack.c.b16 %v4555, %v4553
        %v4584 = vpack.c.b16 %v4556, %v4554
        %v4585 = vpack.c.b16 %v4559, %v4557
        %v4586 = vpack.c.b16 %v4560, %v4558
        %v4587 = vpack.c.b16 %v4563, %v4561
        %v4588 = vpack.c.b16 %v4564, %v4562
        %v4589 = vpack.c.b16 %v4567, %v4565
        %v4590 = vpack.c.b16 %v4568, %v4566
        %v4591 = vpack.c.b16 %v4571, %v4569
        %v4592 = vpack.c.b16 %v4572, %v4570
        %v4593 = vpack.c.b16 %v4575, %v4573
        %v4594 = vpack.c.b16 %v4576, %v4574
        %v4595 = vpack.c.b16 %v4579, %v4577
        %v4596 = vpack.c.b16 %v4580, %v4578
        %4613 = vmatprep.subr.bf16.mxu0 %v4582
        %4614 = vmatpush1.bf16.msra.mxu0 %v4581
        %4615 = vmatprep.subr.bf16.mxu0 %v4584
        %4616 = vmatpush1.bf16.msra.mxu0 %v4583
        %4617 = vmatprep.subr.bf16.mxu0 %v4586
        %4618 = vmatpush1.bf16.msra.mxu0 %v4585
        %4619 = vmatprep.subr.bf16.mxu0 %v4588
        %4620 = vmatpush1.bf16.msra.mxu0 %v4587
        %4621 = vmatprep.subr.bf16.mxu0 %v4590
        %4622 = vmatpush1.bf16.msra.mxu0 %v4589
        %4623 = vmatprep.subr.bf16.mxu0 %v4592
        %4624 = vmatpush1.bf16.msra.mxu0 %v4591
        %4625 = vmatprep.subr.bf16.mxu0 %v4594
        %4626 = vmatpush1.bf16.msra.mxu0 %v4593
        %4627 = vmatprep.subr.bf16.mxu0 %v4596
        %4628 = vmatpush1.bf16.msra.mxu0 %v4595
        %4629 = vmatprep.subr.bf16.mxu0 0
        %4630 = vmatpush1.bf16.msra.mxu0 0
        %4631 = vmatprep.subr.bf16.mxu0 0
        %4632 = vmatpush1.bf16.msra.mxu0 0
        %4633 = vmatprep.subr.bf16.mxu0 0
        %4634 = vmatpush1.bf16.msra.mxu0 0
        %4635 = vmatprep.subr.bf16.mxu0 0
        %4636 = vmatpush1.bf16.msra.mxu0 0
        %4637 = vmatprep.subr.bf16.mxu0 0
        %4638 = vmatpush1.bf16.msra.mxu0 0
        %4639 = vmatprep.subr.bf16.mxu0 0
        %4640 = vmatpush1.bf16.msra.mxu0 0
        %4641 = vmatprep.subr.bf16.mxu0 0
        %4642 = vmatpush1.bf16.msra.mxu0 0
        %4643 = vmatprep.subr.bf16.mxu0 0
        %4644 = vmatpush1.bf16.msra.mxu0 0
        %4645 = vmatprep.mubr.bf16.mxu0 0
        %4646 = vmatmul.mubr.bf16.gmra.mrb[0].mxu0 %v4492
        %v4647 = vpop.f32.mrb[0].mxu0
        %v4648 = vadd.f32 %v4521, %v4647
        %v4649 = vpop.f32.mrb[0].mxu0
        %v4650 = vadd.f32 %v4522, %v4649
        %v4651 = vpop.f32.mrb[0].mxu0
        %v4652 = vadd.f32 %v4523, %v4651
        %v4653 = vpop.f32.mrb[0].mxu0
        %v4654 = vadd.f32 %v4524, %v4653
        %4655 = vmatprep.mubr.bf16.mxu0 0
        %4656 = vmatmul.mubr.bf16.gmra.mrb[0].mxu0 %v4493
        %v4657 = vpop.f32.mrb[0].mxu0
        %v4658 = vadd.f32 %v4525, %v4657
        %v4659 = vpop.f32.mrb[0].mxu0
        %v4660 = vadd.f32 %v4526, %v4659
        %v4661 = vpop.f32.mrb[0].mxu0
        %v4662 = vadd.f32 %v4527, %v4661
        %v4663 = vpop.f32.mrb[0].mxu0
        %v4664 = vadd.f32 %v4528, %v4663
        %4665 = vmatprep.mubr.bf16.mxu0 0
        %4666 = vmatmul.mubr.bf16.gmra.mrb[0].mxu0 %v4494
        %v4667 = vpop.f32.mrb[0].mxu0
        %v4668 = vadd.f32 %v4529, %v4667
        %v4669 = vpop.f32.mrb[0].mxu0
        %v4670 = vadd.f32 %v4530, %v4669
        %v4671 = vpop.f32.mrb[0].mxu0
        %v4672 = vadd.f32 %v4531, %v4671
        %v4673 = vpop.f32.mrb[0].mxu0
        %v4674 = vadd.f32 %v4532, %v4673
        %4675 = vdwg.mxu0
        %v4676 = vpack.c.bf16 %v4652, %v4648
        %v4677 = vpack.c.bf16 %v4654, %v4650
        %v4678 = vpack.c.bf16 %v4662, %v4658
        %v4679 = vpack.c.bf16 %v4664, %v4660
        %v4680 = vpack.c.bf16 %v4672, %v4668
        %v4681 = vpack.c.bf16 %v4674, %v4670
        %4685 = vrot.lane.b32.xlu0 %v4676, 64
        %v4686 = vpop.permute.xlu0 %4685
        %4687 = vrot.lane.b32.xlu0 %v4678, 64
        %v4688 = vpop.permute.xlu0 %4687
        %4689 = vrot.lane.b32.xlu0 %v4680, 64
        %v4690 = vpop.permute.xlu0 %4689
        %v4692 = vsel %vm505, %v4676, 0
        %v4695 = vsel %vm505, %v4678, 0
        %v4698 = vsel %vm505, %v4680, 0
        %v4701 = vsel %vm505, %v4686, 0
        %v4704 = vsel %vm505, %v4688, 0
        %v4707 = vsel %vm505, %v4690, 0
        %4709 = vmatprep.subr.bf16.mxu0 0
        %4710 = vmatpush1.bf16.xpose.msra.mxu0 %v4701
        %4711 = vmatprep.subr.bf16.mxu0 0
        %4712 = vmatpush1.bf16.xpose.msra.mxu0 %v4704
        %4713 = vmatprep.subr.bf16.mxu0 0
        %4714 = vmatpush1.bf16.xpose.msra.mxu0 %v4707
        %4715 = vmatprep.subr.bf16.mxu0 0
        %4716 = vmatpush1.bf16.xpose.msra.mxu0 0
        %4717 = vmatprep.subr.bf16.mxu0 0
        %4718 = vmatpush1.bf16.xpose.msra.mxu0 0
        %4719 = vmatprep.subr.bf16.mxu0 0
        %4720 = vmatpush1.bf16.xpose.msra.mxu0 0
        %4721 = vmatprep.subr.bf16.mxu0 0
        %4722 = vmatpush1.bf16.xpose.msra.mxu0 0
        %4723 = vmatprep.subr.bf16.mxu0 0
        %4724 = vmatpush1.bf16.xpose.msra.mxu0 0
        %4725 = vmatprep.subr.bf16.mxu0 0
        %4726 = vmatpush1.bf16.xpose.msra.mxu0 0
        %4727 = vmatprep.subr.bf16.mxu0 0
        %4728 = vmatpush1.bf16.xpose.msra.mxu0 0
        %4729 = vmatprep.subr.bf16.mxu0 0
        %4730 = vmatpush1.bf16.xpose.msra.mxu0 0
        %4731 = vmatprep.subr.bf16.mxu0 0
        %4732 = vmatpush1.bf16.xpose.msra.mxu0 0
        %4733 = vmatprep.subr.bf16.mxu0 0
        %4734 = vmatpush1.bf16.xpose.msra.mxu0 0
        %4735 = vmatprep.subr.bf16.mxu0 0
        %4736 = vmatpush1.bf16.xpose.msra.mxu0 0
        %4737 = vmatprep.subr.bf16.mxu0 0
        %4738 = vmatpush1.bf16.xpose.msra.mxu0 0
        %4739 = vmatprep.subr.bf16.mxu0 0
        %4740 = vmatpush1.bf16.xpose.msra.mxu0 0
        %4741 = vmatprep.mubr.bf16.mxu0 0
        %4742 = vmatmul.mubr.bf16.gmra.mrb[0].mxu0 %v4692
        %v4743 = vpop.f32.mrb[0].mxu0
        %v4744 = vadd.f32 0.0, %v4743
        %v4745 = vpop.f32.mrb[0].mxu0
        %v4746 = vpop.f32.mrb[0].mxu0
        %v4747 = vadd.f32 0.0, %v4746
        %v4748 = vpop.f32.mrb[0].mxu0
        %4749 = vmatprep.mubr.bf16.mxu0 0
        %4750 = vmatmul.mubr.bf16.gmra.mrb[0].mxu0 %v4695
        %v4751 = vpop.f32.mrb[0].mxu0
        %v4752 = vadd.f32 0.0, %v4751
        %v4753 = vpop.f32.mrb[0].mxu0
        %v4754 = vpop.f32.mrb[0].mxu0
        %v4755 = vadd.f32 0.0, %v4754
        %v4756 = vpop.f32.mrb[0].mxu0
        %4757 = vmatprep.mubr.bf16.mxu0 0
        %4758 = vmatmul.mubr.bf16.gmra.mrb[0].mxu0 %v4698
        %v4759 = vpop.f32.mrb[0].mxu0
        %v4760 = vadd.f32 0.0, %v4759
        %v4761 = vpop.f32.mrb[0].mxu0
        %v4762 = vpop.f32.mrb[0].mxu0
        %v4763 = vadd.f32 0.0, %v4762
        %v4764 = vpop.f32.mrb[0].mxu0
        %4765 = vdwg.mxu0
        %v4766 = vmul.f32 %v4744, 0.25
        %v4767 = vmul.f32 %v4747, 0.25
        %v4768 = vmul.f32 %v4752, 0.25
        %v4769 = vmul.f32 %v4755, 0.25
        %v4770 = vmul.f32 %v4760, 0.25
        %v4771 = vmul.f32 %v4763, 0.25
        %v4772 = vsel %vm1870, %v4766, -inf
        %4773 = vmax.xlane.f32.xlu0 %v4772
        %v4774 = vpop.xlane.xlu0 %4773
        %v4775 = vsel %vm1870, %v4767, -inf
        %4776 = vmax.xlane.f32.xlu0 %v4775
        %v4777 = vpop.xlane.xlu0 %4776
        %v4778 = vsel %vm1870, %v4768, -inf
        %4779 = vmax.xlane.f32.xlu0 %v4778
        %v4780 = vpop.xlane.xlu0 %4779
        %v4781 = vsel %vm1870, %v4769, -inf
        %4782 = vmax.xlane.f32.xlu0 %v4781
        %v4783 = vpop.xlane.xlu0 %4782
        %v4784 = vsel %vm1870, %v4770, -inf
        %4785 = vmax.xlane.f32.xlu0 %v4784
        %v4786 = vpop.xlane.xlu0 %4785
        %v4787 = vsel %vm1886, %v4771, -inf
        %4788 = vmax.xlane.f32.xlu0 %v4787
        %v4789 = vpop.xlane.xlu0 %4788
        %v4790 = vsub.f32 %v4766, %v4774
        %v4791 = vsub.f32 %v4767, %v4777
        %v4792 = vsub.f32 %v4768, %v4780
        %v4793 = vsub.f32 %v4769, %v4783
        %v4794 = vsub.f32 %v4770, %v4786
        %v4795 = vsub.f32 %v4771, %v4789
        %v4796 = vmul.f32 %v4790, 1.442695
        %v4797 = vpow.pop %v4796
        %v4798 = vmul.f32 %v4791, 1.442695
        %v4799 = vpow.pop %v4798
        %v4800 = vmul.f32 %v4792, 1.442695
        %v4801 = vpow.pop %v4800
        %v4802 = vmul.f32 %v4793, 1.442695
        %v4803 = vpow.pop %v4802
        %v4804 = vmul.f32 %v4794, 1.442695
        %v4805 = vpow.pop %v4804
        %v4806 = vmul.f32 %v4795, 1.442695
        %v4807 = vpow.pop %v4806
        %v4808 = vsel %vm1870, %v4797, 0.0
        %4809 = vadd.xlane.f32.xlu0 %v4808
        %v4810 = vpop.xlane.xlu0 %4809
        %v4811 = vsel %vm1870, %v4799, 0.0
        %4812 = vadd.xlane.f32.xlu0 %v4811
        %v4813 = vpop.xlane.xlu0 %4812
        %v4814 = vsel %vm1870, %v4801, 0.0
        %4815 = vadd.xlane.f32.xlu0 %v4814
        %v4816 = vpop.xlane.xlu0 %4815
        %v4817 = vsel %vm1870, %v4803, 0.0
        %4818 = vadd.xlane.f32.xlu0 %v4817
        %v4819 = vpop.xlane.xlu0 %4818
        %v4820 = vsel %vm1870, %v4805, 0.0
        %4821 = vadd.xlane.f32.xlu0 %v4820
        %v4822 = vpop.xlane.xlu0 %4821
        %v4823 = vsel %vm1886, %v4807, 0.0
        %4824 = vadd.xlane.f32.xlu0 %v4823
        %v4825 = vpop.xlane.xlu0 %4824
        %v4826 = vrcp.pop %v4810
        %v4827 = vrcp.pop %v4813
        %v4828 = vrcp.pop %v4816
        %v4829 = vrcp.pop %v4819
        %v4830 = vrcp.pop %v4822
        %v4831 = vrcp.pop %v4825
        %v4832 = vmul.f32 %v4797, %v4826
        %v4833 = vmul.f32 %v4799, %v4827
        %v4834 = vmul.f32 %v4801, %v4828
        %v4835 = vmul.f32 %v4803, %v4829
        %v4836 = vmul.f32 %v4805, %v4830
        %v4837 = vmul.f32 %v4807, %v4831
        %v4838 = vpack.c.bf16 %v4833, %v4832
        %v4839 = vpack.c.bf16 %v4835, %v4834
        %v4840 = vpack.c.bf16 %v4837, %v4836
        %v4842 = vsel %vm1870, %v4838, 0
        %v4845 = vsel %vm1870, %v4839, 0
        %v4848 = vsel %vm1870, %v4840, 0
        %v4851 = vand.u32 %v4681, %v1953
        %4853 = vmatprep.subr.bf16.mxu0 0
        %4854 = vmatpush1.bf16.msra.mxu0 %v4677
        %4855 = vmatprep.subr.bf16.mxu0 0
        %4856 = vmatpush1.bf16.msra.mxu0 %v4679
        %4857 = vmatprep.subr.bf16.mxu0 0
        %4858 = vmatpush1.bf16.msra.mxu0 %v4851
        %4859 = vmatprep.subr.bf16.mxu0 0
        %4860 = vmatpush1.bf16.msra.mxu0 0
        %4861 = vmatprep.subr.bf16.mxu0 0
        %4862 = vmatpush1.bf16.msra.mxu0 0
        %4863 = vmatprep.subr.bf16.mxu0 0
        %4864 = vmatpush1.bf16.msra.mxu0 0
        %4865 = vmatprep.subr.bf16.mxu0 0
        %4866 = vmatpush1.bf16.msra.mxu0 0
        %4867 = vmatprep.subr.bf16.mxu0 0
        %4868 = vmatpush1.bf16.msra.mxu0 0
        %4869 = vmatprep.subr.bf16.mxu0 0
        %4870 = vmatpush1.bf16.msra.mxu0 0
        %4871 = vmatprep.subr.bf16.mxu0 0
        %4872 = vmatpush1.bf16.msra.mxu0 0
        %4873 = vmatprep.subr.bf16.mxu0 0
        %4874 = vmatpush1.bf16.msra.mxu0 0
        %4875 = vmatprep.subr.bf16.mxu0 0
        %4876 = vmatpush1.bf16.msra.mxu0 0
        %4877 = vmatprep.subr.bf16.mxu0 0
        %4878 = vmatpush1.bf16.msra.mxu0 0
        %4879 = vmatprep.subr.bf16.mxu0 0
        %4880 = vmatpush1.bf16.msra.mxu0 0
        %4881 = vmatprep.subr.bf16.mxu0 0
        %4882 = vmatpush1.bf16.msra.mxu0 0
        %4883 = vmatprep.subr.bf16.mxu0 0
        %4884 = vmatpush1.bf16.msra.mxu0 0
        %4885 = vmatprep.mubr.bf16.mxu0 0
        %4886 = vmatmul.mubr.bf16.gmra.mrb[0].mxu0 %v4842
        %v4887 = vpop.f32.mrb[0].mxu0
        %v4888 = vadd.f32 0.0, %v4887
        %v4889 = vpop.f32.mrb[0].mxu0
        %v4890 = vpop.f32.mrb[0].mxu0
        %v4891 = vadd.f32 0.0, %v4890
        %v4892 = vpop.f32.mrb[0].mxu0
        %4893 = vmatprep.mubr.bf16.mxu0 0
        %4894 = vmatmul.mubr.bf16.gmra.mrb[0].mxu0 %v4845
        %v4895 = vpop.f32.mrb[0].mxu0
        %v4896 = vadd.f32 0.0, %v4895
        %v4897 = vpop.f32.mrb[0].mxu0
        %v4898 = vpop.f32.mrb[0].mxu0
        %v4899 = vadd.f32 0.0, %v4898
        %v4900 = vpop.f32.mrb[0].mxu0
        %4901 = vmatprep.mubr.bf16.mxu0 0
        %4902 = vmatmul.mubr.bf16.gmra.mrb[0].mxu0 %v4848
        %v4903 = vpop.f32.mrb[0].mxu0
        %v4904 = vadd.f32 0.0, %v4903
        %v4905 = vpop.f32.mrb[0].mxu0
        %v4906 = vpop.f32.mrb[0].mxu0
        %v4907 = vadd.f32 0.0, %v4906
        %v4908 = vpop.f32.mrb[0].mxu0
        %4909 = vdwg.mxu0
        %4910 = vrot.lane.b32.xlu0 %v4676, 112
        %v4911 = vpop.permute.xlu0 %4910
        %4912 = vrot.lane.b32.xlu0 %v4678, 112
        %v4913 = vpop.permute.xlu0 %4912
        %4914 = vrot.lane.b32.xlu0 %v4680, 112
        %v4915 = vpop.permute.xlu0 %4914
        %4916 = vrot.lane.b32.xlu0 %v4676, 48
        %v4917 = vpop.permute.xlu0 %4916
        %4918 = vrot.lane.b32.xlu0 %v4678, 48
        %v4919 = vpop.permute.xlu0 %4918
        %4920 = vrot.lane.b32.xlu0 %v4680, 48
        %v4921 = vpop.permute.xlu0 %4920
        %v4923 = vsel %vm505, %v4911, 0
        %v4926 = vsel %vm505, %v4913, 0
        %v4929 = vsel %vm505, %v4915, 0
        %v4932 = vsel %vm505, %v4917, 0
        %v4935 = vsel %vm505, %v4919, 0
        %v4938 = vsel %vm505, %v4921, 0
        %4940 = vmatprep.subr.bf16.mxu0 0
        %4941 = vmatpush1.bf16.xpose.msra.mxu0 %v4932
        %4942 = vmatprep.subr.bf16.mxu0 0
        %4943 = vmatpush1.bf16.xpose.msra.mxu0 %v4935
        %4944 = vmatprep.subr.bf16.mxu0 0
        %4945 = vmatpush1.bf16.xpose.msra.mxu0 %v4938
        %4946 = vmatprep.subr.bf16.mxu0 0
        %4947 = vmatpush1.bf16.xpose.msra.mxu0 0
        %4948 = vmatprep.subr.bf16.mxu0 0
        %4949 = vmatpush1.bf16.xpose.msra.mxu0 0
        %4950 = vmatprep.subr.bf16.mxu0 0
        %4951 = vmatpush1.bf16.xpose.msra.mxu0 0
        %4952 = vmatprep.subr.bf16.mxu0 0
        %4953 = vmatpush1.bf16.xpose.msra.mxu0 0
        %4954 = vmatprep.subr.bf16.mxu0 0
        %4955 = vmatpush1.bf16.xpose.msra.mxu0 0
        %4956 = vmatprep.subr.bf16.mxu0 0
        %4957 = vmatpush1.bf16.xpose.msra.mxu0 0
        %4958 = vmatprep.subr.bf16.mxu0 0
        %4959 = vmatpush1.bf16.xpose.msra.mxu0 0
        %4960 = vmatprep.subr.bf16.mxu0 0
        %4961 = vmatpush1.bf16.xpose.msra.mxu0 0
        %4962 = vmatprep.subr.bf16.mxu0 0
        %4963 = vmatpush1.bf16.xpose.msra.mxu0 0
        %4964 = vmatprep.subr.bf16.mxu0 0
        %4965 = vmatpush1.bf16.xpose.msra.mxu0 0
        %4966 = vmatprep.subr.bf16.mxu0 0
        %4967 = vmatpush1.bf16.xpose.msra.mxu0 0
        %4968 = vmatprep.subr.bf16.mxu0 0
        %4969 = vmatpush1.bf16.xpose.msra.mxu0 0
        %4970 = vmatprep.subr.bf16.mxu0 0
        %4971 = vmatpush1.bf16.xpose.msra.mxu0 0
        %4972 = vmatprep.mubr.bf16.mxu0 0
        %4973 = vmatmul.mubr.bf16.gmra.mrb[0].mxu0 %v4923
        %v4974 = vpop.f32.mrb[0].mxu0
        %v4975 = vadd.f32 0.0, %v4974
        %v4976 = vpop.f32.mrb[0].mxu0
        %v4977 = vpop.f32.mrb[0].mxu0
        %v4978 = vadd.f32 0.0, %v4977
        %v4979 = vpop.f32.mrb[0].mxu0
        %4980 = vmatprep.mubr.bf16.mxu0 0
        %4981 = vmatmul.mubr.bf16.gmra.mrb[0].mxu0 %v4926
        %v4982 = vpop.f32.mrb[0].mxu0
        %v4983 = vadd.f32 0.0, %v4982
        %v4984 = vpop.f32.mrb[0].mxu0
        %v4985 = vpop.f32.mrb[0].mxu0
        %v4986 = vadd.f32 0.0, %v4985
        %v4987 = vpop.f32.mrb[0].mxu0
        %4988 = vmatprep.mubr.bf16.mxu0 0
        %4989 = vmatmul.mubr.bf16.gmra.mrb[0].mxu0 %v4929
        %v4990 = vpop.f32.mrb[0].mxu0
        %v4991 = vadd.f32 0.0, %v4990
        %v4992 = vpop.f32.mrb[0].mxu0
        %v4993 = vpop.f32.mrb[0].mxu0
        %v4994 = vadd.f32 0.0, %v4993
        %v4995 = vpop.f32.mrb[0].mxu0
        %4996 = vdwg.mxu0
        %v4997 = vmul.f32 %v4975, 0.25
        %v4998 = vmul.f32 %v4978, 0.25
        %v4999 = vmul.f32 %v4983, 0.25
        %v5000 = vmul.f32 %v4986, 0.25
        %v5001 = vmul.f32 %v4991, 0.25
        %v5002 = vmul.f32 %v4994, 0.25
        %v5003 = vsel %vm1870, %v4997, -inf
        %5004 = vmax.xlane.f32.xlu0 %v5003
        %v5005 = vpop.xlane.xlu0 %5004
        %v5006 = vsel %vm1870, %v4998, -inf
        %5007 = vmax.xlane.f32.xlu0 %v5006
        %v5008 = vpop.xlane.xlu0 %5007
        %v5009 = vsel %vm1870, %v4999, -inf
        %5010 = vmax.xlane.f32.xlu0 %v5009
        %v5011 = vpop.xlane.xlu0 %5010
        %v5012 = vsel %vm1870, %v5000, -inf
        %5013 = vmax.xlane.f32.xlu0 %v5012
        %v5014 = vpop.xlane.xlu0 %5013
        %v5015 = vsel %vm1870, %v5001, -inf
        %5016 = vmax.xlane.f32.xlu0 %v5015
        %v5017 = vpop.xlane.xlu0 %5016
        %v5018 = vsel %vm1886, %v5002, -inf
        %5019 = vmax.xlane.f32.xlu0 %v5018
        %v5020 = vpop.xlane.xlu0 %5019
        %v5021 = vsub.f32 %v4997, %v5005
        %v5022 = vsub.f32 %v4998, %v5008
        %v5023 = vsub.f32 %v4999, %v5011
        %v5024 = vsub.f32 %v5000, %v5014
        %v5025 = vsub.f32 %v5001, %v5017
        %v5026 = vsub.f32 %v5002, %v5020
        %v5027 = vmul.f32 %v5021, 1.442695
        %v5028 = vpow.pop %v5027
        %v5029 = vmul.f32 %v5022, 1.442695
        %v5030 = vpow.pop %v5029
        %v5031 = vmul.f32 %v5023, 1.442695
        %v5032 = vpow.pop %v5031
        %v5033 = vmul.f32 %v5024, 1.442695
        %v5034 = vpow.pop %v5033
        %v5035 = vmul.f32 %v5025, 1.442695
        %v5036 = vpow.pop %v5035
        %v5037 = vmul.f32 %v5026, 1.442695
        %v5038 = vpow.pop %v5037
        %v5039 = vsel %vm1870, %v5028, 0.0
        %5040 = vadd.xlane.f32.xlu0 %v5039
        %v5041 = vpop.xlane.xlu0 %5040
        %v5042 = vsel %vm1870, %v5030, 0.0
        %5043 = vadd.xlane.f32.xlu0 %v5042
        %v5044 = vpop.xlane.xlu0 %5043
        %v5045 = vsel %vm1870, %v5032, 0.0
        %5046 = vadd.xlane.f32.xlu0 %v5045
        %v5047 = vpop.xlane.xlu0 %5046
        %v5048 = vsel %vm1870, %v5034, 0.0
        %5049 = vadd.xlane.f32.xlu0 %v5048
        %v5050 = vpop.xlane.xlu0 %5049
        %v5051 = vsel %vm1870, %v5036, 0.0
        %5052 = vadd.xlane.f32.xlu0 %v5051
        %v5053 = vpop.xlane.xlu0 %5052
        %v5054 = vsel %vm1886, %v5038, 0.0
        %5055 = vadd.xlane.f32.xlu0 %v5054
        %v5056 = vpop.xlane.xlu0 %5055
        %v5057 = vrcp.pop %v5041
        %v5058 = vrcp.pop %v5044
        %v5059 = vrcp.pop %v5047
        %v5060 = vrcp.pop %v5050
        %v5061 = vrcp.pop %v5053
        %v5062 = vrcp.pop %v5056
        %v5063 = vmul.f32 %v5028, %v5057
        %v5064 = vmul.f32 %v5030, %v5058
        %v5065 = vmul.f32 %v5032, %v5059
        %v5066 = vmul.f32 %v5034, %v5060
        %v5067 = vmul.f32 %v5036, %v5061
        %v5068 = vmul.f32 %v5038, %v5062
        %v5069 = vpack.c.bf16 %v5064, %v5063
        %v5070 = vpack.c.bf16 %v5066, %v5065
        %v5071 = vpack.c.bf16 %v5068, %v5067
        %5075 = vrot.lane.b32.xlu0 %v4677, 112
        %v5076 = vpop.permute.xlu0 %5075
        %5077 = vrot.lane.b32.xlu0 %v4679, 112
        %v5078 = vpop.permute.xlu0 %5077
        %5079 = vrot.lane.b32.xlu0 %v4681, 112
        %v5080 = vpop.permute.xlu0 %5079
        %v5084 = vsel %vm1870, %v5069, 0
        %v5087 = vsel %vm1870, %v5070, 0
        %v5090 = vsel %vm1870, %v5071, 0
        %v5093 = vand.u32 %v5080, %v1953
        %5095 = vmatprep.subr.bf16.mxu0 0
        %5096 = vmatpush1.bf16.msra.mxu0 %v5076
        %5097 = vmatprep.subr.bf16.mxu0 0
        %5098 = vmatpush1.bf16.msra.mxu0 %v5078
        %5099 = vmatprep.subr.bf16.mxu0 0
        %5100 = vmatpush1.bf16.msra.mxu0 %v5093
        %5101 = vmatprep.subr.bf16.mxu0 0
        %5102 = vmatpush1.bf16.msra.mxu0 0
        %5103 = vmatprep.subr.bf16.mxu0 0
        %5104 = vmatpush1.bf16.msra.mxu0 0
        %5105 = vmatprep.subr.bf16.mxu0 0
        %5106 = vmatpush1.bf16.msra.mxu0 0
        %5107 = vmatprep.subr.bf16.mxu0 0
        %5108 = vmatpush1.bf16.msra.mxu0 0
        %5109 = vmatprep.subr.bf16.mxu0 0
        %5110 = vmatpush1.bf16.msra.mxu0 0
        %5111 = vmatprep.subr.bf16.mxu0 0
        %5112 = vmatpush1.bf16.msra.mxu0 0
        %5113 = vmatprep.subr.bf16.mxu0 0
        %5114 = vmatpush1.bf16.msra.mxu0 0
        %5115 = vmatprep.subr.bf16.mxu0 0
        %5116 = vmatpush1.bf16.msra.mxu0 0
        %5117 = vmatprep.subr.bf16.mxu0 0
        %5118 = vmatpush1.bf16.msra.mxu0 0
        %5119 = vmatprep.subr.bf16.mxu0 0
        %5120 = vmatpush1.bf16.msra.mxu0 0
        %5121 = vmatprep.subr.bf16.mxu0 0
        %5122 = vmatpush1.bf16.msra.mxu0 0
        %5123 = vmatprep.subr.bf16.mxu0 0
        %5124 = vmatpush1.bf16.msra.mxu0 0
        %5125 = vmatprep.subr.bf16.mxu0 0
        %5126 = vmatpush1.bf16.msra.mxu0 0
        %5127 = vmatprep.mubr.bf16.mxu0 0
        %5128 = vmatmul.mubr.bf16.gmra.mrb[0].mxu0 %v5084
        %v5129 = vpop.f32.mrb[0].mxu0
        %v5130 = vadd.f32 0.0, %v5129
        %v5131 = vpop.f32.mrb[0].mxu0
        %v5132 = vpop.f32.mrb[0].mxu0
        %v5133 = vadd.f32 0.0, %v5132
        %v5134 = vpop.f32.mrb[0].mxu0
        %5135 = vmatprep.mubr.bf16.mxu0 0
        %5136 = vmatmul.mubr.bf16.gmra.mrb[0].mxu0 %v5087
        %v5137 = vpop.f32.mrb[0].mxu0
        %v5138 = vadd.f32 0.0, %v5137
        %v5139 = vpop.f32.mrb[0].mxu0
        %v5140 = vpop.f32.mrb[0].mxu0
        %v5141 = vadd.f32 0.0, %v5140
        %v5142 = vpop.f32.mrb[0].mxu0
        %5143 = vmatprep.mubr.bf16.mxu0 0
        %5144 = vmatmul.mubr.bf16.gmra.mrb[0].mxu0 %v5090
        %v5145 = vpop.f32.mrb[0].mxu0
        %v5146 = vadd.f32 0.0, %v5145
        %v5147 = vpop.f32.mrb[0].mxu0
        %v5148 = vpop.f32.mrb[0].mxu0
        %v5149 = vadd.f32 0.0, %v5148
        %v5150 = vpop.f32.mrb[0].mxu0
        %5151 = vdwg.mxu0
        %5152 = vrot.lane.b32.xlu0 %v4676, 96
        %v5153 = vpop.permute.xlu0 %5152
        %5154 = vrot.lane.b32.xlu0 %v4678, 96
        %v5155 = vpop.permute.xlu0 %5154
        %5156 = vrot.lane.b32.xlu0 %v4680, 96
        %v5157 = vpop.permute.xlu0 %5156
        %5158 = vrot.lane.b32.xlu0 %v4676, 32
        %v5159 = vpop.permute.xlu0 %5158
        %5160 = vrot.lane.b32.xlu0 %v4678, 32
        %v5161 = vpop.permute.xlu0 %5160
        %5162 = vrot.lane.b32.xlu0 %v4680, 32
        %v5163 = vpop.permute.xlu0 %5162
        %v5165 = vsel %vm505, %v5153, 0
        %v5168 = vsel %vm505, %v5155, 0
        %v5171 = vsel %vm505, %v5157, 0
        %v5174 = vsel %vm505, %v5159, 0
        %v5177 = vsel %vm505, %v5161, 0
        %v5180 = vsel %vm505, %v5163, 0
        %5182 = vmatprep.subr.bf16.mxu0 0
        %5183 = vmatpush1.bf16.xpose.msra.mxu0 %v5174
        %5184 = vmatprep.subr.bf16.mxu0 0
        %5185 = vmatpush1.bf16.xpose.msra.mxu0 %v5177
        %5186 = vmatprep.subr.bf16.mxu0 0
        %5187 = vmatpush1.bf16.xpose.msra.mxu0 %v5180
        %5188 = vmatprep.subr.bf16.mxu0 0
        %5189 = vmatpush1.bf16.xpose.msra.mxu0 0
        %5190 = vmatprep.subr.bf16.mxu0 0
        %5191 = vmatpush1.bf16.xpose.msra.mxu0 0
        %5192 = vmatprep.subr.bf16.mxu0 0
        %5193 = vmatpush1.bf16.xpose.msra.mxu0 0
        %5194 = vmatprep.subr.bf16.mxu0 0
        %5195 = vmatpush1.bf16.xpose.msra.mxu0 0
        %5196 = vmatprep.subr.bf16.mxu0 0
        %5197 = vmatpush1.bf16.xpose.msra.mxu0 0
        %5198 = vmatprep.subr.bf16.mxu0 0
        %5199 = vmatpush1.bf16.xpose.msra.mxu0 0
        %5200 = vmatprep.subr.bf16.mxu0 0
        %5201 = vmatpush1.bf16.xpose.msra.mxu0 0
        %5202 = vmatprep.subr.bf16.mxu0 0
        %5203 = vmatpush1.bf16.xpose.msra.mxu0 0
        %5204 = vmatprep.subr.bf16.mxu0 0
        %5205 = vmatpush1.bf16.xpose.msra.mxu0 0
        %5206 = vmatprep.subr.bf16.mxu0 0
        %5207 = vmatpush1.bf16.xpose.msra.mxu0 0
        %5208 = vmatprep.subr.bf16.mxu0 0
        %5209 = vmatpush1.bf16.xpose.msra.mxu0 0
        %5210 = vmatprep.subr.bf16.mxu0 0
        %5211 = vmatpush1.bf16.xpose.msra.mxu0 0
        %5212 = vmatprep.subr.bf16.mxu0 0
        %5213 = vmatpush1.bf16.xpose.msra.mxu0 0
        %5214 = vmatprep.mubr.bf16.mxu0 0
        %5215 = vmatmul.mubr.bf16.gmra.mrb[0].mxu0 %v5165
        %v5216 = vpop.f32.mrb[0].mxu0
        %v5217 = vadd.f32 0.0, %v5216
        %v5218 = vpop.f32.mrb[0].mxu0
        %v5219 = vpop.f32.mrb[0].mxu0
        %v5220 = vadd.f32 0.0, %v5219
        %v5221 = vpop.f32.mrb[0].mxu0
        %5222 = vmatprep.mubr.bf16.mxu0 0
        %5223 = vmatmul.mubr.bf16.gmra.mrb[0].mxu0 %v5168
        %v5224 = vpop.f32.mrb[0].mxu0
        %v5225 = vadd.f32 0.0, %v5224
        %v5226 = vpop.f32.mrb[0].mxu0
        %v5227 = vpop.f32.mrb[0].mxu0
        %v5228 = vadd.f32 0.0, %v5227
        %v5229 = vpop.f32.mrb[0].mxu0
        %5230 = vmatprep.mubr.bf16.mxu0 0
        %5231 = vmatmul.mubr.bf16.gmra.mrb[0].mxu0 %v5171
        %v5232 = vpop.f32.mrb[0].mxu0
        %v5233 = vadd.f32 0.0, %v5232
        %v5234 = vpop.f32.mrb[0].mxu0
        %v5235 = vpop.f32.mrb[0].mxu0
        %v5236 = vadd.f32 0.0, %v5235
        %v5237 = vpop.f32.mrb[0].mxu0
        %5238 = vdwg.mxu0
        %v5239 = vmul.f32 %v5217, 0.25
        %v5240 = vmul.f32 %v5220, 0.25
        %v5241 = vmul.f32 %v5225, 0.25
        %v5242 = vmul.f32 %v5228, 0.25
        %v5243 = vmul.f32 %v5233, 0.25
        %v5244 = vmul.f32 %v5236, 0.25
        %v5245 = vsel %vm1870, %v5239, -inf
        %5246 = vmax.xlane.f32.xlu0 %v5245
        %v5247 = vpop.xlane.xlu0 %5246
        %v5248 = vsel %vm1870, %v5240, -inf
        %5249 = vmax.xlane.f32.xlu0 %v5248
        %v5250 = vpop.xlane.xlu0 %5249
        %v5251 = vsel %vm1870, %v5241, -inf
        %5252 = vmax.xlane.f32.xlu0 %v5251
        %v5253 = vpop.xlane.xlu0 %5252
        %v5254 = vsel %vm1870, %v5242, -inf
        %5255 = vmax.xlane.f32.xlu0 %v5254
        %v5256 = vpop.xlane.xlu0 %5255
        %v5257 = vsel %vm1870, %v5243, -inf
        %5258 = vmax.xlane.f32.xlu0 %v5257
        %v5259 = vpop.xlane.xlu0 %5258
        %v5260 = vsel %vm1886, %v5244, -inf
        %5261 = vmax.xlane.f32.xlu0 %v5260
        %v5262 = vpop.xlane.xlu0 %5261
        %v5263 = vsub.f32 %v5239, %v5247
        %v5264 = vsub.f32 %v5240, %v5250
        %v5265 = vsub.f32 %v5241, %v5253
        %v5266 = vsub.f32 %v5242, %v5256
        %v5267 = vsub.f32 %v5243, %v5259
        %v5268 = vsub.f32 %v5244, %v5262
        %v5269 = vmul.f32 %v5263, 1.442695
        %v5270 = vpow.pop %v5269
        %v5271 = vmul.f32 %v5264, 1.442695
        %v5272 = vpow.pop %v5271
        %v5273 = vmul.f32 %v5265, 1.442695
        %v5274 = vpow.pop %v5273
        %v5275 = vmul.f32 %v5266, 1.442695
        %v5276 = vpow.pop %v5275
        %v5277 = vmul.f32 %v5267, 1.442695
        %v5278 = vpow.pop %v5277
        %v5279 = vmul.f32 %v5268, 1.442695
        %v5280 = vpow.pop %v5279
        %v5281 = vsel %vm1870, %v5270, 0.0
        %5282 = vadd.xlane.f32.xlu0 %v5281
        %v5283 = vpop.xlane.xlu0 %5282
        %v5284 = vsel %vm1870, %v5272, 0.0
        %5285 = vadd.xlane.f32.xlu0 %v5284
        %v5286 = vpop.xlane.xlu0 %5285
        %v5287 = vsel %vm1870, %v5274, 0.0
        %5288 = vadd.xlane.f32.xlu0 %v5287
        %v5289 = vpop.xlane.xlu0 %5288
        %v5290 = vsel %vm1870, %v5276, 0.0
        %5291 = vadd.xlane.f32.xlu0 %v5290
        %v5292 = vpop.xlane.xlu0 %5291
        %v5293 = vsel %vm1870, %v5278, 0.0
        %5294 = vadd.xlane.f32.xlu0 %v5293
        %v5295 = vpop.xlane.xlu0 %5294
        %v5296 = vsel %vm1886, %v5280, 0.0
        %5297 = vadd.xlane.f32.xlu0 %v5296
        %v5298 = vpop.xlane.xlu0 %5297
        %v5299 = vrcp.pop %v5283
        %v5300 = vrcp.pop %v5286
        %v5301 = vrcp.pop %v5289
        %v5302 = vrcp.pop %v5292
        %v5303 = vrcp.pop %v5295
        %v5304 = vrcp.pop %v5298
        %v5305 = vmul.f32 %v5270, %v5299
        %v5306 = vmul.f32 %v5272, %v5300
        %v5307 = vmul.f32 %v5274, %v5301
        %v5308 = vmul.f32 %v5276, %v5302
        %v5309 = vmul.f32 %v5278, %v5303
        %v5310 = vmul.f32 %v5280, %v5304
        %v5311 = vpack.c.bf16 %v5306, %v5305
        %v5312 = vpack.c.bf16 %v5308, %v5307
        %v5313 = vpack.c.bf16 %v5310, %v5309
        %5314 = vrot.lane.b32.xlu0 %v4677, 96
        %v5315 = vpop.permute.xlu0 %5314
        %5316 = vrot.lane.b32.xlu0 %v4679, 96
        %v5317 = vpop.permute.xlu0 %5316
        %5318 = vrot.lane.b32.xlu0 %v4681, 96
        %v5319 = vpop.permute.xlu0 %5318
        %v5323 = vsel %vm1870, %v5311, 0
        %v5326 = vsel %vm1870, %v5312, 0
        %v5329 = vsel %vm1870, %v5313, 0
        %v5332 = vand.u32 %v5319, %v1953
        %5334 = vmatprep.subr.bf16.mxu0 0
        %5335 = vmatpush1.bf16.msra.mxu0 %v5315
        %5336 = vmatprep.subr.bf16.mxu0 0
        %5337 = vmatpush1.bf16.msra.mxu0 %v5317
        %5338 = vmatprep.subr.bf16.mxu0 0
        %5339 = vmatpush1.bf16.msra.mxu0 %v5332
        %5340 = vmatprep.subr.bf16.mxu0 0
        %5341 = vmatpush1.bf16.msra.mxu0 0
        %5342 = vmatprep.subr.bf16.mxu0 0
        %5343 = vmatpush1.bf16.msra.mxu0 0
        %5344 = vmatprep.subr.bf16.mxu0 0
        %5345 = vmatpush1.bf16.msra.mxu0 0
        %5346 = vmatprep.subr.bf16.mxu0 0
        %5347 = vmatpush1.bf16.msra.mxu0 0
        %5348 = vmatprep.subr.bf16.mxu0 0
        %5349 = vmatpush1.bf16.msra.mxu0 0
        %5350 = vmatprep.subr.bf16.mxu0 0
        %5351 = vmatpush1.bf16.msra.mxu0 0
        %5352 = vmatprep.subr.bf16.mxu0 0
        %5353 = vmatpush1.bf16.msra.mxu0 0
        %5354 = vmatprep.subr.bf16.mxu0 0
        %5355 = vmatpush1.bf16.msra.mxu0 0
        %5356 = vmatprep.subr.bf16.mxu0 0
        %5357 = vmatpush1.bf16.msra.mxu0 0
        %5358 = vmatprep.subr.bf16.mxu0 0
        %5359 = vmatpush1.bf16.msra.mxu0 0
        %5360 = vmatprep.subr.bf16.mxu0 0
        %5361 = vmatpush1.bf16.msra.mxu0 0
        %5362 = vmatprep.subr.bf16.mxu0 0
        %5363 = vmatpush1.bf16.msra.mxu0 0
        %5364 = vmatprep.subr.bf16.mxu0 0
        %5365 = vmatpush1.bf16.msra.mxu0 0
        %5366 = vmatprep.mubr.bf16.mxu0 0
        %5367 = vmatmul.mubr.bf16.gmra.mrb[0].mxu0 %v5323
        %v5368 = vpop.f32.mrb[0].mxu0
        %v5369 = vadd.f32 0.0, %v5368
        %v5370 = vpop.f32.mrb[0].mxu0
        %v5371 = vpop.f32.mrb[0].mxu0
        %v5372 = vadd.f32 0.0, %v5371
        %v5373 = vpop.f32.mrb[0].mxu0
        %5374 = vmatprep.mubr.bf16.mxu0 0
        %5375 = vmatmul.mubr.bf16.gmra.mrb[0].mxu0 %v5326
        %v5376 = vpop.f32.mrb[0].mxu0
        %v5377 = vadd.f32 0.0, %v5376
        %v5378 = vpop.f32.mrb[0].mxu0
        %v5379 = vpop.f32.mrb[0].mxu0
        %v5380 = vadd.f32 0.0, %v5379
        %v5381 = vpop.f32.mrb[0].mxu0
        %5382 = vmatprep.mubr.bf16.mxu0 0
        %5383 = vmatmul.mubr.bf16.gmra.mrb[0].mxu0 %v5329
        %v5384 = vpop.f32.mrb[0].mxu0
        %v5385 = vadd.f32 0.0, %v5384
        %v5386 = vpop.f32.mrb[0].mxu0
        %v5387 = vpop.f32.mrb[0].mxu0
        %v5388 = vadd.f32 0.0, %v5387
        %v5389 = vpop.f32.mrb[0].mxu0
        %5390 = vdwg.mxu0
        %5391 = vrot.lane.b32.xlu0 %v4676, 80
        %v5392 = vpop.permute.xlu0 %5391
        %5393 = vrot.lane.b32.xlu0 %v4678, 80
        %v5394 = vpop.permute.xlu0 %5393
        %5395 = vrot.lane.b32.xlu0 %v4680, 80
        %v5396 = vpop.permute.xlu0 %5395
        %5397 = vrot.lane.b32.xlu0 %v4676, 16
        %v5398 = vpop.permute.xlu0 %5397
        %5399 = vrot.lane.b32.xlu0 %v4678, 16
        %v5400 = vpop.permute.xlu0 %5399
        %5401 = vrot.lane.b32.xlu0 %v4680, 16
        %v5402 = vpop.permute.xlu0 %5401
        %v5404 = vsel %vm505, %v5392, 0
        %v5407 = vsel %vm505, %v5394, 0
        %v5410 = vsel %vm505, %v5396, 0
        %v5413 = vsel %vm505, %v5398, 0
        %v5416 = vsel %vm505, %v5400, 0
        %v5419 = vsel %vm505, %v5402, 0
        %5421 = vmatprep.subr.bf16.mxu0 0
        %5422 = vmatpush1.bf16.xpose.msra.mxu0 %v5413
        %5423 = vmatprep.subr.bf16.mxu0 0
        %5424 = vmatpush1.bf16.xpose.msra.mxu0 %v5416
        %5425 = vmatprep.subr.bf16.mxu0 0
        %5426 = vmatpush1.bf16.xpose.msra.mxu0 %v5419
        %5427 = vmatprep.subr.bf16.mxu0 0
        %5428 = vmatpush1.bf16.xpose.msra.mxu0 0
        %5429 = vmatprep.subr.bf16.mxu0 0
        %5430 = vmatpush1.bf16.xpose.msra.mxu0 0
        %5431 = vmatprep.subr.bf16.mxu0 0
        %5432 = vmatpush1.bf16.xpose.msra.mxu0 0
        %5433 = vmatprep.subr.bf16.mxu0 0
        %5434 = vmatpush1.bf16.xpose.msra.mxu0 0
        %5435 = vmatprep.subr.bf16.mxu0 0
        %5436 = vmatpush1.bf16.xpose.msra.mxu0 0
        %5437 = vmatprep.subr.bf16.mxu0 0
        %5438 = vmatpush1.bf16.xpose.msra.mxu0 0
        %5439 = vmatprep.subr.bf16.mxu0 0
        %5440 = vmatpush1.bf16.xpose.msra.mxu0 0
        %5441 = vmatprep.subr.bf16.mxu0 0
        %5442 = vmatpush1.bf16.xpose.msra.mxu0 0
        %5443 = vmatprep.subr.bf16.mxu0 0
        %5444 = vmatpush1.bf16.xpose.msra.mxu0 0
        %5445 = vmatprep.subr.bf16.mxu0 0
        %5446 = vmatpush1.bf16.xpose.msra.mxu0 0
        %5447 = vmatprep.subr.bf16.mxu0 0
        %5448 = vmatpush1.bf16.xpose.msra.mxu0 0
        %5449 = vmatprep.subr.bf16.mxu0 0
        %5450 = vmatpush1.bf16.xpose.msra.mxu0 0
        %5451 = vmatprep.subr.bf16.mxu0 0
        %5452 = vmatpush1.bf16.xpose.msra.mxu0 0
        %5453 = vmatprep.mubr.bf16.mxu0 0
        %5454 = vmatmul.mubr.bf16.gmra.mrb[0].mxu0 %v5404
        %v5455 = vpop.f32.mrb[0].mxu0
        %v5456 = vadd.f32 0.0, %v5455
        %v5457 = vpop.f32.mrb[0].mxu0
        %v5458 = vpop.f32.mrb[0].mxu0
        %v5459 = vadd.f32 0.0, %v5458
        %v5460 = vpop.f32.mrb[0].mxu0
        %5461 = vmatprep.mubr.bf16.mxu0 0
        %5462 = vmatmul.mubr.bf16.gmra.mrb[0].mxu0 %v5407
        %v5463 = vpop.f32.mrb[0].mxu0
        %v5464 = vadd.f32 0.0, %v5463
        %v5465 = vpop.f32.mrb[0].mxu0
        %v5466 = vpop.f32.mrb[0].mxu0
        %v5467 = vadd.f32 0.0, %v5466
        %v5468 = vpop.f32.mrb[0].mxu0
        %5469 = vmatprep.mubr.bf16.mxu0 0
        %5470 = vmatmul.mubr.bf16.gmra.mrb[0].mxu0 %v5410
        %v5471 = vpop.f32.mrb[0].mxu0
        %v5472 = vadd.f32 0.0, %v5471
        %v5473 = vpop.f32.mrb[0].mxu0
        %v5474 = vpop.f32.mrb[0].mxu0
        %v5475 = vadd.f32 0.0, %v5474
        %v5476 = vpop.f32.mrb[0].mxu0
        %5477 = vdwg.mxu0
        %v5478 = vmul.f32 %v5456, 0.25
        %v5479 = vmul.f32 %v5459, 0.25
        %v5480 = vmul.f32 %v5464, 0.25
        %v5481 = vmul.f32 %v5467, 0.25
        %v5482 = vmul.f32 %v5472, 0.25
        %v5483 = vmul.f32 %v5475, 0.25
        %v5484 = vsel %vm1870, %v5478, -inf
        %5485 = vmax.xlane.f32.xlu0 %v5484
        %v5486 = vpop.xlane.xlu0 %5485
        %v5487 = vsel %vm1870, %v5479, -inf
        %5488 = vmax.xlane.f32.xlu0 %v5487
        %v5489 = vpop.xlane.xlu0 %5488
        %v5490 = vsel %vm1870, %v5480, -inf
        %5491 = vmax.xlane.f32.xlu0 %v5490
        %v5492 = vpop.xlane.xlu0 %5491
        %v5493 = vsel %vm1870, %v5481, -inf
        %5494 = vmax.xlane.f32.xlu0 %v5493
        %v5495 = vpop.xlane.xlu0 %5494
        %v5496 = vsel %vm1870, %v5482, -inf
        %5497 = vmax.xlane.f32.xlu0 %v5496
        %v5498 = vpop.xlane.xlu0 %5497
        %v5499 = vsel %vm1886, %v5483, -inf
        %5500 = vmax.xlane.f32.xlu0 %v5499
        %v5501 = vpop.xlane.xlu0 %5500
        %v5502 = vsub.f32 %v5478, %v5486
        %v5503 = vsub.f32 %v5479, %v5489
        %v5504 = vsub.f32 %v5480, %v5492
        %v5505 = vsub.f32 %v5481, %v5495
        %v5506 = vsub.f32 %v5482, %v5498
        %v5507 = vsub.f32 %v5483, %v5501
        %v5508 = vmul.f32 %v5502, 1.442695
        %v5509 = vpow.pop %v5508
        %v5510 = vmul.f32 %v5503, 1.442695
        %v5511 = vpow.pop %v5510
        %v5512 = vmul.f32 %v5504, 1.442695
        %v5513 = vpow.pop %v5512
        %v5514 = vmul.f32 %v5505, 1.442695
        %v5515 = vpow.pop %v5514
        %v5516 = vmul.f32 %v5506, 1.442695
        %v5517 = vpow.pop %v5516
        %v5518 = vmul.f32 %v5507, 1.442695
        %v5519 = vpow.pop %v5518
        %v5520 = vsel %vm1870, %v5509, 0.0
        %5521 = vadd.xlane.f32.xlu0 %v5520
        %v5522 = vpop.xlane.xlu0 %5521
        %v5523 = vsel %vm1870, %v5511, 0.0
        %5524 = vadd.xlane.f32.xlu0 %v5523
        %v5525 = vpop.xlane.xlu0 %5524
        %v5526 = vsel %vm1870, %v5513, 0.0
        %5527 = vadd.xlane.f32.xlu0 %v5526
        %v5528 = vpop.xlane.xlu0 %5527
        %v5529 = vsel %vm1870, %v5515, 0.0
        %5530 = vadd.xlane.f32.xlu0 %v5529
        %v5531 = vpop.xlane.xlu0 %5530
        %v5532 = vsel %vm1870, %v5517, 0.0
        %5533 = vadd.xlane.f32.xlu0 %v5532
        %v5534 = vpop.xlane.xlu0 %5533
        %v5535 = vsel %vm1886, %v5519, 0.0
        %5536 = vadd.xlane.f32.xlu0 %v5535
        %v5537 = vpop.xlane.xlu0 %5536
        %v5538 = vrcp.pop %v5522
        %v5539 = vrcp.pop %v5525
        %v5540 = vrcp.pop %v5528
        %v5541 = vrcp.pop %v5531
        %v5542 = vrcp.pop %v5534
        %v5543 = vrcp.pop %v5537
        %v5544 = vmul.f32 %v5509, %v5538
        %v5545 = vmul.f32 %v5511, %v5539
        %v5546 = vmul.f32 %v5513, %v5540
        %v5547 = vmul.f32 %v5515, %v5541
        %v5548 = vmul.f32 %v5517, %v5542
        %v5549 = vmul.f32 %v5519, %v5543
        %v5550 = vpack.c.bf16 %v5545, %v5544
        %v5551 = vpack.c.bf16 %v5547, %v5546
        %v5552 = vpack.c.bf16 %v5549, %v5548
        %5553 = vrot.lane.b32.xlu0 %v4677, 80
        %v5554 = vpop.permute.xlu0 %5553
        %5555 = vrot.lane.b32.xlu0 %v4679, 80
        %v5556 = vpop.permute.xlu0 %5555
        %5557 = vrot.lane.b32.xlu0 %v4681, 80
        %v5558 = vpop.permute.xlu0 %5557
        %v5562 = vsel %vm1870, %v5550, 0
        %v5565 = vsel %vm1870, %v5551, 0
        %v5568 = vsel %vm1870, %v5552, 0
        %v5571 = vand.u32 %v5558, %v1953
        %5573 = vmatprep.subr.bf16.mxu0 0
        %5574 = vmatpush1.bf16.msra.mxu0 %v5554
        %5575 = vmatprep.subr.bf16.mxu0 0
        %5576 = vmatpush1.bf16.msra.mxu0 %v5556
        %5577 = vmatprep.subr.bf16.mxu0 0
        %5578 = vmatpush1.bf16.msra.mxu0 %v5571
        %5579 = vmatprep.subr.bf16.mxu0 0
        %5580 = vmatpush1.bf16.msra.mxu0 0
        %5581 = vmatprep.subr.bf16.mxu0 0
        %5582 = vmatpush1.bf16.msra.mxu0 0
        %5583 = vmatprep.subr.bf16.mxu0 0
        %5584 = vmatpush1.bf16.msra.mxu0 0
        %5585 = vmatprep.subr.bf16.mxu0 0
        %5586 = vmatpush1.bf16.msra.mxu0 0
        %5587 = vmatprep.subr.bf16.mxu0 0
        %5588 = vmatpush1.bf16.msra.mxu0 0
        %5589 = vmatprep.subr.bf16.mxu0 0
        %5590 = vmatpush1.bf16.msra.mxu0 0
        %5591 = vmatprep.subr.bf16.mxu0 0
        %5592 = vmatpush1.bf16.msra.mxu0 0
        %5593 = vmatprep.subr.bf16.mxu0 0
        %5594 = vmatpush1.bf16.msra.mxu0 0
        %5595 = vmatprep.subr.bf16.mxu0 0
        %5596 = vmatpush1.bf16.msra.mxu0 0
        %5597 = vmatprep.subr.bf16.mxu0 0
        %5598 = vmatpush1.bf16.msra.mxu0 0
        %5599 = vmatprep.subr.bf16.mxu0 0
        %5600 = vmatpush1.bf16.msra.mxu0 0
        %5601 = vmatprep.subr.bf16.mxu0 0
        %5602 = vmatpush1.bf16.msra.mxu0 0
        %5603 = vmatprep.subr.bf16.mxu0 0
        %5604 = vmatpush1.bf16.msra.mxu0 0
        %5605 = vmatprep.mubr.bf16.mxu0 0
        %5606 = vmatmul.mubr.bf16.gmra.mrb[0].mxu0 %v5562
        %v5607 = vpop.f32.mrb[0].mxu0
        %v5608 = vadd.f32 0.0, %v5607
        %v5609 = vpop.f32.mrb[0].mxu0
        %v5610 = vpop.f32.mrb[0].mxu0
        %v5611 = vadd.f32 0.0, %v5610
        %v5612 = vpop.f32.mrb[0].mxu0
        %5613 = vmatprep.mubr.bf16.mxu0 0
        %5614 = vmatmul.mubr.bf16.gmra.mrb[0].mxu0 %v5565
        %v5615 = vpop.f32.mrb[0].mxu0
        %v5616 = vadd.f32 0.0, %v5615
        %v5617 = vpop.f32.mrb[0].mxu0
        %v5618 = vpop.f32.mrb[0].mxu0
        %v5619 = vadd.f32 0.0, %v5618
        %v5620 = vpop.f32.mrb[0].mxu0
        %5621 = vmatprep.mubr.bf16.mxu0 0
        %5622 = vmatmul.mubr.bf16.gmra.mrb[0].mxu0 %v5568
        %v5623 = vpop.f32.mrb[0].mxu0
        %v5624 = vadd.f32 0.0, %v5623
        %v5625 = vpop.f32.mrb[0].mxu0
        %v5626 = vpop.f32.mrb[0].mxu0
        %v5627 = vadd.f32 0.0, %v5626
        %v5628 = vpop.f32.mrb[0].mxu0
        %5629 = vdwg.mxu0
        %5636 = vrot.lane.b32.xlu0 %v5130, 16
        %v5637 = vpop.permute.xlu0 %5636
        %5638 = vrot.lane.b32.xlu0 %v5133, 16
        %v5639 = vpop.permute.xlu0 %5638
        %5640 = vrot.lane.b32.xlu0 %v5138, 16
        %v5641 = vpop.permute.xlu0 %5640
        %5642 = vrot.lane.b32.xlu0 %v5141, 16
        %v5643 = vpop.permute.xlu0 %5642
        %5644 = vrot.lane.b32.xlu0 %v5146, 16
        %v5645 = vpop.permute.xlu0 %5644
        %5646 = vrot.lane.b32.xlu0 %v5149, 16
        %v5647 = vpop.permute.xlu0 %5646
        %5660 = vrot.lane.b32.xlu0 %v5369, 32
        %v5661 = vpop.permute.xlu0 %5660
        %5662 = vrot.lane.b32.xlu0 %v5372, 32
        %v5663 = vpop.permute.xlu0 %5662
        %5664 = vrot.lane.b32.xlu0 %v5377, 32
        %v5665 = vpop.permute.xlu0 %5664
        %5666 = vrot.lane.b32.xlu0 %v5380, 32
        %v5667 = vpop.permute.xlu0 %5666
        %5668 = vrot.lane.b32.xlu0 %v5385, 32
        %v5669 = vpop.permute.xlu0 %5668
        %5670 = vrot.lane.b32.xlu0 %v5388, 32
        %v5671 = vpop.permute.xlu0 %5670
        %5684 = vrot.lane.b32.xlu0 %v5608, 48
        %v5685 = vpop.permute.xlu0 %5684
        %5686 = vrot.lane.b32.xlu0 %v5611, 48
        %v5687 = vpop.permute.xlu0 %5686
        %5688 = vrot.lane.b32.xlu0 %v5616, 48
        %v5689 = vpop.permute.xlu0 %5688
        %5690 = vrot.lane.b32.xlu0 %v5619, 48
        %v5691 = vpop.permute.xlu0 %5690
        %5692 = vrot.lane.b32.xlu0 %v5624, 48
        %v5693 = vpop.permute.xlu0 %5692
        %5694 = vrot.lane.b32.xlu0 %v5627, 48
        %v5695 = vpop.permute.xlu0 %5694
        %v5702 = vsel %vm505, %v4888, %v5637
        %v5703 = vsel %vm505, %v4891, %v5639
        %v5704 = vsel %vm505, %v4896, %v5641
        %v5705 = vsel %vm505, %v4899, %v5643
        %v5706 = vsel %vm505, %v4904, %v5645
        %v5707 = vsel %vm505, %v4907, %v5647
        %v5708 = vsel %vm580, %v5702, %v5661
        %v5709 = vsel %vm580, %v5703, %v5663
        %v5710 = vsel %vm580, %v5704, %v5665
        %v5711 = vsel %vm580, %v5705, %v5667
        %v5712 = vsel %vm580, %v5706, %v5669
        %v5713 = vsel %vm580, %v5707, %v5671
        %v5714 = vsel %vm2818, %v5708, %v5685
        %v5715 = vsel %vm2818, %v5709, %v5687
        %v5716 = vsel %vm2818, %v5710, %v5689
        %v5717 = vsel %vm2818, %v5711, %v5691
        %v5718 = vsel %vm2818, %v5712, %v5693
        %v5719 = vsel %vm2818, %v5713, %v5695
        %v5720 = vsel %vm1470, %v5714, 0.0
        %v5721 = vsel %vm1471, %v5715, 0.0
        %v5722 = vsel %vm1472, %v5716, 0.0
        %v5723 = vsel %vm1473, %v5717, 0.0
        %v5724 = vsel %vm1474, %v5718, 0.0
        %v5725 = vsel %vm1475, %v5719, 0.0
        %v5726 = vsel %vm1470, 0.0, %v5714
        %v5727 = vsel %vm1471, 0.0, %v5715
        %v5728 = vsel %vm1472, 0.0, %v5716
        %v5729 = vsel %vm1473, 0.0, %v5717
        %v5730 = vsel %vm1474, 0.0, %v5718
        %v5731 = vsel %vm1475, 0.0, %v5719
        %5738 = vrot.lane.b32.xlu0 %v5726, 64
        %v5739 = vpop.permute.xlu0 %5738
        %5740 = vrot.lane.b32.xlu0 %v5727, 64
        %v5741 = vpop.permute.xlu0 %5740
        %5742 = vrot.lane.b32.xlu0 %v5728, 64
        %v5743 = vpop.permute.xlu0 %5742
        %5744 = vrot.lane.b32.xlu0 %v5729, 64
        %v5745 = vpop.permute.xlu0 %5744
        %5746 = vrot.lane.b32.xlu0 %v5730, 64
        %v5747 = vpop.permute.xlu0 %5746
        %5748 = vrot.lane.b32.xlu0 %v5731, 64
        %v5749 = vpop.permute.xlu0 %5748
        %v5756 = vsel %vm880, %v5720, %v5739
        %v5757 = vsel %vm880, %v5721, %v5741
        %v5758 = vsel %vm880, %v5722, %v5743
        %v5759 = vsel %vm880, %v5723, %v5745
        %v5760 = vsel %vm880, %v5724, %v5747
        %v5761 = vsel %vm880, %v5725, %v5749
        %v5762 = vld [vmem:[%s3999 + $0x28] sm:$0xf]
        %v5763 = vld [vmem:[%s3999 + $0x54] sm:$0xf]
        %v5764 = vld [vmem:[%s3999 + $0x80] sm:$0xf]
        %v5765 = vld [vmem:[%s3999 + $0xac] sm:$0xf]
        %v5766 = vld [vmem:[%s3999 + $0xd8] sm:$0xf]
        %v5767 = vld [vmem:[%s3999 + $0x104] sm:$0xf]
        %v5768 = vld [vmem:[%s3999 + $0x130] sm:$0xf]
        %v5769 = vld [vmem:[%s3999 + $0x15c] sm:$0xf]
        %v5770 = vld [vmem:[%s3999 + $0x188] sm:$0xf]
        %v5771 = vld [vmem:[%s3999 + $0x1b4] sm:$0xf]
        %v5772 = vld [vmem:[%s3999 + $0x1e0] sm:$0xf]
        %v5773 = vld [vmem:[%s3999 + $0x20c] sm:$0xf]
        %v5774 = vld [vmem:[%s3999 + $0x238] sm:$0xf]
        %v5775 = vld [vmem:[%s3999 + $0x264] sm:$0xf]
        %v5776 = vld [vmem:[%s3999 + $0x290] sm:$0xf]
        %v5777 = vld [vmem:[%s3999 + $0x2bc] sm:$0xf]
        %v5778 = vpack.c.bf16 %v5757, %v5756
        %v5779 = vpack.c.bf16 %v5759, %v5758
        %v5780 = vpack.c.bf16 %v5761, %v5760
        %v5781 = vld [vmem:[%s4024 + $0x14] sm:$0x1]
        %v5782 = vld [vmem:[%s4024 + $0x15] sm:$0x1]
        %v5783 = vlaneseq
        %v5784 = vshrl.u32 %v5783, 7
        %v5785 = vsub.s32 0, %v5784
        %v5786 = vrot.slane %v5781, %v5785
        %v5787 = vlaneseq
        %v5788 = vshrl.u32 %v5787, 7
        %v5789 = vsub.s32 0, %v5788
        %v5790 = vrot.slane %v5782, %v5789
        %v5791 = vsel %vm1470, %v5786, %v5790
        %v5792 = vsel %vm1471, %v5786, %v5790
        %v5793 = vsel %vm1472, %v5786, %v5790
        %v5794 = vsel %vm1473, %v5786, %v5790
        %v5795 = vsel %vm1474, %v5786, %v5790
        %v5796 = vsel %vm1475, %v5786, %v5790
        %v5813 = vunpack.c.l.b16 %v5762
        %v5814 = vunpack.c.l.b16 %v5763
        %v5815 = vunpack.c.l.b16 %v5764
        %v5816 = vunpack.c.l.b16 %v5765
        %v5817 = vunpack.c.l.b16 %v5766
        %v5818 = vunpack.c.l.b16 %v5767
        %v5819 = vunpack.c.l.b16 %v5768
        %v5820 = vunpack.c.l.b16 %v5769
        %v5821 = vunpack.c.l.b16 %v5770
        %v5822 = vunpack.c.l.b16 %v5771
        %v5823 = vunpack.c.l.b16 %v5772
        %v5824 = vunpack.c.l.b16 %v5773
        %v5825 = vunpack.c.l.b16 %v5774
        %v5826 = vunpack.c.l.b16 %v5775
        %v5827 = vunpack.c.l.b16 %v5776
        %v5828 = vunpack.c.l.b16 %v5777
        %v5829 = vpack.c.b16 %v5814, %v5813
        %v5830 = vpack.c.b16 %v5816, %v5815
        %v5831 = vpack.c.b16 %v5818, %v5817
        %v5832 = vpack.c.b16 %v5820, %v5819
        %v5833 = vpack.c.b16 %v5822, %v5821
        %v5834 = vpack.c.b16 %v5824, %v5823
        %v5835 = vpack.c.b16 %v5826, %v5825
        %v5836 = vpack.c.b16 %v5828, %v5827
        %5845 = vmatprep.subr.bf16.mxu0 0
        %5846 = vmatpush1.bf16.msra.mxu0 %v5829
        %5847 = vmatprep.subr.bf16.mxu0 0
        %5848 = vmatpush1.bf16.msra.mxu0 %v5830
        %5849 = vmatprep.subr.bf16.mxu0 0
        %5850 = vmatpush1.bf16.msra.mxu0 %v5831
        %5851 = vmatprep.subr.bf16.mxu0 0
        %5852 = vmatpush1.bf16.msra.mxu0 %v5832
        %5853 = vmatprep.subr.bf16.mxu0 0
        %5854 = vmatpush1.bf16.msra.mxu0 %v5833
        %5855 = vmatprep.subr.bf16.mxu0 0
        %5856 = vmatpush1.bf16.msra.mxu0 %v5834
        %5857 = vmatprep.subr.bf16.mxu0 0
        %5858 = vmatpush1.bf16.msra.mxu0 %v5835
        %5859 = vmatprep.subr.bf16.mxu0 0
        %5860 = vmatpush1.bf16.msra.mxu0 %v5836
        %5861 = vmatprep.subr.bf16.mxu0 0
        %5862 = vmatpush1.bf16.msra.mxu0 0
        %5863 = vmatprep.subr.bf16.mxu0 0
        %5864 = vmatpush1.bf16.msra.mxu0 0
        %5865 = vmatprep.subr.bf16.mxu0 0
        %5866 = vmatpush1.bf16.msra.mxu0 0
        %5867 = vmatprep.subr.bf16.mxu0 0
        %5868 = vmatpush1.bf16.msra.mxu0 0
        %5869 = vmatprep.subr.bf16.mxu0 0
        %5870 = vmatpush1.bf16.msra.mxu0 0
        %5871 = vmatprep.subr.bf16.mxu0 0
        %5872 = vmatpush1.bf16.msra.mxu0 0
        %5873 = vmatprep.subr.bf16.mxu0 0
        %5874 = vmatpush1.bf16.msra.mxu0 0
        %5875 = vmatprep.subr.bf16.mxu0 0
        %5876 = vmatpush1.bf16.msra.mxu0 0
        %5877 = vmatprep.mubr.bf16.mxu0 0
        %5878 = vmatmul.mubr.bf16.gmra.mrb[0].mxu0 %v5778
        %v5879 = vpop.f32.mrb[0].mxu0
        %v5880 = vadd.f32 %v5791, %v5879
        %v5881 = vpop.f32.mrb[0].mxu0
        %v5882 = vpop.f32.mrb[0].mxu0
        %v5883 = vadd.f32 %v5792, %v5882
        %v5884 = vpop.f32.mrb[0].mxu0
        %5885 = vmatprep.mubr.bf16.mxu0 0
        %5886 = vmatmul.mubr.bf16.gmra.mrb[0].mxu0 %v5779
        %v5887 = vpop.f32.mrb[0].mxu0
        %v5888 = vadd.f32 %v5793, %v5887
        %v5889 = vpop.f32.mrb[0].mxu0
        %v5890 = vpop.f32.mrb[0].mxu0
        %v5891 = vadd.f32 %v5794, %v5890
        %v5892 = vpop.f32.mrb[0].mxu0
        %5893 = vmatprep.mubr.bf16.mxu0 0
        %5894 = vmatmul.mubr.bf16.gmra.mrb[0].mxu0 %v5780
        %v5895 = vpop.f32.mrb[0].mxu0
        %v5896 = vadd.f32 %v5795, %v5895
        %v5897 = vpop.f32.mrb[0].mxu0
        %v5898 = vpop.f32.mrb[0].mxu0
        %v5899 = vadd.f32 %v5796, %v5898
        %v5900 = vpop.f32.mrb[0].mxu0
        %5901 = vdwg.mxu0
        %v5902 = vlaneseq
        %v5903 = vshrl.u32 %v5902, 7
        %v5904 = vsub.s32 0, %v5903
        %v5905 = vrot.slane %v4214, %v5904
        %v5906 = vlaneseq
        %v5907 = vshrl.u32 %v5906, 7
        %v5908 = vsub.s32 0, %v5907
        %v5909 = vrot.slane %v4294, %v5908
        %v5910 = vsel %vm1470, %v5905, %v5909
        %v5911 = vsel %vm1471, %v5905, %v5909
        %v5912 = vsel %vm1472, %v5905, %v5909
        %v5913 = vsel %vm1473, %v5905, %v5909
        %v5914 = vsel %vm1474, %v5905, %v5909
        %v5915 = vsel %vm1475, %v5905, %v5909
        %v5916 = vmul.f32 %v5910, %v5880
        %v5917 = vmul.f32 %v5911, %v5883
        %v5918 = vmul.f32 %v5912, %v5888
        %v5919 = vmul.f32 %v5913, %v5891
        %v5920 = vmul.f32 %v5914, %v5896
        %v5921 = vmul.f32 %v5915, %v5899
        %v5922 = vadd.f32 %v3993, %v5916
        %v5923 = vadd.f32 %v3994, %v5917
        %v5924 = vadd.f32 %v3995, %v5918
        %v5925 = vadd.f32 %v3996, %v5919
        %v5926 = vadd.f32 %v3997, %v5920
        %v5927 = vadd.f32 %v3998, %v5921
        %v5928 = vsel %vm880, %v5922, 0.0
        %5929 = vadd.xlane.f32.xlu0 %v5928
        %v5930 = vpop.xlane.xlu0 %5929
        %v5931 = vsel %vm880, %v5923, 0.0
        %5932 = vadd.xlane.f32.xlu0 %v5931
        %v5933 = vpop.xlane.xlu0 %5932
        %v5934 = vsel %vm880, %v5924, 0.0
        %5935 = vadd.xlane.f32.xlu0 %v5934
        %v5936 = vpop.xlane.xlu0 %5935
        %v5937 = vsel %vm880, %v5925, 0.0
        %5938 = vadd.xlane.f32.xlu0 %v5937
        %v5939 = vpop.xlane.xlu0 %5938
        %v5940 = vsel %vm880, %v5926, 0.0
        %5941 = vadd.xlane.f32.xlu0 %v5940
        %v5942 = vpop.xlane.xlu0 %5941
        %v5943 = vsel %vm1399, %v5927, 0.0
        %5944 = vadd.xlane.f32.xlu0 %v5943
        %v5945 = vpop.xlane.xlu0 %5944
        %v5946 = vmul.f32 %v5930, %v1403
        %v5947 = vmul.f32 %v5933, %v1403
        %v5948 = vmul.f32 %v5936, %v1403
        %v5949 = vmul.f32 %v5939, %v1403
        %v5950 = vmul.f32 %v5942, %v1403
        %v5951 = vmul.f32 %v5945, %v1403
        %v5952 = vsub.f32 %v5922, %v5946
        %v5953 = vsub.f32 %v5923, %v5947
        %v5954 = vsub.f32 %v5924, %v5948
        %v5955 = vsub.f32 %v5925, %v5949
        %v5956 = vsub.f32 %v5926, %v5950
        %v5957 = vsub.f32 %v5927, %v5951
        %v5958 = vmul.f32 %v5952, %v5952
        %v5959 = vmul.f32 %v5953, %v5953
        %v5960 = vmul.f32 %v5954, %v5954
        %v5961 = vmul.f32 %v5955, %v5955
        %v5962 = vmul.f32 %v5956, %v5956
        %v5963 = vmul.f32 %v5957, %v5957
        %v5964 = vsel %vm880, %v5958, 0.0
        %5965 = vadd.xlane.f32.xlu0 %v5964
        %v5966 = vpop.xlane.xlu0 %5965
        %v5967 = vsel %vm880, %v5959, 0.0
        %5968 = vadd.xlane.f32.xlu0 %v5967
        %v5969 = vpop.xlane.xlu0 %5968
        %v5970 = vsel %vm880, %v5960, 0.0
        %5971 = vadd.xlane.f32.xlu0 %v5970
        %v5972 = vpop.xlane.xlu0 %5971
        %v5973 = vsel %vm880, %v5961, 0.0
        %5974 = vadd.xlane.f32.xlu0 %v5973
        %v5975 = vpop.xlane.xlu0 %5974
        %v5976 = vsel %vm880, %v5962, 0.0
        %5977 = vadd.xlane.f32.xlu0 %v5976
        %v5978 = vpop.xlane.xlu0 %5977
        %v5979 = vsel %vm1399, %v5963, 0.0
        %5980 = vadd.xlane.f32.xlu0 %v5979
        %v5981 = vpop.xlane.xlu0 %5980
        %v5982 = vmul.f32 %v5966, %v1403
        %v5983 = vmul.f32 %v5969, %v1403
        %v5984 = vmul.f32 %v5972, %v1403
        %v5985 = vmul.f32 %v5975, %v1403
        %v5986 = vmul.f32 %v5978, %v1403
        %v5987 = vmul.f32 %v5981, %v1403
        %v5988 = vadd.f32 %v5982, 1e-06
        %v5989 = vadd.f32 %v5983, 1e-06
        %v5990 = vadd.f32 %v5984, 1e-06
        %v5991 = vadd.f32 %v5985, 1e-06
        %v5992 = vadd.f32 %v5986, 1e-06
        %v5993 = vadd.f32 %v5987, 1e-06
        %v5994 = vrsqrt.pop %v5988
        %v5995 = vrsqrt.pop %v5989
        %v5996 = vrsqrt.pop %v5990
        %v5997 = vrsqrt.pop %v5991
        %v5998 = vrsqrt.pop %v5992
        %v5999 = vrsqrt.pop %v5993
        %v6000 = vmul.f32 %v5952, %v5994
        %v6001 = vmul.f32 %v5953, %v5995
        %v6002 = vmul.f32 %v5954, %v5996
        %v6003 = vmul.f32 %v5955, %v5997
        %v6004 = vmul.f32 %v5956, %v5998
        %v6005 = vmul.f32 %v5957, %v5999
        %v6006 = vlaneseq
        %v6007 = vshrl.u32 %v6006, 7
        %v6008 = vsub.s32 0, %v6007
        %v6009 = vrot.slane %v4253, %v6008
        %v6010 = vlaneseq
        %v6011 = vshrl.u32 %v6010, 7
        %v6012 = vsub.s32 0, %v6011
        %v6013 = vrot.slane %v4296, %v6012
        %v6014 = vsel %vm1470, %v6009, %v6013
        %v6015 = vsel %vm1471, %v6009, %v6013
        %v6016 = vsel %vm1472, %v6009, %v6013
        %v6017 = vsel %vm1473, %v6009, %v6013
        %v6018 = vsel %vm1474, %v6009, %v6013
        %v6019 = vsel %vm1475, %v6009, %v6013
        %v6020 = vadd.f32 %v6014, 1.0
        %v6021 = vadd.f32 %v6015, 1.0
        %v6022 = vadd.f32 %v6016, 1.0
        %v6023 = vadd.f32 %v6017, 1.0
        %v6024 = vadd.f32 %v6018, 1.0
        %v6025 = vadd.f32 %v6019, 1.0
        %v6026 = vmul.f32 %v6000, %v6020
        %v6027 = vmul.f32 %v6001, %v6021
        %v6028 = vmul.f32 %v6002, %v6022
        %v6029 = vmul.f32 %v6003, %v6023
        %v6030 = vmul.f32 %v6004, %v6024
        %v6031 = vmul.f32 %v6005, %v6025
        %6038 = vrot.lane.b32.xlu0 %v5910, 64
        %v6039 = vpop.permute.xlu0 %6038
        %6040 = vrot.lane.b32.xlu0 %v5911, 64
        %v6041 = vpop.permute.xlu0 %6040
        %6042 = vrot.lane.b32.xlu0 %v5912, 64
        %v6043 = vpop.permute.xlu0 %6042
        %6044 = vrot.lane.b32.xlu0 %v5913, 64
        %v6045 = vpop.permute.xlu0 %6044
        %6046 = vrot.lane.b32.xlu0 %v5914, 64
        %v6047 = vpop.permute.xlu0 %6046
        %6048 = vrot.lane.b32.xlu0 %v5915, 64
        %v6049 = vpop.permute.xlu0 %6048
        %v6056 = vadd.f32 %v6026, %v6039
        %v6057 = vadd.f32 %v6027, %v6041
        %v6058 = vadd.f32 %v6028, %v6043
        %v6059 = vadd.f32 %v6029, %v6045
        %v6060 = vadd.f32 %v6030, %v6047
        %v6061 = vadd.f32 %v6031, %v6049
        %v6062 = vsel %vm1470, %v6056, 0.0
        %v6063 = vsel %vm1471, %v6057, 0.0
        %v6064 = vsel %vm1472, %v6058, 0.0
        %v6065 = vsel %vm1473, %v6059, 0.0
        %v6066 = vsel %vm1474, %v6060, 0.0
        %v6067 = vsel %vm1475, %v6061, 0.0
        %v6068 = vsel %vm1470, 0.0, %v6056
        %v6069 = vsel %vm1471, 0.0, %v6057
        %v6070 = vsel %vm1472, 0.0, %v6058
        %v6071 = vsel %vm1473, 0.0, %v6059
        %v6072 = vsel %vm1474, 0.0, %v6060
        %v6073 = vsel %vm1475, 0.0, %v6061
        %6080 = vrot.lane.b32.xlu0 %v6068, 64
        %v6081 = vpop.permute.xlu0 %6080
        %6082 = vrot.lane.b32.xlu0 %v6069, 64
        %v6083 = vpop.permute.xlu0 %6082
        %6084 = vrot.lane.b32.xlu0 %v6070, 64
        %v6085 = vpop.permute.xlu0 %6084
        %6086 = vrot.lane.b32.xlu0 %v6071, 64
        %v6087 = vpop.permute.xlu0 %6086
        %6088 = vrot.lane.b32.xlu0 %v6072, 64
        %v6089 = vpop.permute.xlu0 %6088
        %6090 = vrot.lane.b32.xlu0 %v6073, 64
        %v6091 = vpop.permute.xlu0 %6090
        %v6098 = vsel %vm880, %v6062, %v6081
        %v6099 = vsel %vm880, %v6063, %v6083
        %v6100 = vsel %vm880, %v6064, %v6085
        %v6101 = vsel %vm880, %v6065, %v6087
        %v6102 = vsel %vm880, %v6066, %v6089
        %v6103 = vsel %vm880, %v6067, %v6091
        %v6104 = vld [vmem:[%s3999 + $0x20] sm:$0xff]
        %v6105 = vld [vmem:[%s3999 + $0x4c] sm:$0xff]
        %v6106 = vld [vmem:[%s3999 + $0x78] sm:$0xff]
        %v6107 = vld [vmem:[%s3999 + $0xa4] sm:$0xff]
        %v6108 = vld [vmem:[%s3999 + $0xd0] sm:$0xff]
        %v6109 = vld [vmem:[%s3999 + $0xfc] sm:$0xff]
        %v6110 = vld [vmem:[%s3999 + $0x128] sm:$0xff]
        %v6111 = vld [vmem:[%s3999 + $0x154] sm:$0xff]
        %v6112 = vld [vmem:[%s3999 + $0x180] sm:$0xff]
        %v6113 = vld [vmem:[%s3999 + $0x1ac] sm:$0xff]
        %v6114 = vld [vmem:[%s3999 + $0x1d8] sm:$0xff]
        %v6115 = vld [vmem:[%s3999 + $0x204] sm:$0xff]
        %v6116 = vld [vmem:[%s3999 + $0x230] sm:$0xff]
        %v6117 = vld [vmem:[%s3999 + $0x25c] sm:$0xff]
        %v6118 = vld [vmem:[%s3999 + $0x288] sm:$0xff]
        %v6119 = vld [vmem:[%s3999 + $0x2b4] sm:$0xff]
        %v6120 = vpack.c.bf16 %v6099, %v6098
        %v6121 = vpack.c.bf16 %v6101, %v6100
        %v6122 = vpack.c.bf16 %v6103, %v6102
        %s6123 = scalar_lea.vmem %s4024, 16
        %v6124 = vld [vmem:[%s6123] ss:$2 sm:$0x3]
        %s6125 = scalar_lea.vmem %s4024, 17
        %v6126 = vld [vmem:[%s6125] ss:$2 sm:$0x3]
        %v6128 = vlaneseq
        %v6129 = vshrl.u32 %v6128, 7
        %v6130 = vsub.s32 0, %v6129
        %v6131 = vrot.slane %v6124, %v6130
        %v6132 = vlaneseq
        %v6133 = vshrl.u32 %v6132, 7
        %v6134 = vsub.s32 1, %v6133
        %v6135 = vrot.slane %v6124, %v6134
        %v6139 = vlaneseq
        %v6140 = vshrl.u32 %v6139, 7
        %v6141 = vsub.s32 0, %v6140
        %v6142 = vrot.slane %v6126, %v6141
        %v6143 = vlaneseq
        %v6144 = vshrl.u32 %v6143, 7
        %v6145 = vsub.s32 1, %v6144
        %v6146 = vrot.slane %v6126, %v6145
        %v6149 = vsel %vm1470, %v6131, %v6142
        %v6150 = vsel %vm1470, %v6135, %v6146
        %v6151 = vsel %vm1471, %v6131, %v6142
        %v6152 = vsel %vm1471, %v6135, %v6146
        %v6153 = vsel %vm1472, %v6131, %v6142
        %v6154 = vsel %vm1472, %v6135, %v6146
        %v6155 = vsel %vm1473, %v6131, %v6142
        %v6156 = vsel %vm1473, %v6135, %v6146
        %v6157 = vsel %vm1474, %v6131, %v6142
        %v6158 = vsel %vm1474, %v6135, %v6146
        %v6159 = vsel %vm1475, %v6131, %v6142
        %v6160 = vsel %vm1475, %v6135, %v6146
        %v6177 = vunpack.c.l.b16 %v6104
        %v6178 = vunpack.c.h.b16 %v6104
        %v6179 = vunpack.c.l.b16 %v6105
        %v6180 = vunpack.c.h.b16 %v6105
        %v6181 = vunpack.c.l.b16 %v6106
        %v6182 = vunpack.c.h.b16 %v6106
        %v6183 = vunpack.c.l.b16 %v6107
        %v6184 = vunpack.c.h.b16 %v6107
        %v6185 = vunpack.c.l.b16 %v6108
        %v6186 = vunpack.c.h.b16 %v6108
        %v6187 = vunpack.c.l.b16 %v6109
        %v6188 = vunpack.c.h.b16 %v6109
        %v6189 = vunpack.c.l.b16 %v6110
        %v6190 = vunpack.c.h.b16 %v6110
        %v6191 = vunpack.c.l.b16 %v6111
        %v6192 = vunpack.c.h.b16 %v6111
        %v6193 = vunpack.c.l.b16 %v6112
        %v6194 = vunpack.c.h.b16 %v6112
        %v6195 = vunpack.c.l.b16 %v6113
        %v6196 = vunpack.c.h.b16 %v6113
        %v6197 = vunpack.c.l.b16 %v6114
        %v6198 = vunpack.c.h.b16 %v6114
        %v6199 = vunpack.c.l.b16 %v6115
        %v6200 = vunpack.c.h.b16 %v6115
        %v6201 = vunpack.c.l.b16 %v6116
        %v6202 = vunpack.c.h.b16 %v6116
        %v6203 = vunpack.c.l.b16 %v6117
        %v6204 = vunpack.c.h.b16 %v6117
        %v6205 = vunpack.c.l.b16 %v6118
        %v6206 = vunpack.c.h.b16 %v6118
        %v6207 = vunpack.c.l.b16 %v6119
        %v6208 = vunpack.c.h.b16 %v6119
        %v6209 = vpack.c.b16 %v6179, %v6177
        %v6210 = vpack.c.b16 %v6180, %v6178
        %v6211 = vpack.c.b16 %v6183, %v6181
        %v6212 = vpack.c.b16 %v6184, %v6182
        %v6213 = vpack.c.b16 %v6187, %v6185
        %v6214 = vpack.c.b16 %v6188, %v6186
        %v6215 = vpack.c.b16 %v6191, %v6189
        %v6216 = vpack.c.b16 %v6192, %v6190
        %v6217 = vpack.c.b16 %v6195, %v6193
        %v6218 = vpack.c.b16 %v6196, %v6194
        %v6219 = vpack.c.b16 %v6199, %v6197
        %v6220 = vpack.c.b16 %v6200, %v6198
        %v6221 = vpack.c.b16 %v6203, %v6201
        %v6222 = vpack.c.b16 %v6204, %v6202
        %v6223 = vpack.c.b16 %v6207, %v6205
        %v6224 = vpack.c.b16 %v6208, %v6206
        %6241 = vmatprep.subr.bf16.mxu0 %v6210
        %6242 = vmatpush1.bf16.msra.mxu0 %v6209
        %6243 = vmatprep.subr.bf16.mxu0 %v6212
        %6244 = vmatpush1.bf16.msra.mxu0 %v6211
        %6245 = vmatprep.subr.bf16.mxu0 %v6214
        %6246 = vmatpush1.bf16.msra.mxu0 %v6213
        %6247 = vmatprep.subr.bf16.mxu0 %v6216
        %6248 = vmatpush1.bf16.msra.mxu0 %v6215
        %6249 = vmatprep.subr.bf16.mxu0 %v6218
        %6250 = vmatpush1.bf16.msra.mxu0 %v6217
        %6251 = vmatprep.subr.bf16.mxu0 %v6220
        %6252 = vmatpush1.bf16.msra.mxu0 %v6219
        %6253 = vmatprep.subr.bf16.mxu0 %v6222
        %6254 = vmatpush1.bf16.msra.mxu0 %v6221
        %6255 = vmatprep.subr.bf16.mxu0 %v6224
        %6256 = vmatpush1.bf16.msra.mxu0 %v6223
        %6257 = vmatprep.subr.bf16.mxu0 0
        %6258 = vmatpush1.bf16.msra.mxu0 0
        %6259 = vmatprep.subr.bf16.mxu0 0
        %6260 = vmatpush1.bf16.msra.mxu0 0
        %6261 = vmatprep.subr.bf16.mxu0 0
        %6262 = vmatpush1.bf16.msra.mxu0 0
        %6263 = vmatprep.subr.bf16.mxu0 0
        %6264 = vmatpush1.bf16.msra.mxu0 0
        %6265 = vmatprep.subr.bf16.mxu0 0
        %6266 = vmatpush1.bf16.msra.mxu0 0
        %6267 = vmatprep.subr.bf16.mxu0 0
        %6268 = vmatpush1.bf16.msra.mxu0 0
        %6269 = vmatprep.subr.bf16.mxu0 0
        %6270 = vmatpush1.bf16.msra.mxu0 0
        %6271 = vmatprep.subr.bf16.mxu0 0
        %6272 = vmatpush1.bf16.msra.mxu0 0
        %6273 = vmatprep.mubr.bf16.mxu0 0
        %6274 = vmatmul.mubr.bf16.gmra.mrb[0].mxu0 %v6120
        %v6275 = vpop.f32.mrb[0].mxu0
        %v6276 = vadd.f32 %v6149, %v6275
        %v6277 = vpop.f32.mrb[0].mxu0
        %v6278 = vadd.f32 %v6150, %v6277
        %v6279 = vpop.f32.mrb[0].mxu0
        %v6280 = vadd.f32 %v6151, %v6279
        %v6281 = vpop.f32.mrb[0].mxu0
        %v6282 = vadd.f32 %v6152, %v6281
        %6283 = vmatprep.mubr.bf16.mxu0 0
        %6284 = vmatmul.mubr.bf16.gmra.mrb[0].mxu0 %v6121
        %v6285 = vpop.f32.mrb[0].mxu0
        %v6286 = vadd.f32 %v6153, %v6285
        %v6287 = vpop.f32.mrb[0].mxu0
        %v6288 = vadd.f32 %v6154, %v6287
        %v6289 = vpop.f32.mrb[0].mxu0
        %v6290 = vadd.f32 %v6155, %v6289
        %v6291 = vpop.f32.mrb[0].mxu0
        %v6292 = vadd.f32 %v6156, %v6291
        %6293 = vmatprep.mubr.bf16.mxu0 0
        %6294 = vmatmul.mubr.bf16.gmra.mrb[0].mxu0 %v6122
        %v6295 = vpop.f32.mrb[0].mxu0
        %v6296 = vadd.f32 %v6157, %v6295
        %v6297 = vpop.f32.mrb[0].mxu0
        %v6298 = vadd.f32 %v6158, %v6297
        %v6299 = vpop.f32.mrb[0].mxu0
        %v6300 = vadd.f32 %v6159, %v6299
        %v6301 = vpop.f32.mrb[0].mxu0
        %v6302 = vadd.f32 %v6160, %v6301
        %6303 = vdwg.mxu0
        %v6304 = vmul.f32 %v6276, 0.5
        %v6305 = vmul.f32 %v6278, 0.5
        %v6306 = vmul.f32 %v6280, 0.5
        %v6307 = vmul.f32 %v6282, 0.5
        %v6308 = vmul.f32 %v6286, 0.5
        %v6309 = vmul.f32 %v6288, 0.5
        %v6310 = vmul.f32 %v6290, 0.5
        %v6311 = vmul.f32 %v6292, 0.5
        %v6312 = vmul.f32 %v6296, 0.5
        %v6313 = vmul.f32 %v6298, 0.5
        %v6314 = vmul.f32 %v6300, 0.5
        %v6315 = vmul.f32 %v6302, 0.5
        %v6316 = vmul.f32 %v6276, 0.044715
        %v6317 = vmul.f32 %v6278, 0.044715
        %v6318 = vmul.f32 %v6280, 0.044715
        %v6319 = vmul.f32 %v6282, 0.044715
        %v6320 = vmul.f32 %v6286, 0.044715
        %v6321 = vmul.f32 %v6288, 0.044715
        %v6322 = vmul.f32 %v6290, 0.044715
        %v6323 = vmul.f32 %v6292, 0.044715
        %v6324 = vmul.f32 %v6296, 0.044715
        %v6325 = vmul.f32 %v6298, 0.044715
        %v6326 = vmul.f32 %v6300, 0.044715
        %v6327 = vmul.f32 %v6302, 0.044715
        %v6328 = vmul.f32 %v6316, %v6276
        %v6329 = vmul.f32 %v6317, %v6278
        %v6330 = vmul.f32 %v6318, %v6280
        %v6331 = vmul.f32 %v6319, %v6282
        %v6332 = vmul.f32 %v6320, %v6286
        %v6333 = vmul.f32 %v6321, %v6288
        %v6334 = vmul.f32 %v6322, %v6290
        %v6335 = vmul.f32 %v6323, %v6292
        %v6336 = vmul.f32 %v6324, %v6296
        %v6337 = vmul.f32 %v6325, %v6298
        %v6338 = vmul.f32 %v6326, %v6300
        %v6339 = vmul.f32 %v6327, %v6302
        %v6340 = vmul.f32 %v6328, %v6276
        %v6341 = vmul.f32 %v6329, %v6278
        %v6342 = vmul.f32 %v6330, %v6280
        %v6343 = vmul.f32 %v6331, %v6282
        %v6344 = vmul.f32 %v6332, %v6286
        %v6345 = vmul.f32 %v6333, %v6288
        %v6346 = vmul.f32 %v6334, %v6290
        %v6347 = vmul.f32 %v6335, %v6292
        %v6348 = vmul.f32 %v6336, %v6296
        %v6349 = vmul.f32 %v6337, %v6298
        %v6350 = vmul.f32 %v6338, %v6300
        %v6351 = vmul.f32 %v6339, %v6302
        %v6352 = vadd.f32 %v6276, %v6340
        %v6353 = vadd.f32 %v6278, %v6341
        %v6354 = vadd.f32 %v6280, %v6342
        %v6355 = vadd.f32 %v6282, %v6343
        %v6356 = vadd.f32 %v6286, %v6344
        %v6357 = vadd.f32 %v6288, %v6345
        %v6358 = vadd.f32 %v6290, %v6346
        %v6359 = vadd.f32 %v6292, %v6347
        %v6360 = vadd.f32 %v6296, %v6348
        %v6361 = vadd.f32 %v6298, %v6349
        %v6362 = vadd.f32 %v6300, %v6350
        %v6363 = vadd.f32 %v6302, %v6351
        %v6364 = vmul.f32 %v6352, 0.7978846
        %v6365 = vmul.f32 %v6353, 0.7978846
        %v6366 = vmul.f32 %v6354, 0.7978846
        %v6367 = vmul.f32 %v6355, 0.7978846
        %v6368 = vmul.f32 %v6356, 0.7978846
        %v6369 = vmul.f32 %v6357, 0.7978846
        %v6370 = vmul.f32 %v6358, 0.7978846
        %v6371 = vmul.f32 %v6359, 0.7978846
        %v6372 = vmul.f32 %v6360, 0.7978846
        %v6373 = vmul.f32 %v6361, 0.7978846
        %v6374 = vmul.f32 %v6362, 0.7978846
        %v6375 = vmul.f32 %v6363, 0.7978846
        %v6376 = vtanh.pop %v6364
        %v6377 = vtanh.pop %v6365
        %v6378 = vtanh.pop %v6366
        %v6379 = vtanh.pop %v6367
        %v6380 = vtanh.pop %v6368
        %v6381 = vtanh.pop %v6369
        %v6382 = vtanh.pop %v6370
        %v6383 = vtanh.pop %v6371
        %v6384 = vtanh.pop %v6372
        %v6385 = vtanh.pop %v6373
        %v6386 = vtanh.pop %v6374
        %v6387 = vtanh.pop %v6375
        %v6388 = vadd.f32 %v6376, 1.0
        %v6389 = vadd.f32 %v6377, 1.0
        %v6390 = vadd.f32 %v6378, 1.0
        %v6391 = vadd.f32 %v6379, 1.0
        %v6392 = vadd.f32 %v6380, 1.0
        %v6393 = vadd.f32 %v6381, 1.0
        %v6394 = vadd.f32 %v6382, 1.0
        %v6395 = vadd.f32 %v6383, 1.0
        %v6396 = vadd.f32 %v6384, 1.0
        %v6397 = vadd.f32 %v6385, 1.0
        %v6398 = vadd.f32 %v6386, 1.0
        %v6399 = vadd.f32 %v6387, 1.0
        %v6400 = vmul.f32 %v6304, %v6388
        %v6401 = vmul.f32 %v6305, %v6389
        %v6402 = vmul.f32 %v6306, %v6390
        %v6403 = vmul.f32 %v6307, %v6391
        %v6404 = vmul.f32 %v6308, %v6392
        %v6405 = vmul.f32 %v6309, %v6393
        %v6406 = vmul.f32 %v6310, %v6394
        %v6407 = vmul.f32 %v6311, %v6395
        %v6408 = vmul.f32 %v6312, %v6396
        %v6409 = vmul.f32 %v6313, %v6397
        %v6410 = vmul.f32 %v6314, %v6398
        %v6411 = vmul.f32 %v6315, %v6399
        %v6412 = vsel %vm1470, %v6400, 0.0
        %v6413 = vsel %vm1470, %v6401, 0.0
        %v6414 = vsel %vm1471, %v6402, 0.0
        %v6415 = vsel %vm1471, %v6403, 0.0
        %v6416 = vsel %vm1472, %v6404, 0.0
        %v6417 = vsel %vm1472, %v6405, 0.0
        %v6418 = vsel %vm1473, %v6406, 0.0
        %v6419 = vsel %vm1473, %v6407, 0.0
        %v6420 = vsel %vm1474, %v6408, 0.0
        %v6421 = vsel %vm1474, %v6409, 0.0
        %v6422 = vsel %vm1475, %v6410, 0.0
        %v6423 = vsel %vm1475, %v6411, 0.0
        %v6424 = vsel %vm1470, 0.0, %v6400
        %v6425 = vsel %vm1470, 0.0, %v6401
        %v6426 = vsel %vm1471, 0.0, %v6402
        %v6427 = vsel %vm1471, 0.0, %v6403
        %v6428 = vsel %vm1472, 0.0, %v6404
        %v6429 = vsel %vm1472, 0.0, %v6405
        %v6430 = vsel %vm1473, 0.0, %v6406
        %v6431 = vsel %vm1473, 0.0, %v6407
        %v6432 = vsel %vm1474, 0.0, %v6408
        %v6433 = vsel %vm1474, 0.0, %v6409
        %v6434 = vsel %vm1475, 0.0, %v6410
        %v6435 = vsel %vm1475, 0.0, %v6411
        %s6436 = scalar_lea.vmem %s11, 256
        %v6437 = vld [vmem:[%s6436] sm:$0xf]
        %v6438 = vld [vmem:[%s6436 + $0x4] sm:$0xf]
        %v6439 = vld [vmem:[%s6436 + $0x8] sm:$0xf]
        %v6440 = vld [vmem:[%s6436 + $0xc] sm:$0xf]
        %v6441 = vld [vmem:[%s6436 + $0x10] sm:$0xf]
        %v6442 = vld [vmem:[%s6436 + $0x14] sm:$0xf]
        %v6443 = vld [vmem:[%s6436 + $0x18] sm:$0xf]
        %v6444 = vld [vmem:[%s6436 + $0x1c] sm:$0xf]
        %v6445 = vld [vmem:[%s6436 + $0x20] sm:$0xf]
        %v6446 = vld [vmem:[%s6436 + $0x24] sm:$0xf]
        %v6447 = vld [vmem:[%s6436 + $0x28] sm:$0xf]
        %v6448 = vld [vmem:[%s6436 + $0x2c] sm:$0xf]
        %v6449 = vld [vmem:[%s6436 + $0x30] sm:$0xf]
        %v6450 = vld [vmem:[%s6436 + $0x34] sm:$0xf]
        %v6451 = vld [vmem:[%s6436 + $0x38] sm:$0xf]
        %v6452 = vld [vmem:[%s6436 + $0x3c] sm:$0xf]
        %v6453 = vld [vmem:[%s6436 + $0x40] sm:$0xf]
        %v6454 = vld [vmem:[%s6436 + $0x44] sm:$0xf]
        %v6455 = vld [vmem:[%s6436 + $0x48] sm:$0xf]
        %v6456 = vld [vmem:[%s6436 + $0x4c] sm:$0xf]
        %v6457 = vld [vmem:[%s6436 + $0x50] sm:$0xf]
        %v6458 = vld [vmem:[%s6436 + $0x54] sm:$0xf]
        %v6459 = vld [vmem:[%s6436 + $0x58] sm:$0xf]
        %v6460 = vld [vmem:[%s6436 + $0x5c] sm:$0xf]
        %v6461 = vld [vmem:[%s6436 + $0x60] sm:$0xf]
        %v6462 = vld [vmem:[%s6436 + $0x64] sm:$0xf]
        %v6463 = vld [vmem:[%s6436 + $0x68] sm:$0xf]
        %v6464 = vld [vmem:[%s6436 + $0x6c] sm:$0xf]
        %v6465 = vld [vmem:[%s6436 + $0x70] sm:$0xf]
        %v6466 = vld [vmem:[%s6436 + $0x74] sm:$0xf]
        %v6467 = vld [vmem:[%s6436 + $0x78] sm:$0xf]
        %v6468 = vld [vmem:[%s6436 + $0x7c] sm:$0xf]
        %v6469 = vld [vmem:[%s6436 + $0x80] sm:$0xf]
        %v6470 = vld [vmem:[%s6436 + $0x84] sm:$0xf]
        %v6471 = vld [vmem:[%s6436 + $0x88] sm:$0xf]
        %v6472 = vld [vmem:[%s6436 + $0x8c] sm:$0xf]
        %v6473 = vld [vmem:[%s6436 + $0x90] sm:$0xf]
        %v6474 = vld [vmem:[%s6436 + $0x94] sm:$0xf]
        %v6475 = vld [vmem:[%s6436 + $0x98] sm:$0xf]
        %v6476 = vld [vmem:[%s6436 + $0x9c] sm:$0xf]
        %v6477 = vld [vmem:[%s6436 + $0xa0] sm:$0xf]
        %v6478 = vld [vmem:[%s6436 + $0xa4] sm:$0xf]
        %v6479 = vld [vmem:[%s6436 + $0xa8] sm:$0xf]
        %v6480 = vld [vmem:[%s6436 + $0xac] sm:$0xf]
        %v6481 = vld [vmem:[%s6436 + $0xb0] sm:$0xf]
        %v6482 = vld [vmem:[%s6436 + $0xb4] sm:$0xf]
        %v6483 = vld [vmem:[%s6436 + $0xb8] sm:$0xf]
        %v6484 = vld [vmem:[%s6436 + $0xbc] sm:$0xf]
        %v6485 = vld [vmem:[%s6436 + $0xc0] sm:$0xf]
        %v6486 = vld [vmem:[%s6436 + $0xc4] sm:$0xf]
        %v6487 = vld [vmem:[%s6436 + $0xc8] sm:$0xf]
        %v6488 = vld [vmem:[%s6436 + $0xcc] sm:$0xf]
        %v6489 = vld [vmem:[%s6436 + $0xd0] sm:$0xf]
        %v6490 = vld [vmem:[%s6436 + $0xd4] sm:$0xf]
        %v6491 = vld [vmem:[%s6436 + $0xd8] sm:$0xf]
        %v6492 = vld [vmem:[%s6436 + $0xdc] sm:$0xf]
        %v6493 = vld [vmem:[%s6436 + $0xe0] sm:$0xf]
        %v6494 = vld [vmem:[%s6436 + $0xe4] sm:$0xf]
        %v6495 = vld [vmem:[%s6436 + $0xe8] sm:$0xf]
        %v6496 = vld [vmem:[%s6436 + $0xec] sm:$0xf]
        %v6497 = vld [vmem:[%s6436 + $0xf0] sm:$0xf]
        %v6498 = vld [vmem:[%s6436 + $0xf4] sm:$0xf]
        %v6499 = vld [vmem:[%s6436 + $0xf8] sm:$0xf]
        %v6500 = vld [vmem:[%s6436 + $0xfc] sm:$0xf]
        %v6501 = vpack.c.bf16 %v6414, %v6412
        %v6502 = vpack.c.bf16 %v6415, %v6413
        %v6503 = vpack.c.bf16 %v6426, %v6424
        %v6504 = vpack.c.bf16 %v6427, %v6425
        %v6505 = vpack.c.bf16 %v6418, %v6416
        %v6506 = vpack.c.bf16 %v6419, %v6417
        %v6507 = vpack.c.bf16 %v6430, %v6428
        %v6508 = vpack.c.bf16 %v6431, %v6429
        %v6509 = vpack.c.bf16 %v6422, %v6420
        %v6510 = vpack.c.bf16 %v6423, %v6421
        %v6511 = vpack.c.bf16 %v6434, %v6432
        %v6512 = vpack.c.bf16 %v6435, %v6433
        %v6513 = vld [vmem:[%s4024 + $0x16] sm:$0x1]
        %v6514 = vld [vmem:[%s4024 + $0x17] sm:$0x1]
        %v6515 = vlaneseq
        %v6516 = vshrl.u32 %v6515, 7
        %v6517 = vsub.s32 0, %v6516
        %v6518 = vrot.slane %v6513, %v6517
        %v6519 = vlaneseq
        %v6520 = vshrl.u32 %v6519, 7
        %v6521 = vsub.s32 0, %v6520
        %v6522 = vrot.slane %v6514, %v6521
        %v6523 = vsel %vm1470, %v6518, %v6522
        %v6588 = vunpack.c.l.b16 %v6437
        %v6589 = vunpack.c.l.b16 %v6438
        %v6590 = vunpack.c.l.b16 %v6439
        %v6591 = vunpack.c.l.b16 %v6440
        %v6592 = vunpack.c.l.b16 %v6441
        %v6593 = vunpack.c.l.b16 %v6442
        %v6594 = vunpack.c.l.b16 %v6443
        %v6595 = vunpack.c.l.b16 %v6444
        %v6596 = vunpack.c.l.b16 %v6445
        %v6597 = vunpack.c.l.b16 %v6446
        %v6598 = vunpack.c.l.b16 %v6447
        %v6599 = vunpack.c.l.b16 %v6448
        %v6600 = vunpack.c.l.b16 %v6449
        %v6601 = vunpack.c.l.b16 %v6450
        %v6602 = vunpack.c.l.b16 %v6451
        %v6603 = vunpack.c.l.b16 %v6452
        %v6604 = vunpack.c.l.b16 %v6453
        %v6605 = vunpack.c.l.b16 %v6454
        %v6606 = vunpack.c.l.b16 %v6455
        %v6607 = vunpack.c.l.b16 %v6456
        %v6608 = vunpack.c.l.b16 %v6457
        %v6609 = vunpack.c.l.b16 %v6458
        %v6610 = vunpack.c.l.b16 %v6459
        %v6611 = vunpack.c.l.b16 %v6460
        %v6612 = vunpack.c.l.b16 %v6461
        %v6613 = vunpack.c.l.b16 %v6462
        %v6614 = vunpack.c.l.b16 %v6463
        %v6615 = vunpack.c.l.b16 %v6464
        %v6616 = vunpack.c.l.b16 %v6465
        %v6617 = vunpack.c.l.b16 %v6466
        %v6618 = vunpack.c.l.b16 %v6467
        %v6619 = vunpack.c.l.b16 %v6468
        %v6620 = vunpack.c.l.b16 %v6469
        %v6621 = vunpack.c.l.b16 %v6470
        %v6622 = vunpack.c.l.b16 %v6471
        %v6623 = vunpack.c.l.b16 %v6472
        %v6624 = vunpack.c.l.b16 %v6473
        %v6625 = vunpack.c.l.b16 %v6474
        %v6626 = vunpack.c.l.b16 %v6475
        %v6627 = vunpack.c.l.b16 %v6476
        %v6628 = vunpack.c.l.b16 %v6477
        %v6629 = vunpack.c.l.b16 %v6478
        %v6630 = vunpack.c.l.b16 %v6479
        %v6631 = vunpack.c.l.b16 %v6480
        %v6632 = vunpack.c.l.b16 %v6481
        %v6633 = vunpack.c.l.b16 %v6482
        %v6634 = vunpack.c.l.b16 %v6483
        %v6635 = vunpack.c.l.b16 %v6484
        %v6636 = vunpack.c.l.b16 %v6485
        %v6637 = vunpack.c.l.b16 %v6486
        %v6638 = vunpack.c.l.b16 %v6487
        %v6639 = vunpack.c.l.b16 %v6488
        %v6640 = vunpack.c.l.b16 %v6489
        %v6641 = vunpack.c.l.b16 %v6490
        %v6642 = vunpack.c.l.b16 %v6491
        %v6643 = vunpack.c.l.b16 %v6492
        %v6644 = vunpack.c.l.b16 %v6493
        %v6645 = vunpack.c.l.b16 %v6494
        %v6646 = vunpack.c.l.b16 %v6495
        %v6647 = vunpack.c.l.b16 %v6496
        %v6648 = vunpack.c.l.b16 %v6497
        %v6649 = vunpack.c.l.b16 %v6498
        %v6650 = vunpack.c.l.b16 %v6499
        %v6651 = vunpack.c.l.b16 %v6500
        %v6652 = vpack.c.b16 %v6589, %v6588
        %v6653 = vpack.c.b16 %v6591, %v6590
        %v6654 = vpack.c.b16 %v6593, %v6592
        %v6655 = vpack.c.b16 %v6595, %v6594
        %v6656 = vpack.c.b16 %v6597, %v6596
        %v6657 = vpack.c.b16 %v6599, %v6598
        %v6658 = vpack.c.b16 %v6601, %v6600
        %v6659 = vpack.c.b16 %v6603, %v6602
        %v6660 = vpack.c.b16 %v6605, %v6604
        %v6661 = vpack.c.b16 %v6607, %v6606
        %v6662 = vpack.c.b16 %v6609, %v6608
        %v6663 = vpack.c.b16 %v6611, %v6610
        %v6664 = vpack.c.b16 %v6613, %v6612
        %v6665 = vpack.c.b16 %v6615, %v6614
        %v6666 = vpack.c.b16 %v6617, %v6616
        %v6667 = vpack.c.b16 %v6619, %v6618
        %v6668 = vpack.c.b16 %v6621, %v6620
        %v6669 = vpack.c.b16 %v6623, %v6622
        %v6670 = vpack.c.b16 %v6625, %v6624
        %v6671 = vpack.c.b16 %v6627, %v6626
        %v6672 = vpack.c.b16 %v6629, %v6628
        %v6673 = vpack.c.b16 %v6631, %v6630
        %v6674 = vpack.c.b16 %v6633, %v6632
        %v6675 = vpack.c.b16 %v6635, %v6634
        %v6676 = vpack.c.b16 %v6637, %v6636
        %v6677 = vpack.c.b16 %v6639, %v6638
        %v6678 = vpack.c.b16 %v6641, %v6640
        %v6679 = vpack.c.b16 %v6643, %v6642
        %v6680 = vpack.c.b16 %v6645, %v6644
        %v6681 = vpack.c.b16 %v6647, %v6646
        %v6682 = vpack.c.b16 %v6649, %v6648
        %v6683 = vpack.c.b16 %v6651, %v6650
        %6716 = vmatprep.subr.bf16.mxu0 0
        %6717 = vmatpush1.bf16.msra.mxu0 %v6652
        %6718 = vmatprep.subr.bf16.mxu0 0
        %6719 = vmatpush1.bf16.msra.mxu0 %v6653
        %6720 = vmatprep.subr.bf16.mxu0 0
        %6721 = vmatpush1.bf16.msra.mxu0 %v6654
        %6722 = vmatprep.subr.bf16.mxu0 0
        %6723 = vmatpush1.bf16.msra.mxu0 %v6655
        %6724 = vmatprep.subr.bf16.mxu0 0
        %6725 = vmatpush1.bf16.msra.mxu0 %v6656
        %6726 = vmatprep.subr.bf16.mxu0 0
        %6727 = vmatpush1.bf16.msra.mxu0 %v6657
        %6728 = vmatprep.subr.bf16.mxu0 0
        %6729 = vmatpush1.bf16.msra.mxu0 %v6658
        %6730 = vmatprep.subr.bf16.mxu0 0
        %6731 = vmatpush1.bf16.msra.mxu0 %v6659
        %6732 = vmatprep.subr.bf16.mxu0 0
        %6733 = vmatpush1.bf16.msra.mxu0 %v6660
        %6734 = vmatprep.subr.bf16.mxu0 0
        %6735 = vmatpush1.bf16.msra.mxu0 %v6661
        %6736 = vmatprep.subr.bf16.mxu0 0
        %6737 = vmatpush1.bf16.msra.mxu0 %v6662
        %6738 = vmatprep.subr.bf16.mxu0 0
        %6739 = vmatpush1.bf16.msra.mxu0 %v6663
        %6740 = vmatprep.subr.bf16.mxu0 0
        %6741 = vmatpush1.bf16.msra.mxu0 %v6664
        %6742 = vmatprep.subr.bf16.mxu0 0
        %6743 = vmatpush1.bf16.msra.mxu0 %v6665
        %6744 = vmatprep.subr.bf16.mxu0 0
        %6745 = vmatpush1.bf16.msra.mxu0 %v6666
        %6746 = vmatprep.subr.bf16.mxu0 0
        %6747 = vmatpush1.bf16.msra.mxu0 %v6667
        %6748 = vmatprep.mubr.bf16.mxu0 %v6502
        %6749 = vmatmul.mubr.bf16.gmra.mrb[0].mxu0 %v6501
        %v6750 = vpop.f32.mrb[0].mxu0
        %v6751 = vadd.f32 %v6523, %v6750
        %v6752 = vpop.f32.mrb[0].mxu0
        %v6753 = vpop.f32.mrb[0].mxu0
        %v6754 = vpop.f32.mrb[0].mxu0
        %6755 = vmatprep.mubr.bf16.mxu0 %v6506
        %6756 = vmatmul.mubr.bf16.gmra.mrb[0].mxu0 %v6505
        %v6757 = vpop.f32.mrb[0].mxu0
        %v6758 = vpop.f32.mrb[0].mxu0
        %v6759 = vpop.f32.mrb[0].mxu0
        %v6760 = vpop.f32.mrb[0].mxu0
        %6761 = vmatprep.mubr.bf16.mxu0 %v6510
        %6762 = vmatmul.mubr.bf16.gmra.mrb[0].mxu0 %v6509
        %v6763 = vpop.f32.mrb[0].mxu0
        %v6764 = vpop.f32.mrb[0].mxu0
        %v6765 = vpop.f32.mrb[0].mxu0
        %v6766 = vpop.f32.mrb[0].mxu0
        %6767 = vdwg.mxu0
        %6768 = vmatprep.subr.bf16.mxu0 0
        %6769 = vmatpush1.bf16.msra.mxu0 %v6668
        %6770 = vmatprep.subr.bf16.mxu0 0
        %6771 = vmatpush1.bf16.msra.mxu0 %v6669
        %6772 = vmatprep.subr.bf16.mxu0 0
        %6773 = vmatpush1.bf16.msra.mxu0 %v6670
        %6774 = vmatprep.subr.bf16.mxu0 0
        %6775 = vmatpush1.bf16.msra.mxu0 %v6671
        %6776 = vmatprep.subr.bf16.mxu0 0
        %6777 = vmatpush1.bf16.msra.mxu0 %v6672
        %6778 = vmatprep.subr.bf16.mxu0 0
        %6779 = vmatpush1.bf16.msra.mxu0 %v6673
        %6780 = vmatprep.subr.bf16.mxu0 0
        %6781 = vmatpush1.bf16.msra.mxu0 %v6674
        %6782 = vmatprep.subr.bf16.mxu0 0
        %6783 = vmatpush1.bf16.msra.mxu0 %v6675
        %6784 = vmatprep.subr.bf16.mxu0 0
        %6785 = vmatpush1.bf16.msra.mxu0 %v6676
        %6786 = vmatprep.subr.bf16.mxu0 0
        %6787 = vmatpush1.bf16.msra.mxu0 %v6677
        %6788 = vmatprep.subr.bf16.mxu0 0
        %6789 = vmatpush1.bf16.msra.mxu0 %v6678
        %6790 = vmatprep.subr.bf16.mxu0 0
        %6791 = vmatpush1.bf16.msra.mxu0 %v6679
        %6792 = vmatprep.subr.bf16.mxu0 0
        %6793 = vmatpush1.bf16.msra.mxu0 %v6680
        %6794 = vmatprep.subr.bf16.mxu0 0
        %6795 = vmatpush1.bf16.msra.mxu0 %v6681
        %6796 = vmatprep.subr.bf16.mxu0 0
        %6797 = vmatpush1.bf16.msra.mxu0 %v6682
        %6798 = vmatprep.subr.bf16.mxu0 0
        %6799 = vmatpush1.bf16.msra.mxu0 %v6683
        %6800 = vmatprep.mubr.bf16.mxu0 %v6504
        %6801 = vmatmul.mubr.bf16.gmra.mrb[0].mxu0 %v6503
        %v6802 = vpop.f32.mrb[0].mxu0
        %v6803 = vadd.f32 %v6751, %v6802
        %v6804 = vpop.f32.mrb[0].mxu0
        %v6805 = vpop.f32.mrb[0].mxu0
        %v6806 = vpop.f32.mrb[0].mxu0
        %6807 = vmatprep.mubr.bf16.mxu0 %v6508
        %6808 = vmatmul.mubr.bf16.gmra.mrb[0].mxu0 %v6507
        %v6809 = vpop.f32.mrb[0].mxu0
        %v6810 = vpop.f32.mrb[0].mxu0
        %v6811 = vpop.f32.mrb[0].mxu0
        %v6812 = vpop.f32.mrb[0].mxu0
        %6813 = vmatprep.mubr.bf16.mxu0 %v6512
        %6814 = vmatmul.mubr.bf16.gmra.mrb[0].mxu0 %v6511
        %v6815 = vpop.f32.mrb[0].mxu0
        %v6816 = vpop.f32.mrb[0].mxu0
        %v6817 = vpop.f32.mrb[0].mxu0
        %v6818 = vpop.f32.mrb[0].mxu0
        %6819 = vdwg.mxu0
        %6821 = vrot.lane.b32.xlu0 %v6803, 64
        %v6822 = vpop.permute.xlu0 %6821
        %v6824 = vmul.f32 %v6014, %v6822
        %6826 = vrot.lane.b32.xlu0 %v6824, 64
        %v6827 = vpop.permute.xlu0 %6826
        %v6829 = vadd.f32 %v5922, %v6827
        %v6830 = vld [vmem:[%s7 + $0x8] sm:$0xf]
        %v6831 = vld [vmem:[%s7 + $0x18] sm:$0xf]
        %v6832 = vld [vmem:[%s7 + $0x28] sm:$0xf]
        %v6833 = vld [vmem:[%s7 + $0x38] sm:$0xf]
        %v6834 = vld [vmem:[%s7 + $0x48] sm:$0xf]
        %v6835 = vld [vmem:[%s7 + $0x58] sm:$0xf]
        %v6836 = vld [vmem:[%s7 + $0x68] sm:$0xf]
        %v6837 = vld [vmem:[%s7 + $0x78] sm:$0xf]
        %v6838 = vld [vmem:[%s8 + $0x6] sm:$0x1]
        %v6847 = vunpack.c.l.b16 %v6830
        %v6848 = vunpack.c.l.b16 %v6831
        %v6849 = vunpack.c.l.b16 %v6832
        %v6850 = vunpack.c.l.b16 %v6833
        %v6851 = vunpack.c.l.b16 %v6834
        %v6852 = vunpack.c.l.b16 %v6835
        %v6853 = vunpack.c.l.b16 %v6836
        %v6854 = vunpack.c.l.b16 %v6837
        %v6855 = vpack.c.b16 %v6848, %v6847
        %v6856 = vpack.c.b16 %v6850, %v6849
        %v6857 = vpack.c.b16 %v6852, %v6851
        %v6858 = vpack.c.b16 %v6854, %v6853
        %6863 = vmatprep.subr.bf16.mxu0 0
        %6864 = vmatpush1.bf16.msra.mxu0 %v6855
        %6865 = vmatprep.subr.bf16.mxu0 0
        %6866 = vmatpush1.bf16.msra.mxu0 %v6856
        %6867 = vmatprep.subr.bf16.mxu0 0
        %6868 = vmatpush1.bf16.msra.mxu0 %v6857
        %6869 = vmatprep.subr.bf16.mxu0 0
        %6870 = vmatpush1.bf16.msra.mxu0 %v6858
        %6871 = vmatprep.subr.bf16.mxu0 0
        %6872 = vmatpush1.bf16.msra.mxu0 0
        %6873 = vmatprep.subr.bf16.mxu0 0
        %6874 = vmatpush1.bf16.msra.mxu0 0
        %6875 = vmatprep.subr.bf16.mxu0 0
        %6876 = vmatpush1.bf16.msra.mxu0 0
        %6877 = vmatprep.subr.bf16.mxu0 0
        %6878 = vmatpush1.bf16.msra.mxu0 0
        %6879 = vmatprep.subr.bf16.mxu0 0
        %6880 = vmatpush1.bf16.msra.mxu0 0
        %6881 = vmatprep.subr.bf16.mxu0 0
        %6882 = vmatpush1.bf16.msra.mxu0 0
        %6883 = vmatprep.subr.bf16.mxu0 0
        %6884 = vmatpush1.bf16.msra.mxu0 0
        %6885 = vmatprep.subr.bf16.mxu0 0
        %6886 = vmatpush1.bf16.msra.mxu0 0
        %6887 = vmatprep.subr.bf16.mxu0 0
        %6888 = vmatpush1.bf16.msra.mxu0 0
        %6889 = vmatprep.subr.bf16.mxu0 0
        %6890 = vmatpush1.bf16.msra.mxu0 0
        %6891 = vmatprep.subr.bf16.mxu0 0
        %6892 = vmatpush1.bf16.msra.mxu0 0
        %6893 = vmatprep.subr.bf16.mxu0 0
        %6894 = vmatpush1.bf16.msra.mxu0 0
        %6895 = vmatprep.mubr.bf16.mxu0 0
        %6896 = vmatmul.mubr.bf16.gmra.mrb[0].mxu0 %v1259
        %v6897 = vpop.f32.mrb[0].mxu0
        %v6898 = vadd.f32 %v6838, %v6897
        %v6899 = vpop.f32.mrb[0].mxu0
        %v6900 = vpop.f32.mrb[0].mxu0
        %v6901 = vpop.f32.mrb[0].mxu0
        %6902 = vdwg.mxu0
        %v6903 = vsel %vm880, %v6829, 0.0
        %6904 = vadd.xlane.f32.xlu0 %v6903
        %v6905 = vpop.xlane.xlu0 %6904
        %v6906 = vmul.f32 %v6905, %v1403
        %v6907 = vsub.f32 %v6829, %v6906
        %v6908 = vmul.f32 %v6907, %v6907
        %v6909 = vsel %vm880, %v6908, 0.0
        %6910 = vadd.xlane.f32.xlu0 %v6909
        %v6911 = vpop.xlane.xlu0 %6910
        %v6912 = vmul.f32 %v6911, %v1403
        %v6913 = vadd.f32 %v6912, 1e-06
        %v6914 = vrsqrt.pop %v6913
        %v6915 = vmul.f32 %v6907, %v6914
        %v6916 = vadd.f32 %v6898, 1.0
        %v6917 = vlaneseq
        %v6918 = vshrl.u32 %v6917, 7
        %v6919 = vsub.s32 0, %v6918
        %v6920 = vrot.slane %v6916, %v6919
        %6922 = vrot.lane.b32.xlu0 %v6920, 64
        %v6923 = vpop.permute.xlu0 %6922
        %v6925 = vmul.f32 %v6915, %v6923
        %v6926 = vlaneseq
        %v6927 = vshrl.u32 %v6926, 7
        %v6928 = vsub.s32 0, %v6927
        %v6929 = vrot.slane %v6898, %v6928
        %v6930 = vadd.f32 %v6925, %v6929
        %v6931 = vld [vmem:[%s7 + $0xc] sm:$0xf]
        %v6932 = vld [vmem:[%s7 + $0x1c] sm:$0xf]
        %v6933 = vld [vmem:[%s7 + $0x2c] sm:$0xf]
        %v6934 = vld [vmem:[%s7 + $0x3c] sm:$0xf]
        %v6935 = vld [vmem:[%s7 + $0x4c] sm:$0xf]
        %v6936 = vld [vmem:[%s7 + $0x5c] sm:$0xf]
        %v6937 = vld [vmem:[%s7 + $0x6c] sm:$0xf]
        %v6938 = vld [vmem:[%s7 + $0x7c] sm:$0xf]
        %v6939 = vpack.c.bf16 %v6930, %v6930
        %v6940 = vld [vmem:[%s8 + $0x7] sm:$0x1]
        %v6942 = vlaneseq
        %v6943 = vshrl.u32 %v6942, 7
        %v6944 = vsub.s32 0, %v6943
        %v6945 = vrot.slane %v6940, %v6944
        %v6955 = vunpack.c.l.b16 %v6931
        %v6956 = vunpack.c.l.b16 %v6932
        %v6957 = vunpack.c.l.b16 %v6933
        %v6958 = vunpack.c.l.b16 %v6934
        %v6959 = vunpack.c.l.b16 %v6935
        %v6960 = vunpack.c.l.b16 %v6936
        %v6961 = vunpack.c.l.b16 %v6937
        %v6962 = vunpack.c.l.b16 %v6938
        %v6963 = vpack.c.b16 %v6956, %v6955
        %v6964 = vpack.c.b16 %v6958, %v6957
        %v6965 = vpack.c.b16 %v6960, %v6959
        %v6966 = vpack.c.b16 %v6962, %v6961
        %v6972 = vsel %vm880, %v6939, 0
        %6974 = vmatprep.subr.bf16.mxu0 0
        %6975 = vmatpush1.bf16.msra.mxu0 %v6963
        %6976 = vmatprep.subr.bf16.mxu0 0
        %6977 = vmatpush1.bf16.msra.mxu0 %v6964
        %6978 = vmatprep.subr.bf16.mxu0 0
        %6979 = vmatpush1.bf16.msra.mxu0 %v6965
        %6980 = vmatprep.subr.bf16.mxu0 0
        %6981 = vmatpush1.bf16.msra.mxu0 %v6966
        %6982 = vmatprep.subr.bf16.mxu0 0
        %6983 = vmatpush1.bf16.msra.mxu0 0
        %6984 = vmatprep.subr.bf16.mxu0 0
        %6985 = vmatpush1.bf16.msra.mxu0 0
        %6986 = vmatprep.subr.bf16.mxu0 0
        %6987 = vmatpush1.bf16.msra.mxu0 0
        %6988 = vmatprep.subr.bf16.mxu0 0
        %6989 = vmatpush1.bf16.msra.mxu0 0
        %6990 = vmatprep.subr.bf16.mxu0 0
        %6991 = vmatpush1.bf16.msra.mxu0 0
        %6992 = vmatprep.subr.bf16.mxu0 0
        %6993 = vmatpush1.bf16.msra.mxu0 0
        %6994 = vmatprep.subr.bf16.mxu0 0
        %6995 = vmatpush1.bf16.msra.mxu0 0
        %6996 = vmatprep.subr.bf16.mxu0 0
        %6997 = vmatpush1.bf16.msra.mxu0 0
        %6998 = vmatprep.subr.bf16.mxu0 0
        %6999 = vmatpush1.bf16.msra.mxu0 0
        %7000 = vmatprep.subr.bf16.mxu0 0
        %7001 = vmatpush1.bf16.msra.mxu0 0
        %7002 = vmatprep.subr.bf16.mxu0 0
        %7003 = vmatpush1.bf16.msra.mxu0 0
        %7004 = vmatprep.subr.bf16.mxu0 0
        %7005 = vmatpush1.bf16.msra.mxu0 0
        %7006 = vmatprep.mubr.bf16.mxu0 0
        %7007 = vmatmul.mubr.bf16.gmra.mrb[0].mxu0 %v6972
        %v7008 = vpop.f32.mrb[0].mxu0
        %v7009 = vadd.f32 %v6945, %v7008
        %v7010 = vpop.f32.mrb[0].mxu0
        %v7011 = vpop.f32.mrb[0].mxu0
        %v7012 = vpop.f32.mrb[0].mxu0
        %7013 = vdwg.mxu0
        %7014 = vst [vmem:[%s470] sm:$0xff] %v7009
        %s7015 = sand.u32 %s328, 1
        %s7016 = scalar_lea.sflag [#allocation3], %s7015
        %s7017 = sand.u32 %s328, 1
        %s7018 = smul.addr %s7017, 8
        %s7019 = scalar_lea.vmem [#allocation2], %s7018
        // Predicated region
        $region73: #{dit_forward.1} parent=71 // pred_check
          %p7020 = pneg %p338
        $region74: #{dit_forward.1} parent=71 // pred_check_branch
          %7022 = sbr.rel (%p7020) target = $region76
        $region75: #{dit_forward.1} parent=71 // pred_region
          %s7024 = ssub.s32 128, 128
          %7025 = vsyncadd %s7016, %s7024
          %s7026 = smul.addr %s27, 128
          %s7027 = scalar_lea.hbm %s13, %s7026
          %s7029 = sshll.u32 %s7019, 4
          %s7030 = int_to_ptr.vmem [resolvable:$true] %s7029
          %7032 = dma.vmem_to_hbm [thread:$0]  %s7030, 128, %s7027, %s7016
        $region76: #{dit_forward.1} parent=71 // pred_fallthru
          _
      $region72: #{dit_forward.1} parent=5 // pred_fallthru
        _
      %p7033 = scmp.le.s32.totalorder 2, %s22
      // Predicated region
      $region77: #{dit_forward.1} parent=5 // pred_check
        %p7034 = pneg %p7033
      $region78: #{dit_forward.1} parent=5 // pred_check_branch
        %7036 = sbr.rel (%p7034) target = $region80
      $region79: #{dit_forward.1} parent=5 // pred_region
        %s7037 = ssub.s32 %s22, 2
        // Predicated region
        $region81: #{dit_forward.1} parent=79 // pred_check
          %p7038 = pneg %p344
        $region82: #{dit_forward.1} parent=79 // pred_check_branch
          %7040 = sbr.rel (%p7038) target = $region84
        $region83: #{dit_forward.1} parent=79 // pred_region
          %s7041 = sand.u32 %s329, 1
          %s7042 = scalar_lea.sflag [#allocation3], %s7041
          %s7043 = sand.u32 %s329, 1
          %s7044 = smul.addr %s7043, 8
          %s7045 = scalar_lea.vmem [#allocation2], %s7044
          %7046 = dma.done %s7042, 128
        $region84: #{dit_forward.1} parent=79 // pred_fallthru
          _
      $region80: #{dit_forward.1} parent=5 // pred_fallthru
        _
    $region6: #{dit_forward.1} parent=1 // loop_footer
      %s26 = sadd.s32 1, %s22
    $region7: #{dit_forward.1} parent=1 // loop_footer_branch
      %21 = sbr.rel target = $region3
    $region8: #{dit_forward.1} parent=1 // loop_exit
      _
    %7047 = vsyncpa [#allocation3], 1
    %s7048 = scalar_lea.sflag [#allocation3], 1
    %7049 = vsyncpa %s7048, 1

</llo_original>
